<compile_context>
chip_gen: v7x
topology: tpu7x:2x2x1
jax: 0.10.0
libtpu: 0.0.40
codegen_flags: <defaults>
</compile_context>

<pallas_src>
import math

import jax
import jax.numpy as jnp
from jax.experimental import pallas as pl
from jax.experimental.pallas import tpu as pltpu


def _attention_body(x_ref, wqkv_ref, wproj_ref, bo_ref, y_ref, attn_ref, *,
                    num_heads, n_valid, compute_dtype):
    # x_ref:    (1, Np, C)   compute_dtype
    # wqkv_ref: (C, 3C)      compute_dtype (softmax scale folded into q cols)
    # wproj_ref:(C, C)       compute_dtype
    # bo_ref:   (1, C)       f32
    # y_ref:    (1, Np, C)
    # attn_ref: (1, H, Np, Np) or None
    Np = x_ref.shape[1]
    C = x_ref.shape[2]
    H = num_heads
    D = C // H
    cd = compute_dtype

    x = x_ref[0]                                                # (Np, C)

    # One lane-dense (Np, C) @ (C, 3C) MXU matmul, f32 accumulation.
    qkv = jnp.dot(x, wqkv_ref[...],
                  preferred_element_type=jnp.float32)           # (Np, 3C) f32

    # Key-padding mask (static: only built when the sequence was padded).
    kmask = None
    if n_valid < Np:
        kmask = jax.lax.broadcasted_iota(jnp.int32, (Np, Np), 1) < n_valid

    # q @ k^T without materializing a transpose: contract the last dims.
    contract_last = (((1,), (1,)), ((), ()))

    o_cols = []
    for h in range(H):                                          # static unroll
        qh = qkv[:, h * D:(h + 1) * D].astype(cd)               # (Np, D)
        kh = qkv[:, C + h * D:C + (h + 1) * D].astype(cd)       # (Np, D)
        vh = qkv[:, 2 * C + h * D:2 * C + (h + 1) * D].astype(cd)

        s = jax.lax.dot_general(qh, kh, contract_last,
                                preferred_element_type=jnp.float32)  # (Np,Np)
        if kmask is not None:
            s = jnp.where(kmask, s, -1e30)

        # Numerically-stable softmax in f32; exact divide (attn rows sum to 1).
        s = s - jnp.max(s, axis=-1, keepdims=True)
        e = jnp.exp(s)
        a = e / jnp.sum(e, axis=-1, keepdims=True)

        if attn_ref is not None:
            attn_ref[0, h] = a.astype(attn_ref.dtype)

        o_cols.append(jnp.dot(a.astype(cd), vh,
                              preferred_element_type=jnp.float32))   # (Np, D)

    # Merge heads -> lane-dense (Np, C), then one (Np, C) @ (C, C) matmul.
    o = jnp.concatenate(o_cols, axis=-1).astype(cd)
    y = jnp.dot(o, wproj_ref[...], preferred_element_type=jnp.float32)
    y = y + bo_ref[...]                                          # (1,C) bcast
    y_ref[0] = y.astype(y_ref.dtype)


def attention_forward(x, w_qkv, w_proj, b_proj, num_heads, *,
                      qk_scale=None, return_attn=True,
                      compute_dtype=jnp.bfloat16, attn_dtype=None,
                      pad_seq_to=None, vmem_limit_bytes=32 * 1024 * 1024):
    """Forward of the PyTorch `Attention` module (eval mode, dropout p=0).

    x:       (B, N, C)
    w_qkv:   (3C, C)  nn.Linear(dim, 3*dim, bias=False).weight
    w_proj:  (C, C)   nn.Linear(dim, dim).weight
    b_proj:  (C,)     nn.Linear(dim, dim).bias
    compute_dtype: MXU operand dtype (bf16 default on all TPU generations;
        pass jnp.float32 for an exact path).  Accumulation/softmax are f32.
    attn_dtype: dtype of the returned attention map (default: x.dtype; pass
        jnp.bfloat16 to halve the dominant HBM writeback).
    pad_seq_to: pad N up to a multiple of this (e.g. 128) for lane-dense
        output stores; padded keys are masked in-kernel, padding sliced off.
    """
    B, N, C = x.shape
    H = num_heads
    D = C // H
    scale = qk_scale if qk_scale is not None else D ** (-0.5)
    if compute_dtype is None:
        compute_dtype = x.dtype
    if attn_dtype is None:
        attn_dtype = x.dtype
    out_dtype = x.dtype

    # ---- plain-JAX glue (outside the kernel) -------------------------------
    # Lane-dense 2-D weight layouts for y = x @ W.T; fold the softmax scale
    # into the q output columns.
    wqkv_t = w_qkv.T.astype(jnp.float32)                        # (C, 3C)
    col_scale = jnp.concatenate(
        [jnp.full((C,), scale, dtype=jnp.float32),
         jnp.ones((2 * C,), dtype=jnp.float32)])
    wqkv_t = (wqkv_t * col_scale[None, :]).astype(compute_dtype)
    wproj_t = w_proj.T.astype(compute_dtype)                    # (C, C)
    bo = b_proj.reshape(1, C).astype(jnp.float32)               # (1, C)

    # Cast x in the wrapper: halves x's per-step DMA bytes when bf16 and
    # removes an N*C cast from every grid step.
    xk = x.astype(compute_dtype)

    # Optional token padding so the attn / y output slabs are lane-dense.
    Np = N
    if pad_seq_to is not None and N % pad_seq_to != 0:
        Np = ((N + pad_seq_to - 1) // pad_seq_to) * pad_seq_to
        xk = jnp.pad(xk, ((0, 0), (0, Np - N), (0, 0)))

    if return_attn:
        def kernel(x_ref, wq_ref, wp_ref, bo_ref, y_ref, attn_ref):
            _attention_body(x_ref, wq_ref, wp_ref, bo_ref, y_ref, attn_ref,
                            num_heads=H, n_valid=N, compute_dtype=compute_dtype)
        out_shape = (jax.ShapeDtypeStruct((B, Np, C), out_dtype),
                     jax.ShapeDtypeStruct((B, H, Np, Np), attn_dtype))
        out_specs = (pl.BlockSpec((1, Np, C), lambda b: (b, 0, 0)),
                     pl.BlockSpec((1, H, Np, Np), lambda b: (b, 0, 0, 0)))
    else:
        def kernel(x_ref, wq_ref, wp_ref, bo_ref, y_ref):
            _attention_body(x_ref, wq_ref, wp_ref, bo_ref, y_ref, None,
                            num_heads=H, n_valid=N, compute_dtype=compute_dtype)
        out_shape = jax.ShapeDtypeStruct((B, Np, C), out_dtype)
        out_specs = pl.BlockSpec((1, Np, C), lambda b: (b, 0, 0))

    # Advisory cost estimate for XLA's scheduler around the custom call.
    flops = B * (2 * Np * C * 3 * C            # qkv projection
                 + 2 * H * Np * Np * D         # q @ k^T
                 + 2 * H * Np * Np * D         # attn @ v
                 + 2 * Np * C * C)             # output projection
    transcendentals = B * H * Np * Np          # exp
    cd_bytes = jnp.dtype(compute_dtype).itemsize
    bytes_accessed = int(
        B * Np * C * cd_bytes                  # x in
        + C * 3 * C * cd_bytes + C * C * cd_bytes + C * 4     # weights + bias
        + B * Np * C * jnp.dtype(out_dtype).itemsize          # y out
        + (B * H * Np * Np * jnp.dtype(attn_dtype).itemsize
           if return_attn else 0))
    cost = pl.CostEstimate(flops=int(flops),
                           transcendentals=int(transcendentals),
                           bytes_accessed=bytes_accessed)

    # Weights / bias use constant index_maps (grid-invariant), so their blocks
    # are not re-fetched per batch step.
    result = pl.pallas_call(
        kernel,
        out_shape=out_shape,
        grid_spec=pltpu.PrefetchScalarGridSpec(
            num_scalar_prefetch=0,
            grid=(B,),
            in_specs=[
                pl.BlockSpec((1, Np, C), lambda b: (b, 0, 0)),   # x
                pl.BlockSpec((C, 3 * C), lambda b: (0, 0)),      # wqkv^T
                pl.BlockSpec((C, C), lambda b: (0, 0)),          # wproj^T
                pl.BlockSpec((1, C), lambda b: (0, 0)),          # bias
            ],
            out_specs=out_specs,
        ),
        compiler_params=pltpu.CompilerParams(
            dimension_semantics=("parallel",),
            vmem_limit_bytes=vmem_limit_bytes),
        cost_estimate=cost,
    )(xk, wqkv_t, wproj_t, bo)

    if return_attn:
        y, attn = result
        if Np != N:
            y = y[:, :N, :]
            attn = attn[:, :, :N, :N]
        return y, attn
    y = result
    if Np != N:
        y = y[:, :N, :]
    return y


def _reference(x, w_qkv, w_proj, b_proj, num_heads):
    """Pure-JAX reference mirroring the PyTorch forward, for validation."""
    B, N, C = x.shape
    H = num_heads
    D = C // H
    scale = D ** (-0.5)
    qkv = x @ w_qkv.T                                          # (B, N, 3C)
    qkv = qkv.reshape(B, N, 3, H, D).transpose(2, 0, 3, 1, 4)  # (3, B, H, N, D)
    q, k, v = qkv[0], qkv[1], qkv[2]
    attn = (q @ jnp.swapaxes(k, -2, -1)) * scale
    attn = jax.nn.softmax(attn, axis=-1)
    out = (attn @ v).transpose(0, 2, 1, 3).reshape(B, N, C)
    out = out @ w_proj.T + b_proj
    return out, attn


if __name__ == "__main__":
    # Make f32 matmuls exact on TPU (reference AND kernel) so the comparison
    # tolerances below are meaningful.
    jax.config.update("jax_default_matmul_precision", "highest")

    # Small shapes consistent with the module: B=2, N=8 tokens, C=32, 8 heads.
    B, N, C, H = 2, 8, 32, 8

    key = jax.random.PRNGKey(0)
    kx, kqkv, kproj, kb = jax.random.split(key, 4)

    x = jax.random.normal(kx, (B, N, C), dtype=jnp.float32)
    # nn.Linear(dim, 3*dim, bias=False): weight (3C, C)
    w_qkv = jax.random.normal(kqkv, (3 * C, C), dtype=jnp.float32) / math.sqrt(C)
    # nn.Linear(dim, dim): weight (C, C), bias (C,)
    w_proj = jax.random.normal(kproj, (C, C), dtype=jnp.float32) / math.sqrt(C)
    b_proj = jax.random.normal(kb, (C,), dtype=jnp.float32) * 0.01

    y_ref, attn_ref = _reference(x, w_qkv, w_proj, b_proj, num_heads=H)

    # 1) exact f32 path (matches the PyTorch module semantics)
    y, attn = attention_forward(x, w_qkv, w_proj, b_proj, num_heads=H,
                                compute_dtype=jnp.float32)
    jax.block_until_ready((y, attn))
    assert y.shape == (B, N, C) and attn.shape == (B, H, N, N)
    assert jnp.allclose(y, y_ref, atol=1e-3, rtol=1e-3), \
        float(jnp.max(jnp.abs(y - y_ref)))
    assert jnp.allclose(attn, attn_ref, atol=1e-3, rtol=1e-3), \
        float(jnp.max(jnp.abs(attn - attn_ref)))

    # 2) exact f32 path with lane-dense token padding + in-kernel key masking
    y_p, attn_p = attention_forward(x, w_qkv, w_proj, b_proj, num_heads=H,
                                    compute_dtype=jnp.float32, pad_seq_to=128)
    jax.block_until_ready((y_p, attn_p))
    assert y_p.shape == (B, N, C) and attn_p.shape == (B, H, N, N)
    assert jnp.allclose(y_p, y_ref, atol=1e-3, rtol=1e-3)
    assert jnp.allclose(attn_p, attn_ref, atol=1e-3, rtol=1e-3)

    # 3) default bf16 MXU-operand path (f32 accumulation + f32 softmax)
    y_b, attn_b = attention_forward(x, w_qkv, w_proj, b_proj, num_heads=H)
    jax.block_until_ready((y_b, attn_b))
    assert jnp.allclose(y_b, y_ref, atol=1e-1, rtol=1e-1)
    assert jnp.allclose(attn_b, attn_ref, atol=5e-2, rtol=5e-2)

    # 4) y-only path: drops the dominant B*H*N^2 attention-map HBM writeback
    y_only = attention_forward(x, w_qkv, w_proj, b_proj, num_heads=H,
                               compute_dtype=jnp.float32, return_attn=False)
    jax.block_until_ready(y_only)
    assert jnp.allclose(y_only, y_ref, atol=1e-3, rtol=1e-3)

    print("KERNEL_OK")
</pallas_src>

<mosaic_0001>
module attributes {stable_mosaic.version = 11 : i64} {
  func.func @kernel(%arg0: i32, %arg1: memref<1x8x32xf32, #tpu.memory_space<vmem>>, %arg2: memref<32x96xf32, #tpu.memory_space<vmem>>, %arg3: memref<32x32xf32, #tpu.memory_space<vmem>>, %arg4: memref<1x32xf32, #tpu.memory_space<vmem>>, %arg5: memref<1x8x32xf32, #tpu.memory_space<vmem>>, %arg6: memref<1x8x8x8xf32, #tpu.memory_space<vmem>>) attributes {dimension_semantics = [#tpu.dimension_semantics<parallel>], iteration_bounds = array<i64: 2>, scalar_prefetch = 0 : i64, scratch_operands = 0 : i64, tpu.core_type = #tpu.core_type<tc>, window_params = [{transform_indices = @transform_0, window_bounds = array<i64: 1, 8, 32>}, {pipeline_mode = #tpu.pipeline_mode<synchronous>, transform_indices = @transform_1, window_bounds = array<i64: 32, 96>}, {pipeline_mode = #tpu.pipeline_mode<synchronous>, transform_indices = @transform_2, window_bounds = array<i64: 32, 32>}, {pipeline_mode = #tpu.pipeline_mode<synchronous>, transform_indices = @transform_3, window_bounds = array<i64: 1, 32>}, {transform_indices = @transform_4, window_bounds = array<i64: 1, 8, 32>}, {transform_indices = @transform_5, window_bounds = array<i64: 1, 8, 8, 8>}]} {
    %c0 = arith.constant 0 : index
    %c0_0 = arith.constant 0 : index
    %c0_1 = arith.constant 0 : index
    %0 = vector.load %arg1[%c0, %c0_0, %c0_1] : memref<1x8x32xf32, #tpu.memory_space<vmem>>, vector<1x8x32xf32>
    %1 = vector.shape_cast %0 : vector<1x8x32xf32> to vector<8x32xf32>
    %c0_2 = arith.constant 0 : index
    %c0_3 = arith.constant 0 : index
    %2 = vector.load %arg2[%c0_2, %c0_3] : memref<32x96xf32, #tpu.memory_space<vmem>>, vector<32x96xf32>
    %cst = arith.constant dense<0.000000e+00> : vector<8x96xf32>
    %3 = tpu.matmul %1, %2, %cst {dimension_numbers = #tpu.dot_dimension_numbers<[1], [0], [0], [1], [0, 0, 1, 1], [], []>, precision = #tpu.contract_precision<fp32>} : vector<8x32xf32>, vector<32x96xf32>, vector<8x96xf32> -> vector<8x96xf32>
    %4 = vector.extract_strided_slice %3 {offsets = [0, 0], sizes = [8, 4], strides = [1, 1]} : vector<8x96xf32> to vector<8x4xf32>
    %5 = vector.extract_strided_slice %3 {offsets = [0, 32], sizes = [8, 4], strides = [1, 1]} : vector<8x96xf32> to vector<8x4xf32>
    %6 = vector.extract_strided_slice %3 {offsets = [0, 64], sizes = [8, 4], strides = [1, 1]} : vector<8x96xf32> to vector<8x4xf32>
    %cst_4 = arith.constant dense<0.000000e+00> : vector<8x8xf32>
    %7 = tpu.matmul %4, %5, %cst_4 {dimension_numbers = #tpu.dot_dimension_numbers<[1], [1], [0], [0], [0, 0, 1, 0], [], []>, precision = #tpu.contract_precision<fp32>} : vector<8x4xf32>, vector<8x4xf32>, vector<8x8xf32> -> vector<8x8xf32>
    %cst_5 = arith.constant dense<0xFF800000> : vector<8xf32>
    %8 = vector.multi_reduction <maximumf>, %7, %cst_5 [1] : vector<8x8xf32> to vector<8xf32>
    %9 = vector.shape_cast %8 : vector<8xf32> to vector<8x1xf32>
    %10 = vector.broadcast %9 : vector<8x1xf32> to vector<8x8xf32>
    %11 = arith.subf %7, %10 : vector<8x8xf32>
    %12 = math.exp %11 : vector<8x8xf32>
    %cst_6 = arith.constant dense<0.000000e+00> : vector<8xf32>
    %13 = vector.multi_reduction <add>, %12, %cst_6 [1] : vector<8x8xf32> to vector<8xf32>
    %14 = vector.shape_cast %13 : vector<8xf32> to vector<8x1xf32>
    %15 = vector.broadcast %14 : vector<8x1xf32> to vector<8x8xf32>
    %16 = arith.divf %12, %15 : vector<8x8xf32>
    %c0_7 = arith.constant 0 : index
    %c0_8 = arith.constant 0 : index
    %c0_9 = arith.constant 0 : index
    %c0_10 = arith.constant 0 : index
    %17 = vector.load %arg6[%c0_7, %c0_8, %c0_9, %c0_10] : memref<1x8x8x8xf32, #tpu.memory_space<vmem>>, vector<1x1x8x8xf32>
    %18 = vector.shape_cast %17 : vector<1x1x8x8xf32> to vector<8x8xf32>
    %19 = vector.shape_cast %16 : vector<8x8xf32> to vector<1x1x8x8xf32>
    tpu.vector_store %arg6[%c0_7, %c0_8, %c0_9, %c0_10], %19 {strides = array<i32>} : memref<1x8x8x8xf32, #tpu.memory_space<vmem>>, vector<1x1x8x8xf32>,
    %cst_11 = arith.constant dense<0.000000e+00> : vector<8x4xf32>
    %20 = tpu.matmul %16, %6, %cst_11 {dimension_numbers = #tpu.dot_dimension_numbers<[1], [0], [0], [1], [0, 0, 1, 1], [], []>, precision = #tpu.contract_precision<fp32>} : vector<8x8xf32>, vector<8x4xf32>, vector<8x4xf32> -> vector<8x4xf32>
    %21 = vector.extract_strided_slice %3 {offsets = [0, 4], sizes = [8, 4], strides = [1, 1]} : vector<8x96xf32> to vector<8x4xf32>
    %22 = vector.extract_strided_slice %3 {offsets = [0, 36], sizes = [8, 4], strides = [1, 1]} : vector<8x96xf32> to vector<8x4xf32>
    %23 = vector.extract_strided_slice %3 {offsets = [0, 68], sizes = [8, 4], strides = [1, 1]} : vector<8x96xf32> to vector<8x4xf32>
    %cst_12 = arith.constant dense<0.000000e+00> : vector<8x8xf32>
    %24 = tpu.matmul %21, %22, %cst_12 {dimension_numbers = #tpu.dot_dimension_numbers<[1], [1], [0], [0], [0, 0, 1, 0], [], []>, precision = #tpu.contract_precision<fp32>} : vector<8x4xf32>, vector<8x4xf32>, vector<8x8xf32> -> vector<8x8xf32>
    %cst_13 = arith.constant dense<0xFF800000> : vector<8xf32>
    %25 = vector.multi_reduction <maximumf>, %24, %cst_13 [1] : vector<8x8xf32> to vector<8xf32>
    %26 = vector.shape_cast %25 : vector<8xf32> to vector<8x1xf32>
    %27 = vector.broadcast %26 : vector<8x1xf32> to vector<8x8xf32>
    %28 = arith.subf %24, %27 : vector<8x8xf32>
    %29 = math.exp %28 : vector<8x8xf32>
    %cst_14 = arith.constant dense<0.000000e+00> : vector<8xf32>
    %30 = vector.multi_reduction <add>, %29, %cst_14 [1] : vector<8x8xf32> to vector<8xf32>
    %31 = vector.shape_cast %30 : vector<8xf32> to vector<8x1xf32>
    %32 = vector.broadcast %31 : vector<8x1xf32> to vector<8x8xf32>
    %33 = arith.divf %29, %32 : vector<8x8xf32>
    %c0_15 = arith.constant 0 : index
    %c1 = arith.constant 1 : index
    %c0_16 = arith.constant 0 : index
    %c0_17 = arith.constant 0 : index
    %34 = vector.load %arg6[%c0_15, %c1, %c0_16, %c0_17] : memref<1x8x8x8xf32, #tpu.memory_space<vmem>>, vector<1x1x8x8xf32>
    %35 = vector.shape_cast %34 : vector<1x1x8x8xf32> to vector<8x8xf32>
    %36 = vector.shape_cast %33 : vector<8x8xf32> to vector<1x1x8x8xf32>
    tpu.vector_store %arg6[%c0_15, %c1, %c0_16, %c0_17], %36 {strides = array<i32>} : memref<1x8x8x8xf32, #tpu.memory_space<vmem>>, vector<1x1x8x8xf32>,
    %cst_18 = arith.constant dense<0.000000e+00> : vector<8x4xf32>
    %37 = tpu.matmul %33, %23, %cst_18 {dimension_numbers = #tpu.dot_dimension_numbers<[1], [0], [0], [1], [0, 0, 1, 1], [], []>, precision = #tpu.contract_precision<fp32>} : vector<8x8xf32>, vector<8x4xf32>, vector<8x4xf32> -> vector<8x4xf32>
    %38 = vector.extract_strided_slice %3 {offsets = [0, 8], sizes = [8, 4], strides = [1, 1]} : vector<8x96xf32> to vector<8x4xf32>
    %39 = vector.extract_strided_slice %3 {offsets = [0, 40], sizes = [8, 4], strides = [1, 1]} : vector<8x96xf32> to vector<8x4xf32>
    %40 = vector.extract_strided_slice %3 {offsets = [0, 72], sizes = [8, 4], strides = [1, 1]} : vector<8x96xf32> to vector<8x4xf32>
    %cst_19 = arith.constant dense<0.000000e+00> : vector<8x8xf32>
    %41 = tpu.matmul %38, %39, %cst_19 {dimension_numbers = #tpu.dot_dimension_numbers<[1], [1], [0], [0], [0, 0, 1, 0], [], []>, precision = #tpu.contract_precision<fp32>} : vector<8x4xf32>, vector<8x4xf32>, vector<8x8xf32> -> vector<8x8xf32>
    %cst_20 = arith.constant dense<0xFF800000> : vector<8xf32>
    %42 = vector.multi_reduction <maximumf>, %41, %cst_20 [1] : vector<8x8xf32> to vector<8xf32>
    %43 = vector.shape_cast %42 : vector<8xf32> to vector<8x1xf32>
    %44 = vector.broadcast %43 : vector<8x1xf32> to vector<8x8xf32>
    %45 = arith.subf %41, %44 : vector<8x8xf32>
    %46 = math.exp %45 : vector<8x8xf32>
    %cst_21 = arith.constant dense<0.000000e+00> : vector<8xf32>
    %47 = vector.multi_reduction <add>, %46, %cst_21 [1] : vector<8x8xf32> to vector<8xf32>
    %48 = vector.shape_cast %47 : vector<8xf32> to vector<8x1xf32>
    %49 = vector.broadcast %48 : vector<8x1xf32> to vector<8x8xf32>
    %50 = arith.divf %46, %49 : vector<8x8xf32>
    %c0_22 = arith.constant 0 : index
    %c2 = arith.constant 2 : index
    %c0_23 = arith.constant 0 : index
    %c0_24 = arith.constant 0 : index
    %51 = vector.load %arg6[%c0_22, %c2, %c0_23, %c0_24] : memref<1x8x8x8xf32, #tpu.memory_space<vmem>>, vector<1x1x8x8xf32>
    %52 = vector.shape_cast %51 : vector<1x1x8x8xf32> to vector<8x8xf32>
    %53 = vector.shape_cast %50 : vector<8x8xf32> to vector<1x1x8x8xf32>
    tpu.vector_store %arg6[%c0_22, %c2, %c0_23, %c0_24], %53 {strides = array<i32>} : memref<1x8x8x8xf32, #tpu.memory_space<vmem>>, vector<1x1x8x8xf32>,
    %cst_25 = arith.constant dense<0.000000e+00> : vector<8x4xf32>
    %54 = tpu.matmul %50, %40, %cst_25 {dimension_numbers = #tpu.dot_dimension_numbers<[1], [0], [0], [1], [0, 0, 1, 1], [], []>, precision = #tpu.contract_precision<fp32>} : vector<8x8xf32>, vector<8x4xf32>, vector<8x4xf32> -> vector<8x4xf32>
    %55 = vector.extract_strided_slice %3 {offsets = [0, 12], sizes = [8, 4], strides = [1, 1]} : vector<8x96xf32> to vector<8x4xf32>
    %56 = vector.extract_strided_slice %3 {offsets = [0, 44], sizes = [8, 4], strides = [1, 1]} : vector<8x96xf32> to vector<8x4xf32>
    %57 = vector.extract_strided_slice %3 {offsets = [0, 76], sizes = [8, 4], strides = [1, 1]} : vector<8x96xf32> to vector<8x4xf32>
    %cst_26 = arith.constant dense<0.000000e+00> : vector<8x8xf32>
    %58 = tpu.matmul %55, %56, %cst_26 {dimension_numbers = #tpu.dot_dimension_numbers<[1], [1], [0], [0], [0, 0, 1, 0], [], []>, precision = #tpu.contract_precision<fp32>} : vector<8x4xf32>, vector<8x4xf32>, vector<8x8xf32> -> vector<8x8xf32>
    %cst_27 = arith.constant dense<0xFF800000> : vector<8xf32>
    %59 = vector.multi_reduction <maximumf>, %58, %cst_27 [1] : vector<8x8xf32> to vector<8xf32>
    %60 = vector.shape_cast %59 : vector<8xf32> to vector<8x1xf32>
    %61 = vector.broadcast %60 : vector<8x1xf32> to vector<8x8xf32>
    %62 = arith.subf %58, %61 : vector<8x8xf32>
    %63 = math.exp %62 : vector<8x8xf32>
    %cst_28 = arith.constant dense<0.000000e+00> : vector<8xf32>
    %64 = vector.multi_reduction <add>, %63, %cst_28 [1] : vector<8x8xf32> to vector<8xf32>
    %65 = vector.shape_cast %64 : vector<8xf32> to vector<8x1xf32>
    %66 = vector.broadcast %65 : vector<8x1xf32> to vector<8x8xf32>
    %67 = arith.divf %63, %66 : vector<8x8xf32>
    %c0_29 = arith.constant 0 : index
    %c3 = arith.constant 3 : index
    %c0_30 = arith.constant 0 : index
    %c0_31 = arith.constant 0 : index
    %68 = vector.load %arg6[%c0_29, %c3, %c0_30, %c0_31] : memref<1x8x8x8xf32, #tpu.memory_space<vmem>>, vector<1x1x8x8xf32>
    %69 = vector.shape_cast %68 : vector<1x1x8x8xf32> to vector<8x8xf32>
    %70 = vector.shape_cast %67 : vector<8x8xf32> to vector<1x1x8x8xf32>
    tpu.vector_store %arg6[%c0_29, %c3, %c0_30, %c0_31], %70 {strides = array<i32>} : memref<1x8x8x8xf32, #tpu.memory_space<vmem>>, vector<1x1x8x8xf32>,
    %cst_32 = arith.constant dense<0.000000e+00> : vector<8x4xf32>
    %71 = tpu.matmul %67, %57, %cst_32 {dimension_numbers = #tpu.dot_dimension_numbers<[1], [0], [0], [1], [0, 0, 1, 1], [], []>, precision = #tpu.contract_precision<fp32>} : vector<8x8xf32>, vector<8x4xf32>, vector<8x4xf32> -> vector<8x4xf32>
    %72 = vector.extract_strided_slice %3 {offsets = [0, 16], sizes = [8, 4], strides = [1, 1]} : vector<8x96xf32> to vector<8x4xf32>
    %73 = vector.extract_strided_slice %3 {offsets = [0, 48], sizes = [8, 4], strides = [1, 1]} : vector<8x96xf32> to vector<8x4xf32>
    %74 = vector.extract_strided_slice %3 {offsets = [0, 80], sizes = [8, 4], strides = [1, 1]} : vector<8x96xf32> to vector<8x4xf32>
    %cst_33 = arith.constant dense<0.000000e+00> : vector<8x8xf32>
    %75 = tpu.matmul %72, %73, %cst_33 {dimension_numbers = #tpu.dot_dimension_numbers<[1], [1], [0], [0], [0, 0, 1, 0], [], []>, precision = #tpu.contract_precision<fp32>} : vector<8x4xf32>, vector<8x4xf32>, vector<8x8xf32> -> vector<8x8xf32>
    %cst_34 = arith.constant dense<0xFF800000> : vector<8xf32>
    %76 = vector.multi_reduction <maximumf>, %75, %cst_34 [1] : vector<8x8xf32> to vector<8xf32>
    %77 = vector.shape_cast %76 : vector<8xf32> to vector<8x1xf32>
    %78 = vector.broadcast %77 : vector<8x1xf32> to vector<8x8xf32>
    %79 = arith.subf %75, %78 : vector<8x8xf32>
    %80 = math.exp %79 : vector<8x8xf32>
    %cst_35 = arith.constant dense<0.000000e+00> : vector<8xf32>
    %81 = vector.multi_reduction <add>, %80, %cst_35 [1] : vector<8x8xf32> to vector<8xf32>
    %82 = vector.shape_cast %81 : vector<8xf32> to vector<8x1xf32>
    %83 = vector.broadcast %82 : vector<8x1xf32> to vector<8x8xf32>
    %84 = arith.divf %80, %83 : vector<8x8xf32>
    %c0_36 = arith.constant 0 : index
    %c4 = arith.constant 4 : index
    %c0_37 = arith.constant 0 : index
    %c0_38 = arith.constant 0 : index
    %85 = vector.load %arg6[%c0_36, %c4, %c0_37, %c0_38] : memref<1x8x8x8xf32, #tpu.memory_space<vmem>>, vector<1x1x8x8xf32>
    %86 = vector.shape_cast %85 : vector<1x1x8x8xf32> to vector<8x8xf32>
    %87 = vector.shape_cast %84 : vector<8x8xf32> to vector<1x1x8x8xf32>
    tpu.vector_store %arg6[%c0_36, %c4, %c0_37, %c0_38], %87 {strides = array<i32>} : memref<1x8x8x8xf32, #tpu.memory_space<vmem>>, vector<1x1x8x8xf32>,
    %cst_39 = arith.constant dense<0.000000e+00> : vector<8x4xf32>
    %88 = tpu.matmul %84, %74, %cst_39 {dimension_numbers = #tpu.dot_dimension_numbers<[1], [0], [0], [1], [0, 0, 1, 1], [], []>, precision = #tpu.contract_precision<fp32>} : vector<8x8xf32>, vector<8x4xf32>, vector<8x4xf32> -> vector<8x4xf32>
    %89 = vector.extract_strided_slice %3 {offsets = [0, 20], sizes = [8, 4], strides = [1, 1]} : vector<8x96xf32> to vector<8x4xf32>
    %90 = vector.extract_strided_slice %3 {offsets = [0, 52], sizes = [8, 4], strides = [1, 1]} : vector<8x96xf32> to vector<8x4xf32>
    %91 = vector.extract_strided_slice %3 {offsets = [0, 84], sizes = [8, 4], strides = [1, 1]} : vector<8x96xf32> to vector<8x4xf32>
    %cst_40 = arith.constant dense<0.000000e+00> : vector<8x8xf32>
    %92 = tpu.matmul %89, %90, %cst_40 {dimension_numbers = #tpu.dot_dimension_numbers<[1], [1], [0], [0], [0, 0, 1, 0], [], []>, precision = #tpu.contract_precision<fp32>} : vector<8x4xf32>, vector<8x4xf32>, vector<8x8xf32> -> vector<8x8xf32>
    %cst_41 = arith.constant dense<0xFF800000> : vector<8xf32>
    %93 = vector.multi_reduction <maximumf>, %92, %cst_41 [1] : vector<8x8xf32> to vector<8xf32>
    %94 = vector.shape_cast %93 : vector<8xf32> to vector<8x1xf32>
    %95 = vector.broadcast %94 : vector<8x1xf32> to vector<8x8xf32>
    %96 = arith.subf %92, %95 : vector<8x8xf32>
    %97 = math.exp %96 : vector<8x8xf32>
    %cst_42 = arith.constant dense<0.000000e+00> : vector<8xf32>
    %98 = vector.multi_reduction <add>, %97, %cst_42 [1] : vector<8x8xf32> to vector<8xf32>
    %99 = vector.shape_cast %98 : vector<8xf32> to vector<8x1xf32>
    %100 = vector.broadcast %99 : vector<8x1xf32> to vector<8x8xf32>
    %101 = arith.divf %97, %100 : vector<8x8xf32>
    %c0_43 = arith.constant 0 : index
    %c5 = arith.constant 5 : index
    %c0_44 = arith.constant 0 : index
    %c0_45 = arith.constant 0 : index
    %102 = vector.load %arg6[%c0_43, %c5, %c0_44, %c0_45] : memref<1x8x8x8xf32, #tpu.memory_space<vmem>>, vector<1x1x8x8xf32>
    %103 = vector.shape_cast %102 : vector<1x1x8x8xf32> to vector<8x8xf32>
    %104 = vector.shape_cast %101 : vector<8x8xf32> to vector<1x1x8x8xf32>
    tpu.vector_store %arg6[%c0_43, %c5, %c0_44, %c0_45], %104 {strides = array<i32>} : memref<1x8x8x8xf32, #tpu.memory_space<vmem>>, vector<1x1x8x8xf32>,
    %cst_46 = arith.constant dense<0.000000e+00> : vector<8x4xf32>
    %105 = tpu.matmul %101, %91, %cst_46 {dimension_numbers = #tpu.dot_dimension_numbers<[1], [0], [0], [1], [0, 0, 1, 1], [], []>, precision = #tpu.contract_precision<fp32>} : vector<8x8xf32>, vector<8x4xf32>, vector<8x4xf32> -> vector<8x4xf32>
    %106 = vector.extract_strided_slice %3 {offsets = [0, 24], sizes = [8, 4], strides = [1, 1]} : vector<8x96xf32> to vector<8x4xf32>
    %107 = vector.extract_strided_slice %3 {offsets = [0, 56], sizes = [8, 4], strides = [1, 1]} : vector<8x96xf32> to vector<8x4xf32>
    %108 = vector.extract_strided_slice %3 {offsets = [0, 88], sizes = [8, 4], strides = [1, 1]} : vector<8x96xf32> to vector<8x4xf32>
    %cst_47 = arith.constant dense<0.000000e+00> : vector<8x8xf32>
    %109 = tpu.matmul %106, %107, %cst_47 {dimension_numbers = #tpu.dot_dimension_numbers<[1], [1], [0], [0], [0, 0, 1, 0], [], []>, precision = #tpu.contract_precision<fp32>} : vector<8x4xf32>, vector<8x4xf32>, vector<8x8xf32> -> vector<8x8xf32>
    %cst_48 = arith.constant dense<0xFF800000> : vector<8xf32>
    %110 = vector.multi_reduction <maximumf>, %109, %cst_48 [1] : vector<8x8xf32> to vector<8xf32>
    %111 = vector.shape_cast %110 : vector<8xf32> to vector<8x1xf32>
    %112 = vector.broadcast %111 : vector<8x1xf32> to vector<8x8xf32>
    %113 = arith.subf %109, %112 : vector<8x8xf32>
    %114 = math.exp %113 : vector<8x8xf32>
    %cst_49 = arith.constant dense<0.000000e+00> : vector<8xf32>
    %115 = vector.multi_reduction <add>, %114, %cst_49 [1] : vector<8x8xf32> to vector<8xf32>
    %116 = vector.shape_cast %115 : vector<8xf32> to vector<8x1xf32>
    %117 = vector.broadcast %116 : vector<8x1xf32> to vector<8x8xf32>
    %118 = arith.divf %114, %117 : vector<8x8xf32>
    %c0_50 = arith.constant 0 : index
    %c6 = arith.constant 6 : index
    %c0_51 = arith.constant 0 : index
    %c0_52 = arith.constant 0 : index
    %119 = vector.load %arg6[%c0_50, %c6, %c0_51, %c0_52] : memref<1x8x8x8xf32, #tpu.memory_space<vmem>>, vector<1x1x8x8xf32>
    %120 = vector.shape_cast %119 : vector<1x1x8x8xf32> to vector<8x8xf32>
    %121 = vector.shape_cast %118 : vector<8x8xf32> to vector<1x1x8x8xf32>
    tpu.vector_store %arg6[%c0_50, %c6, %c0_51, %c0_52], %121 {strides = array<i32>} : memref<1x8x8x8xf32, #tpu.memory_space<vmem>>, vector<1x1x8x8xf32>,
    %cst_53 = arith.constant dense<0.000000e+00> : vector<8x4xf32>
    %122 = tpu.matmul %118, %108, %cst_53 {dimension_numbers = #tpu.dot_dimension_numbers<[1], [0], [0], [1], [0, 0, 1, 1], [], []>, precision = #tpu.contract_precision<fp32>} : vector<8x8xf32>, vector<8x4xf32>, vector<8x4xf32> -> vector<8x4xf32>
    %123 = vector.extract_strided_slice %3 {offsets = [0, 28], sizes = [8, 4], strides = [1, 1]} : vector<8x96xf32> to vector<8x4xf32>
    %124 = vector.extract_strided_slice %3 {offsets = [0, 60], sizes = [8, 4], strides = [1, 1]} : vector<8x96xf32> to vector<8x4xf32>
    %125 = vector.extract_strided_slice %3 {offsets = [0, 92], sizes = [8, 4], strides = [1, 1]} : vector<8x96xf32> to vector<8x4xf32>
    %cst_54 = arith.constant dense<0.000000e+00> : vector<8x8xf32>
    %126 = tpu.matmul %123, %124, %cst_54 {dimension_numbers = #tpu.dot_dimension_numbers<[1], [1], [0], [0], [0, 0, 1, 0], [], []>, precision = #tpu.contract_precision<fp32>} : vector<8x4xf32>, vector<8x4xf32>, vector<8x8xf32> -> vector<8x8xf32>
    %cst_55 = arith.constant dense<0xFF800000> : vector<8xf32>
    %127 = vector.multi_reduction <maximumf>, %126, %cst_55 [1] : vector<8x8xf32> to vector<8xf32>
    %128 = vector.shape_cast %127 : vector<8xf32> to vector<8x1xf32>
    %129 = vector.broadcast %128 : vector<8x1xf32> to vector<8x8xf32>
    %130 = arith.subf %126, %129 : vector<8x8xf32>
    %131 = math.exp %130 : vector<8x8xf32>
    %cst_56 = arith.constant dense<0.000000e+00> : vector<8xf32>
    %132 = vector.multi_reduction <add>, %131, %cst_56 [1] : vector<8x8xf32> to vector<8xf32>
    %133 = vector.shape_cast %132 : vector<8xf32> to vector<8x1xf32>
    %134 = vector.broadcast %133 : vector<8x1xf32> to vector<8x8xf32>
    %135 = arith.divf %131, %134 : vector<8x8xf32>
    %c0_57 = arith.constant 0 : index
    %c7 = arith.constant 7 : index
    %c0_58 = arith.constant 0 : index
    %c0_59 = arith.constant 0 : index
    %136 = vector.load %arg6[%c0_57, %c7, %c0_58, %c0_59] : memref<1x8x8x8xf32, #tpu.memory_space<vmem>>, vector<1x1x8x8xf32>
    %137 = vector.shape_cast %136 : vector<1x1x8x8xf32> to vector<8x8xf32>
    %138 = vector.shape_cast %135 : vector<8x8xf32> to vector<1x1x8x8xf32>
    tpu.vector_store %arg6[%c0_57, %c7, %c0_58, %c0_59], %138 {strides = array<i32>} : memref<1x8x8x8xf32, #tpu.memory_space<vmem>>, vector<1x1x8x8xf32>,
    %cst_60 = arith.constant dense<0.000000e+00> : vector<8x4xf32>
    %139 = tpu.matmul %135, %125, %cst_60 {dimension_numbers = #tpu.dot_dimension_numbers<[1], [0], [0], [1], [0, 0, 1, 1], [], []>, precision = #tpu.contract_precision<fp32>} : vector<8x8xf32>, vector<8x4xf32>, vector<8x4xf32> -> vector<8x4xf32>
    %140 = tpu.concatenate %20, %37, %54, %71, %88, %105, %122, %139 in 1 : vector<8x4xf32>, vector<8x4xf32>, vector<8x4xf32>, vector<8x4xf32>, vector<8x4xf32>, vector<8x4xf32>, vector<8x4xf32>, vector<8x4xf32> -> vector<8x32xf32>
    %c0_61 = arith.constant 0 : index
    %c0_62 = arith.constant 0 : index
    %141 = vector.load %arg3[%c0_61, %c0_62] : memref<32x32xf32, #tpu.memory_space<vmem>>, vector<32x32xf32>
    %cst_63 = arith.constant dense<0.000000e+00> : vector<8x32xf32>
    %142 = tpu.matmul %140, %141, %cst_63 {dimension_numbers = #tpu.dot_dimension_numbers<[1], [0], [0], [1], [0, 0, 1, 1], [], []>, precision = #tpu.contract_precision<fp32>} : vector<8x32xf32>, vector<32x32xf32>, vector<8x32xf32> -> vector<8x32xf32>
    %c0_64 = arith.constant 0 : index
    %c0_65 = arith.constant 0 : index
    %143 = vector.load %arg4[%c0_64, %c0_65] : memref<1x32xf32, #tpu.memory_space<vmem>>, vector<1x32xf32>
    %144 = vector.broadcast %143 : vector<1x32xf32> to vector<8x32xf32>
    %145 = arith.addf %142, %144 : vector<8x32xf32>
    %c0_66 = arith.constant 0 : index
    %c0_67 = arith.constant 0 : index
    %c0_68 = arith.constant 0 : index
    %146 = vector.load %arg5[%c0_66, %c0_67, %c0_68] : memref<1x8x32xf32, #tpu.memory_space<vmem>>, vector<1x8x32xf32>
    %147 = vector.shape_cast %146 : vector<1x8x32xf32> to vector<8x32xf32>
    %148 = vector.shape_cast %145 : vector<8x32xf32> to vector<1x8x32xf32>
    tpu.vector_store %arg5[%c0_66, %c0_67, %c0_68], %148 {strides = array<i32>} : memref<1x8x32xf32, #tpu.memory_space<vmem>>, vector<1x8x32xf32>,
    return
  }
  func.func @transform_0(%arg0: i32) -> (i32, i32, i32) {
    %c0_i32 = arith.constant 0 : i32
    %c0_i32_0 = arith.constant 0 : i32
    %c0_i32_1 = arith.constant 0 : i32
    return %arg0, %c0_i32, %c0_i32_0 : i32, i32, i32
  }
  func.func @transform_1(%arg0: i32) -> (i32, i32) {
    %c0_i32 = arith.constant 0 : i32
    %c0_i32_0 = arith.constant 0 : i32
    %c0_i32_1 = arith.constant 0 : i32
    return %c0_i32, %c0_i32_0 : i32, i32
  }
  func.func @transform_2(%arg0: i32) -> (i32, i32) {
    %c0_i32 = arith.constant 0 : i32
    %c0_i32_0 = arith.constant 0 : i32
    %c0_i32_1 = arith.constant 0 : i32
    return %c0_i32, %c0_i32_0 : i32, i32
  }
  func.func @transform_3(%arg0: i32) -> (i32, i32) {
    %c0_i32 = arith.constant 0 : i32
    %c0_i32_0 = arith.constant 0 : i32
    %c0_i32_1 = arith.constant 0 : i32
    return %c0_i32, %c0_i32_0 : i32, i32
  }
  func.func @transform_4(%arg0: i32) -> (i32, i32, i32) {
    %c0_i32 = arith.constant 0 : i32
    %c0_i32_0 = arith.constant 0 : i32
    %c0_i32_1 = arith.constant 0 : i32
    return %arg0, %c0_i32, %c0_i32_0 : i32, i32, i32
  }
  func.func @transform_5(%arg0: i32) -> (i32, i32, i32, i32) {
    %c0_i32 = arith.constant 0 : i32
    %c0_i32_0 = arith.constant 0 : i32
    %c0_i32_1 = arith.constant 0 : i32
    %c0_i32_2 = arith.constant 0 : i32
    return %arg0, %c0_i32, %c0_i32_0, %c0_i32_1 : i32, i32, i32, i32
  }
}

</mosaic_0001>

<llo_original>
// kernel: tpu_custom_call.1
$region0: #{tpu_custom_call.1}
  #allocation0 [shape = 'u32[]', space=smem, size = 0x4, offset = 0x4, fixed_abs, tag = 'smem constant byte address 0x4 - core index']
  #allocation1 [shape = 'u32[144,128]{1,0:T(1,128)}', space=vmem, size = 0x12000, scoped, tag = 'internal scratch']
  %s0 = inlined_call_operand.hbm [shape: f32[2,8,32], index: 0, kind: input, shape index: {}]
  %s1 = inlined_call_operand.hbm [shape: f32[32,96], index: 1, kind: input, shape index: {}]
  %s2 = inlined_call_operand.hbm [shape: f32[32,32], index: 2, kind: input, shape index: {}]
  %s3 = inlined_call_operand.vmem [shape: f32[1,32], index: 3, kind: input, shape index: {}]
  %s4 = inlined_call_operand.hbm [shape: f32[2,8,32], index: 4, kind: output, shape index: {0}]
  %s5 = inlined_call_operand.hbm [shape: f32[2,8,8,8], index: 5, kind: output, shape index: {1}]
  %6 = xla_tuple %s4, %s5
  %s7 = sld [smem:[#allocation0]]
  $region69: #{tpu_custom_call.1} parent=0
    _
  %s9 = ssub.s32 1, %s7
  %s10 = scalar_select 0, %s9, %s7
  $region1: #{tpu_custom_call.1} parent=0
    #allocation2 [shape = 'u8[8192]{0}', space=vmem, size = 0x2000, scoped, tag = 'input window, operand 0']
    #allocation3 [shape = 's32[2]{0}', space=sflag, size = 0x8, scoped, tag = 'scoped memory for tpu_custom_call.1']
    #allocation4 [shape = 's32[2]{0}', space=sflag, size = 0x8, scoped, tag = 'scoped memory for tpu_custom_call.1']
    #allocation5 [shape = 'u8[16384]{0}', space=vmem, size = 0x4000, scoped, tag = 'input window, operand 1, single buffered']
    #allocation6 [shape = 's32[1]{0}', space=sflag, size = 0x4, scoped, tag = 'scoped memory for tpu_custom_call.1']
    #allocation7 [shape = 'u8[16384]{0}', space=vmem, size = 0x4000, scoped, tag = 'input window, operand 2, single buffered']
    #allocation8 [shape = 'u8[8192]{0}', space=vmem, size = 0x2000, scoped, tag = 'output window, operand 0']
    #allocation9 [shape = 'u8[65536]{0}', space=vmem, size = 0x10000, scoped, tag = 'output window, operand 1']
    #allocation10 [shape = 's32[2]{0}', space=sflag, size = 0x8, scoped, tag = 'scoped memory for tpu_custom_call.1']
    %11 = vsyncpa [#allocation3], 0
    %s12 = scalar_lea.sflag [#allocation3], 1
    %13 = vsyncpa %s12, 0
    %14 = vsyncpa [#allocation6], 0
    %15 = vsyncpa [#allocation4], 0
    %s16 = scalar_lea.sflag [#allocation4], 1
    %17 = vsyncpa %s16, 0
    %18 = vsyncpa [#allocation10], 0
    %s19 = scalar_lea.sflag [#allocation10], 1
    %20 = vsyncpa %s19, 0
    loop: start=0, step=1, limit=4
    $region2: #{tpu_custom_call.1} parent=1 // loop_pre_header
      _
    $region3: #{tpu_custom_call.1} parent=1 // loop_header
      %s22 = sphi 0, %s26
      %p23 = scmp.ge.s32.totalorder %s22, 4
      %s32 = sphi 0, %s34
      %s35 = sphi 0, %s32
      %s36 = sphi 0, %s35
      %s52 = sphi 0, %s36
      %s56 = sphi 0, %s56
      %s58 = sphi 0, %s56
      %s59 = sphi 0, %s58
      %s73 = sphi 0, %s59
      %s77 = sphi 0, %s77
      %s79 = sphi 0, %s77
      %s80 = sphi 0, %s79
      %s94 = sphi 0, %s80
      %s98 = sphi 0, %s98
      %s100 = sphi 0, %s98
      %s101 = sphi 0, %s100
      %s115 = sphi 0, %s101
      %s121 = sphi 0, %s123
      %s124 = sphi 0, %s121
      %s125 = sphi 0, %s124
      %s141 = sphi 0, %s125
      %s147 = sphi 0, %s149
      %s150 = sphi 0, %s147
      %s151 = sphi 0, %s150
      %s167 = sphi 0, %s151
    $region4: #{tpu_custom_call.1} parent=1 // loop_header_branch
      %25 = sbr.rel (%p23) target = $region8
    $region5: #{tpu_custom_call.1} parent=1 // loop_body
      %s27 = ssub.s32 %s22, 1
      %s28 = ssub.s32 %s22, 2
      %s29 = sadd.s32 %s22, 1
      %s30 = ssub.s32 %s22, %s29
      %p31 = scmp.eq.s32.totalorder %s30, 0
      %s33 = sadd.s32 %s32, 1
      %s34 = scalar_select %p31, %s32, %s33
      %p37 = pneg %p31
      %p38 = scmp.eq.s32.totalorder %s22, 1
      %p39 = por %p37, %p38
      %p40 = scmp.ne.s32.totalorder %s32, %s35
      %p41 = scmp.eq.s32.totalorder %s22, 0
      %p42 = por %p40, %p41
      %p43 = scmp.ne.s32.totalorder %s32, %s35
      %p44 = scmp.eq.s32.totalorder %s27, 1
      %p45 = por %p43, %p44
      %p46 = scmp.ne.s32.totalorder %s35, %s36
      %p47 = scmp.eq.s32.totalorder %s27, 0
      %p48 = por %p46, %p47
      %p49 = scmp.ne.s32.totalorder %s35, %s36
      %p50 = scmp.eq.s32.totalorder %s28, 1
      %p51 = por %p49, %p50
      %p53 = scmp.ne.s32.totalorder %s36, %s52
      %p54 = scmp.eq.s32.totalorder %s28, 0
      %p55 = por %p53, %p54
      %s57 = sadd.s32 %s56, 1
      %p60 = scmp.eq.s32.totalorder %s22, 1
      %p61 = scmp.ne.s32.totalorder %s56, %s58
      %p62 = scmp.eq.s32.totalorder %s22, 0
      %p63 = por %p61, %p62
      %p64 = scmp.ne.s32.totalorder %s56, %s58
      %p65 = scmp.eq.s32.totalorder %s27, 1
      %p66 = por %p64, %p65
      %p67 = scmp.ne.s32.totalorder %s58, %s59
      %p68 = scmp.eq.s32.totalorder %s27, 0
      %p69 = por %p67, %p68
      %p70 = scmp.ne.s32.totalorder %s58, %s59
      %p71 = scmp.eq.s32.totalorder %s28, 1
      %p72 = por %p70, %p71
      %p74 = scmp.ne.s32.totalorder %s59, %s73
      %p75 = scmp.eq.s32.totalorder %s28, 0
      %p76 = por %p74, %p75
      %s78 = sadd.s32 %s77, 1
      %p81 = scmp.eq.s32.totalorder %s22, 1
      %p82 = scmp.ne.s32.totalorder %s77, %s79
      %p83 = scmp.eq.s32.totalorder %s22, 0
      %p84 = por %p82, %p83
      %p85 = scmp.ne.s32.totalorder %s77, %s79
      %p86 = scmp.eq.s32.totalorder %s27, 1
      %p87 = por %p85, %p86
      %p88 = scmp.ne.s32.totalorder %s79, %s80
      %p89 = scmp.eq.s32.totalorder %s27, 0
      %p90 = por %p88, %p89
      %p91 = scmp.ne.s32.totalorder %s79, %s80
      %p92 = scmp.eq.s32.totalorder %s28, 1
      %p93 = por %p91, %p92
      %p95 = scmp.ne.s32.totalorder %s80, %s94
      %p96 = scmp.eq.s32.totalorder %s28, 0
      %p97 = por %p95, %p96
      %s99 = sadd.s32 %s98, 1
      %p102 = scmp.eq.s32.totalorder %s22, 1
      %p103 = scmp.ne.s32.totalorder %s98, %s100
      %p104 = scmp.eq.s32.totalorder %s22, 0
      %p105 = por %p103, %p104
      %p106 = scmp.ne.s32.totalorder %s98, %s100
      %p107 = scmp.eq.s32.totalorder %s27, 1
      %p108 = por %p106, %p107
      %p109 = scmp.ne.s32.totalorder %s100, %s101
      %p110 = scmp.eq.s32.totalorder %s27, 0
      %p111 = por %p109, %p110
      %p112 = scmp.ne.s32.totalorder %s100, %s101
      %p113 = scmp.eq.s32.totalorder %s28, 1
      %p114 = por %p112, %p113
      %p116 = scmp.ne.s32.totalorder %s101, %s115
      %p117 = scmp.eq.s32.totalorder %s28, 0
      %p118 = por %p116, %p117
      %s119 = ssub.s32 %s22, %s29
      %p120 = scmp.eq.s32.totalorder %s119, 0
      %s122 = sadd.s32 %s121, 1
      %s123 = scalar_select %p120, %s121, %s122
      %p126 = pneg %p120
      %p127 = scmp.eq.s32.totalorder %s22, 1
      %p128 = por %p126, %p127
      %p129 = scmp.ne.s32.totalorder %s121, %s124
      %p130 = scmp.eq.s32.totalorder %s22, 0
      %p131 = por %p129, %p130
      %p132 = scmp.ne.s32.totalorder %s121, %s124
      %p133 = scmp.eq.s32.totalorder %s27, 1
      %p134 = por %p132, %p133
      %p135 = scmp.ne.s32.totalorder %s124, %s125
      %p136 = scmp.eq.s32.totalorder %s27, 0
      %p137 = por %p135, %p136
      %p138 = scmp.ne.s32.totalorder %s124, %s125
      %p139 = scmp.eq.s32.totalorder %s28, 1
      %p140 = por %p138, %p139
      %p142 = scmp.ne.s32.totalorder %s125, %s141
      %p143 = scmp.eq.s32.totalorder %s28, 0
      %p144 = por %p142, %p143
      %s145 = ssub.s32 %s22, %s29
      %p146 = scmp.eq.s32.totalorder %s145, 0
      %s148 = sadd.s32 %s147, 1
      %s149 = scalar_select %p146, %s147, %s148
      %p152 = pneg %p146
      %p153 = scmp.eq.s32.totalorder %s22, 1
      %p154 = por %p152, %p153
      %p155 = scmp.ne.s32.totalorder %s147, %s150
      %p156 = scmp.eq.s32.totalorder %s22, 0
      %p157 = por %p155, %p156
      %p158 = scmp.ne.s32.totalorder %s147, %s150
      %p159 = scmp.eq.s32.totalorder %s27, 1
      %p160 = por %p158, %p159
      %p161 = scmp.ne.s32.totalorder %s150, %s151
      %p162 = scmp.eq.s32.totalorder %s27, 0
      %p163 = por %p161, %p162
      %p164 = scmp.ne.s32.totalorder %s150, %s151
      %p165 = scmp.eq.s32.totalorder %s28, 1
      %p166 = por %p164, %p165
      %p168 = scmp.ne.s32.totalorder %s151, %s167
      %p169 = scmp.eq.s32.totalorder %s28, 0
      %p170 = por %p168, %p169
      %p171 = scmp.le.s32.totalorder 1, %s22
      %p172 = scmp.lt.s32.totalorder %s22, 3
      %p173 = pnand %p171, %p172
      %p174 = pneg %p173
      // Predicated region
      $region9: #{tpu_custom_call.1} parent=5 // pred_check
        _
      $region10: #{tpu_custom_call.1} parent=5 // pred_check_branch
        %176 = sbr.rel (%p173) target = $region12
      $region11: #{tpu_custom_call.1} parent=5 // pred_region
        %s177 = ssub.s32 %s22, 1
        // Predicated region
        $region13: #{tpu_custom_call.1} parent=11 // pred_check
          %p178 = pneg %p69
        $region14: #{tpu_custom_call.1} parent=11 // pred_check_branch
          %180 = sbr.rel (%p178) target = $region16
        $region15: #{tpu_custom_call.1} parent=11 // pred_region
          %s182 = ssub.s32 512, 512
          %183 = vsyncadd [#allocation6], %s182
          %s184 = sshll.u32 [#allocation5], 4
          %s185 = int_to_ptr.vmem [resolvable:$true] %s184
          %190 = dma.hbm_to_vmem [thread:$0]  %s1, 512, %s185, [#allocation6], 128, 128, 8
        $region16: #{tpu_custom_call.1} parent=11 // pred_fallthru
          _
        // Predicated region
        $region17: #{tpu_custom_call.1} parent=11 // pred_check
          %p191 = pneg %p90
        $region18: #{tpu_custom_call.1} parent=11 // pred_check_branch
          %193 = sbr.rel (%p191) target = $region20
        $region19: #{tpu_custom_call.1} parent=11 // pred_region
          %s195 = ssub.s32 512, 512
          %196 = vsyncadd [#allocation6], %s195
          %s197 = sshll.u32 [#allocation7], 4
          %s198 = int_to_ptr.vmem [resolvable:$true] %s197
          %203 = dma.hbm_to_vmem [thread:$0]  %s2, 512, %s198, [#allocation6], 128, 128, 8
        $region20: #{tpu_custom_call.1} parent=11 // pred_fallthru
          _
        // Predicated region
        $region21: #{tpu_custom_call.1} parent=11 // pred_check
          %p204 = pneg %p111
        $region22: #{tpu_custom_call.1} parent=11 // pred_check_branch
          %206 = sbr.rel (%p204) target = $region24
        $region23: #{tpu_custom_call.1} parent=11 // pred_region
          _
        $region24: #{tpu_custom_call.1} parent=11 // pred_fallthru
          _
      $region12: #{tpu_custom_call.1} parent=5 // pred_fallthru
        _
      %p207 = scmp.lt.s32.totalorder %s22, 2
      // Predicated region
      $region25: #{tpu_custom_call.1} parent=5 // pred_check
        %p208 = pneg %p207
      $region26: #{tpu_custom_call.1} parent=5 // pred_check_branch
        %210 = sbr.rel (%p208) target = $region28
      $region27: #{tpu_custom_call.1} parent=5 // pred_region
        // Predicated region
        $region29: #{tpu_custom_call.1} parent=27 // pred_check
          %p211 = pneg %p42
        $region30: #{tpu_custom_call.1} parent=27 // pred_check_branch
          %213 = sbr.rel (%p211) target = $region32
        $region31: #{tpu_custom_call.1} parent=27 // pred_region
          %s214 = sand.u32 %s32, 1
          %s215 = scalar_lea.sflag [#allocation3], %s214
          %s216 = sand.u32 %s32, 1
          %s217 = smul.addr %s216, 8
          %s218 = scalar_lea.vmem [#allocation2], %s217
          %s220 = ssub.s32 128, 128
          %221 = vsyncadd %s215, %s220
          %s222 = smul.addr %s22, 128
          %s223 = scalar_lea.hbm %s0, %s222
          %s225 = sshll.u32 %s218, 4
          %s226 = int_to_ptr.vmem [resolvable:$true] %s225
          %228 = dma.hbm_to_vmem [thread:$0]  %s223, 128, %s226, %s215
        $region32: #{tpu_custom_call.1} parent=27 // pred_fallthru
          _
      $region28: #{tpu_custom_call.1} parent=5 // pred_fallthru
        _
      %p229 = scmp.le.s32.totalorder 1, %s22
      %p230 = scmp.lt.s32.totalorder %s22, 3
      %p231 = pnand %p229, %p230
      %p232 = pneg %p231
      // Predicated region
      $region33: #{tpu_custom_call.1} parent=5 // pred_check
        _
      $region34: #{tpu_custom_call.1} parent=5 // pred_check_branch
        %234 = sbr.rel (%p231) target = $region36
      $region35: #{tpu_custom_call.1} parent=5 // pred_region
        %s235 = ssub.s32 %s22, 1
        %s236 = sand.u32 %s35, 1
        %s237 = scalar_lea.sflag [#allocation3], %s236
        %s238 = sand.u32 %s35, 1
        %s239 = smul.addr %s238, 8
        %s240 = scalar_lea.vmem [#allocation2], %s239
        // Predicated region
        $region37: #{tpu_custom_call.1} parent=35 // pred_check
          %p241 = pneg %p48
        $region38: #{tpu_custom_call.1} parent=35 // pred_check_branch
          %243 = sbr.rel (%p241) target = $region40
        $region39: #{tpu_custom_call.1} parent=35 // pred_region
          %244 = dma.done %s237, 128
        $region40: #{tpu_custom_call.1} parent=35 // pred_fallthru
          _
        // Predicated region
        $region41: #{tpu_custom_call.1} parent=35 // pred_check
          %p245 = pneg %p69
        $region42: #{tpu_custom_call.1} parent=35 // pred_check_branch
          %247 = sbr.rel (%p245) target = $region44
        $region43: #{tpu_custom_call.1} parent=35 // pred_region
          %248 = dma.done [#allocation6], 512
        $region44: #{tpu_custom_call.1} parent=35 // pred_fallthru
          _
        // Predicated region
        $region45: #{tpu_custom_call.1} parent=35 // pred_check
          %p249 = pneg %p90
        $region46: #{tpu_custom_call.1} parent=35 // pred_check_branch
          %251 = sbr.rel (%p249) target = $region48
        $region47: #{tpu_custom_call.1} parent=35 // pred_region
          %252 = dma.done [#allocation6], 512
        $region48: #{tpu_custom_call.1} parent=35 // pred_fallthru
          _
        %s253 = sand.u32 %s35, 1
        %s254 = scalar_lea.sflag [#allocation3], %s253
        %s255 = sand.u32 %s35, 1
        %s256 = smul.addr %s255, 8
        %s257 = scalar_lea.vmem [#allocation2], %s256
        %p258 = pneg %p48
        %p259 = pneg %p45
        %p260 = pneg %p69
        %p261 = pneg %p66
        %p262 = pneg %p90
        %p263 = pneg %p87
        %p264 = pneg %p111
        %p265 = pneg %p108
        %p266 = pneg %p137
        %p267 = pneg %p134
        %s268 = sand.u32 %s124, 1
        %s269 = scalar_lea.sflag [#allocation4], %s268
        %s270 = sand.u32 %s124, 1
        %s271 = smul.addr %s270, 8
        %s272 = scalar_lea.vmem [#allocation8], %s271
        %p273 = pneg %p163
        %p274 = pneg %p160
        %s275 = sand.u32 %s150, 1
        %s276 = scalar_lea.sflag [#allocation10], %s275
        %s277 = sand.u32 %s150, 1
        %s278 = smul.addr %s277, 64
        %s279 = scalar_lea.vmem [#allocation9], %s278
        %v280 = vld [vmem:[%s240] sm:$0xff]
        %v281 = vld [vmem:[#allocation5] sm:$0xff]
        %v282 = vld [vmem:[#allocation5 + $0x8] sm:$0xff]
        %v283 = vld [vmem:[#allocation5 + $0x10] sm:$0xff]
        %v284 = vld [vmem:[#allocation5 + $0x18] sm:$0xff]
        %vm285 = vcmask 261120
        %v287 = vsel %vm285, %v280, 0
        %289 = vmatprep.subr.mxu0 0.0
        %v290 = vand.u32 %v281, 4294901760
        %291 = vmatpush1.msra.mxu0 %v290
        %292 = vmatprep.subr.mxu0 0.0
        %v293 = vand.u32 %v282, 4294901760
        %294 = vmatpush1.msra.mxu0 %v293
        %295 = vmatprep.subr.mxu0 0.0
        %v296 = vand.u32 %v283, 4294901760
        %297 = vmatpush1.msra.mxu0 %v296
        %298 = vmatprep.subr.mxu0 0.0
        %v299 = vand.u32 %v284, 4294901760
        %300 = vmatpush1.msra.mxu0 %v299
        %301 = vmatprep.subr.mxu0 0.0
        %302 = vmatpush1.msra.mxu0 0.0
        %303 = vmatprep.subr.mxu0 0.0
        %304 = vmatpush1.msra.mxu0 0.0
        %305 = vmatprep.subr.mxu0 0.0
        %306 = vmatpush1.msra.mxu0 0.0
        %307 = vmatprep.subr.mxu0 0.0
        %308 = vmatpush1.msra.mxu0 0.0
        %309 = vmatprep.subr.mxu0 0.0
        %310 = vmatpush1.msra.mxu0 0.0
        %311 = vmatprep.subr.mxu0 0.0
        %312 = vmatpush1.msra.mxu0 0.0
        %313 = vmatprep.subr.mxu0 0.0
        %314 = vmatpush1.msra.mxu0 0.0
        %315 = vmatprep.subr.mxu0 0.0
        %316 = vmatpush1.msra.mxu0 0.0
        %317 = vmatprep.subr.mxu0 0.0
        %318 = vmatpush1.msra.mxu0 0.0
        %319 = vmatprep.subr.mxu0 0.0
        %320 = vmatpush1.msra.mxu0 0.0
        %321 = vmatprep.subr.mxu0 0.0
        %322 = vmatpush1.msra.mxu0 0.0
        %323 = vmatprep.subr.mxu0 0.0
        %324 = vmatpush1.msra.mxu0 0.0
        %325 = vmatprep.subr.mxu0 0.0
        %326 = vmatpush1.msra.mxu0 0.0
        %327 = vmatprep.subr.mxu0 0.0
        %328 = vmatpush1.msra.mxu0 0.0
        %329 = vmatprep.subr.mxu0 0.0
        %330 = vmatpush1.msra.mxu0 0.0
        %331 = vmatprep.subr.mxu0 0.0
        %332 = vmatpush1.msra.mxu0 0.0
        %333 = vmatprep.subr.mxu0 0.0
        %334 = vmatpush1.msra.mxu0 0.0
        %335 = vmatprep.subr.mxu0 0.0
        %336 = vmatpush1.msra.mxu0 0.0
        %337 = vmatprep.subr.mxu0 0.0
        %338 = vmatpush1.msra.mxu0 0.0
        %339 = vmatprep.subr.mxu0 0.0
        %340 = vmatpush1.msra.mxu0 0.0
        %341 = vmatprep.subr.mxu0 0.0
        %342 = vmatpush1.msra.mxu0 0.0
        %343 = vmatprep.subr.mxu0 0.0
        %344 = vmatpush1.msra.mxu0 0.0
        %345 = vmatprep.subr.mxu0 0.0
        %346 = vmatpush1.msra.mxu0 0.0
        %347 = vmatprep.subr.mxu0 0.0
        %348 = vmatpush1.msra.mxu0 0.0
        %349 = vmatprep.subr.mxu0 0.0
        %350 = vmatpush1.msra.mxu0 0.0
        %351 = vmatprep.subr.mxu0 0.0
        %352 = vmatpush1.msra.mxu0 0.0
        %353 = vmatprep.subr.mxu0 0.0
        %354 = vmatpush1.msra.mxu0 0.0
        %355 = vmatprep.subr.mxu0 0.0
        %356 = vmatpush1.msra.mxu0 0.0
        %357 = vmatprep.mubr.f32.mxu0 0.0
        %v358 = vand.u32 %v287, 4294901760
        %v359 = vsub.f32 %v287, %v358
        %v360 = vand.u32 %v359, 4294901760
        %v361 = vsub.f32 %v359, %v360
        %v362 = vand.u32 %v361, 4294901760
        %363 = vmatmul.mubr.f32.gmra.mrb[0].mxu0 %v362
        %v364 = vpop.f32.mrb[0].mxu0
        %v365 = vadd.f32 0.0, %v364
        %v366 = vpop.f32.mrb[0].mxu0
        %367 = vdwg.mxu0
        %368 = vmatprep.subr.mxu0 0.0
        %v369 = vand.u32 %v281, 4294901760
        %v370 = vsub.f32 %v281, %v369
        %v371 = vand.u32 %v370, 4294901760
        %v372 = vsub.f32 %v370, %v371
        %v373 = vand.u32 %v372, 4294901760
        %374 = vmatpush1.msra.mxu0 %v373
        %375 = vmatprep.subr.mxu0 0.0
        %v376 = vand.u32 %v282, 4294901760
        %v377 = vsub.f32 %v282, %v376
        %v378 = vand.u32 %v377, 4294901760
        %v379 = vsub.f32 %v377, %v378
        %v380 = vand.u32 %v379, 4294901760
        %381 = vmatpush1.msra.mxu0 %v380
        %382 = vmatprep.subr.mxu0 0.0
        %v383 = vand.u32 %v283, 4294901760
        %v384 = vsub.f32 %v283, %v383
        %v385 = vand.u32 %v384, 4294901760
        %v386 = vsub.f32 %v384, %v385
        %v387 = vand.u32 %v386, 4294901760
        %388 = vmatpush1.msra.mxu0 %v387
        %389 = vmatprep.subr.mxu0 0.0
        %v390 = vand.u32 %v284, 4294901760
        %v391 = vsub.f32 %v284, %v390
        %v392 = vand.u32 %v391, 4294901760
        %v393 = vsub.f32 %v391, %v392
        %v394 = vand.u32 %v393, 4294901760
        %395 = vmatpush1.msra.mxu0 %v394
        %396 = vmatprep.subr.mxu0 0.0
        %397 = vmatpush1.msra.mxu0 0.0
        %398 = vmatprep.subr.mxu0 0.0
        %399 = vmatpush1.msra.mxu0 0.0
        %400 = vmatprep.subr.mxu0 0.0
        %401 = vmatpush1.msra.mxu0 0.0
        %402 = vmatprep.subr.mxu0 0.0
        %403 = vmatpush1.msra.mxu0 0.0
        %404 = vmatprep.subr.mxu0 0.0
        %405 = vmatpush1.msra.mxu0 0.0
        %406 = vmatprep.subr.mxu0 0.0
        %407 = vmatpush1.msra.mxu0 0.0
        %408 = vmatprep.subr.mxu0 0.0
        %409 = vmatpush1.msra.mxu0 0.0
        %410 = vmatprep.subr.mxu0 0.0
        %411 = vmatpush1.msra.mxu0 0.0
        %412 = vmatprep.subr.mxu0 0.0
        %413 = vmatpush1.msra.mxu0 0.0
        %414 = vmatprep.subr.mxu0 0.0
        %415 = vmatpush1.msra.mxu0 0.0
        %416 = vmatprep.subr.mxu0 0.0
        %417 = vmatpush1.msra.mxu0 0.0
        %418 = vmatprep.subr.mxu0 0.0
        %419 = vmatpush1.msra.mxu0 0.0
        %420 = vmatprep.subr.mxu0 0.0
        %421 = vmatpush1.msra.mxu0 0.0
        %422 = vmatprep.subr.mxu0 0.0
        %423 = vmatpush1.msra.mxu0 0.0
        %424 = vmatprep.subr.mxu0 0.0
        %425 = vmatpush1.msra.mxu0 0.0
        %426 = vmatprep.subr.mxu0 0.0
        %427 = vmatpush1.msra.mxu0 0.0
        %428 = vmatprep.subr.mxu0 0.0
        %429 = vmatpush1.msra.mxu0 0.0
        %430 = vmatprep.subr.mxu0 0.0
        %431 = vmatpush1.msra.mxu0 0.0
        %432 = vmatprep.subr.mxu0 0.0
        %433 = vmatpush1.msra.mxu0 0.0
        %434 = vmatprep.subr.mxu0 0.0
        %435 = vmatpush1.msra.mxu0 0.0
        %436 = vmatprep.subr.mxu0 0.0
        %437 = vmatpush1.msra.mxu0 0.0
        %438 = vmatprep.subr.mxu0 0.0
        %439 = vmatpush1.msra.mxu0 0.0
        %440 = vmatprep.subr.mxu0 0.0
        %441 = vmatpush1.msra.mxu0 0.0
        %442 = vmatprep.subr.mxu0 0.0
        %443 = vmatpush1.msra.mxu0 0.0
        %444 = vmatprep.subr.mxu0 0.0
        %445 = vmatpush1.msra.mxu0 0.0
        %446 = vmatprep.subr.mxu0 0.0
        %447 = vmatpush1.msra.mxu0 0.0
        %448 = vmatprep.subr.mxu0 0.0
        %449 = vmatpush1.msra.mxu0 0.0
        %450 = vmatprep.subr.mxu0 0.0
        %451 = vmatpush1.msra.mxu0 0.0
        %452 = vmatprep.mubr.f32.mxu0 0.0
        %v453 = vand.u32 %v287, 4294901760
        %454 = vmatmul.mubr.f32.gmra.mrb[0].mxu0 %v453
        %v455 = vpop.f32.mrb[0].mxu0
        %v456 = vadd.f32 %v365, %v455
        %v457 = vpop.f32.mrb[0].mxu0
        %458 = vdwg.mxu0
        %459 = vmatprep.subr.mxu0 0.0
        %v460 = vand.u32 %v281, 4294901760
        %v461 = vsub.f32 %v281, %v460
        %462 = vmatpush1.msra.mxu0 %v461
        %463 = vmatprep.subr.mxu0 0.0
        %v464 = vand.u32 %v282, 4294901760
        %v465 = vsub.f32 %v282, %v464
        %466 = vmatpush1.msra.mxu0 %v465
        %467 = vmatprep.subr.mxu0 0.0
        %v468 = vand.u32 %v283, 4294901760
        %v469 = vsub.f32 %v283, %v468
        %470 = vmatpush1.msra.mxu0 %v469
        %471 = vmatprep.subr.mxu0 0.0
        %v472 = vand.u32 %v284, 4294901760
        %v473 = vsub.f32 %v284, %v472
        %474 = vmatpush1.msra.mxu0 %v473
        %475 = vmatprep.subr.mxu0 0.0
        %476 = vmatpush1.msra.mxu0 0.0
        %477 = vmatprep.subr.mxu0 0.0
        %478 = vmatpush1.msra.mxu0 0.0
        %479 = vmatprep.subr.mxu0 0.0
        %480 = vmatpush1.msra.mxu0 0.0
        %481 = vmatprep.subr.mxu0 0.0
        %482 = vmatpush1.msra.mxu0 0.0
        %483 = vmatprep.subr.mxu0 0.0
        %484 = vmatpush1.msra.mxu0 0.0
        %485 = vmatprep.subr.mxu0 0.0
        %486 = vmatpush1.msra.mxu0 0.0
        %487 = vmatprep.subr.mxu0 0.0
        %488 = vmatpush1.msra.mxu0 0.0
        %489 = vmatprep.subr.mxu0 0.0
        %490 = vmatpush1.msra.mxu0 0.0
        %491 = vmatprep.subr.mxu0 0.0
        %492 = vmatpush1.msra.mxu0 0.0
        %493 = vmatprep.subr.mxu0 0.0
        %494 = vmatpush1.msra.mxu0 0.0
        %495 = vmatprep.subr.mxu0 0.0
        %496 = vmatpush1.msra.mxu0 0.0
        %497 = vmatprep.subr.mxu0 0.0
        %498 = vmatpush1.msra.mxu0 0.0
        %499 = vmatprep.subr.mxu0 0.0
        %500 = vmatpush1.msra.mxu0 0.0
        %501 = vmatprep.subr.mxu0 0.0
        %502 = vmatpush1.msra.mxu0 0.0
        %503 = vmatprep.subr.mxu0 0.0
        %504 = vmatpush1.msra.mxu0 0.0
        %505 = vmatprep.subr.mxu0 0.0
        %506 = vmatpush1.msra.mxu0 0.0
        %507 = vmatprep.subr.mxu0 0.0
        %508 = vmatpush1.msra.mxu0 0.0
        %509 = vmatprep.subr.mxu0 0.0
        %510 = vmatpush1.msra.mxu0 0.0
        %511 = vmatprep.subr.mxu0 0.0
        %512 = vmatpush1.msra.mxu0 0.0
        %513 = vmatprep.subr.mxu0 0.0
        %514 = vmatpush1.msra.mxu0 0.0
        %515 = vmatprep.subr.mxu0 0.0
        %516 = vmatpush1.msra.mxu0 0.0
        %517 = vmatprep.subr.mxu0 0.0
        %518 = vmatpush1.msra.mxu0 0.0
        %519 = vmatprep.subr.mxu0 0.0
        %520 = vmatpush1.msra.mxu0 0.0
        %521 = vmatprep.subr.mxu0 0.0
        %522 = vmatpush1.msra.mxu0 0.0
        %523 = vmatprep.subr.mxu0 0.0
        %524 = vmatpush1.msra.mxu0 0.0
        %525 = vmatprep.subr.mxu0 0.0
        %526 = vmatpush1.msra.mxu0 0.0
        %527 = vmatprep.subr.mxu0 0.0
        %528 = vmatpush1.msra.mxu0 0.0
        %529 = vmatprep.subr.mxu0 0.0
        %530 = vmatpush1.msra.mxu0 0.0
        %531 = vmatprep.mubr.f32.mxu0 0.0
        %v532 = vand.u32 %v287, 4294901760
        %v533 = vsub.f32 %v287, %v532
        %534 = vmatmul.mubr.f32.gmra.mrb[0].mxu0 %v533
        %v535 = vpop.f32.mrb[0].mxu0
        %v536 = vadd.f32 %v456, %v535
        %v537 = vpop.f32.mrb[0].mxu0
        %538 = vdwg.mxu0
        %539 = vmatprep.subr.mxu0 0.0
        %v540 = vand.u32 %v281, 4294901760
        %541 = vmatpush1.msra.mxu0 %v540
        %542 = vmatprep.subr.mxu0 0.0
        %v543 = vand.u32 %v282, 4294901760
        %544 = vmatpush1.msra.mxu0 %v543
        %545 = vmatprep.subr.mxu0 0.0
        %v546 = vand.u32 %v283, 4294901760
        %547 = vmatpush1.msra.mxu0 %v546
        %548 = vmatprep.subr.mxu0 0.0
        %v549 = vand.u32 %v284, 4294901760
        %550 = vmatpush1.msra.mxu0 %v549
        %551 = vmatprep.subr.mxu0 0.0
        %552 = vmatpush1.msra.mxu0 0.0
        %553 = vmatprep.subr.mxu0 0.0
        %554 = vmatpush1.msra.mxu0 0.0
        %555 = vmatprep.subr.mxu0 0.0
        %556 = vmatpush1.msra.mxu0 0.0
        %557 = vmatprep.subr.mxu0 0.0
        %558 = vmatpush1.msra.mxu0 0.0
        %559 = vmatprep.subr.mxu0 0.0
        %560 = vmatpush1.msra.mxu0 0.0
        %561 = vmatprep.subr.mxu0 0.0
        %562 = vmatpush1.msra.mxu0 0.0
        %563 = vmatprep.subr.mxu0 0.0
        %564 = vmatpush1.msra.mxu0 0.0
        %565 = vmatprep.subr.mxu0 0.0
        %566 = vmatpush1.msra.mxu0 0.0
        %567 = vmatprep.subr.mxu0 0.0
        %568 = vmatpush1.msra.mxu0 0.0
        %569 = vmatprep.subr.mxu0 0.0
        %570 = vmatpush1.msra.mxu0 0.0
        %571 = vmatprep.subr.mxu0 0.0
        %572 = vmatpush1.msra.mxu0 0.0
        %573 = vmatprep.subr.mxu0 0.0
        %574 = vmatpush1.msra.mxu0 0.0
        %575 = vmatprep.subr.mxu0 0.0
        %576 = vmatpush1.msra.mxu0 0.0
        %577 = vmatprep.subr.mxu0 0.0
        %578 = vmatpush1.msra.mxu0 0.0
        %579 = vmatprep.subr.mxu0 0.0
        %580 = vmatpush1.msra.mxu0 0.0
        %581 = vmatprep.subr.mxu0 0.0
        %582 = vmatpush1.msra.mxu0 0.0
        %583 = vmatprep.subr.mxu0 0.0
        %584 = vmatpush1.msra.mxu0 0.0
        %585 = vmatprep.subr.mxu0 0.0
        %586 = vmatpush1.msra.mxu0 0.0
        %587 = vmatprep.subr.mxu0 0.0
        %588 = vmatpush1.msra.mxu0 0.0
        %589 = vmatprep.subr.mxu0 0.0
        %590 = vmatpush1.msra.mxu0 0.0
        %591 = vmatprep.subr.mxu0 0.0
        %592 = vmatpush1.msra.mxu0 0.0
        %593 = vmatprep.subr.mxu0 0.0
        %594 = vmatpush1.msra.mxu0 0.0
        %595 = vmatprep.subr.mxu0 0.0
        %596 = vmatpush1.msra.mxu0 0.0
        %597 = vmatprep.subr.mxu0 0.0
        %598 = vmatpush1.msra.mxu0 0.0
        %599 = vmatprep.subr.mxu0 0.0
        %600 = vmatpush1.msra.mxu0 0.0
        %601 = vmatprep.subr.mxu0 0.0
        %602 = vmatpush1.msra.mxu0 0.0
        %603 = vmatprep.subr.mxu0 0.0
        %604 = vmatpush1.msra.mxu0 0.0
        %605 = vmatprep.subr.mxu0 0.0
        %606 = vmatpush1.msra.mxu0 0.0
        %607 = vmatprep.mubr.f32.mxu0 0.0
        %v608 = vand.u32 %v287, 4294901760
        %v609 = vsub.f32 %v287, %v608
        %v610 = vand.u32 %v609, 4294901760
        %611 = vmatmul.mubr.f32.gmra.mrb[0].mxu0 %v610
        %v612 = vpop.f32.mrb[0].mxu0
        %v613 = vadd.f32 %v536, %v612
        %v614 = vpop.f32.mrb[0].mxu0
        %615 = vdwg.mxu0
        %616 = vmatprep.subr.mxu0 0.0
        %v617 = vand.u32 %v281, 4294901760
        %v618 = vsub.f32 %v281, %v617
        %v619 = vand.u32 %v618, 4294901760
        %620 = vmatpush1.msra.mxu0 %v619
        %621 = vmatprep.subr.mxu0 0.0
        %v622 = vand.u32 %v282, 4294901760
        %v623 = vsub.f32 %v282, %v622
        %v624 = vand.u32 %v623, 4294901760
        %625 = vmatpush1.msra.mxu0 %v624
        %626 = vmatprep.subr.mxu0 0.0
        %v627 = vand.u32 %v283, 4294901760
        %v628 = vsub.f32 %v283, %v627
        %v629 = vand.u32 %v628, 4294901760
        %630 = vmatpush1.msra.mxu0 %v629
        %631 = vmatprep.subr.mxu0 0.0
        %v632 = vand.u32 %v284, 4294901760
        %v633 = vsub.f32 %v284, %v632
        %v634 = vand.u32 %v633, 4294901760
        %635 = vmatpush1.msra.mxu0 %v634
        %636 = vmatprep.subr.mxu0 0.0
        %637 = vmatpush1.msra.mxu0 0.0
        %638 = vmatprep.subr.mxu0 0.0
        %639 = vmatpush1.msra.mxu0 0.0
        %640 = vmatprep.subr.mxu0 0.0
        %641 = vmatpush1.msra.mxu0 0.0
        %642 = vmatprep.subr.mxu0 0.0
        %643 = vmatpush1.msra.mxu0 0.0
        %644 = vmatprep.subr.mxu0 0.0
        %645 = vmatpush1.msra.mxu0 0.0
        %646 = vmatprep.subr.mxu0 0.0
        %647 = vmatpush1.msra.mxu0 0.0
        %648 = vmatprep.subr.mxu0 0.0
        %649 = vmatpush1.msra.mxu0 0.0
        %650 = vmatprep.subr.mxu0 0.0
        %651 = vmatpush1.msra.mxu0 0.0
        %652 = vmatprep.subr.mxu0 0.0
        %653 = vmatpush1.msra.mxu0 0.0
        %654 = vmatprep.subr.mxu0 0.0
        %655 = vmatpush1.msra.mxu0 0.0
        %656 = vmatprep.subr.mxu0 0.0
        %657 = vmatpush1.msra.mxu0 0.0
        %658 = vmatprep.subr.mxu0 0.0
        %659 = vmatpush1.msra.mxu0 0.0
        %660 = vmatprep.subr.mxu0 0.0
        %661 = vmatpush1.msra.mxu0 0.0
        %662 = vmatprep.subr.mxu0 0.0
        %663 = vmatpush1.msra.mxu0 0.0
        %664 = vmatprep.subr.mxu0 0.0
        %665 = vmatpush1.msra.mxu0 0.0
        %666 = vmatprep.subr.mxu0 0.0
        %667 = vmatpush1.msra.mxu0 0.0
        %668 = vmatprep.subr.mxu0 0.0
        %669 = vmatpush1.msra.mxu0 0.0
        %670 = vmatprep.subr.mxu0 0.0
        %671 = vmatpush1.msra.mxu0 0.0
        %672 = vmatprep.subr.mxu0 0.0
        %673 = vmatpush1.msra.mxu0 0.0
        %674 = vmatprep.subr.mxu0 0.0
        %675 = vmatpush1.msra.mxu0 0.0
        %676 = vmatprep.subr.mxu0 0.0
        %677 = vmatpush1.msra.mxu0 0.0
        %678 = vmatprep.subr.mxu0 0.0
        %679 = vmatpush1.msra.mxu0 0.0
        %680 = vmatprep.subr.mxu0 0.0
        %681 = vmatpush1.msra.mxu0 0.0
        %682 = vmatprep.subr.mxu0 0.0
        %683 = vmatpush1.msra.mxu0 0.0
        %684 = vmatprep.subr.mxu0 0.0
        %685 = vmatpush1.msra.mxu0 0.0
        %686 = vmatprep.subr.mxu0 0.0
        %687 = vmatpush1.msra.mxu0 0.0
        %688 = vmatprep.subr.mxu0 0.0
        %689 = vmatpush1.msra.mxu0 0.0
        %690 = vmatprep.subr.mxu0 0.0
        %691 = vmatpush1.msra.mxu0 0.0
        %692 = vmatprep.mubr.f32.mxu0 0.0
        %v693 = vand.u32 %v287, 4294901760
        %694 = vmatmul.mubr.f32.gmra.mrb[0].mxu0 %v693
        %v695 = vpop.f32.mrb[0].mxu0
        %v696 = vadd.f32 %v613, %v695
        %v697 = vpop.f32.mrb[0].mxu0
        %698 = vdwg.mxu0
        %699 = vmatprep.subr.mxu0 0.0
        %v700 = vand.u32 %v281, 4294901760
        %701 = vmatpush1.msra.mxu0 %v700
        %702 = vmatprep.subr.mxu0 0.0
        %v703 = vand.u32 %v282, 4294901760
        %704 = vmatpush1.msra.mxu0 %v703
        %705 = vmatprep.subr.mxu0 0.0
        %v706 = vand.u32 %v283, 4294901760
        %707 = vmatpush1.msra.mxu0 %v706
        %708 = vmatprep.subr.mxu0 0.0
        %v709 = vand.u32 %v284, 4294901760
        %710 = vmatpush1.msra.mxu0 %v709
        %711 = vmatprep.subr.mxu0 0.0
        %712 = vmatpush1.msra.mxu0 0.0
        %713 = vmatprep.subr.mxu0 0.0
        %714 = vmatpush1.msra.mxu0 0.0
        %715 = vmatprep.subr.mxu0 0.0
        %716 = vmatpush1.msra.mxu0 0.0
        %717 = vmatprep.subr.mxu0 0.0
        %718 = vmatpush1.msra.mxu0 0.0
        %719 = vmatprep.subr.mxu0 0.0
        %720 = vmatpush1.msra.mxu0 0.0
        %721 = vmatprep.subr.mxu0 0.0
        %722 = vmatpush1.msra.mxu0 0.0
        %723 = vmatprep.subr.mxu0 0.0
        %724 = vmatpush1.msra.mxu0 0.0
        %725 = vmatprep.subr.mxu0 0.0
        %726 = vmatpush1.msra.mxu0 0.0
        %727 = vmatprep.subr.mxu0 0.0
        %728 = vmatpush1.msra.mxu0 0.0
        %729 = vmatprep.subr.mxu0 0.0
        %730 = vmatpush1.msra.mxu0 0.0
        %731 = vmatprep.subr.mxu0 0.0
        %732 = vmatpush1.msra.mxu0 0.0
        %733 = vmatprep.subr.mxu0 0.0
        %734 = vmatpush1.msra.mxu0 0.0
        %735 = vmatprep.subr.mxu0 0.0
        %736 = vmatpush1.msra.mxu0 0.0
        %737 = vmatprep.subr.mxu0 0.0
        %738 = vmatpush1.msra.mxu0 0.0
        %739 = vmatprep.subr.mxu0 0.0
        %740 = vmatpush1.msra.mxu0 0.0
        %741 = vmatprep.subr.mxu0 0.0
        %742 = vmatpush1.msra.mxu0 0.0
        %743 = vmatprep.subr.mxu0 0.0
        %744 = vmatpush1.msra.mxu0 0.0
        %745 = vmatprep.subr.mxu0 0.0
        %746 = vmatpush1.msra.mxu0 0.0
        %747 = vmatprep.subr.mxu0 0.0
        %748 = vmatpush1.msra.mxu0 0.0
        %749 = vmatprep.subr.mxu0 0.0
        %750 = vmatpush1.msra.mxu0 0.0
        %751 = vmatprep.subr.mxu0 0.0
        %752 = vmatpush1.msra.mxu0 0.0
        %753 = vmatprep.subr.mxu0 0.0
        %754 = vmatpush1.msra.mxu0 0.0
        %755 = vmatprep.subr.mxu0 0.0
        %756 = vmatpush1.msra.mxu0 0.0
        %757 = vmatprep.subr.mxu0 0.0
        %758 = vmatpush1.msra.mxu0 0.0
        %759 = vmatprep.subr.mxu0 0.0
        %760 = vmatpush1.msra.mxu0 0.0
        %761 = vmatprep.subr.mxu0 0.0
        %762 = vmatpush1.msra.mxu0 0.0
        %763 = vmatprep.subr.mxu0 0.0
        %764 = vmatpush1.msra.mxu0 0.0
        %765 = vmatprep.subr.mxu0 0.0
        %766 = vmatpush1.msra.mxu0 0.0
        %767 = vmatprep.mubr.f32.mxu0 0.0
        %v768 = vand.u32 %v287, 4294901760
        %769 = vmatmul.mubr.f32.gmra.mrb[0].mxu0 %v768
        %v770 = vpop.f32.mrb[0].mxu0
        %v771 = vadd.f32 %v696, %v770
        %v772 = vpop.f32.mrb[0].mxu0
        %773 = vdwg.mxu0
        %775 = vrot.lane.b32.xlu0 %v771, 96
        %v776 = vpop.permute.xlu0 %775
        %vm777 = vcmask 31744
        %v778 = vsel %vm777, %v771, 0
        %v780 = vsel %vm777, %v776, 0
        %782 = vmatprep.subr.mxu0 0.0
        %v783 = vand.u32 %v780, 4294901760
        %784 = vmatpush1.xpose.msra.mxu0 %v783
        %785 = vmatprep.subr.mxu0 0.0
        %786 = vmatpush1.xpose.msra.mxu0 0.0
        %787 = vmatprep.subr.mxu0 0.0
        %788 = vmatpush1.xpose.msra.mxu0 0.0
        %789 = vmatprep.subr.mxu0 0.0
        %790 = vmatpush1.xpose.msra.mxu0 0.0
        %791 = vmatprep.subr.mxu0 0.0
        %792 = vmatpush1.xpose.msra.mxu0 0.0
        %793 = vmatprep.subr.mxu0 0.0
        %794 = vmatpush1.xpose.msra.mxu0 0.0
        %795 = vmatprep.subr.mxu0 0.0
        %796 = vmatpush1.xpose.msra.mxu0 0.0
        %797 = vmatprep.subr.mxu0 0.0
        %798 = vmatpush1.xpose.msra.mxu0 0.0
        %799 = vmatprep.subr.mxu0 0.0
        %800 = vmatpush1.xpose.msra.mxu0 0.0
        %801 = vmatprep.subr.mxu0 0.0
        %802 = vmatpush1.xpose.msra.mxu0 0.0
        %803 = vmatprep.subr.mxu0 0.0
        %804 = vmatpush1.xpose.msra.mxu0 0.0
        %805 = vmatprep.subr.mxu0 0.0
        %806 = vmatpush1.xpose.msra.mxu0 0.0
        %807 = vmatprep.subr.mxu0 0.0
        %808 = vmatpush1.xpose.msra.mxu0 0.0
        %809 = vmatprep.subr.mxu0 0.0
        %810 = vmatpush1.xpose.msra.mxu0 0.0
        %811 = vmatprep.subr.mxu0 0.0
        %812 = vmatpush1.xpose.msra.mxu0 0.0
        %813 = vmatprep.subr.mxu0 0.0
        %814 = vmatpush1.xpose.msra.mxu0 0.0
        %815 = vmatprep.subr.mxu0 0.0
        %816 = vmatpush1.xpose.msra.mxu0 0.0
        %817 = vmatprep.subr.mxu0 0.0
        %818 = vmatpush1.xpose.msra.mxu0 0.0
        %819 = vmatprep.subr.mxu0 0.0
        %820 = vmatpush1.xpose.msra.mxu0 0.0
        %821 = vmatprep.subr.mxu0 0.0
        %822 = vmatpush1.xpose.msra.mxu0 0.0
        %823 = vmatprep.subr.mxu0 0.0
        %824 = vmatpush1.xpose.msra.mxu0 0.0
        %825 = vmatprep.subr.mxu0 0.0
        %826 = vmatpush1.xpose.msra.mxu0 0.0
        %827 = vmatprep.subr.mxu0 0.0
        %828 = vmatpush1.xpose.msra.mxu0 0.0
        %829 = vmatprep.subr.mxu0 0.0
        %830 = vmatpush1.xpose.msra.mxu0 0.0
        %831 = vmatprep.subr.mxu0 0.0
        %832 = vmatpush1.xpose.msra.mxu0 0.0
        %833 = vmatprep.subr.mxu0 0.0
        %834 = vmatpush1.xpose.msra.mxu0 0.0
        %835 = vmatprep.subr.mxu0 0.0
        %836 = vmatpush1.xpose.msra.mxu0 0.0
        %837 = vmatprep.subr.mxu0 0.0
        %838 = vmatpush1.xpose.msra.mxu0 0.0
        %839 = vmatprep.subr.mxu0 0.0
        %840 = vmatpush1.xpose.msra.mxu0 0.0
        %841 = vmatprep.subr.mxu0 0.0
        %842 = vmatpush1.xpose.msra.mxu0 0.0
        %843 = vmatprep.subr.mxu0 0.0
        %844 = vmatpush1.xpose.msra.mxu0 0.0
        %845 = vmatprep.subr.mxu0 0.0
        %846 = vmatpush1.xpose.msra.mxu0 0.0
        %847 = vmatprep.mubr.f32.mxu0 0.0
        %v848 = vand.u32 %v778, 4294901760
        %v849 = vsub.f32 %v778, %v848
        %v850 = vand.u32 %v849, 4294901760
        %v851 = vsub.f32 %v849, %v850
        %v852 = vand.u32 %v851, 4294901760
        %853 = vmatmul.mubr.f32.gmra.mrb[0].mxu0 %v852
        %v854 = vpop.f32.mrb[0].mxu0
        %v855 = vadd.f32 0.0, %v854
        %v856 = vpop.f32.mrb[0].mxu0
        %857 = vdwg.mxu0
        %858 = vmatprep.subr.mxu0 0.0
        %v859 = vand.u32 %v780, 4294901760
        %v860 = vsub.f32 %v780, %v859
        %v861 = vand.u32 %v860, 4294901760
        %v862 = vsub.f32 %v860, %v861
        %v863 = vand.u32 %v862, 4294901760
        %864 = vmatpush1.xpose.msra.mxu0 %v863
        %865 = vmatprep.subr.mxu0 0.0
        %866 = vmatpush1.xpose.msra.mxu0 0.0
        %867 = vmatprep.subr.mxu0 0.0
        %868 = vmatpush1.xpose.msra.mxu0 0.0
        %869 = vmatprep.subr.mxu0 0.0
        %870 = vmatpush1.xpose.msra.mxu0 0.0
        %871 = vmatprep.subr.mxu0 0.0
        %872 = vmatpush1.xpose.msra.mxu0 0.0
        %873 = vmatprep.subr.mxu0 0.0
        %874 = vmatpush1.xpose.msra.mxu0 0.0
        %875 = vmatprep.subr.mxu0 0.0
        %876 = vmatpush1.xpose.msra.mxu0 0.0
        %877 = vmatprep.subr.mxu0 0.0
        %878 = vmatpush1.xpose.msra.mxu0 0.0
        %879 = vmatprep.subr.mxu0 0.0
        %880 = vmatpush1.xpose.msra.mxu0 0.0
        %881 = vmatprep.subr.mxu0 0.0
        %882 = vmatpush1.xpose.msra.mxu0 0.0
        %883 = vmatprep.subr.mxu0 0.0
        %884 = vmatpush1.xpose.msra.mxu0 0.0
        %885 = vmatprep.subr.mxu0 0.0
        %886 = vmatpush1.xpose.msra.mxu0 0.0
        %887 = vmatprep.subr.mxu0 0.0
        %888 = vmatpush1.xpose.msra.mxu0 0.0
        %889 = vmatprep.subr.mxu0 0.0
        %890 = vmatpush1.xpose.msra.mxu0 0.0
        %891 = vmatprep.subr.mxu0 0.0
        %892 = vmatpush1.xpose.msra.mxu0 0.0
        %893 = vmatprep.subr.mxu0 0.0
        %894 = vmatpush1.xpose.msra.mxu0 0.0
        %895 = vmatprep.subr.mxu0 0.0
        %896 = vmatpush1.xpose.msra.mxu0 0.0
        %897 = vmatprep.subr.mxu0 0.0
        %898 = vmatpush1.xpose.msra.mxu0 0.0
        %899 = vmatprep.subr.mxu0 0.0
        %900 = vmatpush1.xpose.msra.mxu0 0.0
        %901 = vmatprep.subr.mxu0 0.0
        %902 = vmatpush1.xpose.msra.mxu0 0.0
        %903 = vmatprep.subr.mxu0 0.0
        %904 = vmatpush1.xpose.msra.mxu0 0.0
        %905 = vmatprep.subr.mxu0 0.0
        %906 = vmatpush1.xpose.msra.mxu0 0.0
        %907 = vmatprep.subr.mxu0 0.0
        %908 = vmatpush1.xpose.msra.mxu0 0.0
        %909 = vmatprep.subr.mxu0 0.0
        %910 = vmatpush1.xpose.msra.mxu0 0.0
        %911 = vmatprep.subr.mxu0 0.0
        %912 = vmatpush1.xpose.msra.mxu0 0.0
        %913 = vmatprep.subr.mxu0 0.0
        %914 = vmatpush1.xpose.msra.mxu0 0.0
        %915 = vmatprep.subr.mxu0 0.0
        %916 = vmatpush1.xpose.msra.mxu0 0.0
        %917 = vmatprep.subr.mxu0 0.0
        %918 = vmatpush1.xpose.msra.mxu0 0.0
        %919 = vmatprep.subr.mxu0 0.0
        %920 = vmatpush1.xpose.msra.mxu0 0.0
        %921 = vmatprep.subr.mxu0 0.0
        %922 = vmatpush1.xpose.msra.mxu0 0.0
        %923 = vmatprep.subr.mxu0 0.0
        %924 = vmatpush1.xpose.msra.mxu0 0.0
        %925 = vmatprep.subr.mxu0 0.0
        %926 = vmatpush1.xpose.msra.mxu0 0.0
        %927 = vmatprep.mubr.f32.mxu0 0.0
        %v928 = vand.u32 %v778, 4294901760
        %929 = vmatmul.mubr.f32.gmra.mrb[0].mxu0 %v928
        %v930 = vpop.f32.mrb[0].mxu0
        %v931 = vadd.f32 %v855, %v930
        %v932 = vpop.f32.mrb[0].mxu0
        %933 = vdwg.mxu0
        %934 = vmatprep.subr.mxu0 0.0
        %v935 = vand.u32 %v780, 4294901760
        %v936 = vsub.f32 %v780, %v935
        %937 = vmatpush1.xpose.msra.mxu0 %v936
        %938 = vmatprep.subr.mxu0 0.0
        %939 = vmatpush1.xpose.msra.mxu0 0.0
        %940 = vmatprep.subr.mxu0 0.0
        %941 = vmatpush1.xpose.msra.mxu0 0.0
        %942 = vmatprep.subr.mxu0 0.0
        %943 = vmatpush1.xpose.msra.mxu0 0.0
        %944 = vmatprep.subr.mxu0 0.0
        %945 = vmatpush1.xpose.msra.mxu0 0.0
        %946 = vmatprep.subr.mxu0 0.0
        %947 = vmatpush1.xpose.msra.mxu0 0.0
        %948 = vmatprep.subr.mxu0 0.0
        %949 = vmatpush1.xpose.msra.mxu0 0.0
        %950 = vmatprep.subr.mxu0 0.0
        %951 = vmatpush1.xpose.msra.mxu0 0.0
        %952 = vmatprep.subr.mxu0 0.0
        %953 = vmatpush1.xpose.msra.mxu0 0.0
        %954 = vmatprep.subr.mxu0 0.0
        %955 = vmatpush1.xpose.msra.mxu0 0.0
        %956 = vmatprep.subr.mxu0 0.0
        %957 = vmatpush1.xpose.msra.mxu0 0.0
        %958 = vmatprep.subr.mxu0 0.0
        %959 = vmatpush1.xpose.msra.mxu0 0.0
        %960 = vmatprep.subr.mxu0 0.0
        %961 = vmatpush1.xpose.msra.mxu0 0.0
        %962 = vmatprep.subr.mxu0 0.0
        %963 = vmatpush1.xpose.msra.mxu0 0.0
        %964 = vmatprep.subr.mxu0 0.0
        %965 = vmatpush1.xpose.msra.mxu0 0.0
        %966 = vmatprep.subr.mxu0 0.0
        %967 = vmatpush1.xpose.msra.mxu0 0.0
        %968 = vmatprep.subr.mxu0 0.0
        %969 = vmatpush1.xpose.msra.mxu0 0.0
        %970 = vmatprep.subr.mxu0 0.0
        %971 = vmatpush1.xpose.msra.mxu0 0.0
        %972 = vmatprep.subr.mxu0 0.0
        %973 = vmatpush1.xpose.msra.mxu0 0.0
        %974 = vmatprep.subr.mxu0 0.0
        %975 = vmatpush1.xpose.msra.mxu0 0.0
        %976 = vmatprep.subr.mxu0 0.0
        %977 = vmatpush1.xpose.msra.mxu0 0.0
        %978 = vmatprep.subr.mxu0 0.0
        %979 = vmatpush1.xpose.msra.mxu0 0.0
        %980 = vmatprep.subr.mxu0 0.0
        %981 = vmatpush1.xpose.msra.mxu0 0.0
        %982 = vmatprep.subr.mxu0 0.0
        %983 = vmatpush1.xpose.msra.mxu0 0.0
        %984 = vmatprep.subr.mxu0 0.0
        %985 = vmatpush1.xpose.msra.mxu0 0.0
        %986 = vmatprep.subr.mxu0 0.0
        %987 = vmatpush1.xpose.msra.mxu0 0.0
        %988 = vmatprep.subr.mxu0 0.0
        %989 = vmatpush1.xpose.msra.mxu0 0.0
        %990 = vmatprep.subr.mxu0 0.0
        %991 = vmatpush1.xpose.msra.mxu0 0.0
        %992 = vmatprep.subr.mxu0 0.0
        %993 = vmatpush1.xpose.msra.mxu0 0.0
        %994 = vmatprep.subr.mxu0 0.0
        %995 = vmatpush1.xpose.msra.mxu0 0.0
        %996 = vmatprep.subr.mxu0 0.0
        %997 = vmatpush1.xpose.msra.mxu0 0.0
        %998 = vmatprep.subr.mxu0 0.0
        %999 = vmatpush1.xpose.msra.mxu0 0.0
        %1000 = vmatprep.mubr.f32.mxu0 0.0
        %v1001 = vand.u32 %v778, 4294901760
        %v1002 = vsub.f32 %v778, %v1001
        %1003 = vmatmul.mubr.f32.gmra.mrb[0].mxu0 %v1002
        %v1004 = vpop.f32.mrb[0].mxu0
        %v1005 = vadd.f32 %v931, %v1004
        %v1006 = vpop.f32.mrb[0].mxu0
        %1007 = vdwg.mxu0
        %1008 = vmatprep.subr.mxu0 0.0
        %v1009 = vand.u32 %v780, 4294901760
        %1010 = vmatpush1.xpose.msra.mxu0 %v1009
        %1011 = vmatprep.subr.mxu0 0.0
        %1012 = vmatpush1.xpose.msra.mxu0 0.0
        %1013 = vmatprep.subr.mxu0 0.0
        %1014 = vmatpush1.xpose.msra.mxu0 0.0
        %1015 = vmatprep.subr.mxu0 0.0
        %1016 = vmatpush1.xpose.msra.mxu0 0.0
        %1017 = vmatprep.subr.mxu0 0.0
        %1018 = vmatpush1.xpose.msra.mxu0 0.0
        %1019 = vmatprep.subr.mxu0 0.0
        %1020 = vmatpush1.xpose.msra.mxu0 0.0
        %1021 = vmatprep.subr.mxu0 0.0
        %1022 = vmatpush1.xpose.msra.mxu0 0.0
        %1023 = vmatprep.subr.mxu0 0.0
        %1024 = vmatpush1.xpose.msra.mxu0 0.0
        %1025 = vmatprep.subr.mxu0 0.0
        %1026 = vmatpush1.xpose.msra.mxu0 0.0
        %1027 = vmatprep.subr.mxu0 0.0
        %1028 = vmatpush1.xpose.msra.mxu0 0.0
        %1029 = vmatprep.subr.mxu0 0.0
        %1030 = vmatpush1.xpose.msra.mxu0 0.0
        %1031 = vmatprep.subr.mxu0 0.0
        %1032 = vmatpush1.xpose.msra.mxu0 0.0
        %1033 = vmatprep.subr.mxu0 0.0
        %1034 = vmatpush1.xpose.msra.mxu0 0.0
        %1035 = vmatprep.subr.mxu0 0.0
        %1036 = vmatpush1.xpose.msra.mxu0 0.0
        %1037 = vmatprep.subr.mxu0 0.0
        %1038 = vmatpush1.xpose.msra.mxu0 0.0
        %1039 = vmatprep.subr.mxu0 0.0
        %1040 = vmatpush1.xpose.msra.mxu0 0.0
        %1041 = vmatprep.subr.mxu0 0.0
        %1042 = vmatpush1.xpose.msra.mxu0 0.0
        %1043 = vmatprep.subr.mxu0 0.0
        %1044 = vmatpush1.xpose.msra.mxu0 0.0
        %1045 = vmatprep.subr.mxu0 0.0
        %1046 = vmatpush1.xpose.msra.mxu0 0.0
        %1047 = vmatprep.subr.mxu0 0.0
        %1048 = vmatpush1.xpose.msra.mxu0 0.0
        %1049 = vmatprep.subr.mxu0 0.0
        %1050 = vmatpush1.xpose.msra.mxu0 0.0
        %1051 = vmatprep.subr.mxu0 0.0
        %1052 = vmatpush1.xpose.msra.mxu0 0.0
        %1053 = vmatprep.subr.mxu0 0.0
        %1054 = vmatpush1.xpose.msra.mxu0 0.0
        %1055 = vmatprep.subr.mxu0 0.0
        %1056 = vmatpush1.xpose.msra.mxu0 0.0
        %1057 = vmatprep.subr.mxu0 0.0
        %1058 = vmatpush1.xpose.msra.mxu0 0.0
        %1059 = vmatprep.subr.mxu0 0.0
        %1060 = vmatpush1.xpose.msra.mxu0 0.0
        %1061 = vmatprep.subr.mxu0 0.0
        %1062 = vmatpush1.xpose.msra.mxu0 0.0
        %1063 = vmatprep.subr.mxu0 0.0
        %1064 = vmatpush1.xpose.msra.mxu0 0.0
        %1065 = vmatprep.subr.mxu0 0.0
        %1066 = vmatpush1.xpose.msra.mxu0 0.0
        %1067 = vmatprep.subr.mxu0 0.0
        %1068 = vmatpush1.xpose.msra.mxu0 0.0
        %1069 = vmatprep.subr.mxu0 0.0
        %1070 = vmatpush1.xpose.msra.mxu0 0.0
        %1071 = vmatprep.subr.mxu0 0.0
        %1072 = vmatpush1.xpose.msra.mxu0 0.0
        %1073 = vmatprep.mubr.f32.mxu0 0.0
        %v1074 = vand.u32 %v778, 4294901760
        %v1075 = vsub.f32 %v778, %v1074
        %v1076 = vand.u32 %v1075, 4294901760
        %1077 = vmatmul.mubr.f32.gmra.mrb[0].mxu0 %v1076
        %v1078 = vpop.f32.mrb[0].mxu0
        %v1079 = vadd.f32 %v1005, %v1078
        %v1080 = vpop.f32.mrb[0].mxu0
        %1081 = vdwg.mxu0
        %1082 = vmatprep.subr.mxu0 0.0
        %v1083 = vand.u32 %v780, 4294901760
        %v1084 = vsub.f32 %v780, %v1083
        %v1085 = vand.u32 %v1084, 4294901760
        %1086 = vmatpush1.xpose.msra.mxu0 %v1085
        %1087 = vmatprep.subr.mxu0 0.0
        %1088 = vmatpush1.xpose.msra.mxu0 0.0
        %1089 = vmatprep.subr.mxu0 0.0
        %1090 = vmatpush1.xpose.msra.mxu0 0.0
        %1091 = vmatprep.subr.mxu0 0.0
        %1092 = vmatpush1.xpose.msra.mxu0 0.0
        %1093 = vmatprep.subr.mxu0 0.0
        %1094 = vmatpush1.xpose.msra.mxu0 0.0
        %1095 = vmatprep.subr.mxu0 0.0
        %1096 = vmatpush1.xpose.msra.mxu0 0.0
        %1097 = vmatprep.subr.mxu0 0.0
        %1098 = vmatpush1.xpose.msra.mxu0 0.0
        %1099 = vmatprep.subr.mxu0 0.0
        %1100 = vmatpush1.xpose.msra.mxu0 0.0
        %1101 = vmatprep.subr.mxu0 0.0
        %1102 = vmatpush1.xpose.msra.mxu0 0.0
        %1103 = vmatprep.subr.mxu0 0.0
        %1104 = vmatpush1.xpose.msra.mxu0 0.0
        %1105 = vmatprep.subr.mxu0 0.0
        %1106 = vmatpush1.xpose.msra.mxu0 0.0
        %1107 = vmatprep.subr.mxu0 0.0
        %1108 = vmatpush1.xpose.msra.mxu0 0.0
        %1109 = vmatprep.subr.mxu0 0.0
        %1110 = vmatpush1.xpose.msra.mxu0 0.0
        %1111 = vmatprep.subr.mxu0 0.0
        %1112 = vmatpush1.xpose.msra.mxu0 0.0
        %1113 = vmatprep.subr.mxu0 0.0
        %1114 = vmatpush1.xpose.msra.mxu0 0.0
        %1115 = vmatprep.subr.mxu0 0.0
        %1116 = vmatpush1.xpose.msra.mxu0 0.0
        %1117 = vmatprep.subr.mxu0 0.0
        %1118 = vmatpush1.xpose.msra.mxu0 0.0
        %1119 = vmatprep.subr.mxu0 0.0
        %1120 = vmatpush1.xpose.msra.mxu0 0.0
        %1121 = vmatprep.subr.mxu0 0.0
        %1122 = vmatpush1.xpose.msra.mxu0 0.0
        %1123 = vmatprep.subr.mxu0 0.0
        %1124 = vmatpush1.xpose.msra.mxu0 0.0
        %1125 = vmatprep.subr.mxu0 0.0
        %1126 = vmatpush1.xpose.msra.mxu0 0.0
        %1127 = vmatprep.subr.mxu0 0.0
        %1128 = vmatpush1.xpose.msra.mxu0 0.0
        %1129 = vmatprep.subr.mxu0 0.0
        %1130 = vmatpush1.xpose.msra.mxu0 0.0
        %1131 = vmatprep.subr.mxu0 0.0
        %1132 = vmatpush1.xpose.msra.mxu0 0.0
        %1133 = vmatprep.subr.mxu0 0.0
        %1134 = vmatpush1.xpose.msra.mxu0 0.0
        %1135 = vmatprep.subr.mxu0 0.0
        %1136 = vmatpush1.xpose.msra.mxu0 0.0
        %1137 = vmatprep.subr.mxu0 0.0
        %1138 = vmatpush1.xpose.msra.mxu0 0.0
        %1139 = vmatprep.subr.mxu0 0.0
        %1140 = vmatpush1.xpose.msra.mxu0 0.0
        %1141 = vmatprep.subr.mxu0 0.0
        %1142 = vmatpush1.xpose.msra.mxu0 0.0
        %1143 = vmatprep.subr.mxu0 0.0
        %1144 = vmatpush1.xpose.msra.mxu0 0.0
        %1145 = vmatprep.subr.mxu0 0.0
        %1146 = vmatpush1.xpose.msra.mxu0 0.0
        %1147 = vmatprep.subr.mxu0 0.0
        %1148 = vmatpush1.xpose.msra.mxu0 0.0
        %1149 = vmatprep.mubr.f32.mxu0 0.0
        %v1150 = vand.u32 %v778, 4294901760
        %1151 = vmatmul.mubr.f32.gmra.mrb[0].mxu0 %v1150
        %v1152 = vpop.f32.mrb[0].mxu0
        %v1153 = vadd.f32 %v1079, %v1152
        %v1154 = vpop.f32.mrb[0].mxu0
        %1155 = vdwg.mxu0
        %1156 = vmatprep.subr.mxu0 0.0
        %v1157 = vand.u32 %v780, 4294901760
        %1158 = vmatpush1.xpose.msra.mxu0 %v1157
        %1159 = vmatprep.subr.mxu0 0.0
        %1160 = vmatpush1.xpose.msra.mxu0 0.0
        %1161 = vmatprep.subr.mxu0 0.0
        %1162 = vmatpush1.xpose.msra.mxu0 0.0
        %1163 = vmatprep.subr.mxu0 0.0
        %1164 = vmatpush1.xpose.msra.mxu0 0.0
        %1165 = vmatprep.subr.mxu0 0.0
        %1166 = vmatpush1.xpose.msra.mxu0 0.0
        %1167 = vmatprep.subr.mxu0 0.0
        %1168 = vmatpush1.xpose.msra.mxu0 0.0
        %1169 = vmatprep.subr.mxu0 0.0
        %1170 = vmatpush1.xpose.msra.mxu0 0.0
        %1171 = vmatprep.subr.mxu0 0.0
        %1172 = vmatpush1.xpose.msra.mxu0 0.0
        %1173 = vmatprep.subr.mxu0 0.0
        %1174 = vmatpush1.xpose.msra.mxu0 0.0
        %1175 = vmatprep.subr.mxu0 0.0
        %1176 = vmatpush1.xpose.msra.mxu0 0.0
        %1177 = vmatprep.subr.mxu0 0.0
        %1178 = vmatpush1.xpose.msra.mxu0 0.0
        %1179 = vmatprep.subr.mxu0 0.0
        %1180 = vmatpush1.xpose.msra.mxu0 0.0
        %1181 = vmatprep.subr.mxu0 0.0
        %1182 = vmatpush1.xpose.msra.mxu0 0.0
        %1183 = vmatprep.subr.mxu0 0.0
        %1184 = vmatpush1.xpose.msra.mxu0 0.0
        %1185 = vmatprep.subr.mxu0 0.0
        %1186 = vmatpush1.xpose.msra.mxu0 0.0
        %1187 = vmatprep.subr.mxu0 0.0
        %1188 = vmatpush1.xpose.msra.mxu0 0.0
        %1189 = vmatprep.subr.mxu0 0.0
        %1190 = vmatpush1.xpose.msra.mxu0 0.0
        %1191 = vmatprep.subr.mxu0 0.0
        %1192 = vmatpush1.xpose.msra.mxu0 0.0
        %1193 = vmatprep.subr.mxu0 0.0
        %1194 = vmatpush1.xpose.msra.mxu0 0.0
        %1195 = vmatprep.subr.mxu0 0.0
        %1196 = vmatpush1.xpose.msra.mxu0 0.0
        %1197 = vmatprep.subr.mxu0 0.0
        %1198 = vmatpush1.xpose.msra.mxu0 0.0
        %1199 = vmatprep.subr.mxu0 0.0
        %1200 = vmatpush1.xpose.msra.mxu0 0.0
        %1201 = vmatprep.subr.mxu0 0.0
        %1202 = vmatpush1.xpose.msra.mxu0 0.0
        %1203 = vmatprep.subr.mxu0 0.0
        %1204 = vmatpush1.xpose.msra.mxu0 0.0
        %1205 = vmatprep.subr.mxu0 0.0
        %1206 = vmatpush1.xpose.msra.mxu0 0.0
        %1207 = vmatprep.subr.mxu0 0.0
        %1208 = vmatpush1.xpose.msra.mxu0 0.0
        %1209 = vmatprep.subr.mxu0 0.0
        %1210 = vmatpush1.xpose.msra.mxu0 0.0
        %1211 = vmatprep.subr.mxu0 0.0
        %1212 = vmatpush1.xpose.msra.mxu0 0.0
        %1213 = vmatprep.subr.mxu0 0.0
        %1214 = vmatpush1.xpose.msra.mxu0 0.0
        %1215 = vmatprep.subr.mxu0 0.0
        %1216 = vmatpush1.xpose.msra.mxu0 0.0
        %1217 = vmatprep.subr.mxu0 0.0
        %1218 = vmatpush1.xpose.msra.mxu0 0.0
        %1219 = vmatprep.subr.mxu0 0.0
        %1220 = vmatpush1.xpose.msra.mxu0 0.0
        %1221 = vmatprep.mubr.f32.mxu0 0.0
        %v1222 = vand.u32 %v778, 4294901760
        %1223 = vmatmul.mubr.f32.gmra.mrb[0].mxu0 %v1222
        %v1224 = vpop.f32.mrb[0].mxu0
        %v1225 = vadd.f32 %v1153, %v1224
        %v1226 = vpop.f32.mrb[0].mxu0
        %1227 = vdwg.mxu0
        %vm1228 = vcmask 64512
        %v1229 = vsel %vm1228, %v1225, -inf
        %1230 = vmax.xlane.f32.xlu0 %v1229
        %v1231 = vpop.xlane.xlu0 %1230
        %v1232 = vsub.f32 %v1225, %v1231
        %v1233 = vmul.f32 %v1232, 1.442695
        %v1234 = vpow.pop %v1233
        %v1235 = vsel %vm1228, %v1234, 0.0
        %1236 = vadd.xlane.f32.xlu0 %v1235
        %v1237 = vpop.xlane.xlu0 %1236
        %v1238 = vrcp.pop %v1237
        %v1239 = vmul.f32 %v1234, %v1238
        %1240 = vst.msk [vmem:[%s279] sm:$0xff] %vm1228, %v1239
        %1241 = vrot.lane.b32.xlu0 %v771, 64
        %v1242 = vpop.permute.xlu0 %1241
        %v1245 = vsel %vm1228, %v1239, 0
        %1247 = vmatprep.subr.mxu0 0.0
        %v1248 = vand.u32 %v1242, 4294901760
        %1249 = vmatpush1.msra.mxu0 %v1248
        %1250 = vmatprep.subr.mxu0 0.0
        %1251 = vmatpush1.msra.mxu0 0.0
        %1252 = vmatprep.subr.mxu0 0.0
        %1253 = vmatpush1.msra.mxu0 0.0
        %1254 = vmatprep.subr.mxu0 0.0
        %1255 = vmatpush1.msra.mxu0 0.0
        %1256 = vmatprep.subr.mxu0 0.0
        %1257 = vmatpush1.msra.mxu0 0.0
        %1258 = vmatprep.subr.mxu0 0.0
        %1259 = vmatpush1.msra.mxu0 0.0
        %1260 = vmatprep.subr.mxu0 0.0
        %1261 = vmatpush1.msra.mxu0 0.0
        %1262 = vmatprep.subr.mxu0 0.0
        %1263 = vmatpush1.msra.mxu0 0.0
        %1264 = vmatprep.subr.mxu0 0.0
        %1265 = vmatpush1.msra.mxu0 0.0
        %1266 = vmatprep.subr.mxu0 0.0
        %1267 = vmatpush1.msra.mxu0 0.0
        %1268 = vmatprep.subr.mxu0 0.0
        %1269 = vmatpush1.msra.mxu0 0.0
        %1270 = vmatprep.subr.mxu0 0.0
        %1271 = vmatpush1.msra.mxu0 0.0
        %1272 = vmatprep.subr.mxu0 0.0
        %1273 = vmatpush1.msra.mxu0 0.0
        %1274 = vmatprep.subr.mxu0 0.0
        %1275 = vmatpush1.msra.mxu0 0.0
        %1276 = vmatprep.subr.mxu0 0.0
        %1277 = vmatpush1.msra.mxu0 0.0
        %1278 = vmatprep.subr.mxu0 0.0
        %1279 = vmatpush1.msra.mxu0 0.0
        %1280 = vmatprep.subr.mxu0 0.0
        %1281 = vmatpush1.msra.mxu0 0.0
        %1282 = vmatprep.subr.mxu0 0.0
        %1283 = vmatpush1.msra.mxu0 0.0
        %1284 = vmatprep.subr.mxu0 0.0
        %1285 = vmatpush1.msra.mxu0 0.0
        %1286 = vmatprep.subr.mxu0 0.0
        %1287 = vmatpush1.msra.mxu0 0.0
        %1288 = vmatprep.subr.mxu0 0.0
        %1289 = vmatpush1.msra.mxu0 0.0
        %1290 = vmatprep.subr.mxu0 0.0
        %1291 = vmatpush1.msra.mxu0 0.0
        %1292 = vmatprep.subr.mxu0 0.0
        %1293 = vmatpush1.msra.mxu0 0.0
        %1294 = vmatprep.subr.mxu0 0.0
        %1295 = vmatpush1.msra.mxu0 0.0
        %1296 = vmatprep.subr.mxu0 0.0
        %1297 = vmatpush1.msra.mxu0 0.0
        %1298 = vmatprep.subr.mxu0 0.0
        %1299 = vmatpush1.msra.mxu0 0.0
        %1300 = vmatprep.subr.mxu0 0.0
        %1301 = vmatpush1.msra.mxu0 0.0
        %1302 = vmatprep.subr.mxu0 0.0
        %1303 = vmatpush1.msra.mxu0 0.0
        %1304 = vmatprep.subr.mxu0 0.0
        %1305 = vmatpush1.msra.mxu0 0.0
        %1306 = vmatprep.subr.mxu0 0.0
        %1307 = vmatpush1.msra.mxu0 0.0
        %1308 = vmatprep.subr.mxu0 0.0
        %1309 = vmatpush1.msra.mxu0 0.0
        %1310 = vmatprep.subr.mxu0 0.0
        %1311 = vmatpush1.msra.mxu0 0.0
        %1312 = vmatprep.mubr.f32.mxu0 0.0
        %v1313 = vand.u32 %v1245, 4294901760
        %v1314 = vsub.f32 %v1245, %v1313
        %v1315 = vand.u32 %v1314, 4294901760
        %v1316 = vsub.f32 %v1314, %v1315
        %v1317 = vand.u32 %v1316, 4294901760
        %1318 = vmatmul.mubr.f32.gmra.mrb[0].mxu0 %v1317
        %v1319 = vpop.f32.mrb[0].mxu0
        %v1320 = vadd.f32 0.0, %v1319
        %v1321 = vpop.f32.mrb[0].mxu0
        %1322 = vdwg.mxu0
        %1323 = vmatprep.subr.mxu0 0.0
        %v1324 = vand.u32 %v1242, 4294901760
        %v1325 = vsub.f32 %v1242, %v1324
        %v1326 = vand.u32 %v1325, 4294901760
        %v1327 = vsub.f32 %v1325, %v1326
        %v1328 = vand.u32 %v1327, 4294901760
        %1329 = vmatpush1.msra.mxu0 %v1328
        %1330 = vmatprep.subr.mxu0 0.0
        %1331 = vmatpush1.msra.mxu0 0.0
        %1332 = vmatprep.subr.mxu0 0.0
        %1333 = vmatpush1.msra.mxu0 0.0
        %1334 = vmatprep.subr.mxu0 0.0
        %1335 = vmatpush1.msra.mxu0 0.0
        %1336 = vmatprep.subr.mxu0 0.0
        %1337 = vmatpush1.msra.mxu0 0.0
        %1338 = vmatprep.subr.mxu0 0.0
        %1339 = vmatpush1.msra.mxu0 0.0
        %1340 = vmatprep.subr.mxu0 0.0
        %1341 = vmatpush1.msra.mxu0 0.0
        %1342 = vmatprep.subr.mxu0 0.0
        %1343 = vmatpush1.msra.mxu0 0.0
        %1344 = vmatprep.subr.mxu0 0.0
        %1345 = vmatpush1.msra.mxu0 0.0
        %1346 = vmatprep.subr.mxu0 0.0
        %1347 = vmatpush1.msra.mxu0 0.0
        %1348 = vmatprep.subr.mxu0 0.0
        %1349 = vmatpush1.msra.mxu0 0.0
        %1350 = vmatprep.subr.mxu0 0.0
        %1351 = vmatpush1.msra.mxu0 0.0
        %1352 = vmatprep.subr.mxu0 0.0
        %1353 = vmatpush1.msra.mxu0 0.0
        %1354 = vmatprep.subr.mxu0 0.0
        %1355 = vmatpush1.msra.mxu0 0.0
        %1356 = vmatprep.subr.mxu0 0.0
        %1357 = vmatpush1.msra.mxu0 0.0
        %1358 = vmatprep.subr.mxu0 0.0
        %1359 = vmatpush1.msra.mxu0 0.0
        %1360 = vmatprep.subr.mxu0 0.0
        %1361 = vmatpush1.msra.mxu0 0.0
        %1362 = vmatprep.subr.mxu0 0.0
        %1363 = vmatpush1.msra.mxu0 0.0
        %1364 = vmatprep.subr.mxu0 0.0
        %1365 = vmatpush1.msra.mxu0 0.0
        %1366 = vmatprep.subr.mxu0 0.0
        %1367 = vmatpush1.msra.mxu0 0.0
        %1368 = vmatprep.subr.mxu0 0.0
        %1369 = vmatpush1.msra.mxu0 0.0
        %1370 = vmatprep.subr.mxu0 0.0
        %1371 = vmatpush1.msra.mxu0 0.0
        %1372 = vmatprep.subr.mxu0 0.0
        %1373 = vmatpush1.msra.mxu0 0.0
        %1374 = vmatprep.subr.mxu0 0.0
        %1375 = vmatpush1.msra.mxu0 0.0
        %1376 = vmatprep.subr.mxu0 0.0
        %1377 = vmatpush1.msra.mxu0 0.0
        %1378 = vmatprep.subr.mxu0 0.0
        %1379 = vmatpush1.msra.mxu0 0.0
        %1380 = vmatprep.subr.mxu0 0.0
        %1381 = vmatpush1.msra.mxu0 0.0
        %1382 = vmatprep.subr.mxu0 0.0
        %1383 = vmatpush1.msra.mxu0 0.0
        %1384 = vmatprep.subr.mxu0 0.0
        %1385 = vmatpush1.msra.mxu0 0.0
        %1386 = vmatprep.subr.mxu0 0.0
        %1387 = vmatpush1.msra.mxu0 0.0
        %1388 = vmatprep.subr.mxu0 0.0
        %1389 = vmatpush1.msra.mxu0 0.0
        %1390 = vmatprep.subr.mxu0 0.0
        %1391 = vmatpush1.msra.mxu0 0.0
        %1392 = vmatprep.mubr.f32.mxu0 0.0
        %v1393 = vand.u32 %v1245, 4294901760
        %1394 = vmatmul.mubr.f32.gmra.mrb[0].mxu0 %v1393
        %v1395 = vpop.f32.mrb[0].mxu0
        %v1396 = vadd.f32 %v1320, %v1395
        %v1397 = vpop.f32.mrb[0].mxu0
        %1398 = vdwg.mxu0
        %1399 = vmatprep.subr.mxu0 0.0
        %v1400 = vand.u32 %v1242, 4294901760
        %v1401 = vsub.f32 %v1242, %v1400
        %1402 = vmatpush1.msra.mxu0 %v1401
        %1403 = vmatprep.subr.mxu0 0.0
        %1404 = vmatpush1.msra.mxu0 0.0
        %1405 = vmatprep.subr.mxu0 0.0
        %1406 = vmatpush1.msra.mxu0 0.0
        %1407 = vmatprep.subr.mxu0 0.0
        %1408 = vmatpush1.msra.mxu0 0.0
        %1409 = vmatprep.subr.mxu0 0.0
        %1410 = vmatpush1.msra.mxu0 0.0
        %1411 = vmatprep.subr.mxu0 0.0
        %1412 = vmatpush1.msra.mxu0 0.0
        %1413 = vmatprep.subr.mxu0 0.0
        %1414 = vmatpush1.msra.mxu0 0.0
        %1415 = vmatprep.subr.mxu0 0.0
        %1416 = vmatpush1.msra.mxu0 0.0
        %1417 = vmatprep.subr.mxu0 0.0
        %1418 = vmatpush1.msra.mxu0 0.0
        %1419 = vmatprep.subr.mxu0 0.0
        %1420 = vmatpush1.msra.mxu0 0.0
        %1421 = vmatprep.subr.mxu0 0.0
        %1422 = vmatpush1.msra.mxu0 0.0
        %1423 = vmatprep.subr.mxu0 0.0
        %1424 = vmatpush1.msra.mxu0 0.0
        %1425 = vmatprep.subr.mxu0 0.0
        %1426 = vmatpush1.msra.mxu0 0.0
        %1427 = vmatprep.subr.mxu0 0.0
        %1428 = vmatpush1.msra.mxu0 0.0
        %1429 = vmatprep.subr.mxu0 0.0
        %1430 = vmatpush1.msra.mxu0 0.0
        %1431 = vmatprep.subr.mxu0 0.0
        %1432 = vmatpush1.msra.mxu0 0.0
        %1433 = vmatprep.subr.mxu0 0.0
        %1434 = vmatpush1.msra.mxu0 0.0
        %1435 = vmatprep.subr.mxu0 0.0
        %1436 = vmatpush1.msra.mxu0 0.0
        %1437 = vmatprep.subr.mxu0 0.0
        %1438 = vmatpush1.msra.mxu0 0.0
        %1439 = vmatprep.subr.mxu0 0.0
        %1440 = vmatpush1.msra.mxu0 0.0
        %1441 = vmatprep.subr.mxu0 0.0
        %1442 = vmatpush1.msra.mxu0 0.0
        %1443 = vmatprep.subr.mxu0 0.0
        %1444 = vmatpush1.msra.mxu0 0.0
        %1445 = vmatprep.subr.mxu0 0.0
        %1446 = vmatpush1.msra.mxu0 0.0
        %1447 = vmatprep.subr.mxu0 0.0
        %1448 = vmatpush1.msra.mxu0 0.0
        %1449 = vmatprep.subr.mxu0 0.0
        %1450 = vmatpush1.msra.mxu0 0.0
        %1451 = vmatprep.subr.mxu0 0.0
        %1452 = vmatpush1.msra.mxu0 0.0
        %1453 = vmatprep.subr.mxu0 0.0
        %1454 = vmatpush1.msra.mxu0 0.0
        %1455 = vmatprep.subr.mxu0 0.0
        %1456 = vmatpush1.msra.mxu0 0.0
        %1457 = vmatprep.subr.mxu0 0.0
        %1458 = vmatpush1.msra.mxu0 0.0
        %1459 = vmatprep.subr.mxu0 0.0
        %1460 = vmatpush1.msra.mxu0 0.0
        %1461 = vmatprep.subr.mxu0 0.0
        %1462 = vmatpush1.msra.mxu0 0.0
        %1463 = vmatprep.subr.mxu0 0.0
        %1464 = vmatpush1.msra.mxu0 0.0
        %1465 = vmatprep.mubr.f32.mxu0 0.0
        %v1466 = vand.u32 %v1245, 4294901760
        %v1467 = vsub.f32 %v1245, %v1466
        %1468 = vmatmul.mubr.f32.gmra.mrb[0].mxu0 %v1467
        %v1469 = vpop.f32.mrb[0].mxu0
        %v1470 = vadd.f32 %v1396, %v1469
        %v1471 = vpop.f32.mrb[0].mxu0
        %1472 = vdwg.mxu0
        %1473 = vmatprep.subr.mxu0 0.0
        %v1474 = vand.u32 %v1242, 4294901760
        %1475 = vmatpush1.msra.mxu0 %v1474
        %1476 = vmatprep.subr.mxu0 0.0
        %1477 = vmatpush1.msra.mxu0 0.0
        %1478 = vmatprep.subr.mxu0 0.0
        %1479 = vmatpush1.msra.mxu0 0.0
        %1480 = vmatprep.subr.mxu0 0.0
        %1481 = vmatpush1.msra.mxu0 0.0
        %1482 = vmatprep.subr.mxu0 0.0
        %1483 = vmatpush1.msra.mxu0 0.0
        %1484 = vmatprep.subr.mxu0 0.0
        %1485 = vmatpush1.msra.mxu0 0.0
        %1486 = vmatprep.subr.mxu0 0.0
        %1487 = vmatpush1.msra.mxu0 0.0
        %1488 = vmatprep.subr.mxu0 0.0
        %1489 = vmatpush1.msra.mxu0 0.0
        %1490 = vmatprep.subr.mxu0 0.0
        %1491 = vmatpush1.msra.mxu0 0.0
        %1492 = vmatprep.subr.mxu0 0.0
        %1493 = vmatpush1.msra.mxu0 0.0
        %1494 = vmatprep.subr.mxu0 0.0
        %1495 = vmatpush1.msra.mxu0 0.0
        %1496 = vmatprep.subr.mxu0 0.0
        %1497 = vmatpush1.msra.mxu0 0.0
        %1498 = vmatprep.subr.mxu0 0.0
        %1499 = vmatpush1.msra.mxu0 0.0
        %1500 = vmatprep.subr.mxu0 0.0
        %1501 = vmatpush1.msra.mxu0 0.0
        %1502 = vmatprep.subr.mxu0 0.0
        %1503 = vmatpush1.msra.mxu0 0.0
        %1504 = vmatprep.subr.mxu0 0.0
        %1505 = vmatpush1.msra.mxu0 0.0
        %1506 = vmatprep.subr.mxu0 0.0
        %1507 = vmatpush1.msra.mxu0 0.0
        %1508 = vmatprep.subr.mxu0 0.0
        %1509 = vmatpush1.msra.mxu0 0.0
        %1510 = vmatprep.subr.mxu0 0.0
        %1511 = vmatpush1.msra.mxu0 0.0
        %1512 = vmatprep.subr.mxu0 0.0
        %1513 = vmatpush1.msra.mxu0 0.0
        %1514 = vmatprep.subr.mxu0 0.0
        %1515 = vmatpush1.msra.mxu0 0.0
        %1516 = vmatprep.subr.mxu0 0.0
        %1517 = vmatpush1.msra.mxu0 0.0
        %1518 = vmatprep.subr.mxu0 0.0
        %1519 = vmatpush1.msra.mxu0 0.0
        %1520 = vmatprep.subr.mxu0 0.0
        %1521 = vmatpush1.msra.mxu0 0.0
        %1522 = vmatprep.subr.mxu0 0.0
        %1523 = vmatpush1.msra.mxu0 0.0
        %1524 = vmatprep.subr.mxu0 0.0
        %1525 = vmatpush1.msra.mxu0 0.0
        %1526 = vmatprep.subr.mxu0 0.0
        %1527 = vmatpush1.msra.mxu0 0.0
        %1528 = vmatprep.subr.mxu0 0.0
        %1529 = vmatpush1.msra.mxu0 0.0
        %1530 = vmatprep.subr.mxu0 0.0
        %1531 = vmatpush1.msra.mxu0 0.0
        %1532 = vmatprep.subr.mxu0 0.0
        %1533 = vmatpush1.msra.mxu0 0.0
        %1534 = vmatprep.subr.mxu0 0.0
        %1535 = vmatpush1.msra.mxu0 0.0
        %1536 = vmatprep.subr.mxu0 0.0
        %1537 = vmatpush1.msra.mxu0 0.0
        %1538 = vmatprep.mubr.f32.mxu0 0.0
        %v1539 = vand.u32 %v1245, 4294901760
        %v1540 = vsub.f32 %v1245, %v1539
        %v1541 = vand.u32 %v1540, 4294901760
        %1542 = vmatmul.mubr.f32.gmra.mrb[0].mxu0 %v1541
        %v1543 = vpop.f32.mrb[0].mxu0
        %v1544 = vadd.f32 %v1470, %v1543
        %v1545 = vpop.f32.mrb[0].mxu0
        %1546 = vdwg.mxu0
        %1547 = vmatprep.subr.mxu0 0.0
        %v1548 = vand.u32 %v1242, 4294901760
        %v1549 = vsub.f32 %v1242, %v1548
        %v1550 = vand.u32 %v1549, 4294901760
        %1551 = vmatpush1.msra.mxu0 %v1550
        %1552 = vmatprep.subr.mxu0 0.0
        %1553 = vmatpush1.msra.mxu0 0.0
        %1554 = vmatprep.subr.mxu0 0.0
        %1555 = vmatpush1.msra.mxu0 0.0
        %1556 = vmatprep.subr.mxu0 0.0
        %1557 = vmatpush1.msra.mxu0 0.0
        %1558 = vmatprep.subr.mxu0 0.0
        %1559 = vmatpush1.msra.mxu0 0.0
        %1560 = vmatprep.subr.mxu0 0.0
        %1561 = vmatpush1.msra.mxu0 0.0
        %1562 = vmatprep.subr.mxu0 0.0
        %1563 = vmatpush1.msra.mxu0 0.0
        %1564 = vmatprep.subr.mxu0 0.0
        %1565 = vmatpush1.msra.mxu0 0.0
        %1566 = vmatprep.subr.mxu0 0.0
        %1567 = vmatpush1.msra.mxu0 0.0
        %1568 = vmatprep.subr.mxu0 0.0
        %1569 = vmatpush1.msra.mxu0 0.0
        %1570 = vmatprep.subr.mxu0 0.0
        %1571 = vmatpush1.msra.mxu0 0.0
        %1572 = vmatprep.subr.mxu0 0.0
        %1573 = vmatpush1.msra.mxu0 0.0
        %1574 = vmatprep.subr.mxu0 0.0
        %1575 = vmatpush1.msra.mxu0 0.0
        %1576 = vmatprep.subr.mxu0 0.0
        %1577 = vmatpush1.msra.mxu0 0.0
        %1578 = vmatprep.subr.mxu0 0.0
        %1579 = vmatpush1.msra.mxu0 0.0
        %1580 = vmatprep.subr.mxu0 0.0
        %1581 = vmatpush1.msra.mxu0 0.0
        %1582 = vmatprep.subr.mxu0 0.0
        %1583 = vmatpush1.msra.mxu0 0.0
        %1584 = vmatprep.subr.mxu0 0.0
        %1585 = vmatpush1.msra.mxu0 0.0
        %1586 = vmatprep.subr.mxu0 0.0
        %1587 = vmatpush1.msra.mxu0 0.0
        %1588 = vmatprep.subr.mxu0 0.0
        %1589 = vmatpush1.msra.mxu0 0.0
        %1590 = vmatprep.subr.mxu0 0.0
        %1591 = vmatpush1.msra.mxu0 0.0
        %1592 = vmatprep.subr.mxu0 0.0
        %1593 = vmatpush1.msra.mxu0 0.0
        %1594 = vmatprep.subr.mxu0 0.0
        %1595 = vmatpush1.msra.mxu0 0.0
        %1596 = vmatprep.subr.mxu0 0.0
        %1597 = vmatpush1.msra.mxu0 0.0
        %1598 = vmatprep.subr.mxu0 0.0
        %1599 = vmatpush1.msra.mxu0 0.0
        %1600 = vmatprep.subr.mxu0 0.0
        %1601 = vmatpush1.msra.mxu0 0.0
        %1602 = vmatprep.subr.mxu0 0.0
        %1603 = vmatpush1.msra.mxu0 0.0
        %1604 = vmatprep.subr.mxu0 0.0
        %1605 = vmatpush1.msra.mxu0 0.0
        %1606 = vmatprep.subr.mxu0 0.0
        %1607 = vmatpush1.msra.mxu0 0.0
        %1608 = vmatprep.subr.mxu0 0.0
        %1609 = vmatpush1.msra.mxu0 0.0
        %1610 = vmatprep.subr.mxu0 0.0
        %1611 = vmatpush1.msra.mxu0 0.0
        %1612 = vmatprep.subr.mxu0 0.0
        %1613 = vmatpush1.msra.mxu0 0.0
        %1614 = vmatprep.mubr.f32.mxu0 0.0
        %v1615 = vand.u32 %v1245, 4294901760
        %1616 = vmatmul.mubr.f32.gmra.mrb[0].mxu0 %v1615
        %v1617 = vpop.f32.mrb[0].mxu0
        %v1618 = vadd.f32 %v1544, %v1617
        %v1619 = vpop.f32.mrb[0].mxu0
        %1620 = vdwg.mxu0
        %1621 = vmatprep.subr.mxu0 0.0
        %v1622 = vand.u32 %v1242, 4294901760
        %1623 = vmatpush1.msra.mxu0 %v1622
        %1624 = vmatprep.subr.mxu0 0.0
        %1625 = vmatpush1.msra.mxu0 0.0
        %1626 = vmatprep.subr.mxu0 0.0
        %1627 = vmatpush1.msra.mxu0 0.0
        %1628 = vmatprep.subr.mxu0 0.0
        %1629 = vmatpush1.msra.mxu0 0.0
        %1630 = vmatprep.subr.mxu0 0.0
        %1631 = vmatpush1.msra.mxu0 0.0
        %1632 = vmatprep.subr.mxu0 0.0
        %1633 = vmatpush1.msra.mxu0 0.0
        %1634 = vmatprep.subr.mxu0 0.0
        %1635 = vmatpush1.msra.mxu0 0.0
        %1636 = vmatprep.subr.mxu0 0.0
        %1637 = vmatpush1.msra.mxu0 0.0
        %1638 = vmatprep.subr.mxu0 0.0
        %1639 = vmatpush1.msra.mxu0 0.0
        %1640 = vmatprep.subr.mxu0 0.0
        %1641 = vmatpush1.msra.mxu0 0.0
        %1642 = vmatprep.subr.mxu0 0.0
        %1643 = vmatpush1.msra.mxu0 0.0
        %1644 = vmatprep.subr.mxu0 0.0
        %1645 = vmatpush1.msra.mxu0 0.0
        %1646 = vmatprep.subr.mxu0 0.0
        %1647 = vmatpush1.msra.mxu0 0.0
        %1648 = vmatprep.subr.mxu0 0.0
        %1649 = vmatpush1.msra.mxu0 0.0
        %1650 = vmatprep.subr.mxu0 0.0
        %1651 = vmatpush1.msra.mxu0 0.0
        %1652 = vmatprep.subr.mxu0 0.0
        %1653 = vmatpush1.msra.mxu0 0.0
        %1654 = vmatprep.subr.mxu0 0.0
        %1655 = vmatpush1.msra.mxu0 0.0
        %1656 = vmatprep.subr.mxu0 0.0
        %1657 = vmatpush1.msra.mxu0 0.0
        %1658 = vmatprep.subr.mxu0 0.0
        %1659 = vmatpush1.msra.mxu0 0.0
        %1660 = vmatprep.subr.mxu0 0.0
        %1661 = vmatpush1.msra.mxu0 0.0
        %1662 = vmatprep.subr.mxu0 0.0
        %1663 = vmatpush1.msra.mxu0 0.0
        %1664 = vmatprep.subr.mxu0 0.0
        %1665 = vmatpush1.msra.mxu0 0.0
        %1666 = vmatprep.subr.mxu0 0.0
        %1667 = vmatpush1.msra.mxu0 0.0
        %1668 = vmatprep.subr.mxu0 0.0
        %1669 = vmatpush1.msra.mxu0 0.0
        %1670 = vmatprep.subr.mxu0 0.0
        %1671 = vmatpush1.msra.mxu0 0.0
        %1672 = vmatprep.subr.mxu0 0.0
        %1673 = vmatpush1.msra.mxu0 0.0
        %1674 = vmatprep.subr.mxu0 0.0
        %1675 = vmatpush1.msra.mxu0 0.0
        %1676 = vmatprep.subr.mxu0 0.0
        %1677 = vmatpush1.msra.mxu0 0.0
        %1678 = vmatprep.subr.mxu0 0.0
        %1679 = vmatpush1.msra.mxu0 0.0
        %1680 = vmatprep.subr.mxu0 0.0
        %1681 = vmatpush1.msra.mxu0 0.0
        %1682 = vmatprep.subr.mxu0 0.0
        %1683 = vmatpush1.msra.mxu0 0.0
        %1684 = vmatprep.subr.mxu0 0.0
        %1685 = vmatpush1.msra.mxu0 0.0
        %1686 = vmatprep.mubr.f32.mxu0 0.0
        %v1687 = vand.u32 %v1245, 4294901760
        %1688 = vmatmul.mubr.f32.gmra.mrb[0].mxu0 %v1687
        %v1689 = vpop.f32.mrb[0].mxu0
        %v1690 = vadd.f32 %v1618, %v1689
        %v1691 = vpop.f32.mrb[0].mxu0
        %1692 = vdwg.mxu0
        %1693 = vrot.lane.b32.xlu0 %v771, 124
        %v1694 = vpop.permute.xlu0 %1693
        %1695 = vrot.lane.b32.xlu0 %v771, 92
        %v1696 = vpop.permute.xlu0 %1695
        %v1697 = vsel %vm777, %v1694, 0
        %v1699 = vsel %vm777, %v1696, 0
        %1701 = vmatprep.subr.mxu0 0.0
        %v1702 = vand.u32 %v1699, 4294901760
        %1703 = vmatpush1.xpose.msra.mxu0 %v1702
        %1704 = vmatprep.subr.mxu0 0.0
        %1705 = vmatpush1.xpose.msra.mxu0 0.0
        %1706 = vmatprep.subr.mxu0 0.0
        %1707 = vmatpush1.xpose.msra.mxu0 0.0
        %1708 = vmatprep.subr.mxu0 0.0
        %1709 = vmatpush1.xpose.msra.mxu0 0.0
        %1710 = vmatprep.subr.mxu0 0.0
        %1711 = vmatpush1.xpose.msra.mxu0 0.0
        %1712 = vmatprep.subr.mxu0 0.0
        %1713 = vmatpush1.xpose.msra.mxu0 0.0
        %1714 = vmatprep.subr.mxu0 0.0
        %1715 = vmatpush1.xpose.msra.mxu0 0.0
        %1716 = vmatprep.subr.mxu0 0.0
        %1717 = vmatpush1.xpose.msra.mxu0 0.0
        %1718 = vmatprep.subr.mxu0 0.0
        %1719 = vmatpush1.xpose.msra.mxu0 0.0
        %1720 = vmatprep.subr.mxu0 0.0
        %1721 = vmatpush1.xpose.msra.mxu0 0.0
        %1722 = vmatprep.subr.mxu0 0.0
        %1723 = vmatpush1.xpose.msra.mxu0 0.0
        %1724 = vmatprep.subr.mxu0 0.0
        %1725 = vmatpush1.xpose.msra.mxu0 0.0
        %1726 = vmatprep.subr.mxu0 0.0
        %1727 = vmatpush1.xpose.msra.mxu0 0.0
        %1728 = vmatprep.subr.mxu0 0.0
        %1729 = vmatpush1.xpose.msra.mxu0 0.0
        %1730 = vmatprep.subr.mxu0 0.0
        %1731 = vmatpush1.xpose.msra.mxu0 0.0
        %1732 = vmatprep.subr.mxu0 0.0
        %1733 = vmatpush1.xpose.msra.mxu0 0.0
        %1734 = vmatprep.subr.mxu0 0.0
        %1735 = vmatpush1.xpose.msra.mxu0 0.0
        %1736 = vmatprep.subr.mxu0 0.0
        %1737 = vmatpush1.xpose.msra.mxu0 0.0
        %1738 = vmatprep.subr.mxu0 0.0
        %1739 = vmatpush1.xpose.msra.mxu0 0.0
        %1740 = vmatprep.subr.mxu0 0.0
        %1741 = vmatpush1.xpose.msra.mxu0 0.0
        %1742 = vmatprep.subr.mxu0 0.0
        %1743 = vmatpush1.xpose.msra.mxu0 0.0
        %1744 = vmatprep.subr.mxu0 0.0
        %1745 = vmatpush1.xpose.msra.mxu0 0.0
        %1746 = vmatprep.subr.mxu0 0.0
        %1747 = vmatpush1.xpose.msra.mxu0 0.0
        %1748 = vmatprep.subr.mxu0 0.0
        %1749 = vmatpush1.xpose.msra.mxu0 0.0
        %1750 = vmatprep.subr.mxu0 0.0
        %1751 = vmatpush1.xpose.msra.mxu0 0.0
        %1752 = vmatprep.subr.mxu0 0.0
        %1753 = vmatpush1.xpose.msra.mxu0 0.0
        %1754 = vmatprep.subr.mxu0 0.0
        %1755 = vmatpush1.xpose.msra.mxu0 0.0
        %1756 = vmatprep.subr.mxu0 0.0
        %1757 = vmatpush1.xpose.msra.mxu0 0.0
        %1758 = vmatprep.subr.mxu0 0.0
        %1759 = vmatpush1.xpose.msra.mxu0 0.0
        %1760 = vmatprep.subr.mxu0 0.0
        %1761 = vmatpush1.xpose.msra.mxu0 0.0
        %1762 = vmatprep.subr.mxu0 0.0
        %1763 = vmatpush1.xpose.msra.mxu0 0.0
        %1764 = vmatprep.subr.mxu0 0.0
        %1765 = vmatpush1.xpose.msra.mxu0 0.0
        %1766 = vmatprep.mubr.f32.mxu0 0.0
        %v1767 = vand.u32 %v1697, 4294901760
        %v1768 = vsub.f32 %v1697, %v1767
        %v1769 = vand.u32 %v1768, 4294901760
        %v1770 = vsub.f32 %v1768, %v1769
        %v1771 = vand.u32 %v1770, 4294901760
        %1772 = vmatmul.mubr.f32.gmra.mrb[0].mxu0 %v1771
        %v1773 = vpop.f32.mrb[0].mxu0
        %v1774 = vadd.f32 0.0, %v1773
        %v1775 = vpop.f32.mrb[0].mxu0
        %1776 = vdwg.mxu0
        %1777 = vmatprep.subr.mxu0 0.0
        %v1778 = vand.u32 %v1699, 4294901760
        %v1779 = vsub.f32 %v1699, %v1778
        %v1780 = vand.u32 %v1779, 4294901760
        %v1781 = vsub.f32 %v1779, %v1780
        %v1782 = vand.u32 %v1781, 4294901760
        %1783 = vmatpush1.xpose.msra.mxu0 %v1782
        %1784 = vmatprep.subr.mxu0 0.0
        %1785 = vmatpush1.xpose.msra.mxu0 0.0
        %1786 = vmatprep.subr.mxu0 0.0
        %1787 = vmatpush1.xpose.msra.mxu0 0.0
        %1788 = vmatprep.subr.mxu0 0.0
        %1789 = vmatpush1.xpose.msra.mxu0 0.0
        %1790 = vmatprep.subr.mxu0 0.0
        %1791 = vmatpush1.xpose.msra.mxu0 0.0
        %1792 = vmatprep.subr.mxu0 0.0
        %1793 = vmatpush1.xpose.msra.mxu0 0.0
        %1794 = vmatprep.subr.mxu0 0.0
        %1795 = vmatpush1.xpose.msra.mxu0 0.0
        %1796 = vmatprep.subr.mxu0 0.0
        %1797 = vmatpush1.xpose.msra.mxu0 0.0
        %1798 = vmatprep.subr.mxu0 0.0
        %1799 = vmatpush1.xpose.msra.mxu0 0.0
        %1800 = vmatprep.subr.mxu0 0.0
        %1801 = vmatpush1.xpose.msra.mxu0 0.0
        %1802 = vmatprep.subr.mxu0 0.0
        %1803 = vmatpush1.xpose.msra.mxu0 0.0
        %1804 = vmatprep.subr.mxu0 0.0
        %1805 = vmatpush1.xpose.msra.mxu0 0.0
        %1806 = vmatprep.subr.mxu0 0.0
        %1807 = vmatpush1.xpose.msra.mxu0 0.0
        %1808 = vmatprep.subr.mxu0 0.0
        %1809 = vmatpush1.xpose.msra.mxu0 0.0
        %1810 = vmatprep.subr.mxu0 0.0
        %1811 = vmatpush1.xpose.msra.mxu0 0.0
        %1812 = vmatprep.subr.mxu0 0.0
        %1813 = vmatpush1.xpose.msra.mxu0 0.0
        %1814 = vmatprep.subr.mxu0 0.0
        %1815 = vmatpush1.xpose.msra.mxu0 0.0
        %1816 = vmatprep.subr.mxu0 0.0
        %1817 = vmatpush1.xpose.msra.mxu0 0.0
        %1818 = vmatprep.subr.mxu0 0.0
        %1819 = vmatpush1.xpose.msra.mxu0 0.0
        %1820 = vmatprep.subr.mxu0 0.0
        %1821 = vmatpush1.xpose.msra.mxu0 0.0
        %1822 = vmatprep.subr.mxu0 0.0
        %1823 = vmatpush1.xpose.msra.mxu0 0.0
        %1824 = vmatprep.subr.mxu0 0.0
        %1825 = vmatpush1.xpose.msra.mxu0 0.0
        %1826 = vmatprep.subr.mxu0 0.0
        %1827 = vmatpush1.xpose.msra.mxu0 0.0
        %1828 = vmatprep.subr.mxu0 0.0
        %1829 = vmatpush1.xpose.msra.mxu0 0.0
        %1830 = vmatprep.subr.mxu0 0.0
        %1831 = vmatpush1.xpose.msra.mxu0 0.0
        %1832 = vmatprep.subr.mxu0 0.0
        %1833 = vmatpush1.xpose.msra.mxu0 0.0
        %1834 = vmatprep.subr.mxu0 0.0
        %1835 = vmatpush1.xpose.msra.mxu0 0.0
        %1836 = vmatprep.subr.mxu0 0.0
        %1837 = vmatpush1.xpose.msra.mxu0 0.0
        %1838 = vmatprep.subr.mxu0 0.0
        %1839 = vmatpush1.xpose.msra.mxu0 0.0
        %1840 = vmatprep.subr.mxu0 0.0
        %1841 = vmatpush1.xpose.msra.mxu0 0.0
        %1842 = vmatprep.subr.mxu0 0.0
        %1843 = vmatpush1.xpose.msra.mxu0 0.0
        %1844 = vmatprep.subr.mxu0 0.0
        %1845 = vmatpush1.xpose.msra.mxu0 0.0
        %1846 = vmatprep.mubr.f32.mxu0 0.0
        %v1847 = vand.u32 %v1697, 4294901760
        %1848 = vmatmul.mubr.f32.gmra.mrb[0].mxu0 %v1847
        %v1849 = vpop.f32.mrb[0].mxu0
        %v1850 = vadd.f32 %v1774, %v1849
        %v1851 = vpop.f32.mrb[0].mxu0
        %1852 = vdwg.mxu0
        %1853 = vmatprep.subr.mxu0 0.0
        %v1854 = vand.u32 %v1699, 4294901760
        %v1855 = vsub.f32 %v1699, %v1854
        %1856 = vmatpush1.xpose.msra.mxu0 %v1855
        %1857 = vmatprep.subr.mxu0 0.0
        %1858 = vmatpush1.xpose.msra.mxu0 0.0
        %1859 = vmatprep.subr.mxu0 0.0
        %1860 = vmatpush1.xpose.msra.mxu0 0.0
        %1861 = vmatprep.subr.mxu0 0.0
        %1862 = vmatpush1.xpose.msra.mxu0 0.0
        %1863 = vmatprep.subr.mxu0 0.0
        %1864 = vmatpush1.xpose.msra.mxu0 0.0
        %1865 = vmatprep.subr.mxu0 0.0
        %1866 = vmatpush1.xpose.msra.mxu0 0.0
        %1867 = vmatprep.subr.mxu0 0.0
        %1868 = vmatpush1.xpose.msra.mxu0 0.0
        %1869 = vmatprep.subr.mxu0 0.0
        %1870 = vmatpush1.xpose.msra.mxu0 0.0
        %1871 = vmatprep.subr.mxu0 0.0
        %1872 = vmatpush1.xpose.msra.mxu0 0.0
        %1873 = vmatprep.subr.mxu0 0.0
        %1874 = vmatpush1.xpose.msra.mxu0 0.0
        %1875 = vmatprep.subr.mxu0 0.0
        %1876 = vmatpush1.xpose.msra.mxu0 0.0
        %1877 = vmatprep.subr.mxu0 0.0
        %1878 = vmatpush1.xpose.msra.mxu0 0.0
        %1879 = vmatprep.subr.mxu0 0.0
        %1880 = vmatpush1.xpose.msra.mxu0 0.0
        %1881 = vmatprep.subr.mxu0 0.0
        %1882 = vmatpush1.xpose.msra.mxu0 0.0
        %1883 = vmatprep.subr.mxu0 0.0
        %1884 = vmatpush1.xpose.msra.mxu0 0.0
        %1885 = vmatprep.subr.mxu0 0.0
        %1886 = vmatpush1.xpose.msra.mxu0 0.0
        %1887 = vmatprep.subr.mxu0 0.0
        %1888 = vmatpush1.xpose.msra.mxu0 0.0
        %1889 = vmatprep.subr.mxu0 0.0
        %1890 = vmatpush1.xpose.msra.mxu0 0.0
        %1891 = vmatprep.subr.mxu0 0.0
        %1892 = vmatpush1.xpose.msra.mxu0 0.0
        %1893 = vmatprep.subr.mxu0 0.0
        %1894 = vmatpush1.xpose.msra.mxu0 0.0
        %1895 = vmatprep.subr.mxu0 0.0
        %1896 = vmatpush1.xpose.msra.mxu0 0.0
        %1897 = vmatprep.subr.mxu0 0.0
        %1898 = vmatpush1.xpose.msra.mxu0 0.0
        %1899 = vmatprep.subr.mxu0 0.0
        %1900 = vmatpush1.xpose.msra.mxu0 0.0
        %1901 = vmatprep.subr.mxu0 0.0
        %1902 = vmatpush1.xpose.msra.mxu0 0.0
        %1903 = vmatprep.subr.mxu0 0.0
        %1904 = vmatpush1.xpose.msra.mxu0 0.0
        %1905 = vmatprep.subr.mxu0 0.0
        %1906 = vmatpush1.xpose.msra.mxu0 0.0
        %1907 = vmatprep.subr.mxu0 0.0
        %1908 = vmatpush1.xpose.msra.mxu0 0.0
        %1909 = vmatprep.subr.mxu0 0.0
        %1910 = vmatpush1.xpose.msra.mxu0 0.0
        %1911 = vmatprep.subr.mxu0 0.0
        %1912 = vmatpush1.xpose.msra.mxu0 0.0
        %1913 = vmatprep.subr.mxu0 0.0
        %1914 = vmatpush1.xpose.msra.mxu0 0.0
        %1915 = vmatprep.subr.mxu0 0.0
        %1916 = vmatpush1.xpose.msra.mxu0 0.0
        %1917 = vmatprep.subr.mxu0 0.0
        %1918 = vmatpush1.xpose.msra.mxu0 0.0
        %1919 = vmatprep.mubr.f32.mxu0 0.0
        %v1920 = vand.u32 %v1697, 4294901760
        %v1921 = vsub.f32 %v1697, %v1920
        %1922 = vmatmul.mubr.f32.gmra.mrb[0].mxu0 %v1921
        %v1923 = vpop.f32.mrb[0].mxu0
        %v1924 = vadd.f32 %v1850, %v1923
        %v1925 = vpop.f32.mrb[0].mxu0
        %1926 = vdwg.mxu0
        %1927 = vmatprep.subr.mxu0 0.0
        %v1928 = vand.u32 %v1699, 4294901760
        %1929 = vmatpush1.xpose.msra.mxu0 %v1928
        %1930 = vmatprep.subr.mxu0 0.0
        %1931 = vmatpush1.xpose.msra.mxu0 0.0
        %1932 = vmatprep.subr.mxu0 0.0
        %1933 = vmatpush1.xpose.msra.mxu0 0.0
        %1934 = vmatprep.subr.mxu0 0.0
        %1935 = vmatpush1.xpose.msra.mxu0 0.0
        %1936 = vmatprep.subr.mxu0 0.0
        %1937 = vmatpush1.xpose.msra.mxu0 0.0
        %1938 = vmatprep.subr.mxu0 0.0
        %1939 = vmatpush1.xpose.msra.mxu0 0.0
        %1940 = vmatprep.subr.mxu0 0.0
        %1941 = vmatpush1.xpose.msra.mxu0 0.0
        %1942 = vmatprep.subr.mxu0 0.0
        %1943 = vmatpush1.xpose.msra.mxu0 0.0
        %1944 = vmatprep.subr.mxu0 0.0
        %1945 = vmatpush1.xpose.msra.mxu0 0.0
        %1946 = vmatprep.subr.mxu0 0.0
        %1947 = vmatpush1.xpose.msra.mxu0 0.0
        %1948 = vmatprep.subr.mxu0 0.0
        %1949 = vmatpush1.xpose.msra.mxu0 0.0
        %1950 = vmatprep.subr.mxu0 0.0
        %1951 = vmatpush1.xpose.msra.mxu0 0.0
        %1952 = vmatprep.subr.mxu0 0.0
        %1953 = vmatpush1.xpose.msra.mxu0 0.0
        %1954 = vmatprep.subr.mxu0 0.0
        %1955 = vmatpush1.xpose.msra.mxu0 0.0
        %1956 = vmatprep.subr.mxu0 0.0
        %1957 = vmatpush1.xpose.msra.mxu0 0.0
        %1958 = vmatprep.subr.mxu0 0.0
        %1959 = vmatpush1.xpose.msra.mxu0 0.0
        %1960 = vmatprep.subr.mxu0 0.0
        %1961 = vmatpush1.xpose.msra.mxu0 0.0
        %1962 = vmatprep.subr.mxu0 0.0
        %1963 = vmatpush1.xpose.msra.mxu0 0.0
        %1964 = vmatprep.subr.mxu0 0.0
        %1965 = vmatpush1.xpose.msra.mxu0 0.0
        %1966 = vmatprep.subr.mxu0 0.0
        %1967 = vmatpush1.xpose.msra.mxu0 0.0
        %1968 = vmatprep.subr.mxu0 0.0
        %1969 = vmatpush1.xpose.msra.mxu0 0.0
        %1970 = vmatprep.subr.mxu0 0.0
        %1971 = vmatpush1.xpose.msra.mxu0 0.0
        %1972 = vmatprep.subr.mxu0 0.0
        %1973 = vmatpush1.xpose.msra.mxu0 0.0
        %1974 = vmatprep.subr.mxu0 0.0
        %1975 = vmatpush1.xpose.msra.mxu0 0.0
        %1976 = vmatprep.subr.mxu0 0.0
        %1977 = vmatpush1.xpose.msra.mxu0 0.0
        %1978 = vmatprep.subr.mxu0 0.0
        %1979 = vmatpush1.xpose.msra.mxu0 0.0
        %1980 = vmatprep.subr.mxu0 0.0
        %1981 = vmatpush1.xpose.msra.mxu0 0.0
        %1982 = vmatprep.subr.mxu0 0.0
        %1983 = vmatpush1.xpose.msra.mxu0 0.0
        %1984 = vmatprep.subr.mxu0 0.0
        %1985 = vmatpush1.xpose.msra.mxu0 0.0
        %1986 = vmatprep.subr.mxu0 0.0
        %1987 = vmatpush1.xpose.msra.mxu0 0.0
        %1988 = vmatprep.subr.mxu0 0.0
        %1989 = vmatpush1.xpose.msra.mxu0 0.0
        %1990 = vmatprep.subr.mxu0 0.0
        %1991 = vmatpush1.xpose.msra.mxu0 0.0
        %1992 = vmatprep.mubr.f32.mxu0 0.0
        %v1993 = vand.u32 %v1697, 4294901760
        %v1994 = vsub.f32 %v1697, %v1993
        %v1995 = vand.u32 %v1994, 4294901760
        %1996 = vmatmul.mubr.f32.gmra.mrb[0].mxu0 %v1995
        %v1997 = vpop.f32.mrb[0].mxu0
        %v1998 = vadd.f32 %v1924, %v1997
        %v1999 = vpop.f32.mrb[0].mxu0
        %2000 = vdwg.mxu0
        %2001 = vmatprep.subr.mxu0 0.0
        %v2002 = vand.u32 %v1699, 4294901760
        %v2003 = vsub.f32 %v1699, %v2002
        %v2004 = vand.u32 %v2003, 4294901760
        %2005 = vmatpush1.xpose.msra.mxu0 %v2004
        %2006 = vmatprep.subr.mxu0 0.0
        %2007 = vmatpush1.xpose.msra.mxu0 0.0
        %2008 = vmatprep.subr.mxu0 0.0
        %2009 = vmatpush1.xpose.msra.mxu0 0.0
        %2010 = vmatprep.subr.mxu0 0.0
        %2011 = vmatpush1.xpose.msra.mxu0 0.0
        %2012 = vmatprep.subr.mxu0 0.0
        %2013 = vmatpush1.xpose.msra.mxu0 0.0
        %2014 = vmatprep.subr.mxu0 0.0
        %2015 = vmatpush1.xpose.msra.mxu0 0.0
        %2016 = vmatprep.subr.mxu0 0.0
        %2017 = vmatpush1.xpose.msra.mxu0 0.0
        %2018 = vmatprep.subr.mxu0 0.0
        %2019 = vmatpush1.xpose.msra.mxu0 0.0
        %2020 = vmatprep.subr.mxu0 0.0
        %2021 = vmatpush1.xpose.msra.mxu0 0.0
        %2022 = vmatprep.subr.mxu0 0.0
        %2023 = vmatpush1.xpose.msra.mxu0 0.0
        %2024 = vmatprep.subr.mxu0 0.0
        %2025 = vmatpush1.xpose.msra.mxu0 0.0
        %2026 = vmatprep.subr.mxu0 0.0
        %2027 = vmatpush1.xpose.msra.mxu0 0.0
        %2028 = vmatprep.subr.mxu0 0.0
        %2029 = vmatpush1.xpose.msra.mxu0 0.0
        %2030 = vmatprep.subr.mxu0 0.0
        %2031 = vmatpush1.xpose.msra.mxu0 0.0
        %2032 = vmatprep.subr.mxu0 0.0
        %2033 = vmatpush1.xpose.msra.mxu0 0.0
        %2034 = vmatprep.subr.mxu0 0.0
        %2035 = vmatpush1.xpose.msra.mxu0 0.0
        %2036 = vmatprep.subr.mxu0 0.0
        %2037 = vmatpush1.xpose.msra.mxu0 0.0
        %2038 = vmatprep.subr.mxu0 0.0
        %2039 = vmatpush1.xpose.msra.mxu0 0.0
        %2040 = vmatprep.subr.mxu0 0.0
        %2041 = vmatpush1.xpose.msra.mxu0 0.0
        %2042 = vmatprep.subr.mxu0 0.0
        %2043 = vmatpush1.xpose.msra.mxu0 0.0
        %2044 = vmatprep.subr.mxu0 0.0
        %2045 = vmatpush1.xpose.msra.mxu0 0.0
        %2046 = vmatprep.subr.mxu0 0.0
        %2047 = vmatpush1.xpose.msra.mxu0 0.0
        %2048 = vmatprep.subr.mxu0 0.0
        %2049 = vmatpush1.xpose.msra.mxu0 0.0
        %2050 = vmatprep.subr.mxu0 0.0
        %2051 = vmatpush1.xpose.msra.mxu0 0.0
        %2052 = vmatprep.subr.mxu0 0.0
        %2053 = vmatpush1.xpose.msra.mxu0 0.0
        %2054 = vmatprep.subr.mxu0 0.0
        %2055 = vmatpush1.xpose.msra.mxu0 0.0
        %2056 = vmatprep.subr.mxu0 0.0
        %2057 = vmatpush1.xpose.msra.mxu0 0.0
        %2058 = vmatprep.subr.mxu0 0.0
        %2059 = vmatpush1.xpose.msra.mxu0 0.0
        %2060 = vmatprep.subr.mxu0 0.0
        %2061 = vmatpush1.xpose.msra.mxu0 0.0
        %2062 = vmatprep.subr.mxu0 0.0
        %2063 = vmatpush1.xpose.msra.mxu0 0.0
        %2064 = vmatprep.subr.mxu0 0.0
        %2065 = vmatpush1.xpose.msra.mxu0 0.0
        %2066 = vmatprep.subr.mxu0 0.0
        %2067 = vmatpush1.xpose.msra.mxu0 0.0
        %2068 = vmatprep.mubr.f32.mxu0 0.0
        %v2069 = vand.u32 %v1697, 4294901760
        %2070 = vmatmul.mubr.f32.gmra.mrb[0].mxu0 %v2069
        %v2071 = vpop.f32.mrb[0].mxu0
        %v2072 = vadd.f32 %v1998, %v2071
        %v2073 = vpop.f32.mrb[0].mxu0
        %2074 = vdwg.mxu0
        %2075 = vmatprep.subr.mxu0 0.0
        %v2076 = vand.u32 %v1699, 4294901760
        %2077 = vmatpush1.xpose.msra.mxu0 %v2076
        %2078 = vmatprep.subr.mxu0 0.0
        %2079 = vmatpush1.xpose.msra.mxu0 0.0
        %2080 = vmatprep.subr.mxu0 0.0
        %2081 = vmatpush1.xpose.msra.mxu0 0.0
        %2082 = vmatprep.subr.mxu0 0.0
        %2083 = vmatpush1.xpose.msra.mxu0 0.0
        %2084 = vmatprep.subr.mxu0 0.0
        %2085 = vmatpush1.xpose.msra.mxu0 0.0
        %2086 = vmatprep.subr.mxu0 0.0
        %2087 = vmatpush1.xpose.msra.mxu0 0.0
        %2088 = vmatprep.subr.mxu0 0.0
        %2089 = vmatpush1.xpose.msra.mxu0 0.0
        %2090 = vmatprep.subr.mxu0 0.0
        %2091 = vmatpush1.xpose.msra.mxu0 0.0
        %2092 = vmatprep.subr.mxu0 0.0
        %2093 = vmatpush1.xpose.msra.mxu0 0.0
        %2094 = vmatprep.subr.mxu0 0.0
        %2095 = vmatpush1.xpose.msra.mxu0 0.0
        %2096 = vmatprep.subr.mxu0 0.0
        %2097 = vmatpush1.xpose.msra.mxu0 0.0
        %2098 = vmatprep.subr.mxu0 0.0
        %2099 = vmatpush1.xpose.msra.mxu0 0.0
        %2100 = vmatprep.subr.mxu0 0.0
        %2101 = vmatpush1.xpose.msra.mxu0 0.0
        %2102 = vmatprep.subr.mxu0 0.0
        %2103 = vmatpush1.xpose.msra.mxu0 0.0
        %2104 = vmatprep.subr.mxu0 0.0
        %2105 = vmatpush1.xpose.msra.mxu0 0.0
        %2106 = vmatprep.subr.mxu0 0.0
        %2107 = vmatpush1.xpose.msra.mxu0 0.0
        %2108 = vmatprep.subr.mxu0 0.0
        %2109 = vmatpush1.xpose.msra.mxu0 0.0
        %2110 = vmatprep.subr.mxu0 0.0
        %2111 = vmatpush1.xpose.msra.mxu0 0.0
        %2112 = vmatprep.subr.mxu0 0.0
        %2113 = vmatpush1.xpose.msra.mxu0 0.0
        %2114 = vmatprep.subr.mxu0 0.0
        %2115 = vmatpush1.xpose.msra.mxu0 0.0
        %2116 = vmatprep.subr.mxu0 0.0
        %2117 = vmatpush1.xpose.msra.mxu0 0.0
        %2118 = vmatprep.subr.mxu0 0.0
        %2119 = vmatpush1.xpose.msra.mxu0 0.0
        %2120 = vmatprep.subr.mxu0 0.0
        %2121 = vmatpush1.xpose.msra.mxu0 0.0
        %2122 = vmatprep.subr.mxu0 0.0
        %2123 = vmatpush1.xpose.msra.mxu0 0.0
        %2124 = vmatprep.subr.mxu0 0.0
        %2125 = vmatpush1.xpose.msra.mxu0 0.0
        %2126 = vmatprep.subr.mxu0 0.0
        %2127 = vmatpush1.xpose.msra.mxu0 0.0
        %2128 = vmatprep.subr.mxu0 0.0
        %2129 = vmatpush1.xpose.msra.mxu0 0.0
        %2130 = vmatprep.subr.mxu0 0.0
        %2131 = vmatpush1.xpose.msra.mxu0 0.0
        %2132 = vmatprep.subr.mxu0 0.0
        %2133 = vmatpush1.xpose.msra.mxu0 0.0
        %2134 = vmatprep.subr.mxu0 0.0
        %2135 = vmatpush1.xpose.msra.mxu0 0.0
        %2136 = vmatprep.subr.mxu0 0.0
        %2137 = vmatpush1.xpose.msra.mxu0 0.0
        %2138 = vmatprep.subr.mxu0 0.0
        %2139 = vmatpush1.xpose.msra.mxu0 0.0
        %2140 = vmatprep.mubr.f32.mxu0 0.0
        %v2141 = vand.u32 %v1697, 4294901760
        %2142 = vmatmul.mubr.f32.gmra.mrb[0].mxu0 %v2141
        %v2143 = vpop.f32.mrb[0].mxu0
        %v2144 = vadd.f32 %v2072, %v2143
        %v2145 = vpop.f32.mrb[0].mxu0
        %2146 = vdwg.mxu0
        %v2147 = vsel %vm1228, %v2144, -inf
        %2148 = vmax.xlane.f32.xlu0 %v2147
        %v2149 = vpop.xlane.xlu0 %2148
        %v2150 = vsub.f32 %v2144, %v2149
        %v2151 = vmul.f32 %v2150, 1.442695
        %v2152 = vpow.pop %v2151
        %v2153 = vsel %vm1228, %v2152, 0.0
        %2154 = vadd.xlane.f32.xlu0 %v2153
        %v2155 = vpop.xlane.xlu0 %2154
        %v2156 = vrcp.pop %v2155
        %v2157 = vmul.f32 %v2152, %v2156
        %s2158 = scalar_lea.vmem %s279, 8 [#allocation9]
        %2159 = vst.msk [vmem:[%s2158] sm:$0xff] %vm1228, %v2157
        %2160 = vrot.lane.b32.xlu0 %v771, 60
        %v2161 = vpop.permute.xlu0 %2160
        %v2164 = vsel %vm1228, %v2157, 0
        %2166 = vmatprep.subr.mxu0 0.0
        %v2167 = vand.u32 %v2161, 4294901760
        %2168 = vmatpush1.msra.mxu0 %v2167
        %2169 = vmatprep.subr.mxu0 0.0
        %2170 = vmatpush1.msra.mxu0 0.0
        %2171 = vmatprep.subr.mxu0 0.0
        %2172 = vmatpush1.msra.mxu0 0.0
        %2173 = vmatprep.subr.mxu0 0.0
        %2174 = vmatpush1.msra.mxu0 0.0
        %2175 = vmatprep.subr.mxu0 0.0
        %2176 = vmatpush1.msra.mxu0 0.0
        %2177 = vmatprep.subr.mxu0 0.0
        %2178 = vmatpush1.msra.mxu0 0.0
        %2179 = vmatprep.subr.mxu0 0.0
        %2180 = vmatpush1.msra.mxu0 0.0
        %2181 = vmatprep.subr.mxu0 0.0
        %2182 = vmatpush1.msra.mxu0 0.0
        %2183 = vmatprep.subr.mxu0 0.0
        %2184 = vmatpush1.msra.mxu0 0.0
        %2185 = vmatprep.subr.mxu0 0.0
        %2186 = vmatpush1.msra.mxu0 0.0
        %2187 = vmatprep.subr.mxu0 0.0
        %2188 = vmatpush1.msra.mxu0 0.0
        %2189 = vmatprep.subr.mxu0 0.0
        %2190 = vmatpush1.msra.mxu0 0.0
        %2191 = vmatprep.subr.mxu0 0.0
        %2192 = vmatpush1.msra.mxu0 0.0
        %2193 = vmatprep.subr.mxu0 0.0
        %2194 = vmatpush1.msra.mxu0 0.0
        %2195 = vmatprep.subr.mxu0 0.0
        %2196 = vmatpush1.msra.mxu0 0.0
        %2197 = vmatprep.subr.mxu0 0.0
        %2198 = vmatpush1.msra.mxu0 0.0
        %2199 = vmatprep.subr.mxu0 0.0
        %2200 = vmatpush1.msra.mxu0 0.0
        %2201 = vmatprep.subr.mxu0 0.0
        %2202 = vmatpush1.msra.mxu0 0.0
        %2203 = vmatprep.subr.mxu0 0.0
        %2204 = vmatpush1.msra.mxu0 0.0
        %2205 = vmatprep.subr.mxu0 0.0
        %2206 = vmatpush1.msra.mxu0 0.0
        %2207 = vmatprep.subr.mxu0 0.0
        %2208 = vmatpush1.msra.mxu0 0.0
        %2209 = vmatprep.subr.mxu0 0.0
        %2210 = vmatpush1.msra.mxu0 0.0
        %2211 = vmatprep.subr.mxu0 0.0
        %2212 = vmatpush1.msra.mxu0 0.0
        %2213 = vmatprep.subr.mxu0 0.0
        %2214 = vmatpush1.msra.mxu0 0.0
        %2215 = vmatprep.subr.mxu0 0.0
        %2216 = vmatpush1.msra.mxu0 0.0
        %2217 = vmatprep.subr.mxu0 0.0
        %2218 = vmatpush1.msra.mxu0 0.0
        %2219 = vmatprep.subr.mxu0 0.0
        %2220 = vmatpush1.msra.mxu0 0.0
        %2221 = vmatprep.subr.mxu0 0.0
        %2222 = vmatpush1.msra.mxu0 0.0
        %2223 = vmatprep.subr.mxu0 0.0
        %2224 = vmatpush1.msra.mxu0 0.0
        %2225 = vmatprep.subr.mxu0 0.0
        %2226 = vmatpush1.msra.mxu0 0.0
        %2227 = vmatprep.subr.mxu0 0.0
        %2228 = vmatpush1.msra.mxu0 0.0
        %2229 = vmatprep.subr.mxu0 0.0
        %2230 = vmatpush1.msra.mxu0 0.0
        %2231 = vmatprep.mubr.f32.mxu0 0.0
        %v2232 = vand.u32 %v2164, 4294901760
        %v2233 = vsub.f32 %v2164, %v2232
        %v2234 = vand.u32 %v2233, 4294901760
        %v2235 = vsub.f32 %v2233, %v2234
        %v2236 = vand.u32 %v2235, 4294901760
        %2237 = vmatmul.mubr.f32.gmra.mrb[0].mxu0 %v2236
        %v2238 = vpop.f32.mrb[0].mxu0
        %v2239 = vadd.f32 0.0, %v2238
        %v2240 = vpop.f32.mrb[0].mxu0
        %2241 = vdwg.mxu0
        %2242 = vmatprep.subr.mxu0 0.0
        %v2243 = vand.u32 %v2161, 4294901760
        %v2244 = vsub.f32 %v2161, %v2243
        %v2245 = vand.u32 %v2244, 4294901760
        %v2246 = vsub.f32 %v2244, %v2245
        %v2247 = vand.u32 %v2246, 4294901760
        %2248 = vmatpush1.msra.mxu0 %v2247
        %2249 = vmatprep.subr.mxu0 0.0
        %2250 = vmatpush1.msra.mxu0 0.0
        %2251 = vmatprep.subr.mxu0 0.0
        %2252 = vmatpush1.msra.mxu0 0.0
        %2253 = vmatprep.subr.mxu0 0.0
        %2254 = vmatpush1.msra.mxu0 0.0
        %2255 = vmatprep.subr.mxu0 0.0
        %2256 = vmatpush1.msra.mxu0 0.0
        %2257 = vmatprep.subr.mxu0 0.0
        %2258 = vmatpush1.msra.mxu0 0.0
        %2259 = vmatprep.subr.mxu0 0.0
        %2260 = vmatpush1.msra.mxu0 0.0
        %2261 = vmatprep.subr.mxu0 0.0
        %2262 = vmatpush1.msra.mxu0 0.0
        %2263 = vmatprep.subr.mxu0 0.0
        %2264 = vmatpush1.msra.mxu0 0.0
        %2265 = vmatprep.subr.mxu0 0.0
        %2266 = vmatpush1.msra.mxu0 0.0
        %2267 = vmatprep.subr.mxu0 0.0
        %2268 = vmatpush1.msra.mxu0 0.0
        %2269 = vmatprep.subr.mxu0 0.0
        %2270 = vmatpush1.msra.mxu0 0.0
        %2271 = vmatprep.subr.mxu0 0.0
        %2272 = vmatpush1.msra.mxu0 0.0
        %2273 = vmatprep.subr.mxu0 0.0
        %2274 = vmatpush1.msra.mxu0 0.0
        %2275 = vmatprep.subr.mxu0 0.0
        %2276 = vmatpush1.msra.mxu0 0.0
        %2277 = vmatprep.subr.mxu0 0.0
        %2278 = vmatpush1.msra.mxu0 0.0
        %2279 = vmatprep.subr.mxu0 0.0
        %2280 = vmatpush1.msra.mxu0 0.0
        %2281 = vmatprep.subr.mxu0 0.0
        %2282 = vmatpush1.msra.mxu0 0.0
        %2283 = vmatprep.subr.mxu0 0.0
        %2284 = vmatpush1.msra.mxu0 0.0
        %2285 = vmatprep.subr.mxu0 0.0
        %2286 = vmatpush1.msra.mxu0 0.0
        %2287 = vmatprep.subr.mxu0 0.0
        %2288 = vmatpush1.msra.mxu0 0.0
        %2289 = vmatprep.subr.mxu0 0.0
        %2290 = vmatpush1.msra.mxu0 0.0
        %2291 = vmatprep.subr.mxu0 0.0
        %2292 = vmatpush1.msra.mxu0 0.0
        %2293 = vmatprep.subr.mxu0 0.0
        %2294 = vmatpush1.msra.mxu0 0.0
        %2295 = vmatprep.subr.mxu0 0.0
        %2296 = vmatpush1.msra.mxu0 0.0
        %2297 = vmatprep.subr.mxu0 0.0
        %2298 = vmatpush1.msra.mxu0 0.0
        %2299 = vmatprep.subr.mxu0 0.0
        %2300 = vmatpush1.msra.mxu0 0.0
        %2301 = vmatprep.subr.mxu0 0.0
        %2302 = vmatpush1.msra.mxu0 0.0
        %2303 = vmatprep.subr.mxu0 0.0
        %2304 = vmatpush1.msra.mxu0 0.0
        %2305 = vmatprep.subr.mxu0 0.0
        %2306 = vmatpush1.msra.mxu0 0.0
        %2307 = vmatprep.subr.mxu0 0.0
        %2308 = vmatpush1.msra.mxu0 0.0
        %2309 = vmatprep.subr.mxu0 0.0
        %2310 = vmatpush1.msra.mxu0 0.0
        %2311 = vmatprep.mubr.f32.mxu0 0.0
        %v2312 = vand.u32 %v2164, 4294901760
        %2313 = vmatmul.mubr.f32.gmra.mrb[0].mxu0 %v2312
        %v2314 = vpop.f32.mrb[0].mxu0
        %v2315 = vadd.f32 %v2239, %v2314
        %v2316 = vpop.f32.mrb[0].mxu0
        %2317 = vdwg.mxu0
        %2318 = vmatprep.subr.mxu0 0.0
        %v2319 = vand.u32 %v2161, 4294901760
        %v2320 = vsub.f32 %v2161, %v2319
        %2321 = vmatpush1.msra.mxu0 %v2320
        %2322 = vmatprep.subr.mxu0 0.0
        %2323 = vmatpush1.msra.mxu0 0.0
        %2324 = vmatprep.subr.mxu0 0.0
        %2325 = vmatpush1.msra.mxu0 0.0
        %2326 = vmatprep.subr.mxu0 0.0
        %2327 = vmatpush1.msra.mxu0 0.0
        %2328 = vmatprep.subr.mxu0 0.0
        %2329 = vmatpush1.msra.mxu0 0.0
        %2330 = vmatprep.subr.mxu0 0.0
        %2331 = vmatpush1.msra.mxu0 0.0
        %2332 = vmatprep.subr.mxu0 0.0
        %2333 = vmatpush1.msra.mxu0 0.0
        %2334 = vmatprep.subr.mxu0 0.0
        %2335 = vmatpush1.msra.mxu0 0.0
        %2336 = vmatprep.subr.mxu0 0.0
        %2337 = vmatpush1.msra.mxu0 0.0
        %2338 = vmatprep.subr.mxu0 0.0
        %2339 = vmatpush1.msra.mxu0 0.0
        %2340 = vmatprep.subr.mxu0 0.0
        %2341 = vmatpush1.msra.mxu0 0.0
        %2342 = vmatprep.subr.mxu0 0.0
        %2343 = vmatpush1.msra.mxu0 0.0
        %2344 = vmatprep.subr.mxu0 0.0
        %2345 = vmatpush1.msra.mxu0 0.0
        %2346 = vmatprep.subr.mxu0 0.0
        %2347 = vmatpush1.msra.mxu0 0.0
        %2348 = vmatprep.subr.mxu0 0.0
        %2349 = vmatpush1.msra.mxu0 0.0
        %2350 = vmatprep.subr.mxu0 0.0
        %2351 = vmatpush1.msra.mxu0 0.0
        %2352 = vmatprep.subr.mxu0 0.0
        %2353 = vmatpush1.msra.mxu0 0.0
        %2354 = vmatprep.subr.mxu0 0.0
        %2355 = vmatpush1.msra.mxu0 0.0
        %2356 = vmatprep.subr.mxu0 0.0
        %2357 = vmatpush1.msra.mxu0 0.0
        %2358 = vmatprep.subr.mxu0 0.0
        %2359 = vmatpush1.msra.mxu0 0.0
        %2360 = vmatprep.subr.mxu0 0.0
        %2361 = vmatpush1.msra.mxu0 0.0
        %2362 = vmatprep.subr.mxu0 0.0
        %2363 = vmatpush1.msra.mxu0 0.0
        %2364 = vmatprep.subr.mxu0 0.0
        %2365 = vmatpush1.msra.mxu0 0.0
        %2366 = vmatprep.subr.mxu0 0.0
        %2367 = vmatpush1.msra.mxu0 0.0
        %2368 = vmatprep.subr.mxu0 0.0
        %2369 = vmatpush1.msra.mxu0 0.0
        %2370 = vmatprep.subr.mxu0 0.0
        %2371 = vmatpush1.msra.mxu0 0.0
        %2372 = vmatprep.subr.mxu0 0.0
        %2373 = vmatpush1.msra.mxu0 0.0
        %2374 = vmatprep.subr.mxu0 0.0
        %2375 = vmatpush1.msra.mxu0 0.0
        %2376 = vmatprep.subr.mxu0 0.0
        %2377 = vmatpush1.msra.mxu0 0.0
        %2378 = vmatprep.subr.mxu0 0.0
        %2379 = vmatpush1.msra.mxu0 0.0
        %2380 = vmatprep.subr.mxu0 0.0
        %2381 = vmatpush1.msra.mxu0 0.0
        %2382 = vmatprep.subr.mxu0 0.0
        %2383 = vmatpush1.msra.mxu0 0.0
        %2384 = vmatprep.mubr.f32.mxu0 0.0
        %v2385 = vand.u32 %v2164, 4294901760
        %v2386 = vsub.f32 %v2164, %v2385
        %2387 = vmatmul.mubr.f32.gmra.mrb[0].mxu0 %v2386
        %v2388 = vpop.f32.mrb[0].mxu0
        %v2389 = vadd.f32 %v2315, %v2388
        %v2390 = vpop.f32.mrb[0].mxu0
        %2391 = vdwg.mxu0
        %2392 = vmatprep.subr.mxu0 0.0
        %v2393 = vand.u32 %v2161, 4294901760
        %2394 = vmatpush1.msra.mxu0 %v2393
        %2395 = vmatprep.subr.mxu0 0.0
        %2396 = vmatpush1.msra.mxu0 0.0
        %2397 = vmatprep.subr.mxu0 0.0
        %2398 = vmatpush1.msra.mxu0 0.0
        %2399 = vmatprep.subr.mxu0 0.0
        %2400 = vmatpush1.msra.mxu0 0.0
        %2401 = vmatprep.subr.mxu0 0.0
        %2402 = vmatpush1.msra.mxu0 0.0
        %2403 = vmatprep.subr.mxu0 0.0
        %2404 = vmatpush1.msra.mxu0 0.0
        %2405 = vmatprep.subr.mxu0 0.0
        %2406 = vmatpush1.msra.mxu0 0.0
        %2407 = vmatprep.subr.mxu0 0.0
        %2408 = vmatpush1.msra.mxu0 0.0
        %2409 = vmatprep.subr.mxu0 0.0
        %2410 = vmatpush1.msra.mxu0 0.0
        %2411 = vmatprep.subr.mxu0 0.0
        %2412 = vmatpush1.msra.mxu0 0.0
        %2413 = vmatprep.subr.mxu0 0.0
        %2414 = vmatpush1.msra.mxu0 0.0
        %2415 = vmatprep.subr.mxu0 0.0
        %2416 = vmatpush1.msra.mxu0 0.0
        %2417 = vmatprep.subr.mxu0 0.0
        %2418 = vmatpush1.msra.mxu0 0.0
        %2419 = vmatprep.subr.mxu0 0.0
        %2420 = vmatpush1.msra.mxu0 0.0
        %2421 = vmatprep.subr.mxu0 0.0
        %2422 = vmatpush1.msra.mxu0 0.0
        %2423 = vmatprep.subr.mxu0 0.0
        %2424 = vmatpush1.msra.mxu0 0.0
        %2425 = vmatprep.subr.mxu0 0.0
        %2426 = vmatpush1.msra.mxu0 0.0
        %2427 = vmatprep.subr.mxu0 0.0
        %2428 = vmatpush1.msra.mxu0 0.0
        %2429 = vmatprep.subr.mxu0 0.0
        %2430 = vmatpush1.msra.mxu0 0.0
        %2431 = vmatprep.subr.mxu0 0.0
        %2432 = vmatpush1.msra.mxu0 0.0
        %2433 = vmatprep.subr.mxu0 0.0
        %2434 = vmatpush1.msra.mxu0 0.0
        %2435 = vmatprep.subr.mxu0 0.0
        %2436 = vmatpush1.msra.mxu0 0.0
        %2437 = vmatprep.subr.mxu0 0.0
        %2438 = vmatpush1.msra.mxu0 0.0
        %2439 = vmatprep.subr.mxu0 0.0
        %2440 = vmatpush1.msra.mxu0 0.0
        %2441 = vmatprep.subr.mxu0 0.0
        %2442 = vmatpush1.msra.mxu0 0.0
        %2443 = vmatprep.subr.mxu0 0.0
        %2444 = vmatpush1.msra.mxu0 0.0
        %2445 = vmatprep.subr.mxu0 0.0
        %2446 = vmatpush1.msra.mxu0 0.0
        %2447 = vmatprep.subr.mxu0 0.0
        %2448 = vmatpush1.msra.mxu0 0.0
        %2449 = vmatprep.subr.mxu0 0.0
        %2450 = vmatpush1.msra.mxu0 0.0
        %2451 = vmatprep.subr.mxu0 0.0
        %2452 = vmatpush1.msra.mxu0 0.0
        %2453 = vmatprep.subr.mxu0 0.0
        %2454 = vmatpush1.msra.mxu0 0.0
        %2455 = vmatprep.subr.mxu0 0.0
        %2456 = vmatpush1.msra.mxu0 0.0
        %2457 = vmatprep.mubr.f32.mxu0 0.0
        %v2458 = vand.u32 %v2164, 4294901760
        %v2459 = vsub.f32 %v2164, %v2458
        %v2460 = vand.u32 %v2459, 4294901760
        %2461 = vmatmul.mubr.f32.gmra.mrb[0].mxu0 %v2460
        %v2462 = vpop.f32.mrb[0].mxu0
        %v2463 = vadd.f32 %v2389, %v2462
        %v2464 = vpop.f32.mrb[0].mxu0
        %2465 = vdwg.mxu0
        %2466 = vmatprep.subr.mxu0 0.0
        %v2467 = vand.u32 %v2161, 4294901760
        %v2468 = vsub.f32 %v2161, %v2467
        %v2469 = vand.u32 %v2468, 4294901760
        %2470 = vmatpush1.msra.mxu0 %v2469
        %2471 = vmatprep.subr.mxu0 0.0
        %2472 = vmatpush1.msra.mxu0 0.0
        %2473 = vmatprep.subr.mxu0 0.0
        %2474 = vmatpush1.msra.mxu0 0.0
        %2475 = vmatprep.subr.mxu0 0.0
        %2476 = vmatpush1.msra.mxu0 0.0
        %2477 = vmatprep.subr.mxu0 0.0
        %2478 = vmatpush1.msra.mxu0 0.0
        %2479 = vmatprep.subr.mxu0 0.0
        %2480 = vmatpush1.msra.mxu0 0.0
        %2481 = vmatprep.subr.mxu0 0.0
        %2482 = vmatpush1.msra.mxu0 0.0
        %2483 = vmatprep.subr.mxu0 0.0
        %2484 = vmatpush1.msra.mxu0 0.0
        %2485 = vmatprep.subr.mxu0 0.0
        %2486 = vmatpush1.msra.mxu0 0.0
        %2487 = vmatprep.subr.mxu0 0.0
        %2488 = vmatpush1.msra.mxu0 0.0
        %2489 = vmatprep.subr.mxu0 0.0
        %2490 = vmatpush1.msra.mxu0 0.0
        %2491 = vmatprep.subr.mxu0 0.0
        %2492 = vmatpush1.msra.mxu0 0.0
        %2493 = vmatprep.subr.mxu0 0.0
        %2494 = vmatpush1.msra.mxu0 0.0
        %2495 = vmatprep.subr.mxu0 0.0
        %2496 = vmatpush1.msra.mxu0 0.0
        %2497 = vmatprep.subr.mxu0 0.0
        %2498 = vmatpush1.msra.mxu0 0.0
        %2499 = vmatprep.subr.mxu0 0.0
        %2500 = vmatpush1.msra.mxu0 0.0
        %2501 = vmatprep.subr.mxu0 0.0
        %2502 = vmatpush1.msra.mxu0 0.0
        %2503 = vmatprep.subr.mxu0 0.0
        %2504 = vmatpush1.msra.mxu0 0.0
        %2505 = vmatprep.subr.mxu0 0.0
        %2506 = vmatpush1.msra.mxu0 0.0
        %2507 = vmatprep.subr.mxu0 0.0
        %2508 = vmatpush1.msra.mxu0 0.0
        %2509 = vmatprep.subr.mxu0 0.0
        %2510 = vmatpush1.msra.mxu0 0.0
        %2511 = vmatprep.subr.mxu0 0.0
        %2512 = vmatpush1.msra.mxu0 0.0
        %2513 = vmatprep.subr.mxu0 0.0
        %2514 = vmatpush1.msra.mxu0 0.0
        %2515 = vmatprep.subr.mxu0 0.0
        %2516 = vmatpush1.msra.mxu0 0.0
        %2517 = vmatprep.subr.mxu0 0.0
        %2518 = vmatpush1.msra.mxu0 0.0
        %2519 = vmatprep.subr.mxu0 0.0
        %2520 = vmatpush1.msra.mxu0 0.0
        %2521 = vmatprep.subr.mxu0 0.0
        %2522 = vmatpush1.msra.mxu0 0.0
        %2523 = vmatprep.subr.mxu0 0.0
        %2524 = vmatpush1.msra.mxu0 0.0
        %2525 = vmatprep.subr.mxu0 0.0
        %2526 = vmatpush1.msra.mxu0 0.0
        %2527 = vmatprep.subr.mxu0 0.0
        %2528 = vmatpush1.msra.mxu0 0.0
        %2529 = vmatprep.subr.mxu0 0.0
        %2530 = vmatpush1.msra.mxu0 0.0
        %2531 = vmatprep.subr.mxu0 0.0
        %2532 = vmatpush1.msra.mxu0 0.0
        %2533 = vmatprep.mubr.f32.mxu0 0.0
        %v2534 = vand.u32 %v2164, 4294901760
        %2535 = vmatmul.mubr.f32.gmra.mrb[0].mxu0 %v2534
        %v2536 = vpop.f32.mrb[0].mxu0
        %v2537 = vadd.f32 %v2463, %v2536
        %v2538 = vpop.f32.mrb[0].mxu0
        %2539 = vdwg.mxu0
        %2540 = vmatprep.subr.mxu0 0.0
        %v2541 = vand.u32 %v2161, 4294901760
        %2542 = vmatpush1.msra.mxu0 %v2541
        %2543 = vmatprep.subr.mxu0 0.0
        %2544 = vmatpush1.msra.mxu0 0.0
        %2545 = vmatprep.subr.mxu0 0.0
        %2546 = vmatpush1.msra.mxu0 0.0
        %2547 = vmatprep.subr.mxu0 0.0
        %2548 = vmatpush1.msra.mxu0 0.0
        %2549 = vmatprep.subr.mxu0 0.0
        %2550 = vmatpush1.msra.mxu0 0.0
        %2551 = vmatprep.subr.mxu0 0.0
        %2552 = vmatpush1.msra.mxu0 0.0
        %2553 = vmatprep.subr.mxu0 0.0
        %2554 = vmatpush1.msra.mxu0 0.0
        %2555 = vmatprep.subr.mxu0 0.0
        %2556 = vmatpush1.msra.mxu0 0.0
        %2557 = vmatprep.subr.mxu0 0.0
        %2558 = vmatpush1.msra.mxu0 0.0
        %2559 = vmatprep.subr.mxu0 0.0
        %2560 = vmatpush1.msra.mxu0 0.0
        %2561 = vmatprep.subr.mxu0 0.0
        %2562 = vmatpush1.msra.mxu0 0.0
        %2563 = vmatprep.subr.mxu0 0.0
        %2564 = vmatpush1.msra.mxu0 0.0
        %2565 = vmatprep.subr.mxu0 0.0
        %2566 = vmatpush1.msra.mxu0 0.0
        %2567 = vmatprep.subr.mxu0 0.0
        %2568 = vmatpush1.msra.mxu0 0.0
        %2569 = vmatprep.subr.mxu0 0.0
        %2570 = vmatpush1.msra.mxu0 0.0
        %2571 = vmatprep.subr.mxu0 0.0
        %2572 = vmatpush1.msra.mxu0 0.0
        %2573 = vmatprep.subr.mxu0 0.0
        %2574 = vmatpush1.msra.mxu0 0.0
        %2575 = vmatprep.subr.mxu0 0.0
        %2576 = vmatpush1.msra.mxu0 0.0
        %2577 = vmatprep.subr.mxu0 0.0
        %2578 = vmatpush1.msra.mxu0 0.0
        %2579 = vmatprep.subr.mxu0 0.0
        %2580 = vmatpush1.msra.mxu0 0.0
        %2581 = vmatprep.subr.mxu0 0.0
        %2582 = vmatpush1.msra.mxu0 0.0
        %2583 = vmatprep.subr.mxu0 0.0
        %2584 = vmatpush1.msra.mxu0 0.0
        %2585 = vmatprep.subr.mxu0 0.0
        %2586 = vmatpush1.msra.mxu0 0.0
        %2587 = vmatprep.subr.mxu0 0.0
        %2588 = vmatpush1.msra.mxu0 0.0
        %2589 = vmatprep.subr.mxu0 0.0
        %2590 = vmatpush1.msra.mxu0 0.0
        %2591 = vmatprep.subr.mxu0 0.0
        %2592 = vmatpush1.msra.mxu0 0.0
        %2593 = vmatprep.subr.mxu0 0.0
        %2594 = vmatpush1.msra.mxu0 0.0
        %2595 = vmatprep.subr.mxu0 0.0
        %2596 = vmatpush1.msra.mxu0 0.0
        %2597 = vmatprep.subr.mxu0 0.0
        %2598 = vmatpush1.msra.mxu0 0.0
        %2599 = vmatprep.subr.mxu0 0.0
        %2600 = vmatpush1.msra.mxu0 0.0
        %2601 = vmatprep.subr.mxu0 0.0
        %2602 = vmatpush1.msra.mxu0 0.0
        %2603 = vmatprep.subr.mxu0 0.0
        %2604 = vmatpush1.msra.mxu0 0.0
        %2605 = vmatprep.mubr.f32.mxu0 0.0
        %v2606 = vand.u32 %v2164, 4294901760
        %2607 = vmatmul.mubr.f32.gmra.mrb[0].mxu0 %v2606
        %v2608 = vpop.f32.mrb[0].mxu0
        %v2609 = vadd.f32 %v2537, %v2608
        %v2610 = vpop.f32.mrb[0].mxu0
        %2611 = vdwg.mxu0
        %2612 = vrot.lane.b32.xlu0 %v771, 120
        %v2613 = vpop.permute.xlu0 %2612
        %2614 = vrot.lane.b32.xlu0 %v771, 88
        %v2615 = vpop.permute.xlu0 %2614
        %v2616 = vsel %vm777, %v2613, 0
        %v2618 = vsel %vm777, %v2615, 0
        %2620 = vmatprep.subr.mxu0 0.0
        %v2621 = vand.u32 %v2618, 4294901760
        %2622 = vmatpush1.xpose.msra.mxu0 %v2621
        %2623 = vmatprep.subr.mxu0 0.0
        %2624 = vmatpush1.xpose.msra.mxu0 0.0
        %2625 = vmatprep.subr.mxu0 0.0
        %2626 = vmatpush1.xpose.msra.mxu0 0.0
        %2627 = vmatprep.subr.mxu0 0.0
        %2628 = vmatpush1.xpose.msra.mxu0 0.0
        %2629 = vmatprep.subr.mxu0 0.0
        %2630 = vmatpush1.xpose.msra.mxu0 0.0
        %2631 = vmatprep.subr.mxu0 0.0
        %2632 = vmatpush1.xpose.msra.mxu0 0.0
        %2633 = vmatprep.subr.mxu0 0.0
        %2634 = vmatpush1.xpose.msra.mxu0 0.0
        %2635 = vmatprep.subr.mxu0 0.0
        %2636 = vmatpush1.xpose.msra.mxu0 0.0
        %2637 = vmatprep.subr.mxu0 0.0
        %2638 = vmatpush1.xpose.msra.mxu0 0.0
        %2639 = vmatprep.subr.mxu0 0.0
        %2640 = vmatpush1.xpose.msra.mxu0 0.0
        %2641 = vmatprep.subr.mxu0 0.0
        %2642 = vmatpush1.xpose.msra.mxu0 0.0
        %2643 = vmatprep.subr.mxu0 0.0
        %2644 = vmatpush1.xpose.msra.mxu0 0.0
        %2645 = vmatprep.subr.mxu0 0.0
        %2646 = vmatpush1.xpose.msra.mxu0 0.0
        %2647 = vmatprep.subr.mxu0 0.0
        %2648 = vmatpush1.xpose.msra.mxu0 0.0
        %2649 = vmatprep.subr.mxu0 0.0
        %2650 = vmatpush1.xpose.msra.mxu0 0.0
        %2651 = vmatprep.subr.mxu0 0.0
        %2652 = vmatpush1.xpose.msra.mxu0 0.0
        %2653 = vmatprep.subr.mxu0 0.0
        %2654 = vmatpush1.xpose.msra.mxu0 0.0
        %2655 = vmatprep.subr.mxu0 0.0
        %2656 = vmatpush1.xpose.msra.mxu0 0.0
        %2657 = vmatprep.subr.mxu0 0.0
        %2658 = vmatpush1.xpose.msra.mxu0 0.0
        %2659 = vmatprep.subr.mxu0 0.0
        %2660 = vmatpush1.xpose.msra.mxu0 0.0
        %2661 = vmatprep.subr.mxu0 0.0
        %2662 = vmatpush1.xpose.msra.mxu0 0.0
        %2663 = vmatprep.subr.mxu0 0.0
        %2664 = vmatpush1.xpose.msra.mxu0 0.0
        %2665 = vmatprep.subr.mxu0 0.0
        %2666 = vmatpush1.xpose.msra.mxu0 0.0
        %2667 = vmatprep.subr.mxu0 0.0
        %2668 = vmatpush1.xpose.msra.mxu0 0.0
        %2669 = vmatprep.subr.mxu0 0.0
        %2670 = vmatpush1.xpose.msra.mxu0 0.0
        %2671 = vmatprep.subr.mxu0 0.0
        %2672 = vmatpush1.xpose.msra.mxu0 0.0
        %2673 = vmatprep.subr.mxu0 0.0
        %2674 = vmatpush1.xpose.msra.mxu0 0.0
        %2675 = vmatprep.subr.mxu0 0.0
        %2676 = vmatpush1.xpose.msra.mxu0 0.0
        %2677 = vmatprep.subr.mxu0 0.0
        %2678 = vmatpush1.xpose.msra.mxu0 0.0
        %2679 = vmatprep.subr.mxu0 0.0
        %2680 = vmatpush1.xpose.msra.mxu0 0.0
        %2681 = vmatprep.subr.mxu0 0.0
        %2682 = vmatpush1.xpose.msra.mxu0 0.0
        %2683 = vmatprep.subr.mxu0 0.0
        %2684 = vmatpush1.xpose.msra.mxu0 0.0
        %2685 = vmatprep.mubr.f32.mxu0 0.0
        %v2686 = vand.u32 %v2616, 4294901760
        %v2687 = vsub.f32 %v2616, %v2686
        %v2688 = vand.u32 %v2687, 4294901760
        %v2689 = vsub.f32 %v2687, %v2688
        %v2690 = vand.u32 %v2689, 4294901760
        %2691 = vmatmul.mubr.f32.gmra.mrb[0].mxu0 %v2690
        %v2692 = vpop.f32.mrb[0].mxu0
        %v2693 = vadd.f32 0.0, %v2692
        %v2694 = vpop.f32.mrb[0].mxu0
        %2695 = vdwg.mxu0
        %2696 = vmatprep.subr.mxu0 0.0
        %v2697 = vand.u32 %v2618, 4294901760
        %v2698 = vsub.f32 %v2618, %v2697
        %v2699 = vand.u32 %v2698, 4294901760
        %v2700 = vsub.f32 %v2698, %v2699
        %v2701 = vand.u32 %v2700, 4294901760
        %2702 = vmatpush1.xpose.msra.mxu0 %v2701
        %2703 = vmatprep.subr.mxu0 0.0
        %2704 = vmatpush1.xpose.msra.mxu0 0.0
        %2705 = vmatprep.subr.mxu0 0.0
        %2706 = vmatpush1.xpose.msra.mxu0 0.0
        %2707 = vmatprep.subr.mxu0 0.0
        %2708 = vmatpush1.xpose.msra.mxu0 0.0
        %2709 = vmatprep.subr.mxu0 0.0
        %2710 = vmatpush1.xpose.msra.mxu0 0.0
        %2711 = vmatprep.subr.mxu0 0.0
        %2712 = vmatpush1.xpose.msra.mxu0 0.0
        %2713 = vmatprep.subr.mxu0 0.0
        %2714 = vmatpush1.xpose.msra.mxu0 0.0
        %2715 = vmatprep.subr.mxu0 0.0
        %2716 = vmatpush1.xpose.msra.mxu0 0.0
        %2717 = vmatprep.subr.mxu0 0.0
        %2718 = vmatpush1.xpose.msra.mxu0 0.0
        %2719 = vmatprep.subr.mxu0 0.0
        %2720 = vmatpush1.xpose.msra.mxu0 0.0
        %2721 = vmatprep.subr.mxu0 0.0
        %2722 = vmatpush1.xpose.msra.mxu0 0.0
        %2723 = vmatprep.subr.mxu0 0.0
        %2724 = vmatpush1.xpose.msra.mxu0 0.0
        %2725 = vmatprep.subr.mxu0 0.0
        %2726 = vmatpush1.xpose.msra.mxu0 0.0
        %2727 = vmatprep.subr.mxu0 0.0
        %2728 = vmatpush1.xpose.msra.mxu0 0.0
        %2729 = vmatprep.subr.mxu0 0.0
        %2730 = vmatpush1.xpose.msra.mxu0 0.0
        %2731 = vmatprep.subr.mxu0 0.0
        %2732 = vmatpush1.xpose.msra.mxu0 0.0
        %2733 = vmatprep.subr.mxu0 0.0
        %2734 = vmatpush1.xpose.msra.mxu0 0.0
        %2735 = vmatprep.subr.mxu0 0.0
        %2736 = vmatpush1.xpose.msra.mxu0 0.0
        %2737 = vmatprep.subr.mxu0 0.0
        %2738 = vmatpush1.xpose.msra.mxu0 0.0
        %2739 = vmatprep.subr.mxu0 0.0
        %2740 = vmatpush1.xpose.msra.mxu0 0.0
        %2741 = vmatprep.subr.mxu0 0.0
        %2742 = vmatpush1.xpose.msra.mxu0 0.0
        %2743 = vmatprep.subr.mxu0 0.0
        %2744 = vmatpush1.xpose.msra.mxu0 0.0
        %2745 = vmatprep.subr.mxu0 0.0
        %2746 = vmatpush1.xpose.msra.mxu0 0.0
        %2747 = vmatprep.subr.mxu0 0.0
        %2748 = vmatpush1.xpose.msra.mxu0 0.0
        %2749 = vmatprep.subr.mxu0 0.0
        %2750 = vmatpush1.xpose.msra.mxu0 0.0
        %2751 = vmatprep.subr.mxu0 0.0
        %2752 = vmatpush1.xpose.msra.mxu0 0.0
        %2753 = vmatprep.subr.mxu0 0.0
        %2754 = vmatpush1.xpose.msra.mxu0 0.0
        %2755 = vmatprep.subr.mxu0 0.0
        %2756 = vmatpush1.xpose.msra.mxu0 0.0
        %2757 = vmatprep.subr.mxu0 0.0
        %2758 = vmatpush1.xpose.msra.mxu0 0.0
        %2759 = vmatprep.subr.mxu0 0.0
        %2760 = vmatpush1.xpose.msra.mxu0 0.0
        %2761 = vmatprep.subr.mxu0 0.0
        %2762 = vmatpush1.xpose.msra.mxu0 0.0
        %2763 = vmatprep.subr.mxu0 0.0
        %2764 = vmatpush1.xpose.msra.mxu0 0.0
        %2765 = vmatprep.mubr.f32.mxu0 0.0
        %v2766 = vand.u32 %v2616, 4294901760
        %2767 = vmatmul.mubr.f32.gmra.mrb[0].mxu0 %v2766
        %v2768 = vpop.f32.mrb[0].mxu0
        %v2769 = vadd.f32 %v2693, %v2768
        %v2770 = vpop.f32.mrb[0].mxu0
        %2771 = vdwg.mxu0
        %2772 = vmatprep.subr.mxu0 0.0
        %v2773 = vand.u32 %v2618, 4294901760
        %v2774 = vsub.f32 %v2618, %v2773
        %2775 = vmatpush1.xpose.msra.mxu0 %v2774
        %2776 = vmatprep.subr.mxu0 0.0
        %2777 = vmatpush1.xpose.msra.mxu0 0.0
        %2778 = vmatprep.subr.mxu0 0.0
        %2779 = vmatpush1.xpose.msra.mxu0 0.0
        %2780 = vmatprep.subr.mxu0 0.0
        %2781 = vmatpush1.xpose.msra.mxu0 0.0
        %2782 = vmatprep.subr.mxu0 0.0
        %2783 = vmatpush1.xpose.msra.mxu0 0.0
        %2784 = vmatprep.subr.mxu0 0.0
        %2785 = vmatpush1.xpose.msra.mxu0 0.0
        %2786 = vmatprep.subr.mxu0 0.0
        %2787 = vmatpush1.xpose.msra.mxu0 0.0
        %2788 = vmatprep.subr.mxu0 0.0
        %2789 = vmatpush1.xpose.msra.mxu0 0.0
        %2790 = vmatprep.subr.mxu0 0.0
        %2791 = vmatpush1.xpose.msra.mxu0 0.0
        %2792 = vmatprep.subr.mxu0 0.0
        %2793 = vmatpush1.xpose.msra.mxu0 0.0
        %2794 = vmatprep.subr.mxu0 0.0
        %2795 = vmatpush1.xpose.msra.mxu0 0.0
        %2796 = vmatprep.subr.mxu0 0.0
        %2797 = vmatpush1.xpose.msra.mxu0 0.0
        %2798 = vmatprep.subr.mxu0 0.0
        %2799 = vmatpush1.xpose.msra.mxu0 0.0
        %2800 = vmatprep.subr.mxu0 0.0
        %2801 = vmatpush1.xpose.msra.mxu0 0.0
        %2802 = vmatprep.subr.mxu0 0.0
        %2803 = vmatpush1.xpose.msra.mxu0 0.0
        %2804 = vmatprep.subr.mxu0 0.0
        %2805 = vmatpush1.xpose.msra.mxu0 0.0
        %2806 = vmatprep.subr.mxu0 0.0
        %2807 = vmatpush1.xpose.msra.mxu0 0.0
        %2808 = vmatprep.subr.mxu0 0.0
        %2809 = vmatpush1.xpose.msra.mxu0 0.0
        %2810 = vmatprep.subr.mxu0 0.0
        %2811 = vmatpush1.xpose.msra.mxu0 0.0
        %2812 = vmatprep.subr.mxu0 0.0
        %2813 = vmatpush1.xpose.msra.mxu0 0.0
        %2814 = vmatprep.subr.mxu0 0.0
        %2815 = vmatpush1.xpose.msra.mxu0 0.0
        %2816 = vmatprep.subr.mxu0 0.0
        %2817 = vmatpush1.xpose.msra.mxu0 0.0
        %2818 = vmatprep.subr.mxu0 0.0
        %2819 = vmatpush1.xpose.msra.mxu0 0.0
        %2820 = vmatprep.subr.mxu0 0.0
        %2821 = vmatpush1.xpose.msra.mxu0 0.0
        %2822 = vmatprep.subr.mxu0 0.0
        %2823 = vmatpush1.xpose.msra.mxu0 0.0
        %2824 = vmatprep.subr.mxu0 0.0
        %2825 = vmatpush1.xpose.msra.mxu0 0.0
        %2826 = vmatprep.subr.mxu0 0.0
        %2827 = vmatpush1.xpose.msra.mxu0 0.0
        %2828 = vmatprep.subr.mxu0 0.0
        %2829 = vmatpush1.xpose.msra.mxu0 0.0
        %2830 = vmatprep.subr.mxu0 0.0
        %2831 = vmatpush1.xpose.msra.mxu0 0.0
        %2832 = vmatprep.subr.mxu0 0.0
        %2833 = vmatpush1.xpose.msra.mxu0 0.0
        %2834 = vmatprep.subr.mxu0 0.0
        %2835 = vmatpush1.xpose.msra.mxu0 0.0
        %2836 = vmatprep.subr.mxu0 0.0
        %2837 = vmatpush1.xpose.msra.mxu0 0.0
        %2838 = vmatprep.mubr.f32.mxu0 0.0
        %v2839 = vand.u32 %v2616, 4294901760
        %v2840 = vsub.f32 %v2616, %v2839
        %2841 = vmatmul.mubr.f32.gmra.mrb[0].mxu0 %v2840
        %v2842 = vpop.f32.mrb[0].mxu0
        %v2843 = vadd.f32 %v2769, %v2842
        %v2844 = vpop.f32.mrb[0].mxu0
        %2845 = vdwg.mxu0
        %2846 = vmatprep.subr.mxu0 0.0
        %v2847 = vand.u32 %v2618, 4294901760
        %2848 = vmatpush1.xpose.msra.mxu0 %v2847
        %2849 = vmatprep.subr.mxu0 0.0
        %2850 = vmatpush1.xpose.msra.mxu0 0.0
        %2851 = vmatprep.subr.mxu0 0.0
        %2852 = vmatpush1.xpose.msra.mxu0 0.0
        %2853 = vmatprep.subr.mxu0 0.0
        %2854 = vmatpush1.xpose.msra.mxu0 0.0
        %2855 = vmatprep.subr.mxu0 0.0
        %2856 = vmatpush1.xpose.msra.mxu0 0.0
        %2857 = vmatprep.subr.mxu0 0.0
        %2858 = vmatpush1.xpose.msra.mxu0 0.0
        %2859 = vmatprep.subr.mxu0 0.0
        %2860 = vmatpush1.xpose.msra.mxu0 0.0
        %2861 = vmatprep.subr.mxu0 0.0
        %2862 = vmatpush1.xpose.msra.mxu0 0.0
        %2863 = vmatprep.subr.mxu0 0.0
        %2864 = vmatpush1.xpose.msra.mxu0 0.0
        %2865 = vmatprep.subr.mxu0 0.0
        %2866 = vmatpush1.xpose.msra.mxu0 0.0
        %2867 = vmatprep.subr.mxu0 0.0
        %2868 = vmatpush1.xpose.msra.mxu0 0.0
        %2869 = vmatprep.subr.mxu0 0.0
        %2870 = vmatpush1.xpose.msra.mxu0 0.0
        %2871 = vmatprep.subr.mxu0 0.0
        %2872 = vmatpush1.xpose.msra.mxu0 0.0
        %2873 = vmatprep.subr.mxu0 0.0
        %2874 = vmatpush1.xpose.msra.mxu0 0.0
        %2875 = vmatprep.subr.mxu0 0.0
        %2876 = vmatpush1.xpose.msra.mxu0 0.0
        %2877 = vmatprep.subr.mxu0 0.0
        %2878 = vmatpush1.xpose.msra.mxu0 0.0
        %2879 = vmatprep.subr.mxu0 0.0
        %2880 = vmatpush1.xpose.msra.mxu0 0.0
        %2881 = vmatprep.subr.mxu0 0.0
        %2882 = vmatpush1.xpose.msra.mxu0 0.0
        %2883 = vmatprep.subr.mxu0 0.0
        %2884 = vmatpush1.xpose.msra.mxu0 0.0
        %2885 = vmatprep.subr.mxu0 0.0
        %2886 = vmatpush1.xpose.msra.mxu0 0.0
        %2887 = vmatprep.subr.mxu0 0.0
        %2888 = vmatpush1.xpose.msra.mxu0 0.0
        %2889 = vmatprep.subr.mxu0 0.0
        %2890 = vmatpush1.xpose.msra.mxu0 0.0
        %2891 = vmatprep.subr.mxu0 0.0
        %2892 = vmatpush1.xpose.msra.mxu0 0.0
        %2893 = vmatprep.subr.mxu0 0.0
        %2894 = vmatpush1.xpose.msra.mxu0 0.0
        %2895 = vmatprep.subr.mxu0 0.0
        %2896 = vmatpush1.xpose.msra.mxu0 0.0
        %2897 = vmatprep.subr.mxu0 0.0
        %2898 = vmatpush1.xpose.msra.mxu0 0.0
        %2899 = vmatprep.subr.mxu0 0.0
        %2900 = vmatpush1.xpose.msra.mxu0 0.0
        %2901 = vmatprep.subr.mxu0 0.0
        %2902 = vmatpush1.xpose.msra.mxu0 0.0
        %2903 = vmatprep.subr.mxu0 0.0
        %2904 = vmatpush1.xpose.msra.mxu0 0.0
        %2905 = vmatprep.subr.mxu0 0.0
        %2906 = vmatpush1.xpose.msra.mxu0 0.0
        %2907 = vmatprep.subr.mxu0 0.0
        %2908 = vmatpush1.xpose.msra.mxu0 0.0
        %2909 = vmatprep.subr.mxu0 0.0
        %2910 = vmatpush1.xpose.msra.mxu0 0.0
        %2911 = vmatprep.mubr.f32.mxu0 0.0
        %v2912 = vand.u32 %v2616, 4294901760
        %v2913 = vsub.f32 %v2616, %v2912
        %v2914 = vand.u32 %v2913, 4294901760
        %2915 = vmatmul.mubr.f32.gmra.mrb[0].mxu0 %v2914
        %v2916 = vpop.f32.mrb[0].mxu0
        %v2917 = vadd.f32 %v2843, %v2916
        %v2918 = vpop.f32.mrb[0].mxu0
        %2919 = vdwg.mxu0
        %2920 = vmatprep.subr.mxu0 0.0
        %v2921 = vand.u32 %v2618, 4294901760
        %v2922 = vsub.f32 %v2618, %v2921
        %v2923 = vand.u32 %v2922, 4294901760
        %2924 = vmatpush1.xpose.msra.mxu0 %v2923
        %2925 = vmatprep.subr.mxu0 0.0
        %2926 = vmatpush1.xpose.msra.mxu0 0.0
        %2927 = vmatprep.subr.mxu0 0.0
        %2928 = vmatpush1.xpose.msra.mxu0 0.0
        %2929 = vmatprep.subr.mxu0 0.0
        %2930 = vmatpush1.xpose.msra.mxu0 0.0
        %2931 = vmatprep.subr.mxu0 0.0
        %2932 = vmatpush1.xpose.msra.mxu0 0.0
        %2933 = vmatprep.subr.mxu0 0.0
        %2934 = vmatpush1.xpose.msra.mxu0 0.0
        %2935 = vmatprep.subr.mxu0 0.0
        %2936 = vmatpush1.xpose.msra.mxu0 0.0
        %2937 = vmatprep.subr.mxu0 0.0
        %2938 = vmatpush1.xpose.msra.mxu0 0.0
        %2939 = vmatprep.subr.mxu0 0.0
        %2940 = vmatpush1.xpose.msra.mxu0 0.0
        %2941 = vmatprep.subr.mxu0 0.0
        %2942 = vmatpush1.xpose.msra.mxu0 0.0
        %2943 = vmatprep.subr.mxu0 0.0
        %2944 = vmatpush1.xpose.msra.mxu0 0.0
        %2945 = vmatprep.subr.mxu0 0.0
        %2946 = vmatpush1.xpose.msra.mxu0 0.0
        %2947 = vmatprep.subr.mxu0 0.0
        %2948 = vmatpush1.xpose.msra.mxu0 0.0
        %2949 = vmatprep.subr.mxu0 0.0
        %2950 = vmatpush1.xpose.msra.mxu0 0.0
        %2951 = vmatprep.subr.mxu0 0.0
        %2952 = vmatpush1.xpose.msra.mxu0 0.0
        %2953 = vmatprep.subr.mxu0 0.0
        %2954 = vmatpush1.xpose.msra.mxu0 0.0
        %2955 = vmatprep.subr.mxu0 0.0
        %2956 = vmatpush1.xpose.msra.mxu0 0.0
        %2957 = vmatprep.subr.mxu0 0.0
        %2958 = vmatpush1.xpose.msra.mxu0 0.0
        %2959 = vmatprep.subr.mxu0 0.0
        %2960 = vmatpush1.xpose.msra.mxu0 0.0
        %2961 = vmatprep.subr.mxu0 0.0
        %2962 = vmatpush1.xpose.msra.mxu0 0.0
        %2963 = vmatprep.subr.mxu0 0.0
        %2964 = vmatpush1.xpose.msra.mxu0 0.0
        %2965 = vmatprep.subr.mxu0 0.0
        %2966 = vmatpush1.xpose.msra.mxu0 0.0
        %2967 = vmatprep.subr.mxu0 0.0
        %2968 = vmatpush1.xpose.msra.mxu0 0.0
        %2969 = vmatprep.subr.mxu0 0.0
        %2970 = vmatpush1.xpose.msra.mxu0 0.0
        %2971 = vmatprep.subr.mxu0 0.0
        %2972 = vmatpush1.xpose.msra.mxu0 0.0
        %2973 = vmatprep.subr.mxu0 0.0
        %2974 = vmatpush1.xpose.msra.mxu0 0.0
        %2975 = vmatprep.subr.mxu0 0.0
        %2976 = vmatpush1.xpose.msra.mxu0 0.0
        %2977 = vmatprep.subr.mxu0 0.0
        %2978 = vmatpush1.xpose.msra.mxu0 0.0
        %2979 = vmatprep.subr.mxu0 0.0
        %2980 = vmatpush1.xpose.msra.mxu0 0.0
        %2981 = vmatprep.subr.mxu0 0.0
        %2982 = vmatpush1.xpose.msra.mxu0 0.0
        %2983 = vmatprep.subr.mxu0 0.0
        %2984 = vmatpush1.xpose.msra.mxu0 0.0
        %2985 = vmatprep.subr.mxu0 0.0
        %2986 = vmatpush1.xpose.msra.mxu0 0.0
        %2987 = vmatprep.mubr.f32.mxu0 0.0
        %v2988 = vand.u32 %v2616, 4294901760
        %2989 = vmatmul.mubr.f32.gmra.mrb[0].mxu0 %v2988
        %v2990 = vpop.f32.mrb[0].mxu0
        %v2991 = vadd.f32 %v2917, %v2990
        %v2992 = vpop.f32.mrb[0].mxu0
        %2993 = vdwg.mxu0
        %2994 = vmatprep.subr.mxu0 0.0
        %v2995 = vand.u32 %v2618, 4294901760
        %2996 = vmatpush1.xpose.msra.mxu0 %v2995
        %2997 = vmatprep.subr.mxu0 0.0
        %2998 = vmatpush1.xpose.msra.mxu0 0.0
        %2999 = vmatprep.subr.mxu0 0.0
        %3000 = vmatpush1.xpose.msra.mxu0 0.0
        %3001 = vmatprep.subr.mxu0 0.0
        %3002 = vmatpush1.xpose.msra.mxu0 0.0
        %3003 = vmatprep.subr.mxu0 0.0
        %3004 = vmatpush1.xpose.msra.mxu0 0.0
        %3005 = vmatprep.subr.mxu0 0.0
        %3006 = vmatpush1.xpose.msra.mxu0 0.0
        %3007 = vmatprep.subr.mxu0 0.0
        %3008 = vmatpush1.xpose.msra.mxu0 0.0
        %3009 = vmatprep.subr.mxu0 0.0
        %3010 = vmatpush1.xpose.msra.mxu0 0.0
        %3011 = vmatprep.subr.mxu0 0.0
        %3012 = vmatpush1.xpose.msra.mxu0 0.0
        %3013 = vmatprep.subr.mxu0 0.0
        %3014 = vmatpush1.xpose.msra.mxu0 0.0
        %3015 = vmatprep.subr.mxu0 0.0
        %3016 = vmatpush1.xpose.msra.mxu0 0.0
        %3017 = vmatprep.subr.mxu0 0.0
        %3018 = vmatpush1.xpose.msra.mxu0 0.0
        %3019 = vmatprep.subr.mxu0 0.0
        %3020 = vmatpush1.xpose.msra.mxu0 0.0
        %3021 = vmatprep.subr.mxu0 0.0
        %3022 = vmatpush1.xpose.msra.mxu0 0.0
        %3023 = vmatprep.subr.mxu0 0.0
        %3024 = vmatpush1.xpose.msra.mxu0 0.0
        %3025 = vmatprep.subr.mxu0 0.0
        %3026 = vmatpush1.xpose.msra.mxu0 0.0
        %3027 = vmatprep.subr.mxu0 0.0
        %3028 = vmatpush1.xpose.msra.mxu0 0.0
        %3029 = vmatprep.subr.mxu0 0.0
        %3030 = vmatpush1.xpose.msra.mxu0 0.0
        %3031 = vmatprep.subr.mxu0 0.0
        %3032 = vmatpush1.xpose.msra.mxu0 0.0
        %3033 = vmatprep.subr.mxu0 0.0
        %3034 = vmatpush1.xpose.msra.mxu0 0.0
        %3035 = vmatprep.subr.mxu0 0.0
        %3036 = vmatpush1.xpose.msra.mxu0 0.0
        %3037 = vmatprep.subr.mxu0 0.0
        %3038 = vmatpush1.xpose.msra.mxu0 0.0
        %3039 = vmatprep.subr.mxu0 0.0
        %3040 = vmatpush1.xpose.msra.mxu0 0.0
        %3041 = vmatprep.subr.mxu0 0.0
        %3042 = vmatpush1.xpose.msra.mxu0 0.0
        %3043 = vmatprep.subr.mxu0 0.0
        %3044 = vmatpush1.xpose.msra.mxu0 0.0
        %3045 = vmatprep.subr.mxu0 0.0
        %3046 = vmatpush1.xpose.msra.mxu0 0.0
        %3047 = vmatprep.subr.mxu0 0.0
        %3048 = vmatpush1.xpose.msra.mxu0 0.0
        %3049 = vmatprep.subr.mxu0 0.0
        %3050 = vmatpush1.xpose.msra.mxu0 0.0
        %3051 = vmatprep.subr.mxu0 0.0
        %3052 = vmatpush1.xpose.msra.mxu0 0.0
        %3053 = vmatprep.subr.mxu0 0.0
        %3054 = vmatpush1.xpose.msra.mxu0 0.0
        %3055 = vmatprep.subr.mxu0 0.0
        %3056 = vmatpush1.xpose.msra.mxu0 0.0
        %3057 = vmatprep.subr.mxu0 0.0
        %3058 = vmatpush1.xpose.msra.mxu0 0.0
        %3059 = vmatprep.mubr.f32.mxu0 0.0
        %v3060 = vand.u32 %v2616, 4294901760
        %3061 = vmatmul.mubr.f32.gmra.mrb[0].mxu0 %v3060
        %v3062 = vpop.f32.mrb[0].mxu0
        %v3063 = vadd.f32 %v2991, %v3062
        %v3064 = vpop.f32.mrb[0].mxu0
        %3065 = vdwg.mxu0
        %v3066 = vsel %vm1228, %v3063, -inf
        %3067 = vmax.xlane.f32.xlu0 %v3066
        %v3068 = vpop.xlane.xlu0 %3067
        %v3069 = vsub.f32 %v3063, %v3068
        %v3070 = vmul.f32 %v3069, 1.442695
        %v3071 = vpow.pop %v3070
        %v3072 = vsel %vm1228, %v3071, 0.0
        %3073 = vadd.xlane.f32.xlu0 %v3072
        %v3074 = vpop.xlane.xlu0 %3073
        %v3075 = vrcp.pop %v3074
        %v3076 = vmul.f32 %v3071, %v3075
        %s3077 = scalar_lea.vmem %s279, 16 [#allocation9]
        %3078 = vst.msk [vmem:[%s3077] sm:$0xff] %vm1228, %v3076
        %3079 = vrot.lane.b32.xlu0 %v771, 56
        %v3080 = vpop.permute.xlu0 %3079
        %v3083 = vsel %vm1228, %v3076, 0
        %3085 = vmatprep.subr.mxu0 0.0
        %v3086 = vand.u32 %v3080, 4294901760
        %3087 = vmatpush1.msra.mxu0 %v3086
        %3088 = vmatprep.subr.mxu0 0.0
        %3089 = vmatpush1.msra.mxu0 0.0
        %3090 = vmatprep.subr.mxu0 0.0
        %3091 = vmatpush1.msra.mxu0 0.0
        %3092 = vmatprep.subr.mxu0 0.0
        %3093 = vmatpush1.msra.mxu0 0.0
        %3094 = vmatprep.subr.mxu0 0.0
        %3095 = vmatpush1.msra.mxu0 0.0
        %3096 = vmatprep.subr.mxu0 0.0
        %3097 = vmatpush1.msra.mxu0 0.0
        %3098 = vmatprep.subr.mxu0 0.0
        %3099 = vmatpush1.msra.mxu0 0.0
        %3100 = vmatprep.subr.mxu0 0.0
        %3101 = vmatpush1.msra.mxu0 0.0
        %3102 = vmatprep.subr.mxu0 0.0
        %3103 = vmatpush1.msra.mxu0 0.0
        %3104 = vmatprep.subr.mxu0 0.0
        %3105 = vmatpush1.msra.mxu0 0.0
        %3106 = vmatprep.subr.mxu0 0.0
        %3107 = vmatpush1.msra.mxu0 0.0
        %3108 = vmatprep.subr.mxu0 0.0
        %3109 = vmatpush1.msra.mxu0 0.0
        %3110 = vmatprep.subr.mxu0 0.0
        %3111 = vmatpush1.msra.mxu0 0.0
        %3112 = vmatprep.subr.mxu0 0.0
        %3113 = vmatpush1.msra.mxu0 0.0
        %3114 = vmatprep.subr.mxu0 0.0
        %3115 = vmatpush1.msra.mxu0 0.0
        %3116 = vmatprep.subr.mxu0 0.0
        %3117 = vmatpush1.msra.mxu0 0.0
        %3118 = vmatprep.subr.mxu0 0.0
        %3119 = vmatpush1.msra.mxu0 0.0
        %3120 = vmatprep.subr.mxu0 0.0
        %3121 = vmatpush1.msra.mxu0 0.0
        %3122 = vmatprep.subr.mxu0 0.0
        %3123 = vmatpush1.msra.mxu0 0.0
        %3124 = vmatprep.subr.mxu0 0.0
        %3125 = vmatpush1.msra.mxu0 0.0
        %3126 = vmatprep.subr.mxu0 0.0
        %3127 = vmatpush1.msra.mxu0 0.0
        %3128 = vmatprep.subr.mxu0 0.0
        %3129 = vmatpush1.msra.mxu0 0.0
        %3130 = vmatprep.subr.mxu0 0.0
        %3131 = vmatpush1.msra.mxu0 0.0
        %3132 = vmatprep.subr.mxu0 0.0
        %3133 = vmatpush1.msra.mxu0 0.0
        %3134 = vmatprep.subr.mxu0 0.0
        %3135 = vmatpush1.msra.mxu0 0.0
        %3136 = vmatprep.subr.mxu0 0.0
        %3137 = vmatpush1.msra.mxu0 0.0
        %3138 = vmatprep.subr.mxu0 0.0
        %3139 = vmatpush1.msra.mxu0 0.0
        %3140 = vmatprep.subr.mxu0 0.0
        %3141 = vmatpush1.msra.mxu0 0.0
        %3142 = vmatprep.subr.mxu0 0.0
        %3143 = vmatpush1.msra.mxu0 0.0
        %3144 = vmatprep.subr.mxu0 0.0
        %3145 = vmatpush1.msra.mxu0 0.0
        %3146 = vmatprep.subr.mxu0 0.0
        %3147 = vmatpush1.msra.mxu0 0.0
        %3148 = vmatprep.subr.mxu0 0.0
        %3149 = vmatpush1.msra.mxu0 0.0
        %3150 = vmatprep.mubr.f32.mxu0 0.0
        %v3151 = vand.u32 %v3083, 4294901760
        %v3152 = vsub.f32 %v3083, %v3151
        %v3153 = vand.u32 %v3152, 4294901760
        %v3154 = vsub.f32 %v3152, %v3153
        %v3155 = vand.u32 %v3154, 4294901760
        %3156 = vmatmul.mubr.f32.gmra.mrb[0].mxu0 %v3155
        %v3157 = vpop.f32.mrb[0].mxu0
        %v3158 = vadd.f32 0.0, %v3157
        %v3159 = vpop.f32.mrb[0].mxu0
        %3160 = vdwg.mxu0
        %3161 = vmatprep.subr.mxu0 0.0
        %v3162 = vand.u32 %v3080, 4294901760
        %v3163 = vsub.f32 %v3080, %v3162
        %v3164 = vand.u32 %v3163, 4294901760
        %v3165 = vsub.f32 %v3163, %v3164
        %v3166 = vand.u32 %v3165, 4294901760
        %3167 = vmatpush1.msra.mxu0 %v3166
        %3168 = vmatprep.subr.mxu0 0.0
        %3169 = vmatpush1.msra.mxu0 0.0
        %3170 = vmatprep.subr.mxu0 0.0
        %3171 = vmatpush1.msra.mxu0 0.0
        %3172 = vmatprep.subr.mxu0 0.0
        %3173 = vmatpush1.msra.mxu0 0.0
        %3174 = vmatprep.subr.mxu0 0.0
        %3175 = vmatpush1.msra.mxu0 0.0
        %3176 = vmatprep.subr.mxu0 0.0
        %3177 = vmatpush1.msra.mxu0 0.0
        %3178 = vmatprep.subr.mxu0 0.0
        %3179 = vmatpush1.msra.mxu0 0.0
        %3180 = vmatprep.subr.mxu0 0.0
        %3181 = vmatpush1.msra.mxu0 0.0
        %3182 = vmatprep.subr.mxu0 0.0
        %3183 = vmatpush1.msra.mxu0 0.0
        %3184 = vmatprep.subr.mxu0 0.0
        %3185 = vmatpush1.msra.mxu0 0.0
        %3186 = vmatprep.subr.mxu0 0.0
        %3187 = vmatpush1.msra.mxu0 0.0
        %3188 = vmatprep.subr.mxu0 0.0
        %3189 = vmatpush1.msra.mxu0 0.0
        %3190 = vmatprep.subr.mxu0 0.0
        %3191 = vmatpush1.msra.mxu0 0.0
        %3192 = vmatprep.subr.mxu0 0.0
        %3193 = vmatpush1.msra.mxu0 0.0
        %3194 = vmatprep.subr.mxu0 0.0
        %3195 = vmatpush1.msra.mxu0 0.0
        %3196 = vmatprep.subr.mxu0 0.0
        %3197 = vmatpush1.msra.mxu0 0.0
        %3198 = vmatprep.subr.mxu0 0.0
        %3199 = vmatpush1.msra.mxu0 0.0
        %3200 = vmatprep.subr.mxu0 0.0
        %3201 = vmatpush1.msra.mxu0 0.0
        %3202 = vmatprep.subr.mxu0 0.0
        %3203 = vmatpush1.msra.mxu0 0.0
        %3204 = vmatprep.subr.mxu0 0.0
        %3205 = vmatpush1.msra.mxu0 0.0
        %3206 = vmatprep.subr.mxu0 0.0
        %3207 = vmatpush1.msra.mxu0 0.0
        %3208 = vmatprep.subr.mxu0 0.0
        %3209 = vmatpush1.msra.mxu0 0.0
        %3210 = vmatprep.subr.mxu0 0.0
        %3211 = vmatpush1.msra.mxu0 0.0
        %3212 = vmatprep.subr.mxu0 0.0
        %3213 = vmatpush1.msra.mxu0 0.0
        %3214 = vmatprep.subr.mxu0 0.0
        %3215 = vmatpush1.msra.mxu0 0.0
        %3216 = vmatprep.subr.mxu0 0.0
        %3217 = vmatpush1.msra.mxu0 0.0
        %3218 = vmatprep.subr.mxu0 0.0
        %3219 = vmatpush1.msra.mxu0 0.0
        %3220 = vmatprep.subr.mxu0 0.0
        %3221 = vmatpush1.msra.mxu0 0.0
        %3222 = vmatprep.subr.mxu0 0.0
        %3223 = vmatpush1.msra.mxu0 0.0
        %3224 = vmatprep.subr.mxu0 0.0
        %3225 = vmatpush1.msra.mxu0 0.0
        %3226 = vmatprep.subr.mxu0 0.0
        %3227 = vmatpush1.msra.mxu0 0.0
        %3228 = vmatprep.subr.mxu0 0.0
        %3229 = vmatpush1.msra.mxu0 0.0
        %3230 = vmatprep.mubr.f32.mxu0 0.0
        %v3231 = vand.u32 %v3083, 4294901760
        %3232 = vmatmul.mubr.f32.gmra.mrb[0].mxu0 %v3231
        %v3233 = vpop.f32.mrb[0].mxu0
        %v3234 = vadd.f32 %v3158, %v3233
        %v3235 = vpop.f32.mrb[0].mxu0
        %3236 = vdwg.mxu0
        %3237 = vmatprep.subr.mxu0 0.0
        %v3238 = vand.u32 %v3080, 4294901760
        %v3239 = vsub.f32 %v3080, %v3238
        %3240 = vmatpush1.msra.mxu0 %v3239
        %3241 = vmatprep.subr.mxu0 0.0
        %3242 = vmatpush1.msra.mxu0 0.0
        %3243 = vmatprep.subr.mxu0 0.0
        %3244 = vmatpush1.msra.mxu0 0.0
        %3245 = vmatprep.subr.mxu0 0.0
        %3246 = vmatpush1.msra.mxu0 0.0
        %3247 = vmatprep.subr.mxu0 0.0
        %3248 = vmatpush1.msra.mxu0 0.0
        %3249 = vmatprep.subr.mxu0 0.0
        %3250 = vmatpush1.msra.mxu0 0.0
        %3251 = vmatprep.subr.mxu0 0.0
        %3252 = vmatpush1.msra.mxu0 0.0
        %3253 = vmatprep.subr.mxu0 0.0
        %3254 = vmatpush1.msra.mxu0 0.0
        %3255 = vmatprep.subr.mxu0 0.0
        %3256 = vmatpush1.msra.mxu0 0.0
        %3257 = vmatprep.subr.mxu0 0.0
        %3258 = vmatpush1.msra.mxu0 0.0
        %3259 = vmatprep.subr.mxu0 0.0
        %3260 = vmatpush1.msra.mxu0 0.0
        %3261 = vmatprep.subr.mxu0 0.0
        %3262 = vmatpush1.msra.mxu0 0.0
        %3263 = vmatprep.subr.mxu0 0.0
        %3264 = vmatpush1.msra.mxu0 0.0
        %3265 = vmatprep.subr.mxu0 0.0
        %3266 = vmatpush1.msra.mxu0 0.0
        %3267 = vmatprep.subr.mxu0 0.0
        %3268 = vmatpush1.msra.mxu0 0.0
        %3269 = vmatprep.subr.mxu0 0.0
        %3270 = vmatpush1.msra.mxu0 0.0
        %3271 = vmatprep.subr.mxu0 0.0
        %3272 = vmatpush1.msra.mxu0 0.0
        %3273 = vmatprep.subr.mxu0 0.0
        %3274 = vmatpush1.msra.mxu0 0.0
        %3275 = vmatprep.subr.mxu0 0.0
        %3276 = vmatpush1.msra.mxu0 0.0
        %3277 = vmatprep.subr.mxu0 0.0
        %3278 = vmatpush1.msra.mxu0 0.0
        %3279 = vmatprep.subr.mxu0 0.0
        %3280 = vmatpush1.msra.mxu0 0.0
        %3281 = vmatprep.subr.mxu0 0.0
        %3282 = vmatpush1.msra.mxu0 0.0
        %3283 = vmatprep.subr.mxu0 0.0
        %3284 = vmatpush1.msra.mxu0 0.0
        %3285 = vmatprep.subr.mxu0 0.0
        %3286 = vmatpush1.msra.mxu0 0.0
        %3287 = vmatprep.subr.mxu0 0.0
        %3288 = vmatpush1.msra.mxu0 0.0
        %3289 = vmatprep.subr.mxu0 0.0
        %3290 = vmatpush1.msra.mxu0 0.0
        %3291 = vmatprep.subr.mxu0 0.0
        %3292 = vmatpush1.msra.mxu0 0.0
        %3293 = vmatprep.subr.mxu0 0.0
        %3294 = vmatpush1.msra.mxu0 0.0
        %3295 = vmatprep.subr.mxu0 0.0
        %3296 = vmatpush1.msra.mxu0 0.0
        %3297 = vmatprep.subr.mxu0 0.0
        %3298 = vmatpush1.msra.mxu0 0.0
        %3299 = vmatprep.subr.mxu0 0.0
        %3300 = vmatpush1.msra.mxu0 0.0
        %3301 = vmatprep.subr.mxu0 0.0
        %3302 = vmatpush1.msra.mxu0 0.0
        %3303 = vmatprep.mubr.f32.mxu0 0.0
        %v3304 = vand.u32 %v3083, 4294901760
        %v3305 = vsub.f32 %v3083, %v3304
        %3306 = vmatmul.mubr.f32.gmra.mrb[0].mxu0 %v3305
        %v3307 = vpop.f32.mrb[0].mxu0
        %v3308 = vadd.f32 %v3234, %v3307
        %v3309 = vpop.f32.mrb[0].mxu0
        %3310 = vdwg.mxu0
        %3311 = vmatprep.subr.mxu0 0.0
        %v3312 = vand.u32 %v3080, 4294901760
        %3313 = vmatpush1.msra.mxu0 %v3312
        %3314 = vmatprep.subr.mxu0 0.0
        %3315 = vmatpush1.msra.mxu0 0.0
        %3316 = vmatprep.subr.mxu0 0.0
        %3317 = vmatpush1.msra.mxu0 0.0
        %3318 = vmatprep.subr.mxu0 0.0
        %3319 = vmatpush1.msra.mxu0 0.0
        %3320 = vmatprep.subr.mxu0 0.0
        %3321 = vmatpush1.msra.mxu0 0.0
        %3322 = vmatprep.subr.mxu0 0.0
        %3323 = vmatpush1.msra.mxu0 0.0
        %3324 = vmatprep.subr.mxu0 0.0
        %3325 = vmatpush1.msra.mxu0 0.0
        %3326 = vmatprep.subr.mxu0 0.0
        %3327 = vmatpush1.msra.mxu0 0.0
        %3328 = vmatprep.subr.mxu0 0.0
        %3329 = vmatpush1.msra.mxu0 0.0
        %3330 = vmatprep.subr.mxu0 0.0
        %3331 = vmatpush1.msra.mxu0 0.0
        %3332 = vmatprep.subr.mxu0 0.0
        %3333 = vmatpush1.msra.mxu0 0.0
        %3334 = vmatprep.subr.mxu0 0.0
        %3335 = vmatpush1.msra.mxu0 0.0
        %3336 = vmatprep.subr.mxu0 0.0
        %3337 = vmatpush1.msra.mxu0 0.0
        %3338 = vmatprep.subr.mxu0 0.0
        %3339 = vmatpush1.msra.mxu0 0.0
        %3340 = vmatprep.subr.mxu0 0.0
        %3341 = vmatpush1.msra.mxu0 0.0
        %3342 = vmatprep.subr.mxu0 0.0
        %3343 = vmatpush1.msra.mxu0 0.0
        %3344 = vmatprep.subr.mxu0 0.0
        %3345 = vmatpush1.msra.mxu0 0.0
        %3346 = vmatprep.subr.mxu0 0.0
        %3347 = vmatpush1.msra.mxu0 0.0
        %3348 = vmatprep.subr.mxu0 0.0
        %3349 = vmatpush1.msra.mxu0 0.0
        %3350 = vmatprep.subr.mxu0 0.0
        %3351 = vmatpush1.msra.mxu0 0.0
        %3352 = vmatprep.subr.mxu0 0.0
        %3353 = vmatpush1.msra.mxu0 0.0
        %3354 = vmatprep.subr.mxu0 0.0
        %3355 = vmatpush1.msra.mxu0 0.0
        %3356 = vmatprep.subr.mxu0 0.0
        %3357 = vmatpush1.msra.mxu0 0.0
        %3358 = vmatprep.subr.mxu0 0.0
        %3359 = vmatpush1.msra.mxu0 0.0
        %3360 = vmatprep.subr.mxu0 0.0
        %3361 = vmatpush1.msra.mxu0 0.0
        %3362 = vmatprep.subr.mxu0 0.0
        %3363 = vmatpush1.msra.mxu0 0.0
        %3364 = vmatprep.subr.mxu0 0.0
        %3365 = vmatpush1.msra.mxu0 0.0
        %3366 = vmatprep.subr.mxu0 0.0
        %3367 = vmatpush1.msra.mxu0 0.0
        %3368 = vmatprep.subr.mxu0 0.0
        %3369 = vmatpush1.msra.mxu0 0.0
        %3370 = vmatprep.subr.mxu0 0.0
        %3371 = vmatpush1.msra.mxu0 0.0
        %3372 = vmatprep.subr.mxu0 0.0
        %3373 = vmatpush1.msra.mxu0 0.0
        %3374 = vmatprep.subr.mxu0 0.0
        %3375 = vmatpush1.msra.mxu0 0.0
        %3376 = vmatprep.mubr.f32.mxu0 0.0
        %v3377 = vand.u32 %v3083, 4294901760
        %v3378 = vsub.f32 %v3083, %v3377
        %v3379 = vand.u32 %v3378, 4294901760
        %3380 = vmatmul.mubr.f32.gmra.mrb[0].mxu0 %v3379
        %v3381 = vpop.f32.mrb[0].mxu0
        %v3382 = vadd.f32 %v3308, %v3381
        %v3383 = vpop.f32.mrb[0].mxu0
        %3384 = vdwg.mxu0
        %3385 = vmatprep.subr.mxu0 0.0
        %v3386 = vand.u32 %v3080, 4294901760
        %v3387 = vsub.f32 %v3080, %v3386
        %v3388 = vand.u32 %v3387, 4294901760
        %3389 = vmatpush1.msra.mxu0 %v3388
        %3390 = vmatprep.subr.mxu0 0.0
        %3391 = vmatpush1.msra.mxu0 0.0
        %3392 = vmatprep.subr.mxu0 0.0
        %3393 = vmatpush1.msra.mxu0 0.0
        %3394 = vmatprep.subr.mxu0 0.0
        %3395 = vmatpush1.msra.mxu0 0.0
        %3396 = vmatprep.subr.mxu0 0.0
        %3397 = vmatpush1.msra.mxu0 0.0
        %3398 = vmatprep.subr.mxu0 0.0
        %3399 = vmatpush1.msra.mxu0 0.0
        %3400 = vmatprep.subr.mxu0 0.0
        %3401 = vmatpush1.msra.mxu0 0.0
        %3402 = vmatprep.subr.mxu0 0.0
        %3403 = vmatpush1.msra.mxu0 0.0
        %3404 = vmatprep.subr.mxu0 0.0
        %3405 = vmatpush1.msra.mxu0 0.0
        %3406 = vmatprep.subr.mxu0 0.0
        %3407 = vmatpush1.msra.mxu0 0.0
        %3408 = vmatprep.subr.mxu0 0.0
        %3409 = vmatpush1.msra.mxu0 0.0
        %3410 = vmatprep.subr.mxu0 0.0
        %3411 = vmatpush1.msra.mxu0 0.0
        %3412 = vmatprep.subr.mxu0 0.0
        %3413 = vmatpush1.msra.mxu0 0.0
        %3414 = vmatprep.subr.mxu0 0.0
        %3415 = vmatpush1.msra.mxu0 0.0
        %3416 = vmatprep.subr.mxu0 0.0
        %3417 = vmatpush1.msra.mxu0 0.0
        %3418 = vmatprep.subr.mxu0 0.0
        %3419 = vmatpush1.msra.mxu0 0.0
        %3420 = vmatprep.subr.mxu0 0.0
        %3421 = vmatpush1.msra.mxu0 0.0
        %3422 = vmatprep.subr.mxu0 0.0
        %3423 = vmatpush1.msra.mxu0 0.0
        %3424 = vmatprep.subr.mxu0 0.0
        %3425 = vmatpush1.msra.mxu0 0.0
        %3426 = vmatprep.subr.mxu0 0.0
        %3427 = vmatpush1.msra.mxu0 0.0
        %3428 = vmatprep.subr.mxu0 0.0
        %3429 = vmatpush1.msra.mxu0 0.0
        %3430 = vmatprep.subr.mxu0 0.0
        %3431 = vmatpush1.msra.mxu0 0.0
        %3432 = vmatprep.subr.mxu0 0.0
        %3433 = vmatpush1.msra.mxu0 0.0
        %3434 = vmatprep.subr.mxu0 0.0
        %3435 = vmatpush1.msra.mxu0 0.0
        %3436 = vmatprep.subr.mxu0 0.0
        %3437 = vmatpush1.msra.mxu0 0.0
        %3438 = vmatprep.subr.mxu0 0.0
        %3439 = vmatpush1.msra.mxu0 0.0
        %3440 = vmatprep.subr.mxu0 0.0
        %3441 = vmatpush1.msra.mxu0 0.0
        %3442 = vmatprep.subr.mxu0 0.0
        %3443 = vmatpush1.msra.mxu0 0.0
        %3444 = vmatprep.subr.mxu0 0.0
        %3445 = vmatpush1.msra.mxu0 0.0
        %3446 = vmatprep.subr.mxu0 0.0
        %3447 = vmatpush1.msra.mxu0 0.0
        %3448 = vmatprep.subr.mxu0 0.0
        %3449 = vmatpush1.msra.mxu0 0.0
        %3450 = vmatprep.subr.mxu0 0.0
        %3451 = vmatpush1.msra.mxu0 0.0
        %3452 = vmatprep.mubr.f32.mxu0 0.0
        %v3453 = vand.u32 %v3083, 4294901760
        %3454 = vmatmul.mubr.f32.gmra.mrb[0].mxu0 %v3453
        %v3455 = vpop.f32.mrb[0].mxu0
        %v3456 = vadd.f32 %v3382, %v3455
        %v3457 = vpop.f32.mrb[0].mxu0
        %3458 = vdwg.mxu0
        %3459 = vmatprep.subr.mxu0 0.0
        %v3460 = vand.u32 %v3080, 4294901760
        %3461 = vmatpush1.msra.mxu0 %v3460
        %3462 = vmatprep.subr.mxu0 0.0
        %3463 = vmatpush1.msra.mxu0 0.0
        %3464 = vmatprep.subr.mxu0 0.0
        %3465 = vmatpush1.msra.mxu0 0.0
        %3466 = vmatprep.subr.mxu0 0.0
        %3467 = vmatpush1.msra.mxu0 0.0
        %3468 = vmatprep.subr.mxu0 0.0
        %3469 = vmatpush1.msra.mxu0 0.0
        %3470 = vmatprep.subr.mxu0 0.0
        %3471 = vmatpush1.msra.mxu0 0.0
        %3472 = vmatprep.subr.mxu0 0.0
        %3473 = vmatpush1.msra.mxu0 0.0
        %3474 = vmatprep.subr.mxu0 0.0
        %3475 = vmatpush1.msra.mxu0 0.0
        %3476 = vmatprep.subr.mxu0 0.0
        %3477 = vmatpush1.msra.mxu0 0.0
        %3478 = vmatprep.subr.mxu0 0.0
        %3479 = vmatpush1.msra.mxu0 0.0
        %3480 = vmatprep.subr.mxu0 0.0
        %3481 = vmatpush1.msra.mxu0 0.0
        %3482 = vmatprep.subr.mxu0 0.0
        %3483 = vmatpush1.msra.mxu0 0.0
        %3484 = vmatprep.subr.mxu0 0.0
        %3485 = vmatpush1.msra.mxu0 0.0
        %3486 = vmatprep.subr.mxu0 0.0
        %3487 = vmatpush1.msra.mxu0 0.0
        %3488 = vmatprep.subr.mxu0 0.0
        %3489 = vmatpush1.msra.mxu0 0.0
        %3490 = vmatprep.subr.mxu0 0.0
        %3491 = vmatpush1.msra.mxu0 0.0
        %3492 = vmatprep.subr.mxu0 0.0
        %3493 = vmatpush1.msra.mxu0 0.0
        %3494 = vmatprep.subr.mxu0 0.0
        %3495 = vmatpush1.msra.mxu0 0.0
        %3496 = vmatprep.subr.mxu0 0.0
        %3497 = vmatpush1.msra.mxu0 0.0
        %3498 = vmatprep.subr.mxu0 0.0
        %3499 = vmatpush1.msra.mxu0 0.0
        %3500 = vmatprep.subr.mxu0 0.0
        %3501 = vmatpush1.msra.mxu0 0.0
        %3502 = vmatprep.subr.mxu0 0.0
        %3503 = vmatpush1.msra.mxu0 0.0
        %3504 = vmatprep.subr.mxu0 0.0
        %3505 = vmatpush1.msra.mxu0 0.0
        %3506 = vmatprep.subr.mxu0 0.0
        %3507 = vmatpush1.msra.mxu0 0.0
        %3508 = vmatprep.subr.mxu0 0.0
        %3509 = vmatpush1.msra.mxu0 0.0
        %3510 = vmatprep.subr.mxu0 0.0
        %3511 = vmatpush1.msra.mxu0 0.0
        %3512 = vmatprep.subr.mxu0 0.0
        %3513 = vmatpush1.msra.mxu0 0.0
        %3514 = vmatprep.subr.mxu0 0.0
        %3515 = vmatpush1.msra.mxu0 0.0
        %3516 = vmatprep.subr.mxu0 0.0
        %3517 = vmatpush1.msra.mxu0 0.0
        %3518 = vmatprep.subr.mxu0 0.0
        %3519 = vmatpush1.msra.mxu0 0.0
        %3520 = vmatprep.subr.mxu0 0.0
        %3521 = vmatpush1.msra.mxu0 0.0
        %3522 = vmatprep.subr.mxu0 0.0
        %3523 = vmatpush1.msra.mxu0 0.0
        %3524 = vmatprep.mubr.f32.mxu0 0.0
        %v3525 = vand.u32 %v3083, 4294901760
        %3526 = vmatmul.mubr.f32.gmra.mrb[0].mxu0 %v3525
        %v3527 = vpop.f32.mrb[0].mxu0
        %v3528 = vadd.f32 %v3456, %v3527
        %v3529 = vpop.f32.mrb[0].mxu0
        %3530 = vdwg.mxu0
        %3531 = vrot.lane.b32.xlu0 %v771, 116
        %v3532 = vpop.permute.xlu0 %3531
        %3533 = vrot.lane.b32.xlu0 %v771, 84
        %v3534 = vpop.permute.xlu0 %3533
        %v3535 = vsel %vm777, %v3532, 0
        %v3537 = vsel %vm777, %v3534, 0
        %3539 = vmatprep.subr.mxu0 0.0
        %v3540 = vand.u32 %v3537, 4294901760
        %3541 = vmatpush1.xpose.msra.mxu0 %v3540
        %3542 = vmatprep.subr.mxu0 0.0
        %3543 = vmatpush1.xpose.msra.mxu0 0.0
        %3544 = vmatprep.subr.mxu0 0.0
        %3545 = vmatpush1.xpose.msra.mxu0 0.0
        %3546 = vmatprep.subr.mxu0 0.0
        %3547 = vmatpush1.xpose.msra.mxu0 0.0
        %3548 = vmatprep.subr.mxu0 0.0
        %3549 = vmatpush1.xpose.msra.mxu0 0.0
        %3550 = vmatprep.subr.mxu0 0.0
        %3551 = vmatpush1.xpose.msra.mxu0 0.0
        %3552 = vmatprep.subr.mxu0 0.0
        %3553 = vmatpush1.xpose.msra.mxu0 0.0
        %3554 = vmatprep.subr.mxu0 0.0
        %3555 = vmatpush1.xpose.msra.mxu0 0.0
        %3556 = vmatprep.subr.mxu0 0.0
        %3557 = vmatpush1.xpose.msra.mxu0 0.0
        %3558 = vmatprep.subr.mxu0 0.0
        %3559 = vmatpush1.xpose.msra.mxu0 0.0
        %3560 = vmatprep.subr.mxu0 0.0
        %3561 = vmatpush1.xpose.msra.mxu0 0.0
        %3562 = vmatprep.subr.mxu0 0.0
        %3563 = vmatpush1.xpose.msra.mxu0 0.0
        %3564 = vmatprep.subr.mxu0 0.0
        %3565 = vmatpush1.xpose.msra.mxu0 0.0
        %3566 = vmatprep.subr.mxu0 0.0
        %3567 = vmatpush1.xpose.msra.mxu0 0.0
        %3568 = vmatprep.subr.mxu0 0.0
        %3569 = vmatpush1.xpose.msra.mxu0 0.0
        %3570 = vmatprep.subr.mxu0 0.0
        %3571 = vmatpush1.xpose.msra.mxu0 0.0
        %3572 = vmatprep.subr.mxu0 0.0
        %3573 = vmatpush1.xpose.msra.mxu0 0.0
        %3574 = vmatprep.subr.mxu0 0.0
        %3575 = vmatpush1.xpose.msra.mxu0 0.0
        %3576 = vmatprep.subr.mxu0 0.0
        %3577 = vmatpush1.xpose.msra.mxu0 0.0
        %3578 = vmatprep.subr.mxu0 0.0
        %3579 = vmatpush1.xpose.msra.mxu0 0.0
        %3580 = vmatprep.subr.mxu0 0.0
        %3581 = vmatpush1.xpose.msra.mxu0 0.0
        %3582 = vmatprep.subr.mxu0 0.0
        %3583 = vmatpush1.xpose.msra.mxu0 0.0
        %3584 = vmatprep.subr.mxu0 0.0
        %3585 = vmatpush1.xpose.msra.mxu0 0.0
        %3586 = vmatprep.subr.mxu0 0.0
        %3587 = vmatpush1.xpose.msra.mxu0 0.0
        %3588 = vmatprep.subr.mxu0 0.0
        %3589 = vmatpush1.xpose.msra.mxu0 0.0
        %3590 = vmatprep.subr.mxu0 0.0
        %3591 = vmatpush1.xpose.msra.mxu0 0.0
        %3592 = vmatprep.subr.mxu0 0.0
        %3593 = vmatpush1.xpose.msra.mxu0 0.0
        %3594 = vmatprep.subr.mxu0 0.0
        %3595 = vmatpush1.xpose.msra.mxu0 0.0
        %3596 = vmatprep.subr.mxu0 0.0
        %3597 = vmatpush1.xpose.msra.mxu0 0.0
        %3598 = vmatprep.subr.mxu0 0.0
        %3599 = vmatpush1.xpose.msra.mxu0 0.0
        %3600 = vmatprep.subr.mxu0 0.0
        %3601 = vmatpush1.xpose.msra.mxu0 0.0
        %3602 = vmatprep.subr.mxu0 0.0
        %3603 = vmatpush1.xpose.msra.mxu0 0.0
        %3604 = vmatprep.mubr.f32.mxu0 0.0
        %v3605 = vand.u32 %v3535, 4294901760
        %v3606 = vsub.f32 %v3535, %v3605
        %v3607 = vand.u32 %v3606, 4294901760
        %v3608 = vsub.f32 %v3606, %v3607
        %v3609 = vand.u32 %v3608, 4294901760
        %3610 = vmatmul.mubr.f32.gmra.mrb[0].mxu0 %v3609
        %v3611 = vpop.f32.mrb[0].mxu0
        %v3612 = vadd.f32 0.0, %v3611
        %v3613 = vpop.f32.mrb[0].mxu0
        %3614 = vdwg.mxu0
        %3615 = vmatprep.subr.mxu0 0.0
        %v3616 = vand.u32 %v3537, 4294901760
        %v3617 = vsub.f32 %v3537, %v3616
        %v3618 = vand.u32 %v3617, 4294901760
        %v3619 = vsub.f32 %v3617, %v3618
        %v3620 = vand.u32 %v3619, 4294901760
        %3621 = vmatpush1.xpose.msra.mxu0 %v3620
        %3622 = vmatprep.subr.mxu0 0.0
        %3623 = vmatpush1.xpose.msra.mxu0 0.0
        %3624 = vmatprep.subr.mxu0 0.0
        %3625 = vmatpush1.xpose.msra.mxu0 0.0
        %3626 = vmatprep.subr.mxu0 0.0
        %3627 = vmatpush1.xpose.msra.mxu0 0.0
        %3628 = vmatprep.subr.mxu0 0.0
        %3629 = vmatpush1.xpose.msra.mxu0 0.0
        %3630 = vmatprep.subr.mxu0 0.0
        %3631 = vmatpush1.xpose.msra.mxu0 0.0
        %3632 = vmatprep.subr.mxu0 0.0
        %3633 = vmatpush1.xpose.msra.mxu0 0.0
        %3634 = vmatprep.subr.mxu0 0.0
        %3635 = vmatpush1.xpose.msra.mxu0 0.0
        %3636 = vmatprep.subr.mxu0 0.0
        %3637 = vmatpush1.xpose.msra.mxu0 0.0
        %3638 = vmatprep.subr.mxu0 0.0
        %3639 = vmatpush1.xpose.msra.mxu0 0.0
        %3640 = vmatprep.subr.mxu0 0.0
        %3641 = vmatpush1.xpose.msra.mxu0 0.0
        %3642 = vmatprep.subr.mxu0 0.0
        %3643 = vmatpush1.xpose.msra.mxu0 0.0
        %3644 = vmatprep.subr.mxu0 0.0
        %3645 = vmatpush1.xpose.msra.mxu0 0.0
        %3646 = vmatprep.subr.mxu0 0.0
        %3647 = vmatpush1.xpose.msra.mxu0 0.0
        %3648 = vmatprep.subr.mxu0 0.0
        %3649 = vmatpush1.xpose.msra.mxu0 0.0
        %3650 = vmatprep.subr.mxu0 0.0
        %3651 = vmatpush1.xpose.msra.mxu0 0.0
        %3652 = vmatprep.subr.mxu0 0.0
        %3653 = vmatpush1.xpose.msra.mxu0 0.0
        %3654 = vmatprep.subr.mxu0 0.0
        %3655 = vmatpush1.xpose.msra.mxu0 0.0
        %3656 = vmatprep.subr.mxu0 0.0
        %3657 = vmatpush1.xpose.msra.mxu0 0.0
        %3658 = vmatprep.subr.mxu0 0.0
        %3659 = vmatpush1.xpose.msra.mxu0 0.0
        %3660 = vmatprep.subr.mxu0 0.0
        %3661 = vmatpush1.xpose.msra.mxu0 0.0
        %3662 = vmatprep.subr.mxu0 0.0
        %3663 = vmatpush1.xpose.msra.mxu0 0.0
        %3664 = vmatprep.subr.mxu0 0.0
        %3665 = vmatpush1.xpose.msra.mxu0 0.0
        %3666 = vmatprep.subr.mxu0 0.0
        %3667 = vmatpush1.xpose.msra.mxu0 0.0
        %3668 = vmatprep.subr.mxu0 0.0
        %3669 = vmatpush1.xpose.msra.mxu0 0.0
        %3670 = vmatprep.subr.mxu0 0.0
        %3671 = vmatpush1.xpose.msra.mxu0 0.0
        %3672 = vmatprep.subr.mxu0 0.0
        %3673 = vmatpush1.xpose.msra.mxu0 0.0
        %3674 = vmatprep.subr.mxu0 0.0
        %3675 = vmatpush1.xpose.msra.mxu0 0.0
        %3676 = vmatprep.subr.mxu0 0.0
        %3677 = vmatpush1.xpose.msra.mxu0 0.0
        %3678 = vmatprep.subr.mxu0 0.0
        %3679 = vmatpush1.xpose.msra.mxu0 0.0
        %3680 = vmatprep.subr.mxu0 0.0
        %3681 = vmatpush1.xpose.msra.mxu0 0.0
        %3682 = vmatprep.subr.mxu0 0.0
        %3683 = vmatpush1.xpose.msra.mxu0 0.0
        %3684 = vmatprep.mubr.f32.mxu0 0.0
        %v3685 = vand.u32 %v3535, 4294901760
        %3686 = vmatmul.mubr.f32.gmra.mrb[0].mxu0 %v3685
        %v3687 = vpop.f32.mrb[0].mxu0
        %v3688 = vadd.f32 %v3612, %v3687
        %v3689 = vpop.f32.mrb[0].mxu0
        %3690 = vdwg.mxu0
        %3691 = vmatprep.subr.mxu0 0.0
        %v3692 = vand.u32 %v3537, 4294901760
        %v3693 = vsub.f32 %v3537, %v3692
        %3694 = vmatpush1.xpose.msra.mxu0 %v3693
        %3695 = vmatprep.subr.mxu0 0.0
        %3696 = vmatpush1.xpose.msra.mxu0 0.0
        %3697 = vmatprep.subr.mxu0 0.0
        %3698 = vmatpush1.xpose.msra.mxu0 0.0
        %3699 = vmatprep.subr.mxu0 0.0
        %3700 = vmatpush1.xpose.msra.mxu0 0.0
        %3701 = vmatprep.subr.mxu0 0.0
        %3702 = vmatpush1.xpose.msra.mxu0 0.0
        %3703 = vmatprep.subr.mxu0 0.0
        %3704 = vmatpush1.xpose.msra.mxu0 0.0
        %3705 = vmatprep.subr.mxu0 0.0
        %3706 = vmatpush1.xpose.msra.mxu0 0.0
        %3707 = vmatprep.subr.mxu0 0.0
        %3708 = vmatpush1.xpose.msra.mxu0 0.0
        %3709 = vmatprep.subr.mxu0 0.0
        %3710 = vmatpush1.xpose.msra.mxu0 0.0
        %3711 = vmatprep.subr.mxu0 0.0
        %3712 = vmatpush1.xpose.msra.mxu0 0.0
        %3713 = vmatprep.subr.mxu0 0.0
        %3714 = vmatpush1.xpose.msra.mxu0 0.0
        %3715 = vmatprep.subr.mxu0 0.0
        %3716 = vmatpush1.xpose.msra.mxu0 0.0
        %3717 = vmatprep.subr.mxu0 0.0
        %3718 = vmatpush1.xpose.msra.mxu0 0.0
        %3719 = vmatprep.subr.mxu0 0.0
        %3720 = vmatpush1.xpose.msra.mxu0 0.0
        %3721 = vmatprep.subr.mxu0 0.0
        %3722 = vmatpush1.xpose.msra.mxu0 0.0
        %3723 = vmatprep.subr.mxu0 0.0
        %3724 = vmatpush1.xpose.msra.mxu0 0.0
        %3725 = vmatprep.subr.mxu0 0.0
        %3726 = vmatpush1.xpose.msra.mxu0 0.0
        %3727 = vmatprep.subr.mxu0 0.0
        %3728 = vmatpush1.xpose.msra.mxu0 0.0
        %3729 = vmatprep.subr.mxu0 0.0
        %3730 = vmatpush1.xpose.msra.mxu0 0.0
        %3731 = vmatprep.subr.mxu0 0.0
        %3732 = vmatpush1.xpose.msra.mxu0 0.0
        %3733 = vmatprep.subr.mxu0 0.0
        %3734 = vmatpush1.xpose.msra.mxu0 0.0
        %3735 = vmatprep.subr.mxu0 0.0
        %3736 = vmatpush1.xpose.msra.mxu0 0.0
        %3737 = vmatprep.subr.mxu0 0.0
        %3738 = vmatpush1.xpose.msra.mxu0 0.0
        %3739 = vmatprep.subr.mxu0 0.0
        %3740 = vmatpush1.xpose.msra.mxu0 0.0
        %3741 = vmatprep.subr.mxu0 0.0
        %3742 = vmatpush1.xpose.msra.mxu0 0.0
        %3743 = vmatprep.subr.mxu0 0.0
        %3744 = vmatpush1.xpose.msra.mxu0 0.0
        %3745 = vmatprep.subr.mxu0 0.0
        %3746 = vmatpush1.xpose.msra.mxu0 0.0
        %3747 = vmatprep.subr.mxu0 0.0
        %3748 = vmatpush1.xpose.msra.mxu0 0.0
        %3749 = vmatprep.subr.mxu0 0.0
        %3750 = vmatpush1.xpose.msra.mxu0 0.0
        %3751 = vmatprep.subr.mxu0 0.0
        %3752 = vmatpush1.xpose.msra.mxu0 0.0
        %3753 = vmatprep.subr.mxu0 0.0
        %3754 = vmatpush1.xpose.msra.mxu0 0.0
        %3755 = vmatprep.subr.mxu0 0.0
        %3756 = vmatpush1.xpose.msra.mxu0 0.0
        %3757 = vmatprep.mubr.f32.mxu0 0.0
        %v3758 = vand.u32 %v3535, 4294901760
        %v3759 = vsub.f32 %v3535, %v3758
        %3760 = vmatmul.mubr.f32.gmra.mrb[0].mxu0 %v3759
        %v3761 = vpop.f32.mrb[0].mxu0
        %v3762 = vadd.f32 %v3688, %v3761
        %v3763 = vpop.f32.mrb[0].mxu0
        %3764 = vdwg.mxu0
        %3765 = vmatprep.subr.mxu0 0.0
        %v3766 = vand.u32 %v3537, 4294901760
        %3767 = vmatpush1.xpose.msra.mxu0 %v3766
        %3768 = vmatprep.subr.mxu0 0.0
        %3769 = vmatpush1.xpose.msra.mxu0 0.0
        %3770 = vmatprep.subr.mxu0 0.0
        %3771 = vmatpush1.xpose.msra.mxu0 0.0
        %3772 = vmatprep.subr.mxu0 0.0
        %3773 = vmatpush1.xpose.msra.mxu0 0.0
        %3774 = vmatprep.subr.mxu0 0.0
        %3775 = vmatpush1.xpose.msra.mxu0 0.0
        %3776 = vmatprep.subr.mxu0 0.0
        %3777 = vmatpush1.xpose.msra.mxu0 0.0
        %3778 = vmatprep.subr.mxu0 0.0
        %3779 = vmatpush1.xpose.msra.mxu0 0.0
        %3780 = vmatprep.subr.mxu0 0.0
        %3781 = vmatpush1.xpose.msra.mxu0 0.0
        %3782 = vmatprep.subr.mxu0 0.0
        %3783 = vmatpush1.xpose.msra.mxu0 0.0
        %3784 = vmatprep.subr.mxu0 0.0
        %3785 = vmatpush1.xpose.msra.mxu0 0.0
        %3786 = vmatprep.subr.mxu0 0.0
        %3787 = vmatpush1.xpose.msra.mxu0 0.0
        %3788 = vmatprep.subr.mxu0 0.0
        %3789 = vmatpush1.xpose.msra.mxu0 0.0
        %3790 = vmatprep.subr.mxu0 0.0
        %3791 = vmatpush1.xpose.msra.mxu0 0.0
        %3792 = vmatprep.subr.mxu0 0.0
        %3793 = vmatpush1.xpose.msra.mxu0 0.0
        %3794 = vmatprep.subr.mxu0 0.0
        %3795 = vmatpush1.xpose.msra.mxu0 0.0
        %3796 = vmatprep.subr.mxu0 0.0
        %3797 = vmatpush1.xpose.msra.mxu0 0.0
        %3798 = vmatprep.subr.mxu0 0.0
        %3799 = vmatpush1.xpose.msra.mxu0 0.0
        %3800 = vmatprep.subr.mxu0 0.0
        %3801 = vmatpush1.xpose.msra.mxu0 0.0
        %3802 = vmatprep.subr.mxu0 0.0
        %3803 = vmatpush1.xpose.msra.mxu0 0.0
        %3804 = vmatprep.subr.mxu0 0.0
        %3805 = vmatpush1.xpose.msra.mxu0 0.0
        %3806 = vmatprep.subr.mxu0 0.0
        %3807 = vmatpush1.xpose.msra.mxu0 0.0
        %3808 = vmatprep.subr.mxu0 0.0
        %3809 = vmatpush1.xpose.msra.mxu0 0.0
        %3810 = vmatprep.subr.mxu0 0.0
        %3811 = vmatpush1.xpose.msra.mxu0 0.0
        %3812 = vmatprep.subr.mxu0 0.0
        %3813 = vmatpush1.xpose.msra.mxu0 0.0
        %3814 = vmatprep.subr.mxu0 0.0
        %3815 = vmatpush1.xpose.msra.mxu0 0.0
        %3816 = vmatprep.subr.mxu0 0.0
        %3817 = vmatpush1.xpose.msra.mxu0 0.0
        %3818 = vmatprep.subr.mxu0 0.0
        %3819 = vmatpush1.xpose.msra.mxu0 0.0
        %3820 = vmatprep.subr.mxu0 0.0
        %3821 = vmatpush1.xpose.msra.mxu0 0.0
        %3822 = vmatprep.subr.mxu0 0.0
        %3823 = vmatpush1.xpose.msra.mxu0 0.0
        %3824 = vmatprep.subr.mxu0 0.0
        %3825 = vmatpush1.xpose.msra.mxu0 0.0
        %3826 = vmatprep.subr.mxu0 0.0
        %3827 = vmatpush1.xpose.msra.mxu0 0.0
        %3828 = vmatprep.subr.mxu0 0.0
        %3829 = vmatpush1.xpose.msra.mxu0 0.0
        %3830 = vmatprep.mubr.f32.mxu0 0.0
        %v3831 = vand.u32 %v3535, 4294901760
        %v3832 = vsub.f32 %v3535, %v3831
        %v3833 = vand.u32 %v3832, 4294901760
        %3834 = vmatmul.mubr.f32.gmra.mrb[0].mxu0 %v3833
        %v3835 = vpop.f32.mrb[0].mxu0
        %v3836 = vadd.f32 %v3762, %v3835
        %v3837 = vpop.f32.mrb[0].mxu0
        %3838 = vdwg.mxu0
        %3839 = vmatprep.subr.mxu0 0.0
        %v3840 = vand.u32 %v3537, 4294901760
        %v3841 = vsub.f32 %v3537, %v3840
        %v3842 = vand.u32 %v3841, 4294901760
        %3843 = vmatpush1.xpose.msra.mxu0 %v3842
        %3844 = vmatprep.subr.mxu0 0.0
        %3845 = vmatpush1.xpose.msra.mxu0 0.0
        %3846 = vmatprep.subr.mxu0 0.0
        %3847 = vmatpush1.xpose.msra.mxu0 0.0
        %3848 = vmatprep.subr.mxu0 0.0
        %3849 = vmatpush1.xpose.msra.mxu0 0.0
        %3850 = vmatprep.subr.mxu0 0.0
        %3851 = vmatpush1.xpose.msra.mxu0 0.0
        %3852 = vmatprep.subr.mxu0 0.0
        %3853 = vmatpush1.xpose.msra.mxu0 0.0
        %3854 = vmatprep.subr.mxu0 0.0
        %3855 = vmatpush1.xpose.msra.mxu0 0.0
        %3856 = vmatprep.subr.mxu0 0.0
        %3857 = vmatpush1.xpose.msra.mxu0 0.0
        %3858 = vmatprep.subr.mxu0 0.0
        %3859 = vmatpush1.xpose.msra.mxu0 0.0
        %3860 = vmatprep.subr.mxu0 0.0
        %3861 = vmatpush1.xpose.msra.mxu0 0.0
        %3862 = vmatprep.subr.mxu0 0.0
        %3863 = vmatpush1.xpose.msra.mxu0 0.0
        %3864 = vmatprep.subr.mxu0 0.0
        %3865 = vmatpush1.xpose.msra.mxu0 0.0
        %3866 = vmatprep.subr.mxu0 0.0
        %3867 = vmatpush1.xpose.msra.mxu0 0.0
        %3868 = vmatprep.subr.mxu0 0.0
        %3869 = vmatpush1.xpose.msra.mxu0 0.0
        %3870 = vmatprep.subr.mxu0 0.0
        %3871 = vmatpush1.xpose.msra.mxu0 0.0
        %3872 = vmatprep.subr.mxu0 0.0
        %3873 = vmatpush1.xpose.msra.mxu0 0.0
        %3874 = vmatprep.subr.mxu0 0.0
        %3875 = vmatpush1.xpose.msra.mxu0 0.0
        %3876 = vmatprep.subr.mxu0 0.0
        %3877 = vmatpush1.xpose.msra.mxu0 0.0
        %3878 = vmatprep.subr.mxu0 0.0
        %3879 = vmatpush1.xpose.msra.mxu0 0.0
        %3880 = vmatprep.subr.mxu0 0.0
        %3881 = vmatpush1.xpose.msra.mxu0 0.0
        %3882 = vmatprep.subr.mxu0 0.0
        %3883 = vmatpush1.xpose.msra.mxu0 0.0
        %3884 = vmatprep.subr.mxu0 0.0
        %3885 = vmatpush1.xpose.msra.mxu0 0.0
        %3886 = vmatprep.subr.mxu0 0.0
        %3887 = vmatpush1.xpose.msra.mxu0 0.0
        %3888 = vmatprep.subr.mxu0 0.0
        %3889 = vmatpush1.xpose.msra.mxu0 0.0
        %3890 = vmatprep.subr.mxu0 0.0
        %3891 = vmatpush1.xpose.msra.mxu0 0.0
        %3892 = vmatprep.subr.mxu0 0.0
        %3893 = vmatpush1.xpose.msra.mxu0 0.0
        %3894 = vmatprep.subr.mxu0 0.0
        %3895 = vmatpush1.xpose.msra.mxu0 0.0
        %3896 = vmatprep.subr.mxu0 0.0
        %3897 = vmatpush1.xpose.msra.mxu0 0.0
        %3898 = vmatprep.subr.mxu0 0.0
        %3899 = vmatpush1.xpose.msra.mxu0 0.0
        %3900 = vmatprep.subr.mxu0 0.0
        %3901 = vmatpush1.xpose.msra.mxu0 0.0
        %3902 = vmatprep.subr.mxu0 0.0
        %3903 = vmatpush1.xpose.msra.mxu0 0.0
        %3904 = vmatprep.subr.mxu0 0.0
        %3905 = vmatpush1.xpose.msra.mxu0 0.0
        %3906 = vmatprep.mubr.f32.mxu0 0.0
        %v3907 = vand.u32 %v3535, 4294901760
        %3908 = vmatmul.mubr.f32.gmra.mrb[0].mxu0 %v3907
        %v3909 = vpop.f32.mrb[0].mxu0
        %v3910 = vadd.f32 %v3836, %v3909
        %v3911 = vpop.f32.mrb[0].mxu0
        %3912 = vdwg.mxu0
        %3913 = vmatprep.subr.mxu0 0.0
        %v3914 = vand.u32 %v3537, 4294901760
        %3915 = vmatpush1.xpose.msra.mxu0 %v3914
        %3916 = vmatprep.subr.mxu0 0.0
        %3917 = vmatpush1.xpose.msra.mxu0 0.0
        %3918 = vmatprep.subr.mxu0 0.0
        %3919 = vmatpush1.xpose.msra.mxu0 0.0
        %3920 = vmatprep.subr.mxu0 0.0
        %3921 = vmatpush1.xpose.msra.mxu0 0.0
        %3922 = vmatprep.subr.mxu0 0.0
        %3923 = vmatpush1.xpose.msra.mxu0 0.0
        %3924 = vmatprep.subr.mxu0 0.0
        %3925 = vmatpush1.xpose.msra.mxu0 0.0
        %3926 = vmatprep.subr.mxu0 0.0
        %3927 = vmatpush1.xpose.msra.mxu0 0.0
        %3928 = vmatprep.subr.mxu0 0.0
        %3929 = vmatpush1.xpose.msra.mxu0 0.0
        %3930 = vmatprep.subr.mxu0 0.0
        %3931 = vmatpush1.xpose.msra.mxu0 0.0
        %3932 = vmatprep.subr.mxu0 0.0
        %3933 = vmatpush1.xpose.msra.mxu0 0.0
        %3934 = vmatprep.subr.mxu0 0.0
        %3935 = vmatpush1.xpose.msra.mxu0 0.0
        %3936 = vmatprep.subr.mxu0 0.0
        %3937 = vmatpush1.xpose.msra.mxu0 0.0
        %3938 = vmatprep.subr.mxu0 0.0
        %3939 = vmatpush1.xpose.msra.mxu0 0.0
        %3940 = vmatprep.subr.mxu0 0.0
        %3941 = vmatpush1.xpose.msra.mxu0 0.0
        %3942 = vmatprep.subr.mxu0 0.0
        %3943 = vmatpush1.xpose.msra.mxu0 0.0
        %3944 = vmatprep.subr.mxu0 0.0
        %3945 = vmatpush1.xpose.msra.mxu0 0.0
        %3946 = vmatprep.subr.mxu0 0.0
        %3947 = vmatpush1.xpose.msra.mxu0 0.0
        %3948 = vmatprep.subr.mxu0 0.0
        %3949 = vmatpush1.xpose.msra.mxu0 0.0
        %3950 = vmatprep.subr.mxu0 0.0
        %3951 = vmatpush1.xpose.msra.mxu0 0.0
        %3952 = vmatprep.subr.mxu0 0.0
        %3953 = vmatpush1.xpose.msra.mxu0 0.0
        %3954 = vmatprep.subr.mxu0 0.0
        %3955 = vmatpush1.xpose.msra.mxu0 0.0
        %3956 = vmatprep.subr.mxu0 0.0
        %3957 = vmatpush1.xpose.msra.mxu0 0.0
        %3958 = vmatprep.subr.mxu0 0.0
        %3959 = vmatpush1.xpose.msra.mxu0 0.0
        %3960 = vmatprep.subr.mxu0 0.0
        %3961 = vmatpush1.xpose.msra.mxu0 0.0
        %3962 = vmatprep.subr.mxu0 0.0
        %3963 = vmatpush1.xpose.msra.mxu0 0.0
        %3964 = vmatprep.subr.mxu0 0.0
        %3965 = vmatpush1.xpose.msra.mxu0 0.0
        %3966 = vmatprep.subr.mxu0 0.0
        %3967 = vmatpush1.xpose.msra.mxu0 0.0
        %3968 = vmatprep.subr.mxu0 0.0
        %3969 = vmatpush1.xpose.msra.mxu0 0.0
        %3970 = vmatprep.subr.mxu0 0.0
        %3971 = vmatpush1.xpose.msra.mxu0 0.0
        %3972 = vmatprep.subr.mxu0 0.0
        %3973 = vmatpush1.xpose.msra.mxu0 0.0
        %3974 = vmatprep.subr.mxu0 0.0
        %3975 = vmatpush1.xpose.msra.mxu0 0.0
        %3976 = vmatprep.subr.mxu0 0.0
        %3977 = vmatpush1.xpose.msra.mxu0 0.0
        %3978 = vmatprep.mubr.f32.mxu0 0.0
        %v3979 = vand.u32 %v3535, 4294901760
        %3980 = vmatmul.mubr.f32.gmra.mrb[0].mxu0 %v3979
        %v3981 = vpop.f32.mrb[0].mxu0
        %v3982 = vadd.f32 %v3910, %v3981
        %v3983 = vpop.f32.mrb[0].mxu0
        %3984 = vdwg.mxu0
        %v3985 = vsel %vm1228, %v3982, -inf
        %3986 = vmax.xlane.f32.xlu0 %v3985
        %v3987 = vpop.xlane.xlu0 %3986
        %v3988 = vsub.f32 %v3982, %v3987
        %v3989 = vmul.f32 %v3988, 1.442695
        %v3990 = vpow.pop %v3989
        %v3991 = vsel %vm1228, %v3990, 0.0
        %3992 = vadd.xlane.f32.xlu0 %v3991
        %v3993 = vpop.xlane.xlu0 %3992
        %v3994 = vrcp.pop %v3993
        %v3995 = vmul.f32 %v3990, %v3994
        %s3996 = scalar_lea.vmem %s279, 24 [#allocation9]
        %3997 = vst.msk [vmem:[%s3996] sm:$0xff] %vm1228, %v3995
        %3998 = vrot.lane.b32.xlu0 %v771, 52
        %v3999 = vpop.permute.xlu0 %3998
        %v4002 = vsel %vm1228, %v3995, 0
        %4004 = vmatprep.subr.mxu0 0.0
        %v4005 = vand.u32 %v3999, 4294901760
        %4006 = vmatpush1.msra.mxu0 %v4005
        %4007 = vmatprep.subr.mxu0 0.0
        %4008 = vmatpush1.msra.mxu0 0.0
        %4009 = vmatprep.subr.mxu0 0.0
        %4010 = vmatpush1.msra.mxu0 0.0
        %4011 = vmatprep.subr.mxu0 0.0
        %4012 = vmatpush1.msra.mxu0 0.0
        %4013 = vmatprep.subr.mxu0 0.0
        %4014 = vmatpush1.msra.mxu0 0.0
        %4015 = vmatprep.subr.mxu0 0.0
        %4016 = vmatpush1.msra.mxu0 0.0
        %4017 = vmatprep.subr.mxu0 0.0
        %4018 = vmatpush1.msra.mxu0 0.0
        %4019 = vmatprep.subr.mxu0 0.0
        %4020 = vmatpush1.msra.mxu0 0.0
        %4021 = vmatprep.subr.mxu0 0.0
        %4022 = vmatpush1.msra.mxu0 0.0
        %4023 = vmatprep.subr.mxu0 0.0
        %4024 = vmatpush1.msra.mxu0 0.0
        %4025 = vmatprep.subr.mxu0 0.0
        %4026 = vmatpush1.msra.mxu0 0.0
        %4027 = vmatprep.subr.mxu0 0.0
        %4028 = vmatpush1.msra.mxu0 0.0
        %4029 = vmatprep.subr.mxu0 0.0
        %4030 = vmatpush1.msra.mxu0 0.0
        %4031 = vmatprep.subr.mxu0 0.0
        %4032 = vmatpush1.msra.mxu0 0.0
        %4033 = vmatprep.subr.mxu0 0.0
        %4034 = vmatpush1.msra.mxu0 0.0
        %4035 = vmatprep.subr.mxu0 0.0
        %4036 = vmatpush1.msra.mxu0 0.0
        %4037 = vmatprep.subr.mxu0 0.0
        %4038 = vmatpush1.msra.mxu0 0.0
        %4039 = vmatprep.subr.mxu0 0.0
        %4040 = vmatpush1.msra.mxu0 0.0
        %4041 = vmatprep.subr.mxu0 0.0
        %4042 = vmatpush1.msra.mxu0 0.0
        %4043 = vmatprep.subr.mxu0 0.0
        %4044 = vmatpush1.msra.mxu0 0.0
        %4045 = vmatprep.subr.mxu0 0.0
        %4046 = vmatpush1.msra.mxu0 0.0
        %4047 = vmatprep.subr.mxu0 0.0
        %4048 = vmatpush1.msra.mxu0 0.0
        %4049 = vmatprep.subr.mxu0 0.0
        %4050 = vmatpush1.msra.mxu0 0.0
        %4051 = vmatprep.subr.mxu0 0.0
        %4052 = vmatpush1.msra.mxu0 0.0
        %4053 = vmatprep.subr.mxu0 0.0
        %4054 = vmatpush1.msra.mxu0 0.0
        %4055 = vmatprep.subr.mxu0 0.0
        %4056 = vmatpush1.msra.mxu0 0.0
        %4057 = vmatprep.subr.mxu0 0.0
        %4058 = vmatpush1.msra.mxu0 0.0
        %4059 = vmatprep.subr.mxu0 0.0
        %4060 = vmatpush1.msra.mxu0 0.0
        %4061 = vmatprep.subr.mxu0 0.0
        %4062 = vmatpush1.msra.mxu0 0.0
        %4063 = vmatprep.subr.mxu0 0.0
        %4064 = vmatpush1.msra.mxu0 0.0
        %4065 = vmatprep.subr.mxu0 0.0
        %4066 = vmatpush1.msra.mxu0 0.0
        %4067 = vmatprep.subr.mxu0 0.0
        %4068 = vmatpush1.msra.mxu0 0.0
        %4069 = vmatprep.mubr.f32.mxu0 0.0
        %v4070 = vand.u32 %v4002, 4294901760
        %v4071 = vsub.f32 %v4002, %v4070
        %v4072 = vand.u32 %v4071, 4294901760
        %v4073 = vsub.f32 %v4071, %v4072
        %v4074 = vand.u32 %v4073, 4294901760
        %4075 = vmatmul.mubr.f32.gmra.mrb[0].mxu0 %v4074
        %v4076 = vpop.f32.mrb[0].mxu0
        %v4077 = vadd.f32 0.0, %v4076
        %v4078 = vpop.f32.mrb[0].mxu0
        %4079 = vdwg.mxu0
        %4080 = vmatprep.subr.mxu0 0.0
        %v4081 = vand.u32 %v3999, 4294901760
        %v4082 = vsub.f32 %v3999, %v4081
        %v4083 = vand.u32 %v4082, 4294901760
        %v4084 = vsub.f32 %v4082, %v4083
        %v4085 = vand.u32 %v4084, 4294901760
        %4086 = vmatpush1.msra.mxu0 %v4085
        %4087 = vmatprep.subr.mxu0 0.0
        %4088 = vmatpush1.msra.mxu0 0.0
        %4089 = vmatprep.subr.mxu0 0.0
        %4090 = vmatpush1.msra.mxu0 0.0
        %4091 = vmatprep.subr.mxu0 0.0
        %4092 = vmatpush1.msra.mxu0 0.0
        %4093 = vmatprep.subr.mxu0 0.0
        %4094 = vmatpush1.msra.mxu0 0.0
        %4095 = vmatprep.subr.mxu0 0.0
        %4096 = vmatpush1.msra.mxu0 0.0
        %4097 = vmatprep.subr.mxu0 0.0
        %4098 = vmatpush1.msra.mxu0 0.0
        %4099 = vmatprep.subr.mxu0 0.0
        %4100 = vmatpush1.msra.mxu0 0.0
        %4101 = vmatprep.subr.mxu0 0.0
        %4102 = vmatpush1.msra.mxu0 0.0
        %4103 = vmatprep.subr.mxu0 0.0
        %4104 = vmatpush1.msra.mxu0 0.0
        %4105 = vmatprep.subr.mxu0 0.0
        %4106 = vmatpush1.msra.mxu0 0.0
        %4107 = vmatprep.subr.mxu0 0.0
        %4108 = vmatpush1.msra.mxu0 0.0
        %4109 = vmatprep.subr.mxu0 0.0
        %4110 = vmatpush1.msra.mxu0 0.0
        %4111 = vmatprep.subr.mxu0 0.0
        %4112 = vmatpush1.msra.mxu0 0.0
        %4113 = vmatprep.subr.mxu0 0.0
        %4114 = vmatpush1.msra.mxu0 0.0
        %4115 = vmatprep.subr.mxu0 0.0
        %4116 = vmatpush1.msra.mxu0 0.0
        %4117 = vmatprep.subr.mxu0 0.0
        %4118 = vmatpush1.msra.mxu0 0.0
        %4119 = vmatprep.subr.mxu0 0.0
        %4120 = vmatpush1.msra.mxu0 0.0
        %4121 = vmatprep.subr.mxu0 0.0
        %4122 = vmatpush1.msra.mxu0 0.0
        %4123 = vmatprep.subr.mxu0 0.0
        %4124 = vmatpush1.msra.mxu0 0.0
        %4125 = vmatprep.subr.mxu0 0.0
        %4126 = vmatpush1.msra.mxu0 0.0
        %4127 = vmatprep.subr.mxu0 0.0
        %4128 = vmatpush1.msra.mxu0 0.0
        %4129 = vmatprep.subr.mxu0 0.0
        %4130 = vmatpush1.msra.mxu0 0.0
        %4131 = vmatprep.subr.mxu0 0.0
        %4132 = vmatpush1.msra.mxu0 0.0
        %4133 = vmatprep.subr.mxu0 0.0
        %4134 = vmatpush1.msra.mxu0 0.0
        %4135 = vmatprep.subr.mxu0 0.0
        %4136 = vmatpush1.msra.mxu0 0.0
        %4137 = vmatprep.subr.mxu0 0.0
        %4138 = vmatpush1.msra.mxu0 0.0
        %4139 = vmatprep.subr.mxu0 0.0
        %4140 = vmatpush1.msra.mxu0 0.0
        %4141 = vmatprep.subr.mxu0 0.0
        %4142 = vmatpush1.msra.mxu0 0.0
        %4143 = vmatprep.subr.mxu0 0.0
        %4144 = vmatpush1.msra.mxu0 0.0
        %4145 = vmatprep.subr.mxu0 0.0
        %4146 = vmatpush1.msra.mxu0 0.0
        %4147 = vmatprep.subr.mxu0 0.0
        %4148 = vmatpush1.msra.mxu0 0.0
        %4149 = vmatprep.mubr.f32.mxu0 0.0
        %v4150 = vand.u32 %v4002, 4294901760
        %4151 = vmatmul.mubr.f32.gmra.mrb[0].mxu0 %v4150
        %v4152 = vpop.f32.mrb[0].mxu0
        %v4153 = vadd.f32 %v4077, %v4152
        %v4154 = vpop.f32.mrb[0].mxu0
        %4155 = vdwg.mxu0
        %4156 = vmatprep.subr.mxu0 0.0
        %v4157 = vand.u32 %v3999, 4294901760
        %v4158 = vsub.f32 %v3999, %v4157
        %4159 = vmatpush1.msra.mxu0 %v4158
        %4160 = vmatprep.subr.mxu0 0.0
        %4161 = vmatpush1.msra.mxu0 0.0
        %4162 = vmatprep.subr.mxu0 0.0
        %4163 = vmatpush1.msra.mxu0 0.0
        %4164 = vmatprep.subr.mxu0 0.0
        %4165 = vmatpush1.msra.mxu0 0.0
        %4166 = vmatprep.subr.mxu0 0.0
        %4167 = vmatpush1.msra.mxu0 0.0
        %4168 = vmatprep.subr.mxu0 0.0
        %4169 = vmatpush1.msra.mxu0 0.0
        %4170 = vmatprep.subr.mxu0 0.0
        %4171 = vmatpush1.msra.mxu0 0.0
        %4172 = vmatprep.subr.mxu0 0.0
        %4173 = vmatpush1.msra.mxu0 0.0
        %4174 = vmatprep.subr.mxu0 0.0
        %4175 = vmatpush1.msra.mxu0 0.0
        %4176 = vmatprep.subr.mxu0 0.0
        %4177 = vmatpush1.msra.mxu0 0.0
        %4178 = vmatprep.subr.mxu0 0.0
        %4179 = vmatpush1.msra.mxu0 0.0
        %4180 = vmatprep.subr.mxu0 0.0
        %4181 = vmatpush1.msra.mxu0 0.0
        %4182 = vmatprep.subr.mxu0 0.0
        %4183 = vmatpush1.msra.mxu0 0.0
        %4184 = vmatprep.subr.mxu0 0.0
        %4185 = vmatpush1.msra.mxu0 0.0
        %4186 = vmatprep.subr.mxu0 0.0
        %4187 = vmatpush1.msra.mxu0 0.0
        %4188 = vmatprep.subr.mxu0 0.0
        %4189 = vmatpush1.msra.mxu0 0.0
        %4190 = vmatprep.subr.mxu0 0.0
        %4191 = vmatpush1.msra.mxu0 0.0
        %4192 = vmatprep.subr.mxu0 0.0
        %4193 = vmatpush1.msra.mxu0 0.0
        %4194 = vmatprep.subr.mxu0 0.0
        %4195 = vmatpush1.msra.mxu0 0.0
        %4196 = vmatprep.subr.mxu0 0.0
        %4197 = vmatpush1.msra.mxu0 0.0
        %4198 = vmatprep.subr.mxu0 0.0
        %4199 = vmatpush1.msra.mxu0 0.0
        %4200 = vmatprep.subr.mxu0 0.0
        %4201 = vmatpush1.msra.mxu0 0.0
        %4202 = vmatprep.subr.mxu0 0.0
        %4203 = vmatpush1.msra.mxu0 0.0
        %4204 = vmatprep.subr.mxu0 0.0
        %4205 = vmatpush1.msra.mxu0 0.0
        %4206 = vmatprep.subr.mxu0 0.0
        %4207 = vmatpush1.msra.mxu0 0.0
        %4208 = vmatprep.subr.mxu0 0.0
        %4209 = vmatpush1.msra.mxu0 0.0
        %4210 = vmatprep.subr.mxu0 0.0
        %4211 = vmatpush1.msra.mxu0 0.0
        %4212 = vmatprep.subr.mxu0 0.0
        %4213 = vmatpush1.msra.mxu0 0.0
        %4214 = vmatprep.subr.mxu0 0.0
        %4215 = vmatpush1.msra.mxu0 0.0
        %4216 = vmatprep.subr.mxu0 0.0
        %4217 = vmatpush1.msra.mxu0 0.0
        %4218 = vmatprep.subr.mxu0 0.0
        %4219 = vmatpush1.msra.mxu0 0.0
        %4220 = vmatprep.subr.mxu0 0.0
        %4221 = vmatpush1.msra.mxu0 0.0
        %4222 = vmatprep.mubr.f32.mxu0 0.0
        %v4223 = vand.u32 %v4002, 4294901760
        %v4224 = vsub.f32 %v4002, %v4223
        %4225 = vmatmul.mubr.f32.gmra.mrb[0].mxu0 %v4224
        %v4226 = vpop.f32.mrb[0].mxu0
        %v4227 = vadd.f32 %v4153, %v4226
        %v4228 = vpop.f32.mrb[0].mxu0
        %4229 = vdwg.mxu0
        %4230 = vmatprep.subr.mxu0 0.0
        %v4231 = vand.u32 %v3999, 4294901760
        %4232 = vmatpush1.msra.mxu0 %v4231
        %4233 = vmatprep.subr.mxu0 0.0
        %4234 = vmatpush1.msra.mxu0 0.0
        %4235 = vmatprep.subr.mxu0 0.0
        %4236 = vmatpush1.msra.mxu0 0.0
        %4237 = vmatprep.subr.mxu0 0.0
        %4238 = vmatpush1.msra.mxu0 0.0
        %4239 = vmatprep.subr.mxu0 0.0
        %4240 = vmatpush1.msra.mxu0 0.0
        %4241 = vmatprep.subr.mxu0 0.0
        %4242 = vmatpush1.msra.mxu0 0.0
        %4243 = vmatprep.subr.mxu0 0.0
        %4244 = vmatpush1.msra.mxu0 0.0
        %4245 = vmatprep.subr.mxu0 0.0
        %4246 = vmatpush1.msra.mxu0 0.0
        %4247 = vmatprep.subr.mxu0 0.0
        %4248 = vmatpush1.msra.mxu0 0.0
        %4249 = vmatprep.subr.mxu0 0.0
        %4250 = vmatpush1.msra.mxu0 0.0
        %4251 = vmatprep.subr.mxu0 0.0
        %4252 = vmatpush1.msra.mxu0 0.0
        %4253 = vmatprep.subr.mxu0 0.0
        %4254 = vmatpush1.msra.mxu0 0.0
        %4255 = vmatprep.subr.mxu0 0.0
        %4256 = vmatpush1.msra.mxu0 0.0
        %4257 = vmatprep.subr.mxu0 0.0
        %4258 = vmatpush1.msra.mxu0 0.0
        %4259 = vmatprep.subr.mxu0 0.0
        %4260 = vmatpush1.msra.mxu0 0.0
        %4261 = vmatprep.subr.mxu0 0.0
        %4262 = vmatpush1.msra.mxu0 0.0
        %4263 = vmatprep.subr.mxu0 0.0
        %4264 = vmatpush1.msra.mxu0 0.0
        %4265 = vmatprep.subr.mxu0 0.0
        %4266 = vmatpush1.msra.mxu0 0.0
        %4267 = vmatprep.subr.mxu0 0.0
        %4268 = vmatpush1.msra.mxu0 0.0
        %4269 = vmatprep.subr.mxu0 0.0
        %4270 = vmatpush1.msra.mxu0 0.0
        %4271 = vmatprep.subr.mxu0 0.0
        %4272 = vmatpush1.msra.mxu0 0.0
        %4273 = vmatprep.subr.mxu0 0.0
        %4274 = vmatpush1.msra.mxu0 0.0
        %4275 = vmatprep.subr.mxu0 0.0
        %4276 = vmatpush1.msra.mxu0 0.0
        %4277 = vmatprep.subr.mxu0 0.0
        %4278 = vmatpush1.msra.mxu0 0.0
        %4279 = vmatprep.subr.mxu0 0.0
        %4280 = vmatpush1.msra.mxu0 0.0
        %4281 = vmatprep.subr.mxu0 0.0
        %4282 = vmatpush1.msra.mxu0 0.0
        %4283 = vmatprep.subr.mxu0 0.0
        %4284 = vmatpush1.msra.mxu0 0.0
        %4285 = vmatprep.subr.mxu0 0.0
        %4286 = vmatpush1.msra.mxu0 0.0
        %4287 = vmatprep.subr.mxu0 0.0
        %4288 = vmatpush1.msra.mxu0 0.0
        %4289 = vmatprep.subr.mxu0 0.0
        %4290 = vmatpush1.msra.mxu0 0.0
        %4291 = vmatprep.subr.mxu0 0.0
        %4292 = vmatpush1.msra.mxu0 0.0
        %4293 = vmatprep.subr.mxu0 0.0
        %4294 = vmatpush1.msra.mxu0 0.0
        %4295 = vmatprep.mubr.f32.mxu0 0.0
        %v4296 = vand.u32 %v4002, 4294901760
        %v4297 = vsub.f32 %v4002, %v4296
        %v4298 = vand.u32 %v4297, 4294901760
        %4299 = vmatmul.mubr.f32.gmra.mrb[0].mxu0 %v4298
        %v4300 = vpop.f32.mrb[0].mxu0
        %v4301 = vadd.f32 %v4227, %v4300
        %v4302 = vpop.f32.mrb[0].mxu0
        %4303 = vdwg.mxu0
        %4304 = vmatprep.subr.mxu0 0.0
        %v4305 = vand.u32 %v3999, 4294901760
        %v4306 = vsub.f32 %v3999, %v4305
        %v4307 = vand.u32 %v4306, 4294901760
        %4308 = vmatpush1.msra.mxu0 %v4307
        %4309 = vmatprep.subr.mxu0 0.0
        %4310 = vmatpush1.msra.mxu0 0.0
        %4311 = vmatprep.subr.mxu0 0.0
        %4312 = vmatpush1.msra.mxu0 0.0
        %4313 = vmatprep.subr.mxu0 0.0
        %4314 = vmatpush1.msra.mxu0 0.0
        %4315 = vmatprep.subr.mxu0 0.0
        %4316 = vmatpush1.msra.mxu0 0.0
        %4317 = vmatprep.subr.mxu0 0.0
        %4318 = vmatpush1.msra.mxu0 0.0
        %4319 = vmatprep.subr.mxu0 0.0
        %4320 = vmatpush1.msra.mxu0 0.0
        %4321 = vmatprep.subr.mxu0 0.0
        %4322 = vmatpush1.msra.mxu0 0.0
        %4323 = vmatprep.subr.mxu0 0.0
        %4324 = vmatpush1.msra.mxu0 0.0
        %4325 = vmatprep.subr.mxu0 0.0
        %4326 = vmatpush1.msra.mxu0 0.0
        %4327 = vmatprep.subr.mxu0 0.0
        %4328 = vmatpush1.msra.mxu0 0.0
        %4329 = vmatprep.subr.mxu0 0.0
        %4330 = vmatpush1.msra.mxu0 0.0
        %4331 = vmatprep.subr.mxu0 0.0
        %4332 = vmatpush1.msra.mxu0 0.0
        %4333 = vmatprep.subr.mxu0 0.0
        %4334 = vmatpush1.msra.mxu0 0.0
        %4335 = vmatprep.subr.mxu0 0.0
        %4336 = vmatpush1.msra.mxu0 0.0
        %4337 = vmatprep.subr.mxu0 0.0
        %4338 = vmatpush1.msra.mxu0 0.0
        %4339 = vmatprep.subr.mxu0 0.0
        %4340 = vmatpush1.msra.mxu0 0.0
        %4341 = vmatprep.subr.mxu0 0.0
        %4342 = vmatpush1.msra.mxu0 0.0
        %4343 = vmatprep.subr.mxu0 0.0
        %4344 = vmatpush1.msra.mxu0 0.0
        %4345 = vmatprep.subr.mxu0 0.0
        %4346 = vmatpush1.msra.mxu0 0.0
        %4347 = vmatprep.subr.mxu0 0.0
        %4348 = vmatpush1.msra.mxu0 0.0
        %4349 = vmatprep.subr.mxu0 0.0
        %4350 = vmatpush1.msra.mxu0 0.0
        %4351 = vmatprep.subr.mxu0 0.0
        %4352 = vmatpush1.msra.mxu0 0.0
        %4353 = vmatprep.subr.mxu0 0.0
        %4354 = vmatpush1.msra.mxu0 0.0
        %4355 = vmatprep.subr.mxu0 0.0
        %4356 = vmatpush1.msra.mxu0 0.0
        %4357 = vmatprep.subr.mxu0 0.0
        %4358 = vmatpush1.msra.mxu0 0.0
        %4359 = vmatprep.subr.mxu0 0.0
        %4360 = vmatpush1.msra.mxu0 0.0
        %4361 = vmatprep.subr.mxu0 0.0
        %4362 = vmatpush1.msra.mxu0 0.0
        %4363 = vmatprep.subr.mxu0 0.0
        %4364 = vmatpush1.msra.mxu0 0.0
        %4365 = vmatprep.subr.mxu0 0.0
        %4366 = vmatpush1.msra.mxu0 0.0
        %4367 = vmatprep.subr.mxu0 0.0
        %4368 = vmatpush1.msra.mxu0 0.0
        %4369 = vmatprep.subr.mxu0 0.0
        %4370 = vmatpush1.msra.mxu0 0.0
        %4371 = vmatprep.mubr.f32.mxu0 0.0
        %v4372 = vand.u32 %v4002, 4294901760
        %4373 = vmatmul.mubr.f32.gmra.mrb[0].mxu0 %v4372
        %v4374 = vpop.f32.mrb[0].mxu0
        %v4375 = vadd.f32 %v4301, %v4374
        %v4376 = vpop.f32.mrb[0].mxu0
        %4377 = vdwg.mxu0
        %4378 = vmatprep.subr.mxu0 0.0
        %v4379 = vand.u32 %v3999, 4294901760
        %4380 = vmatpush1.msra.mxu0 %v4379
        %4381 = vmatprep.subr.mxu0 0.0
        %4382 = vmatpush1.msra.mxu0 0.0
        %4383 = vmatprep.subr.mxu0 0.0
        %4384 = vmatpush1.msra.mxu0 0.0
        %4385 = vmatprep.subr.mxu0 0.0
        %4386 = vmatpush1.msra.mxu0 0.0
        %4387 = vmatprep.subr.mxu0 0.0
        %4388 = vmatpush1.msra.mxu0 0.0
        %4389 = vmatprep.subr.mxu0 0.0
        %4390 = vmatpush1.msra.mxu0 0.0
        %4391 = vmatprep.subr.mxu0 0.0
        %4392 = vmatpush1.msra.mxu0 0.0
        %4393 = vmatprep.subr.mxu0 0.0
        %4394 = vmatpush1.msra.mxu0 0.0
        %4395 = vmatprep.subr.mxu0 0.0
        %4396 = vmatpush1.msra.mxu0 0.0
        %4397 = vmatprep.subr.mxu0 0.0
        %4398 = vmatpush1.msra.mxu0 0.0
        %4399 = vmatprep.subr.mxu0 0.0
        %4400 = vmatpush1.msra.mxu0 0.0
        %4401 = vmatprep.subr.mxu0 0.0
        %4402 = vmatpush1.msra.mxu0 0.0
        %4403 = vmatprep.subr.mxu0 0.0
        %4404 = vmatpush1.msra.mxu0 0.0
        %4405 = vmatprep.subr.mxu0 0.0
        %4406 = vmatpush1.msra.mxu0 0.0
        %4407 = vmatprep.subr.mxu0 0.0
        %4408 = vmatpush1.msra.mxu0 0.0
        %4409 = vmatprep.subr.mxu0 0.0
        %4410 = vmatpush1.msra.mxu0 0.0
        %4411 = vmatprep.subr.mxu0 0.0
        %4412 = vmatpush1.msra.mxu0 0.0
        %4413 = vmatprep.subr.mxu0 0.0
        %4414 = vmatpush1.msra.mxu0 0.0
        %4415 = vmatprep.subr.mxu0 0.0
        %4416 = vmatpush1.msra.mxu0 0.0
        %4417 = vmatprep.subr.mxu0 0.0
        %4418 = vmatpush1.msra.mxu0 0.0
        %4419 = vmatprep.subr.mxu0 0.0
        %4420 = vmatpush1.msra.mxu0 0.0
        %4421 = vmatprep.subr.mxu0 0.0
        %4422 = vmatpush1.msra.mxu0 0.0
        %4423 = vmatprep.subr.mxu0 0.0
        %4424 = vmatpush1.msra.mxu0 0.0
        %4425 = vmatprep.subr.mxu0 0.0
        %4426 = vmatpush1.msra.mxu0 0.0
        %4427 = vmatprep.subr.mxu0 0.0
        %4428 = vmatpush1.msra.mxu0 0.0
        %4429 = vmatprep.subr.mxu0 0.0
        %4430 = vmatpush1.msra.mxu0 0.0
        %4431 = vmatprep.subr.mxu0 0.0
        %4432 = vmatpush1.msra.mxu0 0.0
        %4433 = vmatprep.subr.mxu0 0.0
        %4434 = vmatpush1.msra.mxu0 0.0
        %4435 = vmatprep.subr.mxu0 0.0
        %4436 = vmatpush1.msra.mxu0 0.0
        %4437 = vmatprep.subr.mxu0 0.0
        %4438 = vmatpush1.msra.mxu0 0.0
        %4439 = vmatprep.subr.mxu0 0.0
        %4440 = vmatpush1.msra.mxu0 0.0
        %4441 = vmatprep.subr.mxu0 0.0
        %4442 = vmatpush1.msra.mxu0 0.0
        %4443 = vmatprep.mubr.f32.mxu0 0.0
        %v4444 = vand.u32 %v4002, 4294901760
        %4445 = vmatmul.mubr.f32.gmra.mrb[0].mxu0 %v4444
        %v4446 = vpop.f32.mrb[0].mxu0
        %v4447 = vadd.f32 %v4375, %v4446
        %v4448 = vpop.f32.mrb[0].mxu0
        %4449 = vdwg.mxu0
        %4450 = vrot.lane.b32.xlu0 %v771, 112
        %v4451 = vpop.permute.xlu0 %4450
        %4452 = vrot.lane.b32.xlu0 %v771, 80
        %v4453 = vpop.permute.xlu0 %4452
        %v4454 = vsel %vm777, %v4451, 0
        %v4456 = vsel %vm777, %v4453, 0
        %4458 = vmatprep.subr.mxu0 0.0
        %v4459 = vand.u32 %v4456, 4294901760
        %4460 = vmatpush1.xpose.msra.mxu0 %v4459
        %4461 = vmatprep.subr.mxu0 0.0
        %4462 = vmatpush1.xpose.msra.mxu0 0.0
        %4463 = vmatprep.subr.mxu0 0.0
        %4464 = vmatpush1.xpose.msra.mxu0 0.0
        %4465 = vmatprep.subr.mxu0 0.0
        %4466 = vmatpush1.xpose.msra.mxu0 0.0
        %4467 = vmatprep.subr.mxu0 0.0
        %4468 = vmatpush1.xpose.msra.mxu0 0.0
        %4469 = vmatprep.subr.mxu0 0.0
        %4470 = vmatpush1.xpose.msra.mxu0 0.0
        %4471 = vmatprep.subr.mxu0 0.0
        %4472 = vmatpush1.xpose.msra.mxu0 0.0
        %4473 = vmatprep.subr.mxu0 0.0
        %4474 = vmatpush1.xpose.msra.mxu0 0.0
        %4475 = vmatprep.subr.mxu0 0.0
        %4476 = vmatpush1.xpose.msra.mxu0 0.0
        %4477 = vmatprep.subr.mxu0 0.0
        %4478 = vmatpush1.xpose.msra.mxu0 0.0
        %4479 = vmatprep.subr.mxu0 0.0
        %4480 = vmatpush1.xpose.msra.mxu0 0.0
        %4481 = vmatprep.subr.mxu0 0.0
        %4482 = vmatpush1.xpose.msra.mxu0 0.0
        %4483 = vmatprep.subr.mxu0 0.0
        %4484 = vmatpush1.xpose.msra.mxu0 0.0
        %4485 = vmatprep.subr.mxu0 0.0
        %4486 = vmatpush1.xpose.msra.mxu0 0.0
        %4487 = vmatprep.subr.mxu0 0.0
        %4488 = vmatpush1.xpose.msra.mxu0 0.0
        %4489 = vmatprep.subr.mxu0 0.0
        %4490 = vmatpush1.xpose.msra.mxu0 0.0
        %4491 = vmatprep.subr.mxu0 0.0
        %4492 = vmatpush1.xpose.msra.mxu0 0.0
        %4493 = vmatprep.subr.mxu0 0.0
        %4494 = vmatpush1.xpose.msra.mxu0 0.0
        %4495 = vmatprep.subr.mxu0 0.0
        %4496 = vmatpush1.xpose.msra.mxu0 0.0
        %4497 = vmatprep.subr.mxu0 0.0
        %4498 = vmatpush1.xpose.msra.mxu0 0.0
        %4499 = vmatprep.subr.mxu0 0.0
        %4500 = vmatpush1.xpose.msra.mxu0 0.0
        %4501 = vmatprep.subr.mxu0 0.0
        %4502 = vmatpush1.xpose.msra.mxu0 0.0
        %4503 = vmatprep.subr.mxu0 0.0
        %4504 = vmatpush1.xpose.msra.mxu0 0.0
        %4505 = vmatprep.subr.mxu0 0.0
        %4506 = vmatpush1.xpose.msra.mxu0 0.0
        %4507 = vmatprep.subr.mxu0 0.0
        %4508 = vmatpush1.xpose.msra.mxu0 0.0
        %4509 = vmatprep.subr.mxu0 0.0
        %4510 = vmatpush1.xpose.msra.mxu0 0.0
        %4511 = vmatprep.subr.mxu0 0.0
        %4512 = vmatpush1.xpose.msra.mxu0 0.0
        %4513 = vmatprep.subr.mxu0 0.0
        %4514 = vmatpush1.xpose.msra.mxu0 0.0
        %4515 = vmatprep.subr.mxu0 0.0
        %4516 = vmatpush1.xpose.msra.mxu0 0.0
        %4517 = vmatprep.subr.mxu0 0.0
        %4518 = vmatpush1.xpose.msra.mxu0 0.0
        %4519 = vmatprep.subr.mxu0 0.0
        %4520 = vmatpush1.xpose.msra.mxu0 0.0
        %4521 = vmatprep.subr.mxu0 0.0
        %4522 = vmatpush1.xpose.msra.mxu0 0.0
        %4523 = vmatprep.mubr.f32.mxu0 0.0
        %v4524 = vand.u32 %v4454, 4294901760
        %v4525 = vsub.f32 %v4454, %v4524
        %v4526 = vand.u32 %v4525, 4294901760
        %v4527 = vsub.f32 %v4525, %v4526
        %v4528 = vand.u32 %v4527, 4294901760
        %4529 = vmatmul.mubr.f32.gmra.mrb[0].mxu0 %v4528
        %v4530 = vpop.f32.mrb[0].mxu0
        %v4531 = vadd.f32 0.0, %v4530
        %v4532 = vpop.f32.mrb[0].mxu0
        %4533 = vdwg.mxu0
        %4534 = vmatprep.subr.mxu0 0.0
        %v4535 = vand.u32 %v4456, 4294901760
        %v4536 = vsub.f32 %v4456, %v4535
        %v4537 = vand.u32 %v4536, 4294901760
        %v4538 = vsub.f32 %v4536, %v4537
        %v4539 = vand.u32 %v4538, 4294901760
        %4540 = vmatpush1.xpose.msra.mxu0 %v4539
        %4541 = vmatprep.subr.mxu0 0.0
        %4542 = vmatpush1.xpose.msra.mxu0 0.0
        %4543 = vmatprep.subr.mxu0 0.0
        %4544 = vmatpush1.xpose.msra.mxu0 0.0
        %4545 = vmatprep.subr.mxu0 0.0
        %4546 = vmatpush1.xpose.msra.mxu0 0.0
        %4547 = vmatprep.subr.mxu0 0.0
        %4548 = vmatpush1.xpose.msra.mxu0 0.0
        %4549 = vmatprep.subr.mxu0 0.0
        %4550 = vmatpush1.xpose.msra.mxu0 0.0
        %4551 = vmatprep.subr.mxu0 0.0
        %4552 = vmatpush1.xpose.msra.mxu0 0.0
        %4553 = vmatprep.subr.mxu0 0.0
        %4554 = vmatpush1.xpose.msra.mxu0 0.0
        %4555 = vmatprep.subr.mxu0 0.0
        %4556 = vmatpush1.xpose.msra.mxu0 0.0
        %4557 = vmatprep.subr.mxu0 0.0
        %4558 = vmatpush1.xpose.msra.mxu0 0.0
        %4559 = vmatprep.subr.mxu0 0.0
        %4560 = vmatpush1.xpose.msra.mxu0 0.0
        %4561 = vmatprep.subr.mxu0 0.0
        %4562 = vmatpush1.xpose.msra.mxu0 0.0
        %4563 = vmatprep.subr.mxu0 0.0
        %4564 = vmatpush1.xpose.msra.mxu0 0.0
        %4565 = vmatprep.subr.mxu0 0.0
        %4566 = vmatpush1.xpose.msra.mxu0 0.0
        %4567 = vmatprep.subr.mxu0 0.0
        %4568 = vmatpush1.xpose.msra.mxu0 0.0
        %4569 = vmatprep.subr.mxu0 0.0
        %4570 = vmatpush1.xpose.msra.mxu0 0.0
        %4571 = vmatprep.subr.mxu0 0.0
        %4572 = vmatpush1.xpose.msra.mxu0 0.0
        %4573 = vmatprep.subr.mxu0 0.0
        %4574 = vmatpush1.xpose.msra.mxu0 0.0
        %4575 = vmatprep.subr.mxu0 0.0
        %4576 = vmatpush1.xpose.msra.mxu0 0.0
        %4577 = vmatprep.subr.mxu0 0.0
        %4578 = vmatpush1.xpose.msra.mxu0 0.0
        %4579 = vmatprep.subr.mxu0 0.0
        %4580 = vmatpush1.xpose.msra.mxu0 0.0
        %4581 = vmatprep.subr.mxu0 0.0
        %4582 = vmatpush1.xpose.msra.mxu0 0.0
        %4583 = vmatprep.subr.mxu0 0.0
        %4584 = vmatpush1.xpose.msra.mxu0 0.0
        %4585 = vmatprep.subr.mxu0 0.0
        %4586 = vmatpush1.xpose.msra.mxu0 0.0
        %4587 = vmatprep.subr.mxu0 0.0
        %4588 = vmatpush1.xpose.msra.mxu0 0.0
        %4589 = vmatprep.subr.mxu0 0.0
        %4590 = vmatpush1.xpose.msra.mxu0 0.0
        %4591 = vmatprep.subr.mxu0 0.0
        %4592 = vmatpush1.xpose.msra.mxu0 0.0
        %4593 = vmatprep.subr.mxu0 0.0
        %4594 = vmatpush1.xpose.msra.mxu0 0.0
        %4595 = vmatprep.subr.mxu0 0.0
        %4596 = vmatpush1.xpose.msra.mxu0 0.0
        %4597 = vmatprep.subr.mxu0 0.0
        %4598 = vmatpush1.xpose.msra.mxu0 0.0
        %4599 = vmatprep.subr.mxu0 0.0
        %4600 = vmatpush1.xpose.msra.mxu0 0.0
        %4601 = vmatprep.subr.mxu0 0.0
        %4602 = vmatpush1.xpose.msra.mxu0 0.0
        %4603 = vmatprep.mubr.f32.mxu0 0.0
        %v4604 = vand.u32 %v4454, 4294901760
        %4605 = vmatmul.mubr.f32.gmra.mrb[0].mxu0 %v4604
        %v4606 = vpop.f32.mrb[0].mxu0
        %v4607 = vadd.f32 %v4531, %v4606
        %v4608 = vpop.f32.mrb[0].mxu0
        %4609 = vdwg.mxu0
        %4610 = vmatprep.subr.mxu0 0.0
        %v4611 = vand.u32 %v4456, 4294901760
        %v4612 = vsub.f32 %v4456, %v4611
        %4613 = vmatpush1.xpose.msra.mxu0 %v4612
        %4614 = vmatprep.subr.mxu0 0.0
        %4615 = vmatpush1.xpose.msra.mxu0 0.0
        %4616 = vmatprep.subr.mxu0 0.0
        %4617 = vmatpush1.xpose.msra.mxu0 0.0
        %4618 = vmatprep.subr.mxu0 0.0
        %4619 = vmatpush1.xpose.msra.mxu0 0.0
        %4620 = vmatprep.subr.mxu0 0.0
        %4621 = vmatpush1.xpose.msra.mxu0 0.0
        %4622 = vmatprep.subr.mxu0 0.0
        %4623 = vmatpush1.xpose.msra.mxu0 0.0
        %4624 = vmatprep.subr.mxu0 0.0
        %4625 = vmatpush1.xpose.msra.mxu0 0.0
        %4626 = vmatprep.subr.mxu0 0.0
        %4627 = vmatpush1.xpose.msra.mxu0 0.0
        %4628 = vmatprep.subr.mxu0 0.0
        %4629 = vmatpush1.xpose.msra.mxu0 0.0
        %4630 = vmatprep.subr.mxu0 0.0
        %4631 = vmatpush1.xpose.msra.mxu0 0.0
        %4632 = vmatprep.subr.mxu0 0.0
        %4633 = vmatpush1.xpose.msra.mxu0 0.0
        %4634 = vmatprep.subr.mxu0 0.0
        %4635 = vmatpush1.xpose.msra.mxu0 0.0
        %4636 = vmatprep.subr.mxu0 0.0
        %4637 = vmatpush1.xpose.msra.mxu0 0.0
        %4638 = vmatprep.subr.mxu0 0.0
        %4639 = vmatpush1.xpose.msra.mxu0 0.0
        %4640 = vmatprep.subr.mxu0 0.0
        %4641 = vmatpush1.xpose.msra.mxu0 0.0
        %4642 = vmatprep.subr.mxu0 0.0
        %4643 = vmatpush1.xpose.msra.mxu0 0.0
        %4644 = vmatprep.subr.mxu0 0.0
        %4645 = vmatpush1.xpose.msra.mxu0 0.0
        %4646 = vmatprep.subr.mxu0 0.0
        %4647 = vmatpush1.xpose.msra.mxu0 0.0
        %4648 = vmatprep.subr.mxu0 0.0
        %4649 = vmatpush1.xpose.msra.mxu0 0.0
        %4650 = vmatprep.subr.mxu0 0.0
        %4651 = vmatpush1.xpose.msra.mxu0 0.0
        %4652 = vmatprep.subr.mxu0 0.0
        %4653 = vmatpush1.xpose.msra.mxu0 0.0
        %4654 = vmatprep.subr.mxu0 0.0
        %4655 = vmatpush1.xpose.msra.mxu0 0.0
        %4656 = vmatprep.subr.mxu0 0.0
        %4657 = vmatpush1.xpose.msra.mxu0 0.0
        %4658 = vmatprep.subr.mxu0 0.0
        %4659 = vmatpush1.xpose.msra.mxu0 0.0
        %4660 = vmatprep.subr.mxu0 0.0
        %4661 = vmatpush1.xpose.msra.mxu0 0.0
        %4662 = vmatprep.subr.mxu0 0.0
        %4663 = vmatpush1.xpose.msra.mxu0 0.0
        %4664 = vmatprep.subr.mxu0 0.0
        %4665 = vmatpush1.xpose.msra.mxu0 0.0
        %4666 = vmatprep.subr.mxu0 0.0
        %4667 = vmatpush1.xpose.msra.mxu0 0.0
        %4668 = vmatprep.subr.mxu0 0.0
        %4669 = vmatpush1.xpose.msra.mxu0 0.0
        %4670 = vmatprep.subr.mxu0 0.0
        %4671 = vmatpush1.xpose.msra.mxu0 0.0
        %4672 = vmatprep.subr.mxu0 0.0
        %4673 = vmatpush1.xpose.msra.mxu0 0.0
        %4674 = vmatprep.subr.mxu0 0.0
        %4675 = vmatpush1.xpose.msra.mxu0 0.0
        %4676 = vmatprep.mubr.f32.mxu0 0.0
        %v4677 = vand.u32 %v4454, 4294901760
        %v4678 = vsub.f32 %v4454, %v4677
        %4679 = vmatmul.mubr.f32.gmra.mrb[0].mxu0 %v4678
        %v4680 = vpop.f32.mrb[0].mxu0
        %v4681 = vadd.f32 %v4607, %v4680
        %v4682 = vpop.f32.mrb[0].mxu0
        %4683 = vdwg.mxu0
        %4684 = vmatprep.subr.mxu0 0.0
        %v4685 = vand.u32 %v4456, 4294901760
        %4686 = vmatpush1.xpose.msra.mxu0 %v4685
        %4687 = vmatprep.subr.mxu0 0.0
        %4688 = vmatpush1.xpose.msra.mxu0 0.0
        %4689 = vmatprep.subr.mxu0 0.0
        %4690 = vmatpush1.xpose.msra.mxu0 0.0
        %4691 = vmatprep.subr.mxu0 0.0
        %4692 = vmatpush1.xpose.msra.mxu0 0.0
        %4693 = vmatprep.subr.mxu0 0.0
        %4694 = vmatpush1.xpose.msra.mxu0 0.0
        %4695 = vmatprep.subr.mxu0 0.0
        %4696 = vmatpush1.xpose.msra.mxu0 0.0
        %4697 = vmatprep.subr.mxu0 0.0
        %4698 = vmatpush1.xpose.msra.mxu0 0.0
        %4699 = vmatprep.subr.mxu0 0.0
        %4700 = vmatpush1.xpose.msra.mxu0 0.0
        %4701 = vmatprep.subr.mxu0 0.0
        %4702 = vmatpush1.xpose.msra.mxu0 0.0
        %4703 = vmatprep.subr.mxu0 0.0
        %4704 = vmatpush1.xpose.msra.mxu0 0.0
        %4705 = vmatprep.subr.mxu0 0.0
        %4706 = vmatpush1.xpose.msra.mxu0 0.0
        %4707 = vmatprep.subr.mxu0 0.0
        %4708 = vmatpush1.xpose.msra.mxu0 0.0
        %4709 = vmatprep.subr.mxu0 0.0
        %4710 = vmatpush1.xpose.msra.mxu0 0.0
        %4711 = vmatprep.subr.mxu0 0.0
        %4712 = vmatpush1.xpose.msra.mxu0 0.0
        %4713 = vmatprep.subr.mxu0 0.0
        %4714 = vmatpush1.xpose.msra.mxu0 0.0
        %4715 = vmatprep.subr.mxu0 0.0
        %4716 = vmatpush1.xpose.msra.mxu0 0.0
        %4717 = vmatprep.subr.mxu0 0.0
        %4718 = vmatpush1.xpose.msra.mxu0 0.0
        %4719 = vmatprep.subr.mxu0 0.0
        %4720 = vmatpush1.xpose.msra.mxu0 0.0
        %4721 = vmatprep.subr.mxu0 0.0
        %4722 = vmatpush1.xpose.msra.mxu0 0.0
        %4723 = vmatprep.subr.mxu0 0.0
        %4724 = vmatpush1.xpose.msra.mxu0 0.0
        %4725 = vmatprep.subr.mxu0 0.0
        %4726 = vmatpush1.xpose.msra.mxu0 0.0
        %4727 = vmatprep.subr.mxu0 0.0
        %4728 = vmatpush1.xpose.msra.mxu0 0.0
        %4729 = vmatprep.subr.mxu0 0.0
        %4730 = vmatpush1.xpose.msra.mxu0 0.0
        %4731 = vmatprep.subr.mxu0 0.0
        %4732 = vmatpush1.xpose.msra.mxu0 0.0
        %4733 = vmatprep.subr.mxu0 0.0
        %4734 = vmatpush1.xpose.msra.mxu0 0.0
        %4735 = vmatprep.subr.mxu0 0.0
        %4736 = vmatpush1.xpose.msra.mxu0 0.0
        %4737 = vmatprep.subr.mxu0 0.0
        %4738 = vmatpush1.xpose.msra.mxu0 0.0
        %4739 = vmatprep.subr.mxu0 0.0
        %4740 = vmatpush1.xpose.msra.mxu0 0.0
        %4741 = vmatprep.subr.mxu0 0.0
        %4742 = vmatpush1.xpose.msra.mxu0 0.0
        %4743 = vmatprep.subr.mxu0 0.0
        %4744 = vmatpush1.xpose.msra.mxu0 0.0
        %4745 = vmatprep.subr.mxu0 0.0
        %4746 = vmatpush1.xpose.msra.mxu0 0.0
        %4747 = vmatprep.subr.mxu0 0.0
        %4748 = vmatpush1.xpose.msra.mxu0 0.0
        %4749 = vmatprep.mubr.f32.mxu0 0.0
        %v4750 = vand.u32 %v4454, 4294901760
        %v4751 = vsub.f32 %v4454, %v4750
        %v4752 = vand.u32 %v4751, 4294901760
        %4753 = vmatmul.mubr.f32.gmra.mrb[0].mxu0 %v4752
        %v4754 = vpop.f32.mrb[0].mxu0
        %v4755 = vadd.f32 %v4681, %v4754
        %v4756 = vpop.f32.mrb[0].mxu0
        %4757 = vdwg.mxu0
        %4758 = vmatprep.subr.mxu0 0.0
        %v4759 = vand.u32 %v4456, 4294901760
        %v4760 = vsub.f32 %v4456, %v4759
        %v4761 = vand.u32 %v4760, 4294901760
        %4762 = vmatpush1.xpose.msra.mxu0 %v4761
        %4763 = vmatprep.subr.mxu0 0.0
        %4764 = vmatpush1.xpose.msra.mxu0 0.0
        %4765 = vmatprep.subr.mxu0 0.0
        %4766 = vmatpush1.xpose.msra.mxu0 0.0
        %4767 = vmatprep.subr.mxu0 0.0
        %4768 = vmatpush1.xpose.msra.mxu0 0.0
        %4769 = vmatprep.subr.mxu0 0.0
        %4770 = vmatpush1.xpose.msra.mxu0 0.0
        %4771 = vmatprep.subr.mxu0 0.0
        %4772 = vmatpush1.xpose.msra.mxu0 0.0
        %4773 = vmatprep.subr.mxu0 0.0
        %4774 = vmatpush1.xpose.msra.mxu0 0.0
        %4775 = vmatprep.subr.mxu0 0.0
        %4776 = vmatpush1.xpose.msra.mxu0 0.0
        %4777 = vmatprep.subr.mxu0 0.0
        %4778 = vmatpush1.xpose.msra.mxu0 0.0
        %4779 = vmatprep.subr.mxu0 0.0
        %4780 = vmatpush1.xpose.msra.mxu0 0.0
        %4781 = vmatprep.subr.mxu0 0.0
        %4782 = vmatpush1.xpose.msra.mxu0 0.0
        %4783 = vmatprep.subr.mxu0 0.0
        %4784 = vmatpush1.xpose.msra.mxu0 0.0
        %4785 = vmatprep.subr.mxu0 0.0
        %4786 = vmatpush1.xpose.msra.mxu0 0.0
        %4787 = vmatprep.subr.mxu0 0.0
        %4788 = vmatpush1.xpose.msra.mxu0 0.0
        %4789 = vmatprep.subr.mxu0 0.0
        %4790 = vmatpush1.xpose.msra.mxu0 0.0
        %4791 = vmatprep.subr.mxu0 0.0
        %4792 = vmatpush1.xpose.msra.mxu0 0.0
        %4793 = vmatprep.subr.mxu0 0.0
        %4794 = vmatpush1.xpose.msra.mxu0 0.0
        %4795 = vmatprep.subr.mxu0 0.0
        %4796 = vmatpush1.xpose.msra.mxu0 0.0
        %4797 = vmatprep.subr.mxu0 0.0
        %4798 = vmatpush1.xpose.msra.mxu0 0.0
        %4799 = vmatprep.subr.mxu0 0.0
        %4800 = vmatpush1.xpose.msra.mxu0 0.0
        %4801 = vmatprep.subr.mxu0 0.0
        %4802 = vmatpush1.xpose.msra.mxu0 0.0
        %4803 = vmatprep.subr.mxu0 0.0
        %4804 = vmatpush1.xpose.msra.mxu0 0.0
        %4805 = vmatprep.subr.mxu0 0.0
        %4806 = vmatpush1.xpose.msra.mxu0 0.0
        %4807 = vmatprep.subr.mxu0 0.0
        %4808 = vmatpush1.xpose.msra.mxu0 0.0
        %4809 = vmatprep.subr.mxu0 0.0
        %4810 = vmatpush1.xpose.msra.mxu0 0.0
        %4811 = vmatprep.subr.mxu0 0.0
        %4812 = vmatpush1.xpose.msra.mxu0 0.0
        %4813 = vmatprep.subr.mxu0 0.0
        %4814 = vmatpush1.xpose.msra.mxu0 0.0
        %4815 = vmatprep.subr.mxu0 0.0
        %4816 = vmatpush1.xpose.msra.mxu0 0.0
        %4817 = vmatprep.subr.mxu0 0.0
        %4818 = vmatpush1.xpose.msra.mxu0 0.0
        %4819 = vmatprep.subr.mxu0 0.0
        %4820 = vmatpush1.xpose.msra.mxu0 0.0
        %4821 = vmatprep.subr.mxu0 0.0
        %4822 = vmatpush1.xpose.msra.mxu0 0.0
        %4823 = vmatprep.subr.mxu0 0.0
        %4824 = vmatpush1.xpose.msra.mxu0 0.0
        %4825 = vmatprep.mubr.f32.mxu0 0.0
        %v4826 = vand.u32 %v4454, 4294901760
        %4827 = vmatmul.mubr.f32.gmra.mrb[0].mxu0 %v4826
        %v4828 = vpop.f32.mrb[0].mxu0
        %v4829 = vadd.f32 %v4755, %v4828
        %v4830 = vpop.f32.mrb[0].mxu0
        %4831 = vdwg.mxu0
        %4832 = vmatprep.subr.mxu0 0.0
        %v4833 = vand.u32 %v4456, 4294901760
        %4834 = vmatpush1.xpose.msra.mxu0 %v4833
        %4835 = vmatprep.subr.mxu0 0.0
        %4836 = vmatpush1.xpose.msra.mxu0 0.0
        %4837 = vmatprep.subr.mxu0 0.0
        %4838 = vmatpush1.xpose.msra.mxu0 0.0
        %4839 = vmatprep.subr.mxu0 0.0
        %4840 = vmatpush1.xpose.msra.mxu0 0.0
        %4841 = vmatprep.subr.mxu0 0.0
        %4842 = vmatpush1.xpose.msra.mxu0 0.0
        %4843 = vmatprep.subr.mxu0 0.0
        %4844 = vmatpush1.xpose.msra.mxu0 0.0
        %4845 = vmatprep.subr.mxu0 0.0
        %4846 = vmatpush1.xpose.msra.mxu0 0.0
        %4847 = vmatprep.subr.mxu0 0.0
        %4848 = vmatpush1.xpose.msra.mxu0 0.0
        %4849 = vmatprep.subr.mxu0 0.0
        %4850 = vmatpush1.xpose.msra.mxu0 0.0
        %4851 = vmatprep.subr.mxu0 0.0
        %4852 = vmatpush1.xpose.msra.mxu0 0.0
        %4853 = vmatprep.subr.mxu0 0.0
        %4854 = vmatpush1.xpose.msra.mxu0 0.0
        %4855 = vmatprep.subr.mxu0 0.0
        %4856 = vmatpush1.xpose.msra.mxu0 0.0
        %4857 = vmatprep.subr.mxu0 0.0
        %4858 = vmatpush1.xpose.msra.mxu0 0.0
        %4859 = vmatprep.subr.mxu0 0.0
        %4860 = vmatpush1.xpose.msra.mxu0 0.0
        %4861 = vmatprep.subr.mxu0 0.0
        %4862 = vmatpush1.xpose.msra.mxu0 0.0
        %4863 = vmatprep.subr.mxu0 0.0
        %4864 = vmatpush1.xpose.msra.mxu0 0.0
        %4865 = vmatprep.subr.mxu0 0.0
        %4866 = vmatpush1.xpose.msra.mxu0 0.0
        %4867 = vmatprep.subr.mxu0 0.0
        %4868 = vmatpush1.xpose.msra.mxu0 0.0
        %4869 = vmatprep.subr.mxu0 0.0
        %4870 = vmatpush1.xpose.msra.mxu0 0.0
        %4871 = vmatprep.subr.mxu0 0.0
        %4872 = vmatpush1.xpose.msra.mxu0 0.0
        %4873 = vmatprep.subr.mxu0 0.0
        %4874 = vmatpush1.xpose.msra.mxu0 0.0
        %4875 = vmatprep.subr.mxu0 0.0
        %4876 = vmatpush1.xpose.msra.mxu0 0.0
        %4877 = vmatprep.subr.mxu0 0.0
        %4878 = vmatpush1.xpose.msra.mxu0 0.0
        %4879 = vmatprep.subr.mxu0 0.0
        %4880 = vmatpush1.xpose.msra.mxu0 0.0
        %4881 = vmatprep.subr.mxu0 0.0
        %4882 = vmatpush1.xpose.msra.mxu0 0.0
        %4883 = vmatprep.subr.mxu0 0.0
        %4884 = vmatpush1.xpose.msra.mxu0 0.0
        %4885 = vmatprep.subr.mxu0 0.0
        %4886 = vmatpush1.xpose.msra.mxu0 0.0
        %4887 = vmatprep.subr.mxu0 0.0
        %4888 = vmatpush1.xpose.msra.mxu0 0.0
        %4889 = vmatprep.subr.mxu0 0.0
        %4890 = vmatpush1.xpose.msra.mxu0 0.0
        %4891 = vmatprep.subr.mxu0 0.0
        %4892 = vmatpush1.xpose.msra.mxu0 0.0
        %4893 = vmatprep.subr.mxu0 0.0
        %4894 = vmatpush1.xpose.msra.mxu0 0.0
        %4895 = vmatprep.subr.mxu0 0.0
        %4896 = vmatpush1.xpose.msra.mxu0 0.0
        %4897 = vmatprep.mubr.f32.mxu0 0.0
        %v4898 = vand.u32 %v4454, 4294901760
        %4899 = vmatmul.mubr.f32.gmra.mrb[0].mxu0 %v4898
        %v4900 = vpop.f32.mrb[0].mxu0
        %v4901 = vadd.f32 %v4829, %v4900
        %v4902 = vpop.f32.mrb[0].mxu0
        %4903 = vdwg.mxu0
        %v4904 = vsel %vm1228, %v4901, -inf
        %4905 = vmax.xlane.f32.xlu0 %v4904
        %v4906 = vpop.xlane.xlu0 %4905
        %v4907 = vsub.f32 %v4901, %v4906
        %v4908 = vmul.f32 %v4907, 1.442695
        %v4909 = vpow.pop %v4908
        %v4910 = vsel %vm1228, %v4909, 0.0
        %4911 = vadd.xlane.f32.xlu0 %v4910
        %v4912 = vpop.xlane.xlu0 %4911
        %v4913 = vrcp.pop %v4912
        %v4914 = vmul.f32 %v4909, %v4913
        %s4915 = scalar_lea.vmem %s279, 32 [#allocation9]
        %4916 = vst.msk [vmem:[%s4915] sm:$0xff] %vm1228, %v4914
        %4917 = vrot.lane.b32.xlu0 %v771, 48
        %v4918 = vpop.permute.xlu0 %4917
        %v4921 = vsel %vm1228, %v4914, 0
        %4923 = vmatprep.subr.mxu0 0.0
        %v4924 = vand.u32 %v4918, 4294901760
        %4925 = vmatpush1.msra.mxu0 %v4924
        %4926 = vmatprep.subr.mxu0 0.0
        %4927 = vmatpush1.msra.mxu0 0.0
        %4928 = vmatprep.subr.mxu0 0.0
        %4929 = vmatpush1.msra.mxu0 0.0
        %4930 = vmatprep.subr.mxu0 0.0
        %4931 = vmatpush1.msra.mxu0 0.0
        %4932 = vmatprep.subr.mxu0 0.0
        %4933 = vmatpush1.msra.mxu0 0.0
        %4934 = vmatprep.subr.mxu0 0.0
        %4935 = vmatpush1.msra.mxu0 0.0
        %4936 = vmatprep.subr.mxu0 0.0
        %4937 = vmatpush1.msra.mxu0 0.0
        %4938 = vmatprep.subr.mxu0 0.0
        %4939 = vmatpush1.msra.mxu0 0.0
        %4940 = vmatprep.subr.mxu0 0.0
        %4941 = vmatpush1.msra.mxu0 0.0
        %4942 = vmatprep.subr.mxu0 0.0
        %4943 = vmatpush1.msra.mxu0 0.0
        %4944 = vmatprep.subr.mxu0 0.0
        %4945 = vmatpush1.msra.mxu0 0.0
        %4946 = vmatprep.subr.mxu0 0.0
        %4947 = vmatpush1.msra.mxu0 0.0
        %4948 = vmatprep.subr.mxu0 0.0
        %4949 = vmatpush1.msra.mxu0 0.0
        %4950 = vmatprep.subr.mxu0 0.0
        %4951 = vmatpush1.msra.mxu0 0.0
        %4952 = vmatprep.subr.mxu0 0.0
        %4953 = vmatpush1.msra.mxu0 0.0
        %4954 = vmatprep.subr.mxu0 0.0
        %4955 = vmatpush1.msra.mxu0 0.0
        %4956 = vmatprep.subr.mxu0 0.0
        %4957 = vmatpush1.msra.mxu0 0.0
        %4958 = vmatprep.subr.mxu0 0.0
        %4959 = vmatpush1.msra.mxu0 0.0
        %4960 = vmatprep.subr.mxu0 0.0
        %4961 = vmatpush1.msra.mxu0 0.0
        %4962 = vmatprep.subr.mxu0 0.0
        %4963 = vmatpush1.msra.mxu0 0.0
        %4964 = vmatprep.subr.mxu0 0.0
        %4965 = vmatpush1.msra.mxu0 0.0
        %4966 = vmatprep.subr.mxu0 0.0
        %4967 = vmatpush1.msra.mxu0 0.0
        %4968 = vmatprep.subr.mxu0 0.0
        %4969 = vmatpush1.msra.mxu0 0.0
        %4970 = vmatprep.subr.mxu0 0.0
        %4971 = vmatpush1.msra.mxu0 0.0
        %4972 = vmatprep.subr.mxu0 0.0
        %4973 = vmatpush1.msra.mxu0 0.0
        %4974 = vmatprep.subr.mxu0 0.0
        %4975 = vmatpush1.msra.mxu0 0.0
        %4976 = vmatprep.subr.mxu0 0.0
        %4977 = vmatpush1.msra.mxu0 0.0
        %4978 = vmatprep.subr.mxu0 0.0
        %4979 = vmatpush1.msra.mxu0 0.0
        %4980 = vmatprep.subr.mxu0 0.0
        %4981 = vmatpush1.msra.mxu0 0.0
        %4982 = vmatprep.subr.mxu0 0.0
        %4983 = vmatpush1.msra.mxu0 0.0
        %4984 = vmatprep.subr.mxu0 0.0
        %4985 = vmatpush1.msra.mxu0 0.0
        %4986 = vmatprep.subr.mxu0 0.0
        %4987 = vmatpush1.msra.mxu0 0.0
        %4988 = vmatprep.mubr.f32.mxu0 0.0
        %v4989 = vand.u32 %v4921, 4294901760
        %v4990 = vsub.f32 %v4921, %v4989
        %v4991 = vand.u32 %v4990, 4294901760
        %v4992 = vsub.f32 %v4990, %v4991
        %v4993 = vand.u32 %v4992, 4294901760
        %4994 = vmatmul.mubr.f32.gmra.mrb[0].mxu0 %v4993
        %v4995 = vpop.f32.mrb[0].mxu0
        %v4996 = vadd.f32 0.0, %v4995
        %v4997 = vpop.f32.mrb[0].mxu0
        %4998 = vdwg.mxu0
        %4999 = vmatprep.subr.mxu0 0.0
        %v5000 = vand.u32 %v4918, 4294901760
        %v5001 = vsub.f32 %v4918, %v5000
        %v5002 = vand.u32 %v5001, 4294901760
        %v5003 = vsub.f32 %v5001, %v5002
        %v5004 = vand.u32 %v5003, 4294901760
        %5005 = vmatpush1.msra.mxu0 %v5004
        %5006 = vmatprep.subr.mxu0 0.0
        %5007 = vmatpush1.msra.mxu0 0.0
        %5008 = vmatprep.subr.mxu0 0.0
        %5009 = vmatpush1.msra.mxu0 0.0
        %5010 = vmatprep.subr.mxu0 0.0
        %5011 = vmatpush1.msra.mxu0 0.0
        %5012 = vmatprep.subr.mxu0 0.0
        %5013 = vmatpush1.msra.mxu0 0.0
        %5014 = vmatprep.subr.mxu0 0.0
        %5015 = vmatpush1.msra.mxu0 0.0
        %5016 = vmatprep.subr.mxu0 0.0
        %5017 = vmatpush1.msra.mxu0 0.0
        %5018 = vmatprep.subr.mxu0 0.0
        %5019 = vmatpush1.msra.mxu0 0.0
        %5020 = vmatprep.subr.mxu0 0.0
        %5021 = vmatpush1.msra.mxu0 0.0
        %5022 = vmatprep.subr.mxu0 0.0
        %5023 = vmatpush1.msra.mxu0 0.0
        %5024 = vmatprep.subr.mxu0 0.0
        %5025 = vmatpush1.msra.mxu0 0.0
        %5026 = vmatprep.subr.mxu0 0.0
        %5027 = vmatpush1.msra.mxu0 0.0
        %5028 = vmatprep.subr.mxu0 0.0
        %5029 = vmatpush1.msra.mxu0 0.0
        %5030 = vmatprep.subr.mxu0 0.0
        %5031 = vmatpush1.msra.mxu0 0.0
        %5032 = vmatprep.subr.mxu0 0.0
        %5033 = vmatpush1.msra.mxu0 0.0
        %5034 = vmatprep.subr.mxu0 0.0
        %5035 = vmatpush1.msra.mxu0 0.0
        %5036 = vmatprep.subr.mxu0 0.0
        %5037 = vmatpush1.msra.mxu0 0.0
        %5038 = vmatprep.subr.mxu0 0.0
        %5039 = vmatpush1.msra.mxu0 0.0
        %5040 = vmatprep.subr.mxu0 0.0
        %5041 = vmatpush1.msra.mxu0 0.0
        %5042 = vmatprep.subr.mxu0 0.0
        %5043 = vmatpush1.msra.mxu0 0.0
        %5044 = vmatprep.subr.mxu0 0.0
        %5045 = vmatpush1.msra.mxu0 0.0
        %5046 = vmatprep.subr.mxu0 0.0
        %5047 = vmatpush1.msra.mxu0 0.0
        %5048 = vmatprep.subr.mxu0 0.0
        %5049 = vmatpush1.msra.mxu0 0.0
        %5050 = vmatprep.subr.mxu0 0.0
        %5051 = vmatpush1.msra.mxu0 0.0
        %5052 = vmatprep.subr.mxu0 0.0
        %5053 = vmatpush1.msra.mxu0 0.0
        %5054 = vmatprep.subr.mxu0 0.0
        %5055 = vmatpush1.msra.mxu0 0.0
        %5056 = vmatprep.subr.mxu0 0.0
        %5057 = vmatpush1.msra.mxu0 0.0
        %5058 = vmatprep.subr.mxu0 0.0
        %5059 = vmatpush1.msra.mxu0 0.0
        %5060 = vmatprep.subr.mxu0 0.0
        %5061 = vmatpush1.msra.mxu0 0.0
        %5062 = vmatprep.subr.mxu0 0.0
        %5063 = vmatpush1.msra.mxu0 0.0
        %5064 = vmatprep.subr.mxu0 0.0
        %5065 = vmatpush1.msra.mxu0 0.0
        %5066 = vmatprep.subr.mxu0 0.0
        %5067 = vmatpush1.msra.mxu0 0.0
        %5068 = vmatprep.mubr.f32.mxu0 0.0
        %v5069 = vand.u32 %v4921, 4294901760
        %5070 = vmatmul.mubr.f32.gmra.mrb[0].mxu0 %v5069
        %v5071 = vpop.f32.mrb[0].mxu0
        %v5072 = vadd.f32 %v4996, %v5071
        %v5073 = vpop.f32.mrb[0].mxu0
        %5074 = vdwg.mxu0
        %5075 = vmatprep.subr.mxu0 0.0
        %v5076 = vand.u32 %v4918, 4294901760
        %v5077 = vsub.f32 %v4918, %v5076
        %5078 = vmatpush1.msra.mxu0 %v5077
        %5079 = vmatprep.subr.mxu0 0.0
        %5080 = vmatpush1.msra.mxu0 0.0
        %5081 = vmatprep.subr.mxu0 0.0
        %5082 = vmatpush1.msra.mxu0 0.0
        %5083 = vmatprep.subr.mxu0 0.0
        %5084 = vmatpush1.msra.mxu0 0.0
        %5085 = vmatprep.subr.mxu0 0.0
        %5086 = vmatpush1.msra.mxu0 0.0
        %5087 = vmatprep.subr.mxu0 0.0
        %5088 = vmatpush1.msra.mxu0 0.0
        %5089 = vmatprep.subr.mxu0 0.0
        %5090 = vmatpush1.msra.mxu0 0.0
        %5091 = vmatprep.subr.mxu0 0.0
        %5092 = vmatpush1.msra.mxu0 0.0
        %5093 = vmatprep.subr.mxu0 0.0
        %5094 = vmatpush1.msra.mxu0 0.0
        %5095 = vmatprep.subr.mxu0 0.0
        %5096 = vmatpush1.msra.mxu0 0.0
        %5097 = vmatprep.subr.mxu0 0.0
        %5098 = vmatpush1.msra.mxu0 0.0
        %5099 = vmatprep.subr.mxu0 0.0
        %5100 = vmatpush1.msra.mxu0 0.0
        %5101 = vmatprep.subr.mxu0 0.0
        %5102 = vmatpush1.msra.mxu0 0.0
        %5103 = vmatprep.subr.mxu0 0.0
        %5104 = vmatpush1.msra.mxu0 0.0
        %5105 = vmatprep.subr.mxu0 0.0
        %5106 = vmatpush1.msra.mxu0 0.0
        %5107 = vmatprep.subr.mxu0 0.0
        %5108 = vmatpush1.msra.mxu0 0.0
        %5109 = vmatprep.subr.mxu0 0.0
        %5110 = vmatpush1.msra.mxu0 0.0
        %5111 = vmatprep.subr.mxu0 0.0
        %5112 = vmatpush1.msra.mxu0 0.0
        %5113 = vmatprep.subr.mxu0 0.0
        %5114 = vmatpush1.msra.mxu0 0.0
        %5115 = vmatprep.subr.mxu0 0.0
        %5116 = vmatpush1.msra.mxu0 0.0
        %5117 = vmatprep.subr.mxu0 0.0
        %5118 = vmatpush1.msra.mxu0 0.0
        %5119 = vmatprep.subr.mxu0 0.0
        %5120 = vmatpush1.msra.mxu0 0.0
        %5121 = vmatprep.subr.mxu0 0.0
        %5122 = vmatpush1.msra.mxu0 0.0
        %5123 = vmatprep.subr.mxu0 0.0
        %5124 = vmatpush1.msra.mxu0 0.0
        %5125 = vmatprep.subr.mxu0 0.0
        %5126 = vmatpush1.msra.mxu0 0.0
        %5127 = vmatprep.subr.mxu0 0.0
        %5128 = vmatpush1.msra.mxu0 0.0
        %5129 = vmatprep.subr.mxu0 0.0
        %5130 = vmatpush1.msra.mxu0 0.0
        %5131 = vmatprep.subr.mxu0 0.0
        %5132 = vmatpush1.msra.mxu0 0.0
        %5133 = vmatprep.subr.mxu0 0.0
        %5134 = vmatpush1.msra.mxu0 0.0
        %5135 = vmatprep.subr.mxu0 0.0
        %5136 = vmatpush1.msra.mxu0 0.0
        %5137 = vmatprep.subr.mxu0 0.0
        %5138 = vmatpush1.msra.mxu0 0.0
        %5139 = vmatprep.subr.mxu0 0.0
        %5140 = vmatpush1.msra.mxu0 0.0
        %5141 = vmatprep.mubr.f32.mxu0 0.0
        %v5142 = vand.u32 %v4921, 4294901760
        %v5143 = vsub.f32 %v4921, %v5142
        %5144 = vmatmul.mubr.f32.gmra.mrb[0].mxu0 %v5143
        %v5145 = vpop.f32.mrb[0].mxu0
        %v5146 = vadd.f32 %v5072, %v5145
        %v5147 = vpop.f32.mrb[0].mxu0
        %5148 = vdwg.mxu0
        %5149 = vmatprep.subr.mxu0 0.0
        %v5150 = vand.u32 %v4918, 4294901760
        %5151 = vmatpush1.msra.mxu0 %v5150
        %5152 = vmatprep.subr.mxu0 0.0
        %5153 = vmatpush1.msra.mxu0 0.0
        %5154 = vmatprep.subr.mxu0 0.0
        %5155 = vmatpush1.msra.mxu0 0.0
        %5156 = vmatprep.subr.mxu0 0.0
        %5157 = vmatpush1.msra.mxu0 0.0
        %5158 = vmatprep.subr.mxu0 0.0
        %5159 = vmatpush1.msra.mxu0 0.0
        %5160 = vmatprep.subr.mxu0 0.0
        %5161 = vmatpush1.msra.mxu0 0.0
        %5162 = vmatprep.subr.mxu0 0.0
        %5163 = vmatpush1.msra.mxu0 0.0
        %5164 = vmatprep.subr.mxu0 0.0
        %5165 = vmatpush1.msra.mxu0 0.0
        %5166 = vmatprep.subr.mxu0 0.0
        %5167 = vmatpush1.msra.mxu0 0.0
        %5168 = vmatprep.subr.mxu0 0.0
        %5169 = vmatpush1.msra.mxu0 0.0
        %5170 = vmatprep.subr.mxu0 0.0
        %5171 = vmatpush1.msra.mxu0 0.0
        %5172 = vmatprep.subr.mxu0 0.0
        %5173 = vmatpush1.msra.mxu0 0.0
        %5174 = vmatprep.subr.mxu0 0.0
        %5175 = vmatpush1.msra.mxu0 0.0
        %5176 = vmatprep.subr.mxu0 0.0
        %5177 = vmatpush1.msra.mxu0 0.0
        %5178 = vmatprep.subr.mxu0 0.0
        %5179 = vmatpush1.msra.mxu0 0.0
        %5180 = vmatprep.subr.mxu0 0.0
        %5181 = vmatpush1.msra.mxu0 0.0
        %5182 = vmatprep.subr.mxu0 0.0
        %5183 = vmatpush1.msra.mxu0 0.0
        %5184 = vmatprep.subr.mxu0 0.0
        %5185 = vmatpush1.msra.mxu0 0.0
        %5186 = vmatprep.subr.mxu0 0.0
        %5187 = vmatpush1.msra.mxu0 0.0
        %5188 = vmatprep.subr.mxu0 0.0
        %5189 = vmatpush1.msra.mxu0 0.0
        %5190 = vmatprep.subr.mxu0 0.0
        %5191 = vmatpush1.msra.mxu0 0.0
        %5192 = vmatprep.subr.mxu0 0.0
        %5193 = vmatpush1.msra.mxu0 0.0
        %5194 = vmatprep.subr.mxu0 0.0
        %5195 = vmatpush1.msra.mxu0 0.0
        %5196 = vmatprep.subr.mxu0 0.0
        %5197 = vmatpush1.msra.mxu0 0.0
        %5198 = vmatprep.subr.mxu0 0.0
        %5199 = vmatpush1.msra.mxu0 0.0
        %5200 = vmatprep.subr.mxu0 0.0
        %5201 = vmatpush1.msra.mxu0 0.0
        %5202 = vmatprep.subr.mxu0 0.0
        %5203 = vmatpush1.msra.mxu0 0.0
        %5204 = vmatprep.subr.mxu0 0.0
        %5205 = vmatpush1.msra.mxu0 0.0
        %5206 = vmatprep.subr.mxu0 0.0
        %5207 = vmatpush1.msra.mxu0 0.0
        %5208 = vmatprep.subr.mxu0 0.0
        %5209 = vmatpush1.msra.mxu0 0.0
        %5210 = vmatprep.subr.mxu0 0.0
        %5211 = vmatpush1.msra.mxu0 0.0
        %5212 = vmatprep.subr.mxu0 0.0
        %5213 = vmatpush1.msra.mxu0 0.0
        %5214 = vmatprep.mubr.f32.mxu0 0.0
        %v5215 = vand.u32 %v4921, 4294901760
        %v5216 = vsub.f32 %v4921, %v5215
        %v5217 = vand.u32 %v5216, 4294901760
        %5218 = vmatmul.mubr.f32.gmra.mrb[0].mxu0 %v5217
        %v5219 = vpop.f32.mrb[0].mxu0
        %v5220 = vadd.f32 %v5146, %v5219
        %v5221 = vpop.f32.mrb[0].mxu0
        %5222 = vdwg.mxu0
        %5223 = vmatprep.subr.mxu0 0.0
        %v5224 = vand.u32 %v4918, 4294901760
        %v5225 = vsub.f32 %v4918, %v5224
        %v5226 = vand.u32 %v5225, 4294901760
        %5227 = vmatpush1.msra.mxu0 %v5226
        %5228 = vmatprep.subr.mxu0 0.0
        %5229 = vmatpush1.msra.mxu0 0.0
        %5230 = vmatprep.subr.mxu0 0.0
        %5231 = vmatpush1.msra.mxu0 0.0
        %5232 = vmatprep.subr.mxu0 0.0
        %5233 = vmatpush1.msra.mxu0 0.0
        %5234 = vmatprep.subr.mxu0 0.0
        %5235 = vmatpush1.msra.mxu0 0.0
        %5236 = vmatprep.subr.mxu0 0.0
        %5237 = vmatpush1.msra.mxu0 0.0
        %5238 = vmatprep.subr.mxu0 0.0
        %5239 = vmatpush1.msra.mxu0 0.0
        %5240 = vmatprep.subr.mxu0 0.0
        %5241 = vmatpush1.msra.mxu0 0.0
        %5242 = vmatprep.subr.mxu0 0.0
        %5243 = vmatpush1.msra.mxu0 0.0
        %5244 = vmatprep.subr.mxu0 0.0
        %5245 = vmatpush1.msra.mxu0 0.0
        %5246 = vmatprep.subr.mxu0 0.0
        %5247 = vmatpush1.msra.mxu0 0.0
        %5248 = vmatprep.subr.mxu0 0.0
        %5249 = vmatpush1.msra.mxu0 0.0
        %5250 = vmatprep.subr.mxu0 0.0
        %5251 = vmatpush1.msra.mxu0 0.0
        %5252 = vmatprep.subr.mxu0 0.0
        %5253 = vmatpush1.msra.mxu0 0.0
        %5254 = vmatprep.subr.mxu0 0.0
        %5255 = vmatpush1.msra.mxu0 0.0
        %5256 = vmatprep.subr.mxu0 0.0
        %5257 = vmatpush1.msra.mxu0 0.0
        %5258 = vmatprep.subr.mxu0 0.0
        %5259 = vmatpush1.msra.mxu0 0.0
        %5260 = vmatprep.subr.mxu0 0.0
        %5261 = vmatpush1.msra.mxu0 0.0
        %5262 = vmatprep.subr.mxu0 0.0
        %5263 = vmatpush1.msra.mxu0 0.0
        %5264 = vmatprep.subr.mxu0 0.0
        %5265 = vmatpush1.msra.mxu0 0.0
        %5266 = vmatprep.subr.mxu0 0.0
        %5267 = vmatpush1.msra.mxu0 0.0
        %5268 = vmatprep.subr.mxu0 0.0
        %5269 = vmatpush1.msra.mxu0 0.0
        %5270 = vmatprep.subr.mxu0 0.0
        %5271 = vmatpush1.msra.mxu0 0.0
        %5272 = vmatprep.subr.mxu0 0.0
        %5273 = vmatpush1.msra.mxu0 0.0
        %5274 = vmatprep.subr.mxu0 0.0
        %5275 = vmatpush1.msra.mxu0 0.0
        %5276 = vmatprep.subr.mxu0 0.0
        %5277 = vmatpush1.msra.mxu0 0.0
        %5278 = vmatprep.subr.mxu0 0.0
        %5279 = vmatpush1.msra.mxu0 0.0
        %5280 = vmatprep.subr.mxu0 0.0
        %5281 = vmatpush1.msra.mxu0 0.0
        %5282 = vmatprep.subr.mxu0 0.0
        %5283 = vmatpush1.msra.mxu0 0.0
        %5284 = vmatprep.subr.mxu0 0.0
        %5285 = vmatpush1.msra.mxu0 0.0
        %5286 = vmatprep.subr.mxu0 0.0
        %5287 = vmatpush1.msra.mxu0 0.0
        %5288 = vmatprep.subr.mxu0 0.0
        %5289 = vmatpush1.msra.mxu0 0.0
        %5290 = vmatprep.mubr.f32.mxu0 0.0
        %v5291 = vand.u32 %v4921, 4294901760
        %5292 = vmatmul.mubr.f32.gmra.mrb[0].mxu0 %v5291
        %v5293 = vpop.f32.mrb[0].mxu0
        %v5294 = vadd.f32 %v5220, %v5293
        %v5295 = vpop.f32.mrb[0].mxu0
        %5296 = vdwg.mxu0
        %5297 = vmatprep.subr.mxu0 0.0
        %v5298 = vand.u32 %v4918, 4294901760
        %5299 = vmatpush1.msra.mxu0 %v5298
        %5300 = vmatprep.subr.mxu0 0.0
        %5301 = vmatpush1.msra.mxu0 0.0
        %5302 = vmatprep.subr.mxu0 0.0
        %5303 = vmatpush1.msra.mxu0 0.0
        %5304 = vmatprep.subr.mxu0 0.0
        %5305 = vmatpush1.msra.mxu0 0.0
        %5306 = vmatprep.subr.mxu0 0.0
        %5307 = vmatpush1.msra.mxu0 0.0
        %5308 = vmatprep.subr.mxu0 0.0
        %5309 = vmatpush1.msra.mxu0 0.0
        %5310 = vmatprep.subr.mxu0 0.0
        %5311 = vmatpush1.msra.mxu0 0.0
        %5312 = vmatprep.subr.mxu0 0.0
        %5313 = vmatpush1.msra.mxu0 0.0
        %5314 = vmatprep.subr.mxu0 0.0
        %5315 = vmatpush1.msra.mxu0 0.0
        %5316 = vmatprep.subr.mxu0 0.0
        %5317 = vmatpush1.msra.mxu0 0.0
        %5318 = vmatprep.subr.mxu0 0.0
        %5319 = vmatpush1.msra.mxu0 0.0
        %5320 = vmatprep.subr.mxu0 0.0
        %5321 = vmatpush1.msra.mxu0 0.0
        %5322 = vmatprep.subr.mxu0 0.0
        %5323 = vmatpush1.msra.mxu0 0.0
        %5324 = vmatprep.subr.mxu0 0.0
        %5325 = vmatpush1.msra.mxu0 0.0
        %5326 = vmatprep.subr.mxu0 0.0
        %5327 = vmatpush1.msra.mxu0 0.0
        %5328 = vmatprep.subr.mxu0 0.0
        %5329 = vmatpush1.msra.mxu0 0.0
        %5330 = vmatprep.subr.mxu0 0.0
        %5331 = vmatpush1.msra.mxu0 0.0
        %5332 = vmatprep.subr.mxu0 0.0
        %5333 = vmatpush1.msra.mxu0 0.0
        %5334 = vmatprep.subr.mxu0 0.0
        %5335 = vmatpush1.msra.mxu0 0.0
        %5336 = vmatprep.subr.mxu0 0.0
        %5337 = vmatpush1.msra.mxu0 0.0
        %5338 = vmatprep.subr.mxu0 0.0
        %5339 = vmatpush1.msra.mxu0 0.0
        %5340 = vmatprep.subr.mxu0 0.0
        %5341 = vmatpush1.msra.mxu0 0.0
        %5342 = vmatprep.subr.mxu0 0.0
        %5343 = vmatpush1.msra.mxu0 0.0
        %5344 = vmatprep.subr.mxu0 0.0
        %5345 = vmatpush1.msra.mxu0 0.0
        %5346 = vmatprep.subr.mxu0 0.0
        %5347 = vmatpush1.msra.mxu0 0.0
        %5348 = vmatprep.subr.mxu0 0.0
        %5349 = vmatpush1.msra.mxu0 0.0
        %5350 = vmatprep.subr.mxu0 0.0
        %5351 = vmatpush1.msra.mxu0 0.0
        %5352 = vmatprep.subr.mxu0 0.0
        %5353 = vmatpush1.msra.mxu0 0.0
        %5354 = vmatprep.subr.mxu0 0.0
        %5355 = vmatpush1.msra.mxu0 0.0
        %5356 = vmatprep.subr.mxu0 0.0
        %5357 = vmatpush1.msra.mxu0 0.0
        %5358 = vmatprep.subr.mxu0 0.0
        %5359 = vmatpush1.msra.mxu0 0.0
        %5360 = vmatprep.subr.mxu0 0.0
        %5361 = vmatpush1.msra.mxu0 0.0
        %5362 = vmatprep.mubr.f32.mxu0 0.0
        %v5363 = vand.u32 %v4921, 4294901760
        %5364 = vmatmul.mubr.f32.gmra.mrb[0].mxu0 %v5363
        %v5365 = vpop.f32.mrb[0].mxu0
        %v5366 = vadd.f32 %v5294, %v5365
        %v5367 = vpop.f32.mrb[0].mxu0
        %5368 = vdwg.mxu0
        %5369 = vrot.lane.b32.xlu0 %v771, 108
        %v5370 = vpop.permute.xlu0 %5369
        %5371 = vrot.lane.b32.xlu0 %v771, 76
        %v5372 = vpop.permute.xlu0 %5371
        %v5373 = vsel %vm777, %v5370, 0
        %v5375 = vsel %vm777, %v5372, 0
        %5377 = vmatprep.subr.mxu0 0.0
        %v5378 = vand.u32 %v5375, 4294901760
        %5379 = vmatpush1.xpose.msra.mxu0 %v5378
        %5380 = vmatprep.subr.mxu0 0.0
        %5381 = vmatpush1.xpose.msra.mxu0 0.0
        %5382 = vmatprep.subr.mxu0 0.0
        %5383 = vmatpush1.xpose.msra.mxu0 0.0
        %5384 = vmatprep.subr.mxu0 0.0
        %5385 = vmatpush1.xpose.msra.mxu0 0.0
        %5386 = vmatprep.subr.mxu0 0.0
        %5387 = vmatpush1.xpose.msra.mxu0 0.0
        %5388 = vmatprep.subr.mxu0 0.0
        %5389 = vmatpush1.xpose.msra.mxu0 0.0
        %5390 = vmatprep.subr.mxu0 0.0
        %5391 = vmatpush1.xpose.msra.mxu0 0.0
        %5392 = vmatprep.subr.mxu0 0.0
        %5393 = vmatpush1.xpose.msra.mxu0 0.0
        %5394 = vmatprep.subr.mxu0 0.0
        %5395 = vmatpush1.xpose.msra.mxu0 0.0
        %5396 = vmatprep.subr.mxu0 0.0
        %5397 = vmatpush1.xpose.msra.mxu0 0.0
        %5398 = vmatprep.subr.mxu0 0.0
        %5399 = vmatpush1.xpose.msra.mxu0 0.0
        %5400 = vmatprep.subr.mxu0 0.0
        %5401 = vmatpush1.xpose.msra.mxu0 0.0
        %5402 = vmatprep.subr.mxu0 0.0
        %5403 = vmatpush1.xpose.msra.mxu0 0.0
        %5404 = vmatprep.subr.mxu0 0.0
        %5405 = vmatpush1.xpose.msra.mxu0 0.0
        %5406 = vmatprep.subr.mxu0 0.0
        %5407 = vmatpush1.xpose.msra.mxu0 0.0
        %5408 = vmatprep.subr.mxu0 0.0
        %5409 = vmatpush1.xpose.msra.mxu0 0.0
        %5410 = vmatprep.subr.mxu0 0.0
        %5411 = vmatpush1.xpose.msra.mxu0 0.0
        %5412 = vmatprep.subr.mxu0 0.0
        %5413 = vmatpush1.xpose.msra.mxu0 0.0
        %5414 = vmatprep.subr.mxu0 0.0
        %5415 = vmatpush1.xpose.msra.mxu0 0.0
        %5416 = vmatprep.subr.mxu0 0.0
        %5417 = vmatpush1.xpose.msra.mxu0 0.0
        %5418 = vmatprep.subr.mxu0 0.0
        %5419 = vmatpush1.xpose.msra.mxu0 0.0
        %5420 = vmatprep.subr.mxu0 0.0
        %5421 = vmatpush1.xpose.msra.mxu0 0.0
        %5422 = vmatprep.subr.mxu0 0.0
        %5423 = vmatpush1.xpose.msra.mxu0 0.0
        %5424 = vmatprep.subr.mxu0 0.0
        %5425 = vmatpush1.xpose.msra.mxu0 0.0
        %5426 = vmatprep.subr.mxu0 0.0
        %5427 = vmatpush1.xpose.msra.mxu0 0.0
        %5428 = vmatprep.subr.mxu0 0.0
        %5429 = vmatpush1.xpose.msra.mxu0 0.0
        %5430 = vmatprep.subr.mxu0 0.0
        %5431 = vmatpush1.xpose.msra.mxu0 0.0
        %5432 = vmatprep.subr.mxu0 0.0
        %5433 = vmatpush1.xpose.msra.mxu0 0.0
        %5434 = vmatprep.subr.mxu0 0.0
        %5435 = vmatpush1.xpose.msra.mxu0 0.0
        %5436 = vmatprep.subr.mxu0 0.0
        %5437 = vmatpush1.xpose.msra.mxu0 0.0
        %5438 = vmatprep.subr.mxu0 0.0
        %5439 = vmatpush1.xpose.msra.mxu0 0.0
        %5440 = vmatprep.subr.mxu0 0.0
        %5441 = vmatpush1.xpose.msra.mxu0 0.0
        %5442 = vmatprep.mubr.f32.mxu0 0.0
        %v5443 = vand.u32 %v5373, 4294901760
        %v5444 = vsub.f32 %v5373, %v5443
        %v5445 = vand.u32 %v5444, 4294901760
        %v5446 = vsub.f32 %v5444, %v5445
        %v5447 = vand.u32 %v5446, 4294901760
        %5448 = vmatmul.mubr.f32.gmra.mrb[0].mxu0 %v5447
        %v5449 = vpop.f32.mrb[0].mxu0
        %v5450 = vadd.f32 0.0, %v5449
        %v5451 = vpop.f32.mrb[0].mxu0
        %5452 = vdwg.mxu0
        %5453 = vmatprep.subr.mxu0 0.0
        %v5454 = vand.u32 %v5375, 4294901760
        %v5455 = vsub.f32 %v5375, %v5454
        %v5456 = vand.u32 %v5455, 4294901760
        %v5457 = vsub.f32 %v5455, %v5456
        %v5458 = vand.u32 %v5457, 4294901760
        %5459 = vmatpush1.xpose.msra.mxu0 %v5458
        %5460 = vmatprep.subr.mxu0 0.0
        %5461 = vmatpush1.xpose.msra.mxu0 0.0
        %5462 = vmatprep.subr.mxu0 0.0
        %5463 = vmatpush1.xpose.msra.mxu0 0.0
        %5464 = vmatprep.subr.mxu0 0.0
        %5465 = vmatpush1.xpose.msra.mxu0 0.0
        %5466 = vmatprep.subr.mxu0 0.0
        %5467 = vmatpush1.xpose.msra.mxu0 0.0
        %5468 = vmatprep.subr.mxu0 0.0
        %5469 = vmatpush1.xpose.msra.mxu0 0.0
        %5470 = vmatprep.subr.mxu0 0.0
        %5471 = vmatpush1.xpose.msra.mxu0 0.0
        %5472 = vmatprep.subr.mxu0 0.0
        %5473 = vmatpush1.xpose.msra.mxu0 0.0
        %5474 = vmatprep.subr.mxu0 0.0
        %5475 = vmatpush1.xpose.msra.mxu0 0.0
        %5476 = vmatprep.subr.mxu0 0.0
        %5477 = vmatpush1.xpose.msra.mxu0 0.0
        %5478 = vmatprep.subr.mxu0 0.0
        %5479 = vmatpush1.xpose.msra.mxu0 0.0
        %5480 = vmatprep.subr.mxu0 0.0
        %5481 = vmatpush1.xpose.msra.mxu0 0.0
        %5482 = vmatprep.subr.mxu0 0.0
        %5483 = vmatpush1.xpose.msra.mxu0 0.0
        %5484 = vmatprep.subr.mxu0 0.0
        %5485 = vmatpush1.xpose.msra.mxu0 0.0
        %5486 = vmatprep.subr.mxu0 0.0
        %5487 = vmatpush1.xpose.msra.mxu0 0.0
        %5488 = vmatprep.subr.mxu0 0.0
        %5489 = vmatpush1.xpose.msra.mxu0 0.0
        %5490 = vmatprep.subr.mxu0 0.0
        %5491 = vmatpush1.xpose.msra.mxu0 0.0
        %5492 = vmatprep.subr.mxu0 0.0
        %5493 = vmatpush1.xpose.msra.mxu0 0.0
        %5494 = vmatprep.subr.mxu0 0.0
        %5495 = vmatpush1.xpose.msra.mxu0 0.0
        %5496 = vmatprep.subr.mxu0 0.0
        %5497 = vmatpush1.xpose.msra.mxu0 0.0
        %5498 = vmatprep.subr.mxu0 0.0
        %5499 = vmatpush1.xpose.msra.mxu0 0.0
        %5500 = vmatprep.subr.mxu0 0.0
        %5501 = vmatpush1.xpose.msra.mxu0 0.0
        %5502 = vmatprep.subr.mxu0 0.0
        %5503 = vmatpush1.xpose.msra.mxu0 0.0
        %5504 = vmatprep.subr.mxu0 0.0
        %5505 = vmatpush1.xpose.msra.mxu0 0.0
        %5506 = vmatprep.subr.mxu0 0.0
        %5507 = vmatpush1.xpose.msra.mxu0 0.0
        %5508 = vmatprep.subr.mxu0 0.0
        %5509 = vmatpush1.xpose.msra.mxu0 0.0
        %5510 = vmatprep.subr.mxu0 0.0
        %5511 = vmatpush1.xpose.msra.mxu0 0.0
        %5512 = vmatprep.subr.mxu0 0.0
        %5513 = vmatpush1.xpose.msra.mxu0 0.0
        %5514 = vmatprep.subr.mxu0 0.0
        %5515 = vmatpush1.xpose.msra.mxu0 0.0
        %5516 = vmatprep.subr.mxu0 0.0
        %5517 = vmatpush1.xpose.msra.mxu0 0.0
        %5518 = vmatprep.subr.mxu0 0.0
        %5519 = vmatpush1.xpose.msra.mxu0 0.0
        %5520 = vmatprep.subr.mxu0 0.0
        %5521 = vmatpush1.xpose.msra.mxu0 0.0
        %5522 = vmatprep.mubr.f32.mxu0 0.0
        %v5523 = vand.u32 %v5373, 4294901760
        %5524 = vmatmul.mubr.f32.gmra.mrb[0].mxu0 %v5523
        %v5525 = vpop.f32.mrb[0].mxu0
        %v5526 = vadd.f32 %v5450, %v5525
        %v5527 = vpop.f32.mrb[0].mxu0
        %5528 = vdwg.mxu0
        %5529 = vmatprep.subr.mxu0 0.0
        %v5530 = vand.u32 %v5375, 4294901760
        %v5531 = vsub.f32 %v5375, %v5530
        %5532 = vmatpush1.xpose.msra.mxu0 %v5531
        %5533 = vmatprep.subr.mxu0 0.0
        %5534 = vmatpush1.xpose.msra.mxu0 0.0
        %5535 = vmatprep.subr.mxu0 0.0
        %5536 = vmatpush1.xpose.msra.mxu0 0.0
        %5537 = vmatprep.subr.mxu0 0.0
        %5538 = vmatpush1.xpose.msra.mxu0 0.0
        %5539 = vmatprep.subr.mxu0 0.0
        %5540 = vmatpush1.xpose.msra.mxu0 0.0
        %5541 = vmatprep.subr.mxu0 0.0
        %5542 = vmatpush1.xpose.msra.mxu0 0.0
        %5543 = vmatprep.subr.mxu0 0.0
        %5544 = vmatpush1.xpose.msra.mxu0 0.0
        %5545 = vmatprep.subr.mxu0 0.0
        %5546 = vmatpush1.xpose.msra.mxu0 0.0
        %5547 = vmatprep.subr.mxu0 0.0
        %5548 = vmatpush1.xpose.msra.mxu0 0.0
        %5549 = vmatprep.subr.mxu0 0.0
        %5550 = vmatpush1.xpose.msra.mxu0 0.0
        %5551 = vmatprep.subr.mxu0 0.0
        %5552 = vmatpush1.xpose.msra.mxu0 0.0
        %5553 = vmatprep.subr.mxu0 0.0
        %5554 = vmatpush1.xpose.msra.mxu0 0.0
        %5555 = vmatprep.subr.mxu0 0.0
        %5556 = vmatpush1.xpose.msra.mxu0 0.0
        %5557 = vmatprep.subr.mxu0 0.0
        %5558 = vmatpush1.xpose.msra.mxu0 0.0
        %5559 = vmatprep.subr.mxu0 0.0
        %5560 = vmatpush1.xpose.msra.mxu0 0.0
        %5561 = vmatprep.subr.mxu0 0.0
        %5562 = vmatpush1.xpose.msra.mxu0 0.0
        %5563 = vmatprep.subr.mxu0 0.0
        %5564 = vmatpush1.xpose.msra.mxu0 0.0
        %5565 = vmatprep.subr.mxu0 0.0
        %5566 = vmatpush1.xpose.msra.mxu0 0.0
        %5567 = vmatprep.subr.mxu0 0.0
        %5568 = vmatpush1.xpose.msra.mxu0 0.0
        %5569 = vmatprep.subr.mxu0 0.0
        %5570 = vmatpush1.xpose.msra.mxu0 0.0
        %5571 = vmatprep.subr.mxu0 0.0
        %5572 = vmatpush1.xpose.msra.mxu0 0.0
        %5573 = vmatprep.subr.mxu0 0.0
        %5574 = vmatpush1.xpose.msra.mxu0 0.0
        %5575 = vmatprep.subr.mxu0 0.0
        %5576 = vmatpush1.xpose.msra.mxu0 0.0
        %5577 = vmatprep.subr.mxu0 0.0
        %5578 = vmatpush1.xpose.msra.mxu0 0.0
        %5579 = vmatprep.subr.mxu0 0.0
        %5580 = vmatpush1.xpose.msra.mxu0 0.0
        %5581 = vmatprep.subr.mxu0 0.0
        %5582 = vmatpush1.xpose.msra.mxu0 0.0
        %5583 = vmatprep.subr.mxu0 0.0
        %5584 = vmatpush1.xpose.msra.mxu0 0.0
        %5585 = vmatprep.subr.mxu0 0.0
        %5586 = vmatpush1.xpose.msra.mxu0 0.0
        %5587 = vmatprep.subr.mxu0 0.0
        %5588 = vmatpush1.xpose.msra.mxu0 0.0
        %5589 = vmatprep.subr.mxu0 0.0
        %5590 = vmatpush1.xpose.msra.mxu0 0.0
        %5591 = vmatprep.subr.mxu0 0.0
        %5592 = vmatpush1.xpose.msra.mxu0 0.0
        %5593 = vmatprep.subr.mxu0 0.0
        %5594 = vmatpush1.xpose.msra.mxu0 0.0
        %5595 = vmatprep.mubr.f32.mxu0 0.0
        %v5596 = vand.u32 %v5373, 4294901760
        %v5597 = vsub.f32 %v5373, %v5596
        %5598 = vmatmul.mubr.f32.gmra.mrb[0].mxu0 %v5597
        %v5599 = vpop.f32.mrb[0].mxu0
        %v5600 = vadd.f32 %v5526, %v5599
        %v5601 = vpop.f32.mrb[0].mxu0
        %5602 = vdwg.mxu0
        %5603 = vmatprep.subr.mxu0 0.0
        %v5604 = vand.u32 %v5375, 4294901760
        %5605 = vmatpush1.xpose.msra.mxu0 %v5604
        %5606 = vmatprep.subr.mxu0 0.0
        %5607 = vmatpush1.xpose.msra.mxu0 0.0
        %5608 = vmatprep.subr.mxu0 0.0
        %5609 = vmatpush1.xpose.msra.mxu0 0.0
        %5610 = vmatprep.subr.mxu0 0.0
        %5611 = vmatpush1.xpose.msra.mxu0 0.0
        %5612 = vmatprep.subr.mxu0 0.0
        %5613 = vmatpush1.xpose.msra.mxu0 0.0
        %5614 = vmatprep.subr.mxu0 0.0
        %5615 = vmatpush1.xpose.msra.mxu0 0.0
        %5616 = vmatprep.subr.mxu0 0.0
        %5617 = vmatpush1.xpose.msra.mxu0 0.0
        %5618 = vmatprep.subr.mxu0 0.0
        %5619 = vmatpush1.xpose.msra.mxu0 0.0
        %5620 = vmatprep.subr.mxu0 0.0
        %5621 = vmatpush1.xpose.msra.mxu0 0.0
        %5622 = vmatprep.subr.mxu0 0.0
        %5623 = vmatpush1.xpose.msra.mxu0 0.0
        %5624 = vmatprep.subr.mxu0 0.0
        %5625 = vmatpush1.xpose.msra.mxu0 0.0
        %5626 = vmatprep.subr.mxu0 0.0
        %5627 = vmatpush1.xpose.msra.mxu0 0.0
        %5628 = vmatprep.subr.mxu0 0.0
        %5629 = vmatpush1.xpose.msra.mxu0 0.0
        %5630 = vmatprep.subr.mxu0 0.0
        %5631 = vmatpush1.xpose.msra.mxu0 0.0
        %5632 = vmatprep.subr.mxu0 0.0
        %5633 = vmatpush1.xpose.msra.mxu0 0.0
        %5634 = vmatprep.subr.mxu0 0.0
        %5635 = vmatpush1.xpose.msra.mxu0 0.0
        %5636 = vmatprep.subr.mxu0 0.0
        %5637 = vmatpush1.xpose.msra.mxu0 0.0
        %5638 = vmatprep.subr.mxu0 0.0
        %5639 = vmatpush1.xpose.msra.mxu0 0.0
        %5640 = vmatprep.subr.mxu0 0.0
        %5641 = vmatpush1.xpose.msra.mxu0 0.0
        %5642 = vmatprep.subr.mxu0 0.0
        %5643 = vmatpush1.xpose.msra.mxu0 0.0
        %5644 = vmatprep.subr.mxu0 0.0
        %5645 = vmatpush1.xpose.msra.mxu0 0.0
        %5646 = vmatprep.subr.mxu0 0.0
        %5647 = vmatpush1.xpose.msra.mxu0 0.0
        %5648 = vmatprep.subr.mxu0 0.0
        %5649 = vmatpush1.xpose.msra.mxu0 0.0
        %5650 = vmatprep.subr.mxu0 0.0
        %5651 = vmatpush1.xpose.msra.mxu0 0.0
        %5652 = vmatprep.subr.mxu0 0.0
        %5653 = vmatpush1.xpose.msra.mxu0 0.0
        %5654 = vmatprep.subr.mxu0 0.0
        %5655 = vmatpush1.xpose.msra.mxu0 0.0
        %5656 = vmatprep.subr.mxu0 0.0
        %5657 = vmatpush1.xpose.msra.mxu0 0.0
        %5658 = vmatprep.subr.mxu0 0.0
        %5659 = vmatpush1.xpose.msra.mxu0 0.0
        %5660 = vmatprep.subr.mxu0 0.0
        %5661 = vmatpush1.xpose.msra.mxu0 0.0
        %5662 = vmatprep.subr.mxu0 0.0
        %5663 = vmatpush1.xpose.msra.mxu0 0.0
        %5664 = vmatprep.subr.mxu0 0.0
        %5665 = vmatpush1.xpose.msra.mxu0 0.0
        %5666 = vmatprep.subr.mxu0 0.0
        %5667 = vmatpush1.xpose.msra.mxu0 0.0
        %5668 = vmatprep.mubr.f32.mxu0 0.0
        %v5669 = vand.u32 %v5373, 4294901760
        %v5670 = vsub.f32 %v5373, %v5669
        %v5671 = vand.u32 %v5670, 4294901760
        %5672 = vmatmul.mubr.f32.gmra.mrb[0].mxu0 %v5671
        %v5673 = vpop.f32.mrb[0].mxu0
        %v5674 = vadd.f32 %v5600, %v5673
        %v5675 = vpop.f32.mrb[0].mxu0
        %5676 = vdwg.mxu0
        %5677 = vmatprep.subr.mxu0 0.0
        %v5678 = vand.u32 %v5375, 4294901760
        %v5679 = vsub.f32 %v5375, %v5678
        %v5680 = vand.u32 %v5679, 4294901760
        %5681 = vmatpush1.xpose.msra.mxu0 %v5680
        %5682 = vmatprep.subr.mxu0 0.0
        %5683 = vmatpush1.xpose.msra.mxu0 0.0
        %5684 = vmatprep.subr.mxu0 0.0
        %5685 = vmatpush1.xpose.msra.mxu0 0.0
        %5686 = vmatprep.subr.mxu0 0.0
        %5687 = vmatpush1.xpose.msra.mxu0 0.0
        %5688 = vmatprep.subr.mxu0 0.0
        %5689 = vmatpush1.xpose.msra.mxu0 0.0
        %5690 = vmatprep.subr.mxu0 0.0
        %5691 = vmatpush1.xpose.msra.mxu0 0.0
        %5692 = vmatprep.subr.mxu0 0.0
        %5693 = vmatpush1.xpose.msra.mxu0 0.0
        %5694 = vmatprep.subr.mxu0 0.0
        %5695 = vmatpush1.xpose.msra.mxu0 0.0
        %5696 = vmatprep.subr.mxu0 0.0
        %5697 = vmatpush1.xpose.msra.mxu0 0.0
        %5698 = vmatprep.subr.mxu0 0.0
        %5699 = vmatpush1.xpose.msra.mxu0 0.0
        %5700 = vmatprep.subr.mxu0 0.0
        %5701 = vmatpush1.xpose.msra.mxu0 0.0
        %5702 = vmatprep.subr.mxu0 0.0
        %5703 = vmatpush1.xpose.msra.mxu0 0.0
        %5704 = vmatprep.subr.mxu0 0.0
        %5705 = vmatpush1.xpose.msra.mxu0 0.0
        %5706 = vmatprep.subr.mxu0 0.0
        %5707 = vmatpush1.xpose.msra.mxu0 0.0
        %5708 = vmatprep.subr.mxu0 0.0
        %5709 = vmatpush1.xpose.msra.mxu0 0.0
        %5710 = vmatprep.subr.mxu0 0.0
        %5711 = vmatpush1.xpose.msra.mxu0 0.0
        %5712 = vmatprep.subr.mxu0 0.0
        %5713 = vmatpush1.xpose.msra.mxu0 0.0
        %5714 = vmatprep.subr.mxu0 0.0
        %5715 = vmatpush1.xpose.msra.mxu0 0.0
        %5716 = vmatprep.subr.mxu0 0.0
        %5717 = vmatpush1.xpose.msra.mxu0 0.0
        %5718 = vmatprep.subr.mxu0 0.0
        %5719 = vmatpush1.xpose.msra.mxu0 0.0
        %5720 = vmatprep.subr.mxu0 0.0
        %5721 = vmatpush1.xpose.msra.mxu0 0.0
        %5722 = vmatprep.subr.mxu0 0.0
        %5723 = vmatpush1.xpose.msra.mxu0 0.0
        %5724 = vmatprep.subr.mxu0 0.0
        %5725 = vmatpush1.xpose.msra.mxu0 0.0
        %5726 = vmatprep.subr.mxu0 0.0
        %5727 = vmatpush1.xpose.msra.mxu0 0.0
        %5728 = vmatprep.subr.mxu0 0.0
        %5729 = vmatpush1.xpose.msra.mxu0 0.0
        %5730 = vmatprep.subr.mxu0 0.0
        %5731 = vmatpush1.xpose.msra.mxu0 0.0
        %5732 = vmatprep.subr.mxu0 0.0
        %5733 = vmatpush1.xpose.msra.mxu0 0.0
        %5734 = vmatprep.subr.mxu0 0.0
        %5735 = vmatpush1.xpose.msra.mxu0 0.0
        %5736 = vmatprep.subr.mxu0 0.0
        %5737 = vmatpush1.xpose.msra.mxu0 0.0
        %5738 = vmatprep.subr.mxu0 0.0
        %5739 = vmatpush1.xpose.msra.mxu0 0.0
        %5740 = vmatprep.subr.mxu0 0.0
        %5741 = vmatpush1.xpose.msra.mxu0 0.0
        %5742 = vmatprep.subr.mxu0 0.0
        %5743 = vmatpush1.xpose.msra.mxu0 0.0
        %5744 = vmatprep.mubr.f32.mxu0 0.0
        %v5745 = vand.u32 %v5373, 4294901760
        %5746 = vmatmul.mubr.f32.gmra.mrb[0].mxu0 %v5745
        %v5747 = vpop.f32.mrb[0].mxu0
        %v5748 = vadd.f32 %v5674, %v5747
        %v5749 = vpop.f32.mrb[0].mxu0
        %5750 = vdwg.mxu0
        %5751 = vmatprep.subr.mxu0 0.0
        %v5752 = vand.u32 %v5375, 4294901760
        %5753 = vmatpush1.xpose.msra.mxu0 %v5752
        %5754 = vmatprep.subr.mxu0 0.0
        %5755 = vmatpush1.xpose.msra.mxu0 0.0
        %5756 = vmatprep.subr.mxu0 0.0
        %5757 = vmatpush1.xpose.msra.mxu0 0.0
        %5758 = vmatprep.subr.mxu0 0.0
        %5759 = vmatpush1.xpose.msra.mxu0 0.0
        %5760 = vmatprep.subr.mxu0 0.0
        %5761 = vmatpush1.xpose.msra.mxu0 0.0
        %5762 = vmatprep.subr.mxu0 0.0
        %5763 = vmatpush1.xpose.msra.mxu0 0.0
        %5764 = vmatprep.subr.mxu0 0.0
        %5765 = vmatpush1.xpose.msra.mxu0 0.0
        %5766 = vmatprep.subr.mxu0 0.0
        %5767 = vmatpush1.xpose.msra.mxu0 0.0
        %5768 = vmatprep.subr.mxu0 0.0
        %5769 = vmatpush1.xpose.msra.mxu0 0.0
        %5770 = vmatprep.subr.mxu0 0.0
        %5771 = vmatpush1.xpose.msra.mxu0 0.0
        %5772 = vmatprep.subr.mxu0 0.0
        %5773 = vmatpush1.xpose.msra.mxu0 0.0
        %5774 = vmatprep.subr.mxu0 0.0
        %5775 = vmatpush1.xpose.msra.mxu0 0.0
        %5776 = vmatprep.subr.mxu0 0.0
        %5777 = vmatpush1.xpose.msra.mxu0 0.0
        %5778 = vmatprep.subr.mxu0 0.0
        %5779 = vmatpush1.xpose.msra.mxu0 0.0
        %5780 = vmatprep.subr.mxu0 0.0
        %5781 = vmatpush1.xpose.msra.mxu0 0.0
        %5782 = vmatprep.subr.mxu0 0.0
        %5783 = vmatpush1.xpose.msra.mxu0 0.0
        %5784 = vmatprep.subr.mxu0 0.0
        %5785 = vmatpush1.xpose.msra.mxu0 0.0
        %5786 = vmatprep.subr.mxu0 0.0
        %5787 = vmatpush1.xpose.msra.mxu0 0.0
        %5788 = vmatprep.subr.mxu0 0.0
        %5789 = vmatpush1.xpose.msra.mxu0 0.0
        %5790 = vmatprep.subr.mxu0 0.0
        %5791 = vmatpush1.xpose.msra.mxu0 0.0
        %5792 = vmatprep.subr.mxu0 0.0
        %5793 = vmatpush1.xpose.msra.mxu0 0.0
        %5794 = vmatprep.subr.mxu0 0.0
        %5795 = vmatpush1.xpose.msra.mxu0 0.0
        %5796 = vmatprep.subr.mxu0 0.0
        %5797 = vmatpush1.xpose.msra.mxu0 0.0
        %5798 = vmatprep.subr.mxu0 0.0
        %5799 = vmatpush1.xpose.msra.mxu0 0.0
        %5800 = vmatprep.subr.mxu0 0.0
        %5801 = vmatpush1.xpose.msra.mxu0 0.0
        %5802 = vmatprep.subr.mxu0 0.0
        %5803 = vmatpush1.xpose.msra.mxu0 0.0
        %5804 = vmatprep.subr.mxu0 0.0
        %5805 = vmatpush1.xpose.msra.mxu0 0.0
        %5806 = vmatprep.subr.mxu0 0.0
        %5807 = vmatpush1.xpose.msra.mxu0 0.0
        %5808 = vmatprep.subr.mxu0 0.0
        %5809 = vmatpush1.xpose.msra.mxu0 0.0
        %5810 = vmatprep.subr.mxu0 0.0
        %5811 = vmatpush1.xpose.msra.mxu0 0.0
        %5812 = vmatprep.subr.mxu0 0.0
        %5813 = vmatpush1.xpose.msra.mxu0 0.0
        %5814 = vmatprep.subr.mxu0 0.0
        %5815 = vmatpush1.xpose.msra.mxu0 0.0
        %5816 = vmatprep.mubr.f32.mxu0 0.0
        %v5817 = vand.u32 %v5373, 4294901760
        %5818 = vmatmul.mubr.f32.gmra.mrb[0].mxu0 %v5817
        %v5819 = vpop.f32.mrb[0].mxu0
        %v5820 = vadd.f32 %v5748, %v5819
        %v5821 = vpop.f32.mrb[0].mxu0
        %5822 = vdwg.mxu0
        %v5823 = vsel %vm1228, %v5820, -inf
        %5824 = vmax.xlane.f32.xlu0 %v5823
        %v5825 = vpop.xlane.xlu0 %5824
        %v5826 = vsub.f32 %v5820, %v5825
        %v5827 = vmul.f32 %v5826, 1.442695
        %v5828 = vpow.pop %v5827
        %v5829 = vsel %vm1228, %v5828, 0.0
        %5830 = vadd.xlane.f32.xlu0 %v5829
        %v5831 = vpop.xlane.xlu0 %5830
        %v5832 = vrcp.pop %v5831
        %v5833 = vmul.f32 %v5828, %v5832
        %s5834 = scalar_lea.vmem %s279, 40 [#allocation9]
        %5835 = vst.msk [vmem:[%s5834] sm:$0xff] %vm1228, %v5833
        %5836 = vrot.lane.b32.xlu0 %v771, 44
        %v5837 = vpop.permute.xlu0 %5836
        %v5840 = vsel %vm1228, %v5833, 0
        %5842 = vmatprep.subr.mxu0 0.0
        %v5843 = vand.u32 %v5837, 4294901760
        %5844 = vmatpush1.msra.mxu0 %v5843
        %5845 = vmatprep.subr.mxu0 0.0
        %5846 = vmatpush1.msra.mxu0 0.0
        %5847 = vmatprep.subr.mxu0 0.0
        %5848 = vmatpush1.msra.mxu0 0.0
        %5849 = vmatprep.subr.mxu0 0.0
        %5850 = vmatpush1.msra.mxu0 0.0
        %5851 = vmatprep.subr.mxu0 0.0
        %5852 = vmatpush1.msra.mxu0 0.0
        %5853 = vmatprep.subr.mxu0 0.0
        %5854 = vmatpush1.msra.mxu0 0.0
        %5855 = vmatprep.subr.mxu0 0.0
        %5856 = vmatpush1.msra.mxu0 0.0
        %5857 = vmatprep.subr.mxu0 0.0
        %5858 = vmatpush1.msra.mxu0 0.0
        %5859 = vmatprep.subr.mxu0 0.0
        %5860 = vmatpush1.msra.mxu0 0.0
        %5861 = vmatprep.subr.mxu0 0.0
        %5862 = vmatpush1.msra.mxu0 0.0
        %5863 = vmatprep.subr.mxu0 0.0
        %5864 = vmatpush1.msra.mxu0 0.0
        %5865 = vmatprep.subr.mxu0 0.0
        %5866 = vmatpush1.msra.mxu0 0.0
        %5867 = vmatprep.subr.mxu0 0.0
        %5868 = vmatpush1.msra.mxu0 0.0
        %5869 = vmatprep.subr.mxu0 0.0
        %5870 = vmatpush1.msra.mxu0 0.0
        %5871 = vmatprep.subr.mxu0 0.0
        %5872 = vmatpush1.msra.mxu0 0.0
        %5873 = vmatprep.subr.mxu0 0.0
        %5874 = vmatpush1.msra.mxu0 0.0
        %5875 = vmatprep.subr.mxu0 0.0
        %5876 = vmatpush1.msra.mxu0 0.0
        %5877 = vmatprep.subr.mxu0 0.0
        %5878 = vmatpush1.msra.mxu0 0.0
        %5879 = vmatprep.subr.mxu0 0.0
        %5880 = vmatpush1.msra.mxu0 0.0
        %5881 = vmatprep.subr.mxu0 0.0
        %5882 = vmatpush1.msra.mxu0 0.0
        %5883 = vmatprep.subr.mxu0 0.0
        %5884 = vmatpush1.msra.mxu0 0.0
        %5885 = vmatprep.subr.mxu0 0.0
        %5886 = vmatpush1.msra.mxu0 0.0
        %5887 = vmatprep.subr.mxu0 0.0
        %5888 = vmatpush1.msra.mxu0 0.0
        %5889 = vmatprep.subr.mxu0 0.0
        %5890 = vmatpush1.msra.mxu0 0.0
        %5891 = vmatprep.subr.mxu0 0.0
        %5892 = vmatpush1.msra.mxu0 0.0
        %5893 = vmatprep.subr.mxu0 0.0
        %5894 = vmatpush1.msra.mxu0 0.0
        %5895 = vmatprep.subr.mxu0 0.0
        %5896 = vmatpush1.msra.mxu0 0.0
        %5897 = vmatprep.subr.mxu0 0.0
        %5898 = vmatpush1.msra.mxu0 0.0
        %5899 = vmatprep.subr.mxu0 0.0
        %5900 = vmatpush1.msra.mxu0 0.0
        %5901 = vmatprep.subr.mxu0 0.0
        %5902 = vmatpush1.msra.mxu0 0.0
        %5903 = vmatprep.subr.mxu0 0.0
        %5904 = vmatpush1.msra.mxu0 0.0
        %5905 = vmatprep.subr.mxu0 0.0
        %5906 = vmatpush1.msra.mxu0 0.0
        %5907 = vmatprep.mubr.f32.mxu0 0.0
        %v5908 = vand.u32 %v5840, 4294901760
        %v5909 = vsub.f32 %v5840, %v5908
        %v5910 = vand.u32 %v5909, 4294901760
        %v5911 = vsub.f32 %v5909, %v5910
        %v5912 = vand.u32 %v5911, 4294901760
        %5913 = vmatmul.mubr.f32.gmra.mrb[0].mxu0 %v5912
        %v5914 = vpop.f32.mrb[0].mxu0
        %v5915 = vadd.f32 0.0, %v5914
        %v5916 = vpop.f32.mrb[0].mxu0
        %5917 = vdwg.mxu0
        %5918 = vmatprep.subr.mxu0 0.0
        %v5919 = vand.u32 %v5837, 4294901760
        %v5920 = vsub.f32 %v5837, %v5919
        %v5921 = vand.u32 %v5920, 4294901760
        %v5922 = vsub.f32 %v5920, %v5921
        %v5923 = vand.u32 %v5922, 4294901760
        %5924 = vmatpush1.msra.mxu0 %v5923
        %5925 = vmatprep.subr.mxu0 0.0
        %5926 = vmatpush1.msra.mxu0 0.0
        %5927 = vmatprep.subr.mxu0 0.0
        %5928 = vmatpush1.msra.mxu0 0.0
        %5929 = vmatprep.subr.mxu0 0.0
        %5930 = vmatpush1.msra.mxu0 0.0
        %5931 = vmatprep.subr.mxu0 0.0
        %5932 = vmatpush1.msra.mxu0 0.0
        %5933 = vmatprep.subr.mxu0 0.0
        %5934 = vmatpush1.msra.mxu0 0.0
        %5935 = vmatprep.subr.mxu0 0.0
        %5936 = vmatpush1.msra.mxu0 0.0
        %5937 = vmatprep.subr.mxu0 0.0
        %5938 = vmatpush1.msra.mxu0 0.0
        %5939 = vmatprep.subr.mxu0 0.0
        %5940 = vmatpush1.msra.mxu0 0.0
        %5941 = vmatprep.subr.mxu0 0.0
        %5942 = vmatpush1.msra.mxu0 0.0
        %5943 = vmatprep.subr.mxu0 0.0
        %5944 = vmatpush1.msra.mxu0 0.0
        %5945 = vmatprep.subr.mxu0 0.0
        %5946 = vmatpush1.msra.mxu0 0.0
        %5947 = vmatprep.subr.mxu0 0.0
        %5948 = vmatpush1.msra.mxu0 0.0
        %5949 = vmatprep.subr.mxu0 0.0
        %5950 = vmatpush1.msra.mxu0 0.0
        %5951 = vmatprep.subr.mxu0 0.0
        %5952 = vmatpush1.msra.mxu0 0.0
        %5953 = vmatprep.subr.mxu0 0.0
        %5954 = vmatpush1.msra.mxu0 0.0
        %5955 = vmatprep.subr.mxu0 0.0
        %5956 = vmatpush1.msra.mxu0 0.0
        %5957 = vmatprep.subr.mxu0 0.0
        %5958 = vmatpush1.msra.mxu0 0.0
        %5959 = vmatprep.subr.mxu0 0.0
        %5960 = vmatpush1.msra.mxu0 0.0
        %5961 = vmatprep.subr.mxu0 0.0
        %5962 = vmatpush1.msra.mxu0 0.0
        %5963 = vmatprep.subr.mxu0 0.0
        %5964 = vmatpush1.msra.mxu0 0.0
        %5965 = vmatprep.subr.mxu0 0.0
        %5966 = vmatpush1.msra.mxu0 0.0
        %5967 = vmatprep.subr.mxu0 0.0
        %5968 = vmatpush1.msra.mxu0 0.0
        %5969 = vmatprep.subr.mxu0 0.0
        %5970 = vmatpush1.msra.mxu0 0.0
        %5971 = vmatprep.subr.mxu0 0.0
        %5972 = vmatpush1.msra.mxu0 0.0
        %5973 = vmatprep.subr.mxu0 0.0
        %5974 = vmatpush1.msra.mxu0 0.0
        %5975 = vmatprep.subr.mxu0 0.0
        %5976 = vmatpush1.msra.mxu0 0.0
        %5977 = vmatprep.subr.mxu0 0.0
        %5978 = vmatpush1.msra.mxu0 0.0
        %5979 = vmatprep.subr.mxu0 0.0
        %5980 = vmatpush1.msra.mxu0 0.0
        %5981 = vmatprep.subr.mxu0 0.0
        %5982 = vmatpush1.msra.mxu0 0.0
        %5983 = vmatprep.subr.mxu0 0.0
        %5984 = vmatpush1.msra.mxu0 0.0
        %5985 = vmatprep.subr.mxu0 0.0
        %5986 = vmatpush1.msra.mxu0 0.0
        %5987 = vmatprep.mubr.f32.mxu0 0.0
        %v5988 = vand.u32 %v5840, 4294901760
        %5989 = vmatmul.mubr.f32.gmra.mrb[0].mxu0 %v5988
        %v5990 = vpop.f32.mrb[0].mxu0
        %v5991 = vadd.f32 %v5915, %v5990
        %v5992 = vpop.f32.mrb[0].mxu0
        %5993 = vdwg.mxu0
        %5994 = vmatprep.subr.mxu0 0.0
        %v5995 = vand.u32 %v5837, 4294901760
        %v5996 = vsub.f32 %v5837, %v5995
        %5997 = vmatpush1.msra.mxu0 %v5996
        %5998 = vmatprep.subr.mxu0 0.0
        %5999 = vmatpush1.msra.mxu0 0.0
        %6000 = vmatprep.subr.mxu0 0.0
        %6001 = vmatpush1.msra.mxu0 0.0
        %6002 = vmatprep.subr.mxu0 0.0
        %6003 = vmatpush1.msra.mxu0 0.0
        %6004 = vmatprep.subr.mxu0 0.0
        %6005 = vmatpush1.msra.mxu0 0.0
        %6006 = vmatprep.subr.mxu0 0.0
        %6007 = vmatpush1.msra.mxu0 0.0
        %6008 = vmatprep.subr.mxu0 0.0
        %6009 = vmatpush1.msra.mxu0 0.0
        %6010 = vmatprep.subr.mxu0 0.0
        %6011 = vmatpush1.msra.mxu0 0.0
        %6012 = vmatprep.subr.mxu0 0.0
        %6013 = vmatpush1.msra.mxu0 0.0
        %6014 = vmatprep.subr.mxu0 0.0
        %6015 = vmatpush1.msra.mxu0 0.0
        %6016 = vmatprep.subr.mxu0 0.0
        %6017 = vmatpush1.msra.mxu0 0.0
        %6018 = vmatprep.subr.mxu0 0.0
        %6019 = vmatpush1.msra.mxu0 0.0
        %6020 = vmatprep.subr.mxu0 0.0
        %6021 = vmatpush1.msra.mxu0 0.0
        %6022 = vmatprep.subr.mxu0 0.0
        %6023 = vmatpush1.msra.mxu0 0.0
        %6024 = vmatprep.subr.mxu0 0.0
        %6025 = vmatpush1.msra.mxu0 0.0
        %6026 = vmatprep.subr.mxu0 0.0
        %6027 = vmatpush1.msra.mxu0 0.0
        %6028 = vmatprep.subr.mxu0 0.0
        %6029 = vmatpush1.msra.mxu0 0.0
        %6030 = vmatprep.subr.mxu0 0.0
        %6031 = vmatpush1.msra.mxu0 0.0
        %6032 = vmatprep.subr.mxu0 0.0
        %6033 = vmatpush1.msra.mxu0 0.0
        %6034 = vmatprep.subr.mxu0 0.0
        %6035 = vmatpush1.msra.mxu0 0.0
        %6036 = vmatprep.subr.mxu0 0.0
        %6037 = vmatpush1.msra.mxu0 0.0
        %6038 = vmatprep.subr.mxu0 0.0
        %6039 = vmatpush1.msra.mxu0 0.0
        %6040 = vmatprep.subr.mxu0 0.0
        %6041 = vmatpush1.msra.mxu0 0.0
        %6042 = vmatprep.subr.mxu0 0.0
        %6043 = vmatpush1.msra.mxu0 0.0
        %6044 = vmatprep.subr.mxu0 0.0
        %6045 = vmatpush1.msra.mxu0 0.0
        %6046 = vmatprep.subr.mxu0 0.0
        %6047 = vmatpush1.msra.mxu0 0.0
        %6048 = vmatprep.subr.mxu0 0.0
        %6049 = vmatpush1.msra.mxu0 0.0
        %6050 = vmatprep.subr.mxu0 0.0
        %6051 = vmatpush1.msra.mxu0 0.0
        %6052 = vmatprep.subr.mxu0 0.0
        %6053 = vmatpush1.msra.mxu0 0.0
        %6054 = vmatprep.subr.mxu0 0.0
        %6055 = vmatpush1.msra.mxu0 0.0
        %6056 = vmatprep.subr.mxu0 0.0
        %6057 = vmatpush1.msra.mxu0 0.0
        %6058 = vmatprep.subr.mxu0 0.0
        %6059 = vmatpush1.msra.mxu0 0.0
        %6060 = vmatprep.mubr.f32.mxu0 0.0
        %v6061 = vand.u32 %v5840, 4294901760
        %v6062 = vsub.f32 %v5840, %v6061
        %6063 = vmatmul.mubr.f32.gmra.mrb[0].mxu0 %v6062
        %v6064 = vpop.f32.mrb[0].mxu0
        %v6065 = vadd.f32 %v5991, %v6064
        %v6066 = vpop.f32.mrb[0].mxu0
        %6067 = vdwg.mxu0
        %6068 = vmatprep.subr.mxu0 0.0
        %v6069 = vand.u32 %v5837, 4294901760
        %6070 = vmatpush1.msra.mxu0 %v6069
        %6071 = vmatprep.subr.mxu0 0.0
        %6072 = vmatpush1.msra.mxu0 0.0
        %6073 = vmatprep.subr.mxu0 0.0
        %6074 = vmatpush1.msra.mxu0 0.0
        %6075 = vmatprep.subr.mxu0 0.0
        %6076 = vmatpush1.msra.mxu0 0.0
        %6077 = vmatprep.subr.mxu0 0.0
        %6078 = vmatpush1.msra.mxu0 0.0
        %6079 = vmatprep.subr.mxu0 0.0
        %6080 = vmatpush1.msra.mxu0 0.0
        %6081 = vmatprep.subr.mxu0 0.0
        %6082 = vmatpush1.msra.mxu0 0.0
        %6083 = vmatprep.subr.mxu0 0.0
        %6084 = vmatpush1.msra.mxu0 0.0
        %6085 = vmatprep.subr.mxu0 0.0
        %6086 = vmatpush1.msra.mxu0 0.0
        %6087 = vmatprep.subr.mxu0 0.0
        %6088 = vmatpush1.msra.mxu0 0.0
        %6089 = vmatprep.subr.mxu0 0.0
        %6090 = vmatpush1.msra.mxu0 0.0
        %6091 = vmatprep.subr.mxu0 0.0
        %6092 = vmatpush1.msra.mxu0 0.0
        %6093 = vmatprep.subr.mxu0 0.0
        %6094 = vmatpush1.msra.mxu0 0.0
        %6095 = vmatprep.subr.mxu0 0.0
        %6096 = vmatpush1.msra.mxu0 0.0
        %6097 = vmatprep.subr.mxu0 0.0
        %6098 = vmatpush1.msra.mxu0 0.0
        %6099 = vmatprep.subr.mxu0 0.0
        %6100 = vmatpush1.msra.mxu0 0.0
        %6101 = vmatprep.subr.mxu0 0.0
        %6102 = vmatpush1.msra.mxu0 0.0
        %6103 = vmatprep.subr.mxu0 0.0
        %6104 = vmatpush1.msra.mxu0 0.0
        %6105 = vmatprep.subr.mxu0 0.0
        %6106 = vmatpush1.msra.mxu0 0.0
        %6107 = vmatprep.subr.mxu0 0.0
        %6108 = vmatpush1.msra.mxu0 0.0
        %6109 = vmatprep.subr.mxu0 0.0
        %6110 = vmatpush1.msra.mxu0 0.0
        %6111 = vmatprep.subr.mxu0 0.0
        %6112 = vmatpush1.msra.mxu0 0.0
        %6113 = vmatprep.subr.mxu0 0.0
        %6114 = vmatpush1.msra.mxu0 0.0
        %6115 = vmatprep.subr.mxu0 0.0
        %6116 = vmatpush1.msra.mxu0 0.0
        %6117 = vmatprep.subr.mxu0 0.0
        %6118 = vmatpush1.msra.mxu0 0.0
        %6119 = vmatprep.subr.mxu0 0.0
        %6120 = vmatpush1.msra.mxu0 0.0
        %6121 = vmatprep.subr.mxu0 0.0
        %6122 = vmatpush1.msra.mxu0 0.0
        %6123 = vmatprep.subr.mxu0 0.0
        %6124 = vmatpush1.msra.mxu0 0.0
        %6125 = vmatprep.subr.mxu0 0.0
        %6126 = vmatpush1.msra.mxu0 0.0
        %6127 = vmatprep.subr.mxu0 0.0
        %6128 = vmatpush1.msra.mxu0 0.0
        %6129 = vmatprep.subr.mxu0 0.0
        %6130 = vmatpush1.msra.mxu0 0.0
        %6131 = vmatprep.subr.mxu0 0.0
        %6132 = vmatpush1.msra.mxu0 0.0
        %6133 = vmatprep.mubr.f32.mxu0 0.0
        %v6134 = vand.u32 %v5840, 4294901760
        %v6135 = vsub.f32 %v5840, %v6134
        %v6136 = vand.u32 %v6135, 4294901760
        %6137 = vmatmul.mubr.f32.gmra.mrb[0].mxu0 %v6136
        %v6138 = vpop.f32.mrb[0].mxu0
        %v6139 = vadd.f32 %v6065, %v6138
        %v6140 = vpop.f32.mrb[0].mxu0
        %6141 = vdwg.mxu0
        %6142 = vmatprep.subr.mxu0 0.0
        %v6143 = vand.u32 %v5837, 4294901760
        %v6144 = vsub.f32 %v5837, %v6143
        %v6145 = vand.u32 %v6144, 4294901760
        %6146 = vmatpush1.msra.mxu0 %v6145
        %6147 = vmatprep.subr.mxu0 0.0
        %6148 = vmatpush1.msra.mxu0 0.0
        %6149 = vmatprep.subr.mxu0 0.0
        %6150 = vmatpush1.msra.mxu0 0.0
        %6151 = vmatprep.subr.mxu0 0.0
        %6152 = vmatpush1.msra.mxu0 0.0
        %6153 = vmatprep.subr.mxu0 0.0
        %6154 = vmatpush1.msra.mxu0 0.0
        %6155 = vmatprep.subr.mxu0 0.0
        %6156 = vmatpush1.msra.mxu0 0.0
        %6157 = vmatprep.subr.mxu0 0.0
        %6158 = vmatpush1.msra.mxu0 0.0
        %6159 = vmatprep.subr.mxu0 0.0
        %6160 = vmatpush1.msra.mxu0 0.0
        %6161 = vmatprep.subr.mxu0 0.0
        %6162 = vmatpush1.msra.mxu0 0.0
        %6163 = vmatprep.subr.mxu0 0.0
        %6164 = vmatpush1.msra.mxu0 0.0
        %6165 = vmatprep.subr.mxu0 0.0
        %6166 = vmatpush1.msra.mxu0 0.0
        %6167 = vmatprep.subr.mxu0 0.0
        %6168 = vmatpush1.msra.mxu0 0.0
        %6169 = vmatprep.subr.mxu0 0.0
        %6170 = vmatpush1.msra.mxu0 0.0
        %6171 = vmatprep.subr.mxu0 0.0
        %6172 = vmatpush1.msra.mxu0 0.0
        %6173 = vmatprep.subr.mxu0 0.0
        %6174 = vmatpush1.msra.mxu0 0.0
        %6175 = vmatprep.subr.mxu0 0.0
        %6176 = vmatpush1.msra.mxu0 0.0
        %6177 = vmatprep.subr.mxu0 0.0
        %6178 = vmatpush1.msra.mxu0 0.0
        %6179 = vmatprep.subr.mxu0 0.0
        %6180 = vmatpush1.msra.mxu0 0.0
        %6181 = vmatprep.subr.mxu0 0.0
        %6182 = vmatpush1.msra.mxu0 0.0
        %6183 = vmatprep.subr.mxu0 0.0
        %6184 = vmatpush1.msra.mxu0 0.0
        %6185 = vmatprep.subr.mxu0 0.0
        %6186 = vmatpush1.msra.mxu0 0.0
        %6187 = vmatprep.subr.mxu0 0.0
        %6188 = vmatpush1.msra.mxu0 0.0
        %6189 = vmatprep.subr.mxu0 0.0
        %6190 = vmatpush1.msra.mxu0 0.0
        %6191 = vmatprep.subr.mxu0 0.0
        %6192 = vmatpush1.msra.mxu0 0.0
        %6193 = vmatprep.subr.mxu0 0.0
        %6194 = vmatpush1.msra.mxu0 0.0
        %6195 = vmatprep.subr.mxu0 0.0
        %6196 = vmatpush1.msra.mxu0 0.0
        %6197 = vmatprep.subr.mxu0 0.0
        %6198 = vmatpush1.msra.mxu0 0.0
        %6199 = vmatprep.subr.mxu0 0.0
        %6200 = vmatpush1.msra.mxu0 0.0
        %6201 = vmatprep.subr.mxu0 0.0
        %6202 = vmatpush1.msra.mxu0 0.0
        %6203 = vmatprep.subr.mxu0 0.0
        %6204 = vmatpush1.msra.mxu0 0.0
        %6205 = vmatprep.subr.mxu0 0.0
        %6206 = vmatpush1.msra.mxu0 0.0
        %6207 = vmatprep.subr.mxu0 0.0
        %6208 = vmatpush1.msra.mxu0 0.0
        %6209 = vmatprep.mubr.f32.mxu0 0.0
        %v6210 = vand.u32 %v5840, 4294901760
        %6211 = vmatmul.mubr.f32.gmra.mrb[0].mxu0 %v6210
        %v6212 = vpop.f32.mrb[0].mxu0
        %v6213 = vadd.f32 %v6139, %v6212
        %v6214 = vpop.f32.mrb[0].mxu0
        %6215 = vdwg.mxu0
        %6216 = vmatprep.subr.mxu0 0.0
        %v6217 = vand.u32 %v5837, 4294901760
        %6218 = vmatpush1.msra.mxu0 %v6217
        %6219 = vmatprep.subr.mxu0 0.0
        %6220 = vmatpush1.msra.mxu0 0.0
        %6221 = vmatprep.subr.mxu0 0.0
        %6222 = vmatpush1.msra.mxu0 0.0
        %6223 = vmatprep.subr.mxu0 0.0
        %6224 = vmatpush1.msra.mxu0 0.0
        %6225 = vmatprep.subr.mxu0 0.0
        %6226 = vmatpush1.msra.mxu0 0.0
        %6227 = vmatprep.subr.mxu0 0.0
        %6228 = vmatpush1.msra.mxu0 0.0
        %6229 = vmatprep.subr.mxu0 0.0
        %6230 = vmatpush1.msra.mxu0 0.0
        %6231 = vmatprep.subr.mxu0 0.0
        %6232 = vmatpush1.msra.mxu0 0.0
        %6233 = vmatprep.subr.mxu0 0.0
        %6234 = vmatpush1.msra.mxu0 0.0
        %6235 = vmatprep.subr.mxu0 0.0
        %6236 = vmatpush1.msra.mxu0 0.0
        %6237 = vmatprep.subr.mxu0 0.0
        %6238 = vmatpush1.msra.mxu0 0.0
        %6239 = vmatprep.subr.mxu0 0.0
        %6240 = vmatpush1.msra.mxu0 0.0
        %6241 = vmatprep.subr.mxu0 0.0
        %6242 = vmatpush1.msra.mxu0 0.0
        %6243 = vmatprep.subr.mxu0 0.0
        %6244 = vmatpush1.msra.mxu0 0.0
        %6245 = vmatprep.subr.mxu0 0.0
        %6246 = vmatpush1.msra.mxu0 0.0
        %6247 = vmatprep.subr.mxu0 0.0
        %6248 = vmatpush1.msra.mxu0 0.0
        %6249 = vmatprep.subr.mxu0 0.0
        %6250 = vmatpush1.msra.mxu0 0.0
        %6251 = vmatprep.subr.mxu0 0.0
        %6252 = vmatpush1.msra.mxu0 0.0
        %6253 = vmatprep.subr.mxu0 0.0
        %6254 = vmatpush1.msra.mxu0 0.0
        %6255 = vmatprep.subr.mxu0 0.0
        %6256 = vmatpush1.msra.mxu0 0.0
        %6257 = vmatprep.subr.mxu0 0.0
        %6258 = vmatpush1.msra.mxu0 0.0
        %6259 = vmatprep.subr.mxu0 0.0
        %6260 = vmatpush1.msra.mxu0 0.0
        %6261 = vmatprep.subr.mxu0 0.0
        %6262 = vmatpush1.msra.mxu0 0.0
        %6263 = vmatprep.subr.mxu0 0.0
        %6264 = vmatpush1.msra.mxu0 0.0
        %6265 = vmatprep.subr.mxu0 0.0
        %6266 = vmatpush1.msra.mxu0 0.0
        %6267 = vmatprep.subr.mxu0 0.0
        %6268 = vmatpush1.msra.mxu0 0.0
        %6269 = vmatprep.subr.mxu0 0.0
        %6270 = vmatpush1.msra.mxu0 0.0
        %6271 = vmatprep.subr.mxu0 0.0
        %6272 = vmatpush1.msra.mxu0 0.0
        %6273 = vmatprep.subr.mxu0 0.0
        %6274 = vmatpush1.msra.mxu0 0.0
        %6275 = vmatprep.subr.mxu0 0.0
        %6276 = vmatpush1.msra.mxu0 0.0
        %6277 = vmatprep.subr.mxu0 0.0
        %6278 = vmatpush1.msra.mxu0 0.0
        %6279 = vmatprep.subr.mxu0 0.0
        %6280 = vmatpush1.msra.mxu0 0.0
        %6281 = vmatprep.mubr.f32.mxu0 0.0
        %v6282 = vand.u32 %v5840, 4294901760
        %6283 = vmatmul.mubr.f32.gmra.mrb[0].mxu0 %v6282
        %v6284 = vpop.f32.mrb[0].mxu0
        %v6285 = vadd.f32 %v6213, %v6284
        %v6286 = vpop.f32.mrb[0].mxu0
        %6287 = vdwg.mxu0
        %6288 = vrot.lane.b32.xlu0 %v771, 104
        %v6289 = vpop.permute.xlu0 %6288
        %6290 = vrot.lane.b32.xlu0 %v771, 72
        %v6291 = vpop.permute.xlu0 %6290
        %v6292 = vsel %vm777, %v6289, 0
        %v6294 = vsel %vm777, %v6291, 0
        %6296 = vmatprep.subr.mxu0 0.0
        %v6297 = vand.u32 %v6294, 4294901760
        %6298 = vmatpush1.xpose.msra.mxu0 %v6297
        %6299 = vmatprep.subr.mxu0 0.0
        %6300 = vmatpush1.xpose.msra.mxu0 0.0
        %6301 = vmatprep.subr.mxu0 0.0
        %6302 = vmatpush1.xpose.msra.mxu0 0.0
        %6303 = vmatprep.subr.mxu0 0.0
        %6304 = vmatpush1.xpose.msra.mxu0 0.0
        %6305 = vmatprep.subr.mxu0 0.0
        %6306 = vmatpush1.xpose.msra.mxu0 0.0
        %6307 = vmatprep.subr.mxu0 0.0
        %6308 = vmatpush1.xpose.msra.mxu0 0.0
        %6309 = vmatprep.subr.mxu0 0.0
        %6310 = vmatpush1.xpose.msra.mxu0 0.0
        %6311 = vmatprep.subr.mxu0 0.0
        %6312 = vmatpush1.xpose.msra.mxu0 0.0
        %6313 = vmatprep.subr.mxu0 0.0
        %6314 = vmatpush1.xpose.msra.mxu0 0.0
        %6315 = vmatprep.subr.mxu0 0.0
        %6316 = vmatpush1.xpose.msra.mxu0 0.0
        %6317 = vmatprep.subr.mxu0 0.0
        %6318 = vmatpush1.xpose.msra.mxu0 0.0
        %6319 = vmatprep.subr.mxu0 0.0
        %6320 = vmatpush1.xpose.msra.mxu0 0.0
        %6321 = vmatprep.subr.mxu0 0.0
        %6322 = vmatpush1.xpose.msra.mxu0 0.0
        %6323 = vmatprep.subr.mxu0 0.0
        %6324 = vmatpush1.xpose.msra.mxu0 0.0
        %6325 = vmatprep.subr.mxu0 0.0
        %6326 = vmatpush1.xpose.msra.mxu0 0.0
        %6327 = vmatprep.subr.mxu0 0.0
        %6328 = vmatpush1.xpose.msra.mxu0 0.0
        %6329 = vmatprep.subr.mxu0 0.0
        %6330 = vmatpush1.xpose.msra.mxu0 0.0
        %6331 = vmatprep.subr.mxu0 0.0
        %6332 = vmatpush1.xpose.msra.mxu0 0.0
        %6333 = vmatprep.subr.mxu0 0.0
        %6334 = vmatpush1.xpose.msra.mxu0 0.0
        %6335 = vmatprep.subr.mxu0 0.0
        %6336 = vmatpush1.xpose.msra.mxu0 0.0
        %6337 = vmatprep.subr.mxu0 0.0
        %6338 = vmatpush1.xpose.msra.mxu0 0.0
        %6339 = vmatprep.subr.mxu0 0.0
        %6340 = vmatpush1.xpose.msra.mxu0 0.0
        %6341 = vmatprep.subr.mxu0 0.0
        %6342 = vmatpush1.xpose.msra.mxu0 0.0
        %6343 = vmatprep.subr.mxu0 0.0
        %6344 = vmatpush1.xpose.msra.mxu0 0.0
        %6345 = vmatprep.subr.mxu0 0.0
        %6346 = vmatpush1.xpose.msra.mxu0 0.0
        %6347 = vmatprep.subr.mxu0 0.0
        %6348 = vmatpush1.xpose.msra.mxu0 0.0
        %6349 = vmatprep.subr.mxu0 0.0
        %6350 = vmatpush1.xpose.msra.mxu0 0.0
        %6351 = vmatprep.subr.mxu0 0.0
        %6352 = vmatpush1.xpose.msra.mxu0 0.0
        %6353 = vmatprep.subr.mxu0 0.0
        %6354 = vmatpush1.xpose.msra.mxu0 0.0
        %6355 = vmatprep.subr.mxu0 0.0
        %6356 = vmatpush1.xpose.msra.mxu0 0.0
        %6357 = vmatprep.subr.mxu0 0.0
        %6358 = vmatpush1.xpose.msra.mxu0 0.0
        %6359 = vmatprep.subr.mxu0 0.0
        %6360 = vmatpush1.xpose.msra.mxu0 0.0
        %6361 = vmatprep.mubr.f32.mxu0 0.0
        %v6362 = vand.u32 %v6292, 4294901760
        %v6363 = vsub.f32 %v6292, %v6362
        %v6364 = vand.u32 %v6363, 4294901760
        %v6365 = vsub.f32 %v6363, %v6364
        %v6366 = vand.u32 %v6365, 4294901760
        %6367 = vmatmul.mubr.f32.gmra.mrb[0].mxu0 %v6366
        %v6368 = vpop.f32.mrb[0].mxu0
        %v6369 = vadd.f32 0.0, %v6368
        %v6370 = vpop.f32.mrb[0].mxu0
        %6371 = vdwg.mxu0
        %6372 = vmatprep.subr.mxu0 0.0
        %v6373 = vand.u32 %v6294, 4294901760
        %v6374 = vsub.f32 %v6294, %v6373
        %v6375 = vand.u32 %v6374, 4294901760
        %v6376 = vsub.f32 %v6374, %v6375
        %v6377 = vand.u32 %v6376, 4294901760
        %6378 = vmatpush1.xpose.msra.mxu0 %v6377
        %6379 = vmatprep.subr.mxu0 0.0
        %6380 = vmatpush1.xpose.msra.mxu0 0.0
        %6381 = vmatprep.subr.mxu0 0.0
        %6382 = vmatpush1.xpose.msra.mxu0 0.0
        %6383 = vmatprep.subr.mxu0 0.0
        %6384 = vmatpush1.xpose.msra.mxu0 0.0
        %6385 = vmatprep.subr.mxu0 0.0
        %6386 = vmatpush1.xpose.msra.mxu0 0.0
        %6387 = vmatprep.subr.mxu0 0.0
        %6388 = vmatpush1.xpose.msra.mxu0 0.0
        %6389 = vmatprep.subr.mxu0 0.0
        %6390 = vmatpush1.xpose.msra.mxu0 0.0
        %6391 = vmatprep.subr.mxu0 0.0
        %6392 = vmatpush1.xpose.msra.mxu0 0.0
        %6393 = vmatprep.subr.mxu0 0.0
        %6394 = vmatpush1.xpose.msra.mxu0 0.0
        %6395 = vmatprep.subr.mxu0 0.0
        %6396 = vmatpush1.xpose.msra.mxu0 0.0
        %6397 = vmatprep.subr.mxu0 0.0
        %6398 = vmatpush1.xpose.msra.mxu0 0.0
        %6399 = vmatprep.subr.mxu0 0.0
        %6400 = vmatpush1.xpose.msra.mxu0 0.0
        %6401 = vmatprep.subr.mxu0 0.0
        %6402 = vmatpush1.xpose.msra.mxu0 0.0
        %6403 = vmatprep.subr.mxu0 0.0
        %6404 = vmatpush1.xpose.msra.mxu0 0.0
        %6405 = vmatprep.subr.mxu0 0.0
        %6406 = vmatpush1.xpose.msra.mxu0 0.0
        %6407 = vmatprep.subr.mxu0 0.0
        %6408 = vmatpush1.xpose.msra.mxu0 0.0
        %6409 = vmatprep.subr.mxu0 0.0
        %6410 = vmatpush1.xpose.msra.mxu0 0.0
        %6411 = vmatprep.subr.mxu0 0.0
        %6412 = vmatpush1.xpose.msra.mxu0 0.0
        %6413 = vmatprep.subr.mxu0 0.0
        %6414 = vmatpush1.xpose.msra.mxu0 0.0
        %6415 = vmatprep.subr.mxu0 0.0
        %6416 = vmatpush1.xpose.msra.mxu0 0.0
        %6417 = vmatprep.subr.mxu0 0.0
        %6418 = vmatpush1.xpose.msra.mxu0 0.0
        %6419 = vmatprep.subr.mxu0 0.0
        %6420 = vmatpush1.xpose.msra.mxu0 0.0
        %6421 = vmatprep.subr.mxu0 0.0
        %6422 = vmatpush1.xpose.msra.mxu0 0.0
        %6423 = vmatprep.subr.mxu0 0.0
        %6424 = vmatpush1.xpose.msra.mxu0 0.0
        %6425 = vmatprep.subr.mxu0 0.0
        %6426 = vmatpush1.xpose.msra.mxu0 0.0
        %6427 = vmatprep.subr.mxu0 0.0
        %6428 = vmatpush1.xpose.msra.mxu0 0.0
        %6429 = vmatprep.subr.mxu0 0.0
        %6430 = vmatpush1.xpose.msra.mxu0 0.0
        %6431 = vmatprep.subr.mxu0 0.0
        %6432 = vmatpush1.xpose.msra.mxu0 0.0
        %6433 = vmatprep.subr.mxu0 0.0
        %6434 = vmatpush1.xpose.msra.mxu0 0.0
        %6435 = vmatprep.subr.mxu0 0.0
        %6436 = vmatpush1.xpose.msra.mxu0 0.0
        %6437 = vmatprep.subr.mxu0 0.0
        %6438 = vmatpush1.xpose.msra.mxu0 0.0
        %6439 = vmatprep.subr.mxu0 0.0
        %6440 = vmatpush1.xpose.msra.mxu0 0.0
        %6441 = vmatprep.mubr.f32.mxu0 0.0
        %v6442 = vand.u32 %v6292, 4294901760
        %6443 = vmatmul.mubr.f32.gmra.mrb[0].mxu0 %v6442
        %v6444 = vpop.f32.mrb[0].mxu0
        %v6445 = vadd.f32 %v6369, %v6444
        %v6446 = vpop.f32.mrb[0].mxu0
        %6447 = vdwg.mxu0
        %6448 = vmatprep.subr.mxu0 0.0
        %v6449 = vand.u32 %v6294, 4294901760
        %v6450 = vsub.f32 %v6294, %v6449
        %6451 = vmatpush1.xpose.msra.mxu0 %v6450
        %6452 = vmatprep.subr.mxu0 0.0
        %6453 = vmatpush1.xpose.msra.mxu0 0.0
        %6454 = vmatprep.subr.mxu0 0.0
        %6455 = vmatpush1.xpose.msra.mxu0 0.0
        %6456 = vmatprep.subr.mxu0 0.0
        %6457 = vmatpush1.xpose.msra.mxu0 0.0
        %6458 = vmatprep.subr.mxu0 0.0
        %6459 = vmatpush1.xpose.msra.mxu0 0.0
        %6460 = vmatprep.subr.mxu0 0.0
        %6461 = vmatpush1.xpose.msra.mxu0 0.0
        %6462 = vmatprep.subr.mxu0 0.0
        %6463 = vmatpush1.xpose.msra.mxu0 0.0
        %6464 = vmatprep.subr.mxu0 0.0
        %6465 = vmatpush1.xpose.msra.mxu0 0.0
        %6466 = vmatprep.subr.mxu0 0.0
        %6467 = vmatpush1.xpose.msra.mxu0 0.0
        %6468 = vmatprep.subr.mxu0 0.0
        %6469 = vmatpush1.xpose.msra.mxu0 0.0
        %6470 = vmatprep.subr.mxu0 0.0
        %6471 = vmatpush1.xpose.msra.mxu0 0.0
        %6472 = vmatprep.subr.mxu0 0.0
        %6473 = vmatpush1.xpose.msra.mxu0 0.0
        %6474 = vmatprep.subr.mxu0 0.0
        %6475 = vmatpush1.xpose.msra.mxu0 0.0
        %6476 = vmatprep.subr.mxu0 0.0
        %6477 = vmatpush1.xpose.msra.mxu0 0.0
        %6478 = vmatprep.subr.mxu0 0.0
        %6479 = vmatpush1.xpose.msra.mxu0 0.0
        %6480 = vmatprep.subr.mxu0 0.0
        %6481 = vmatpush1.xpose.msra.mxu0 0.0
        %6482 = vmatprep.subr.mxu0 0.0
        %6483 = vmatpush1.xpose.msra.mxu0 0.0
        %6484 = vmatprep.subr.mxu0 0.0
        %6485 = vmatpush1.xpose.msra.mxu0 0.0
        %6486 = vmatprep.subr.mxu0 0.0
        %6487 = vmatpush1.xpose.msra.mxu0 0.0
        %6488 = vmatprep.subr.mxu0 0.0
        %6489 = vmatpush1.xpose.msra.mxu0 0.0
        %6490 = vmatprep.subr.mxu0 0.0
        %6491 = vmatpush1.xpose.msra.mxu0 0.0
        %6492 = vmatprep.subr.mxu0 0.0
        %6493 = vmatpush1.xpose.msra.mxu0 0.0
        %6494 = vmatprep.subr.mxu0 0.0
        %6495 = vmatpush1.xpose.msra.mxu0 0.0
        %6496 = vmatprep.subr.mxu0 0.0
        %6497 = vmatpush1.xpose.msra.mxu0 0.0
        %6498 = vmatprep.subr.mxu0 0.0
        %6499 = vmatpush1.xpose.msra.mxu0 0.0
        %6500 = vmatprep.subr.mxu0 0.0
        %6501 = vmatpush1.xpose.msra.mxu0 0.0
        %6502 = vmatprep.subr.mxu0 0.0
        %6503 = vmatpush1.xpose.msra.mxu0 0.0
        %6504 = vmatprep.subr.mxu0 0.0
        %6505 = vmatpush1.xpose.msra.mxu0 0.0
        %6506 = vmatprep.subr.mxu0 0.0
        %6507 = vmatpush1.xpose.msra.mxu0 0.0
        %6508 = vmatprep.subr.mxu0 0.0
        %6509 = vmatpush1.xpose.msra.mxu0 0.0
        %6510 = vmatprep.subr.mxu0 0.0
        %6511 = vmatpush1.xpose.msra.mxu0 0.0
        %6512 = vmatprep.subr.mxu0 0.0
        %6513 = vmatpush1.xpose.msra.mxu0 0.0
        %6514 = vmatprep.mubr.f32.mxu0 0.0
        %v6515 = vand.u32 %v6292, 4294901760
        %v6516 = vsub.f32 %v6292, %v6515
        %6517 = vmatmul.mubr.f32.gmra.mrb[0].mxu0 %v6516
        %v6518 = vpop.f32.mrb[0].mxu0
        %v6519 = vadd.f32 %v6445, %v6518
        %v6520 = vpop.f32.mrb[0].mxu0
        %6521 = vdwg.mxu0
        %6522 = vmatprep.subr.mxu0 0.0
        %v6523 = vand.u32 %v6294, 4294901760
        %6524 = vmatpush1.xpose.msra.mxu0 %v6523
        %6525 = vmatprep.subr.mxu0 0.0
        %6526 = vmatpush1.xpose.msra.mxu0 0.0
        %6527 = vmatprep.subr.mxu0 0.0
        %6528 = vmatpush1.xpose.msra.mxu0 0.0
        %6529 = vmatprep.subr.mxu0 0.0
        %6530 = vmatpush1.xpose.msra.mxu0 0.0
        %6531 = vmatprep.subr.mxu0 0.0
        %6532 = vmatpush1.xpose.msra.mxu0 0.0
        %6533 = vmatprep.subr.mxu0 0.0
        %6534 = vmatpush1.xpose.msra.mxu0 0.0
        %6535 = vmatprep.subr.mxu0 0.0
        %6536 = vmatpush1.xpose.msra.mxu0 0.0
        %6537 = vmatprep.subr.mxu0 0.0
        %6538 = vmatpush1.xpose.msra.mxu0 0.0
        %6539 = vmatprep.subr.mxu0 0.0
        %6540 = vmatpush1.xpose.msra.mxu0 0.0
        %6541 = vmatprep.subr.mxu0 0.0
        %6542 = vmatpush1.xpose.msra.mxu0 0.0
        %6543 = vmatprep.subr.mxu0 0.0
        %6544 = vmatpush1.xpose.msra.mxu0 0.0
        %6545 = vmatprep.subr.mxu0 0.0
        %6546 = vmatpush1.xpose.msra.mxu0 0.0
        %6547 = vmatprep.subr.mxu0 0.0
        %6548 = vmatpush1.xpose.msra.mxu0 0.0
        %6549 = vmatprep.subr.mxu0 0.0
        %6550 = vmatpush1.xpose.msra.mxu0 0.0
        %6551 = vmatprep.subr.mxu0 0.0
        %6552 = vmatpush1.xpose.msra.mxu0 0.0
        %6553 = vmatprep.subr.mxu0 0.0
        %6554 = vmatpush1.xpose.msra.mxu0 0.0
        %6555 = vmatprep.subr.mxu0 0.0
        %6556 = vmatpush1.xpose.msra.mxu0 0.0
        %6557 = vmatprep.subr.mxu0 0.0
        %6558 = vmatpush1.xpose.msra.mxu0 0.0
        %6559 = vmatprep.subr.mxu0 0.0
        %6560 = vmatpush1.xpose.msra.mxu0 0.0
        %6561 = vmatprep.subr.mxu0 0.0
        %6562 = vmatpush1.xpose.msra.mxu0 0.0
        %6563 = vmatprep.subr.mxu0 0.0
        %6564 = vmatpush1.xpose.msra.mxu0 0.0
        %6565 = vmatprep.subr.mxu0 0.0
        %6566 = vmatpush1.xpose.msra.mxu0 0.0
        %6567 = vmatprep.subr.mxu0 0.0
        %6568 = vmatpush1.xpose.msra.mxu0 0.0
        %6569 = vmatprep.subr.mxu0 0.0
        %6570 = vmatpush1.xpose.msra.mxu0 0.0
        %6571 = vmatprep.subr.mxu0 0.0
        %6572 = vmatpush1.xpose.msra.mxu0 0.0
        %6573 = vmatprep.subr.mxu0 0.0
        %6574 = vmatpush1.xpose.msra.mxu0 0.0
        %6575 = vmatprep.subr.mxu0 0.0
        %6576 = vmatpush1.xpose.msra.mxu0 0.0
        %6577 = vmatprep.subr.mxu0 0.0
        %6578 = vmatpush1.xpose.msra.mxu0 0.0
        %6579 = vmatprep.subr.mxu0 0.0
        %6580 = vmatpush1.xpose.msra.mxu0 0.0
        %6581 = vmatprep.subr.mxu0 0.0
        %6582 = vmatpush1.xpose.msra.mxu0 0.0
        %6583 = vmatprep.subr.mxu0 0.0
        %6584 = vmatpush1.xpose.msra.mxu0 0.0
        %6585 = vmatprep.subr.mxu0 0.0
        %6586 = vmatpush1.xpose.msra.mxu0 0.0
        %6587 = vmatprep.mubr.f32.mxu0 0.0
        %v6588 = vand.u32 %v6292, 4294901760
        %v6589 = vsub.f32 %v6292, %v6588
        %v6590 = vand.u32 %v6589, 4294901760
        %6591 = vmatmul.mubr.f32.gmra.mrb[0].mxu0 %v6590
        %v6592 = vpop.f32.mrb[0].mxu0
        %v6593 = vadd.f32 %v6519, %v6592
        %v6594 = vpop.f32.mrb[0].mxu0
        %6595 = vdwg.mxu0
        %6596 = vmatprep.subr.mxu0 0.0
        %v6597 = vand.u32 %v6294, 4294901760
        %v6598 = vsub.f32 %v6294, %v6597
        %v6599 = vand.u32 %v6598, 4294901760
        %6600 = vmatpush1.xpose.msra.mxu0 %v6599
        %6601 = vmatprep.subr.mxu0 0.0
        %6602 = vmatpush1.xpose.msra.mxu0 0.0
        %6603 = vmatprep.subr.mxu0 0.0
        %6604 = vmatpush1.xpose.msra.mxu0 0.0
        %6605 = vmatprep.subr.mxu0 0.0
        %6606 = vmatpush1.xpose.msra.mxu0 0.0
        %6607 = vmatprep.subr.mxu0 0.0
        %6608 = vmatpush1.xpose.msra.mxu0 0.0
        %6609 = vmatprep.subr.mxu0 0.0
        %6610 = vmatpush1.xpose.msra.mxu0 0.0
        %6611 = vmatprep.subr.mxu0 0.0
        %6612 = vmatpush1.xpose.msra.mxu0 0.0
        %6613 = vmatprep.subr.mxu0 0.0
        %6614 = vmatpush1.xpose.msra.mxu0 0.0
        %6615 = vmatprep.subr.mxu0 0.0
        %6616 = vmatpush1.xpose.msra.mxu0 0.0
        %6617 = vmatprep.subr.mxu0 0.0
        %6618 = vmatpush1.xpose.msra.mxu0 0.0
        %6619 = vmatprep.subr.mxu0 0.0
        %6620 = vmatpush1.xpose.msra.mxu0 0.0
        %6621 = vmatprep.subr.mxu0 0.0
        %6622 = vmatpush1.xpose.msra.mxu0 0.0
        %6623 = vmatprep.subr.mxu0 0.0
        %6624 = vmatpush1.xpose.msra.mxu0 0.0
        %6625 = vmatprep.subr.mxu0 0.0
        %6626 = vmatpush1.xpose.msra.mxu0 0.0
        %6627 = vmatprep.subr.mxu0 0.0
        %6628 = vmatpush1.xpose.msra.mxu0 0.0
        %6629 = vmatprep.subr.mxu0 0.0
        %6630 = vmatpush1.xpose.msra.mxu0 0.0
        %6631 = vmatprep.subr.mxu0 0.0
        %6632 = vmatpush1.xpose.msra.mxu0 0.0
        %6633 = vmatprep.subr.mxu0 0.0
        %6634 = vmatpush1.xpose.msra.mxu0 0.0
        %6635 = vmatprep.subr.mxu0 0.0
        %6636 = vmatpush1.xpose.msra.mxu0 0.0
        %6637 = vmatprep.subr.mxu0 0.0
        %6638 = vmatpush1.xpose.msra.mxu0 0.0
        %6639 = vmatprep.subr.mxu0 0.0
        %6640 = vmatpush1.xpose.msra.mxu0 0.0
        %6641 = vmatprep.subr.mxu0 0.0
        %6642 = vmatpush1.xpose.msra.mxu0 0.0
        %6643 = vmatprep.subr.mxu0 0.0
        %6644 = vmatpush1.xpose.msra.mxu0 0.0
        %6645 = vmatprep.subr.mxu0 0.0
        %6646 = vmatpush1.xpose.msra.mxu0 0.0
        %6647 = vmatprep.subr.mxu0 0.0
        %6648 = vmatpush1.xpose.msra.mxu0 0.0
        %6649 = vmatprep.subr.mxu0 0.0
        %6650 = vmatpush1.xpose.msra.mxu0 0.0
        %6651 = vmatprep.subr.mxu0 0.0
        %6652 = vmatpush1.xpose.msra.mxu0 0.0
        %6653 = vmatprep.subr.mxu0 0.0
        %6654 = vmatpush1.xpose.msra.mxu0 0.0
        %6655 = vmatprep.subr.mxu0 0.0
        %6656 = vmatpush1.xpose.msra.mxu0 0.0
        %6657 = vmatprep.subr.mxu0 0.0
        %6658 = vmatpush1.xpose.msra.mxu0 0.0
        %6659 = vmatprep.subr.mxu0 0.0
        %6660 = vmatpush1.xpose.msra.mxu0 0.0
        %6661 = vmatprep.subr.mxu0 0.0
        %6662 = vmatpush1.xpose.msra.mxu0 0.0
        %6663 = vmatprep.mubr.f32.mxu0 0.0
        %v6664 = vand.u32 %v6292, 4294901760
        %6665 = vmatmul.mubr.f32.gmra.mrb[0].mxu0 %v6664
        %v6666 = vpop.f32.mrb[0].mxu0
        %v6667 = vadd.f32 %v6593, %v6666
        %v6668 = vpop.f32.mrb[0].mxu0
        %6669 = vdwg.mxu0
        %6670 = vmatprep.subr.mxu0 0.0
        %v6671 = vand.u32 %v6294, 4294901760
        %6672 = vmatpush1.xpose.msra.mxu0 %v6671
        %6673 = vmatprep.subr.mxu0 0.0
        %6674 = vmatpush1.xpose.msra.mxu0 0.0
        %6675 = vmatprep.subr.mxu0 0.0
        %6676 = vmatpush1.xpose.msra.mxu0 0.0
        %6677 = vmatprep.subr.mxu0 0.0
        %6678 = vmatpush1.xpose.msra.mxu0 0.0
        %6679 = vmatprep.subr.mxu0 0.0
        %6680 = vmatpush1.xpose.msra.mxu0 0.0
        %6681 = vmatprep.subr.mxu0 0.0
        %6682 = vmatpush1.xpose.msra.mxu0 0.0
        %6683 = vmatprep.subr.mxu0 0.0
        %6684 = vmatpush1.xpose.msra.mxu0 0.0
        %6685 = vmatprep.subr.mxu0 0.0
        %6686 = vmatpush1.xpose.msra.mxu0 0.0
        %6687 = vmatprep.subr.mxu0 0.0
        %6688 = vmatpush1.xpose.msra.mxu0 0.0
        %6689 = vmatprep.subr.mxu0 0.0
        %6690 = vmatpush1.xpose.msra.mxu0 0.0
        %6691 = vmatprep.subr.mxu0 0.0
        %6692 = vmatpush1.xpose.msra.mxu0 0.0
        %6693 = vmatprep.subr.mxu0 0.0
        %6694 = vmatpush1.xpose.msra.mxu0 0.0
        %6695 = vmatprep.subr.mxu0 0.0
        %6696 = vmatpush1.xpose.msra.mxu0 0.0
        %6697 = vmatprep.subr.mxu0 0.0
        %6698 = vmatpush1.xpose.msra.mxu0 0.0
        %6699 = vmatprep.subr.mxu0 0.0
        %6700 = vmatpush1.xpose.msra.mxu0 0.0
        %6701 = vmatprep.subr.mxu0 0.0
        %6702 = vmatpush1.xpose.msra.mxu0 0.0
        %6703 = vmatprep.subr.mxu0 0.0
        %6704 = vmatpush1.xpose.msra.mxu0 0.0
        %6705 = vmatprep.subr.mxu0 0.0
        %6706 = vmatpush1.xpose.msra.mxu0 0.0
        %6707 = vmatprep.subr.mxu0 0.0
        %6708 = vmatpush1.xpose.msra.mxu0 0.0
        %6709 = vmatprep.subr.mxu0 0.0
        %6710 = vmatpush1.xpose.msra.mxu0 0.0
        %6711 = vmatprep.subr.mxu0 0.0
        %6712 = vmatpush1.xpose.msra.mxu0 0.0
        %6713 = vmatprep.subr.mxu0 0.0
        %6714 = vmatpush1.xpose.msra.mxu0 0.0
        %6715 = vmatprep.subr.mxu0 0.0
        %6716 = vmatpush1.xpose.msra.mxu0 0.0
        %6717 = vmatprep.subr.mxu0 0.0
        %6718 = vmatpush1.xpose.msra.mxu0 0.0
        %6719 = vmatprep.subr.mxu0 0.0
        %6720 = vmatpush1.xpose.msra.mxu0 0.0
        %6721 = vmatprep.subr.mxu0 0.0
        %6722 = vmatpush1.xpose.msra.mxu0 0.0
        %6723 = vmatprep.subr.mxu0 0.0
        %6724 = vmatpush1.xpose.msra.mxu0 0.0
        %6725 = vmatprep.subr.mxu0 0.0
        %6726 = vmatpush1.xpose.msra.mxu0 0.0
        %6727 = vmatprep.subr.mxu0 0.0
        %6728 = vmatpush1.xpose.msra.mxu0 0.0
        %6729 = vmatprep.subr.mxu0 0.0
        %6730 = vmatpush1.xpose.msra.mxu0 0.0
        %6731 = vmatprep.subr.mxu0 0.0
        %6732 = vmatpush1.xpose.msra.mxu0 0.0
        %6733 = vmatprep.subr.mxu0 0.0
        %6734 = vmatpush1.xpose.msra.mxu0 0.0
        %6735 = vmatprep.mubr.f32.mxu0 0.0
        %v6736 = vand.u32 %v6292, 4294901760
        %6737 = vmatmul.mubr.f32.gmra.mrb[0].mxu0 %v6736
        %v6738 = vpop.f32.mrb[0].mxu0
        %v6739 = vadd.f32 %v6667, %v6738
        %v6740 = vpop.f32.mrb[0].mxu0
        %6741 = vdwg.mxu0
        %v6742 = vsel %vm1228, %v6739, -inf
        %6743 = vmax.xlane.f32.xlu0 %v6742
        %v6744 = vpop.xlane.xlu0 %6743
        %v6745 = vsub.f32 %v6739, %v6744
        %v6746 = vmul.f32 %v6745, 1.442695
        %v6747 = vpow.pop %v6746
        %v6748 = vsel %vm1228, %v6747, 0.0
        %6749 = vadd.xlane.f32.xlu0 %v6748
        %v6750 = vpop.xlane.xlu0 %6749
        %v6751 = vrcp.pop %v6750
        %v6752 = vmul.f32 %v6747, %v6751
        %s6753 = scalar_lea.vmem %s279, 48 [#allocation9]
        %6754 = vst.msk [vmem:[%s6753] sm:$0xff] %vm1228, %v6752
        %6755 = vrot.lane.b32.xlu0 %v771, 40
        %v6756 = vpop.permute.xlu0 %6755
        %v6759 = vsel %vm1228, %v6752, 0
        %6761 = vmatprep.subr.mxu0 0.0
        %v6762 = vand.u32 %v6756, 4294901760
        %6763 = vmatpush1.msra.mxu0 %v6762
        %6764 = vmatprep.subr.mxu0 0.0
        %6765 = vmatpush1.msra.mxu0 0.0
        %6766 = vmatprep.subr.mxu0 0.0
        %6767 = vmatpush1.msra.mxu0 0.0
        %6768 = vmatprep.subr.mxu0 0.0
        %6769 = vmatpush1.msra.mxu0 0.0
        %6770 = vmatprep.subr.mxu0 0.0
        %6771 = vmatpush1.msra.mxu0 0.0
        %6772 = vmatprep.subr.mxu0 0.0
        %6773 = vmatpush1.msra.mxu0 0.0
        %6774 = vmatprep.subr.mxu0 0.0
        %6775 = vmatpush1.msra.mxu0 0.0
        %6776 = vmatprep.subr.mxu0 0.0
        %6777 = vmatpush1.msra.mxu0 0.0
        %6778 = vmatprep.subr.mxu0 0.0
        %6779 = vmatpush1.msra.mxu0 0.0
        %6780 = vmatprep.subr.mxu0 0.0
        %6781 = vmatpush1.msra.mxu0 0.0
        %6782 = vmatprep.subr.mxu0 0.0
        %6783 = vmatpush1.msra.mxu0 0.0
        %6784 = vmatprep.subr.mxu0 0.0
        %6785 = vmatpush1.msra.mxu0 0.0
        %6786 = vmatprep.subr.mxu0 0.0
        %6787 = vmatpush1.msra.mxu0 0.0
        %6788 = vmatprep.subr.mxu0 0.0
        %6789 = vmatpush1.msra.mxu0 0.0
        %6790 = vmatprep.subr.mxu0 0.0
        %6791 = vmatpush1.msra.mxu0 0.0
        %6792 = vmatprep.subr.mxu0 0.0
        %6793 = vmatpush1.msra.mxu0 0.0
        %6794 = vmatprep.subr.mxu0 0.0
        %6795 = vmatpush1.msra.mxu0 0.0
        %6796 = vmatprep.subr.mxu0 0.0
        %6797 = vmatpush1.msra.mxu0 0.0
        %6798 = vmatprep.subr.mxu0 0.0
        %6799 = vmatpush1.msra.mxu0 0.0
        %6800 = vmatprep.subr.mxu0 0.0
        %6801 = vmatpush1.msra.mxu0 0.0
        %6802 = vmatprep.subr.mxu0 0.0
        %6803 = vmatpush1.msra.mxu0 0.0
        %6804 = vmatprep.subr.mxu0 0.0
        %6805 = vmatpush1.msra.mxu0 0.0
        %6806 = vmatprep.subr.mxu0 0.0
        %6807 = vmatpush1.msra.mxu0 0.0
        %6808 = vmatprep.subr.mxu0 0.0
        %6809 = vmatpush1.msra.mxu0 0.0
        %6810 = vmatprep.subr.mxu0 0.0
        %6811 = vmatpush1.msra.mxu0 0.0
        %6812 = vmatprep.subr.mxu0 0.0
        %6813 = vmatpush1.msra.mxu0 0.0
        %6814 = vmatprep.subr.mxu0 0.0
        %6815 = vmatpush1.msra.mxu0 0.0
        %6816 = vmatprep.subr.mxu0 0.0
        %6817 = vmatpush1.msra.mxu0 0.0
        %6818 = vmatprep.subr.mxu0 0.0
        %6819 = vmatpush1.msra.mxu0 0.0
        %6820 = vmatprep.subr.mxu0 0.0
        %6821 = vmatpush1.msra.mxu0 0.0
        %6822 = vmatprep.subr.mxu0 0.0
        %6823 = vmatpush1.msra.mxu0 0.0
        %6824 = vmatprep.subr.mxu0 0.0
        %6825 = vmatpush1.msra.mxu0 0.0
        %6826 = vmatprep.mubr.f32.mxu0 0.0
        %v6827 = vand.u32 %v6759, 4294901760
        %v6828 = vsub.f32 %v6759, %v6827
        %v6829 = vand.u32 %v6828, 4294901760
        %v6830 = vsub.f32 %v6828, %v6829
        %v6831 = vand.u32 %v6830, 4294901760
        %6832 = vmatmul.mubr.f32.gmra.mrb[0].mxu0 %v6831
        %v6833 = vpop.f32.mrb[0].mxu0
        %v6834 = vadd.f32 0.0, %v6833
        %v6835 = vpop.f32.mrb[0].mxu0
        %6836 = vdwg.mxu0
        %6837 = vmatprep.subr.mxu0 0.0
        %v6838 = vand.u32 %v6756, 4294901760
        %v6839 = vsub.f32 %v6756, %v6838
        %v6840 = vand.u32 %v6839, 4294901760
        %v6841 = vsub.f32 %v6839, %v6840
        %v6842 = vand.u32 %v6841, 4294901760
        %6843 = vmatpush1.msra.mxu0 %v6842
        %6844 = vmatprep.subr.mxu0 0.0
        %6845 = vmatpush1.msra.mxu0 0.0
        %6846 = vmatprep.subr.mxu0 0.0
        %6847 = vmatpush1.msra.mxu0 0.0
        %6848 = vmatprep.subr.mxu0 0.0
        %6849 = vmatpush1.msra.mxu0 0.0
        %6850 = vmatprep.subr.mxu0 0.0
        %6851 = vmatpush1.msra.mxu0 0.0
        %6852 = vmatprep.subr.mxu0 0.0
        %6853 = vmatpush1.msra.mxu0 0.0
        %6854 = vmatprep.subr.mxu0 0.0
        %6855 = vmatpush1.msra.mxu0 0.0
        %6856 = vmatprep.subr.mxu0 0.0
        %6857 = vmatpush1.msra.mxu0 0.0
        %6858 = vmatprep.subr.mxu0 0.0
        %6859 = vmatpush1.msra.mxu0 0.0
        %6860 = vmatprep.subr.mxu0 0.0
        %6861 = vmatpush1.msra.mxu0 0.0
        %6862 = vmatprep.subr.mxu0 0.0
        %6863 = vmatpush1.msra.mxu0 0.0
        %6864 = vmatprep.subr.mxu0 0.0
        %6865 = vmatpush1.msra.mxu0 0.0
        %6866 = vmatprep.subr.mxu0 0.0
        %6867 = vmatpush1.msra.mxu0 0.0
        %6868 = vmatprep.subr.mxu0 0.0
        %6869 = vmatpush1.msra.mxu0 0.0
        %6870 = vmatprep.subr.mxu0 0.0
        %6871 = vmatpush1.msra.mxu0 0.0
        %6872 = vmatprep.subr.mxu0 0.0
        %6873 = vmatpush1.msra.mxu0 0.0
        %6874 = vmatprep.subr.mxu0 0.0
        %6875 = vmatpush1.msra.mxu0 0.0
        %6876 = vmatprep.subr.mxu0 0.0
        %6877 = vmatpush1.msra.mxu0 0.0
        %6878 = vmatprep.subr.mxu0 0.0
        %6879 = vmatpush1.msra.mxu0 0.0
        %6880 = vmatprep.subr.mxu0 0.0
        %6881 = vmatpush1.msra.mxu0 0.0
        %6882 = vmatprep.subr.mxu0 0.0
        %6883 = vmatpush1.msra.mxu0 0.0
        %6884 = vmatprep.subr.mxu0 0.0
        %6885 = vmatpush1.msra.mxu0 0.0
        %6886 = vmatprep.subr.mxu0 0.0
        %6887 = vmatpush1.msra.mxu0 0.0
        %6888 = vmatprep.subr.mxu0 0.0
        %6889 = vmatpush1.msra.mxu0 0.0
        %6890 = vmatprep.subr.mxu0 0.0
        %6891 = vmatpush1.msra.mxu0 0.0
        %6892 = vmatprep.subr.mxu0 0.0
        %6893 = vmatpush1.msra.mxu0 0.0
        %6894 = vmatprep.subr.mxu0 0.0
        %6895 = vmatpush1.msra.mxu0 0.0
        %6896 = vmatprep.subr.mxu0 0.0
        %6897 = vmatpush1.msra.mxu0 0.0
        %6898 = vmatprep.subr.mxu0 0.0
        %6899 = vmatpush1.msra.mxu0 0.0
        %6900 = vmatprep.subr.mxu0 0.0
        %6901 = vmatpush1.msra.mxu0 0.0
        %6902 = vmatprep.subr.mxu0 0.0
        %6903 = vmatpush1.msra.mxu0 0.0
        %6904 = vmatprep.subr.mxu0 0.0
        %6905 = vmatpush1.msra.mxu0 0.0
        %6906 = vmatprep.mubr.f32.mxu0 0.0
        %v6907 = vand.u32 %v6759, 4294901760
        %6908 = vmatmul.mubr.f32.gmra.mrb[0].mxu0 %v6907
        %v6909 = vpop.f32.mrb[0].mxu0
        %v6910 = vadd.f32 %v6834, %v6909
        %v6911 = vpop.f32.mrb[0].mxu0
        %6912 = vdwg.mxu0
        %6913 = vmatprep.subr.mxu0 0.0
        %v6914 = vand.u32 %v6756, 4294901760
        %v6915 = vsub.f32 %v6756, %v6914
        %6916 = vmatpush1.msra.mxu0 %v6915
        %6917 = vmatprep.subr.mxu0 0.0
        %6918 = vmatpush1.msra.mxu0 0.0
        %6919 = vmatprep.subr.mxu0 0.0
        %6920 = vmatpush1.msra.mxu0 0.0
        %6921 = vmatprep.subr.mxu0 0.0
        %6922 = vmatpush1.msra.mxu0 0.0
        %6923 = vmatprep.subr.mxu0 0.0
        %6924 = vmatpush1.msra.mxu0 0.0
        %6925 = vmatprep.subr.mxu0 0.0
        %6926 = vmatpush1.msra.mxu0 0.0
        %6927 = vmatprep.subr.mxu0 0.0
        %6928 = vmatpush1.msra.mxu0 0.0
        %6929 = vmatprep.subr.mxu0 0.0
        %6930 = vmatpush1.msra.mxu0 0.0
        %6931 = vmatprep.subr.mxu0 0.0
        %6932 = vmatpush1.msra.mxu0 0.0
        %6933 = vmatprep.subr.mxu0 0.0
        %6934 = vmatpush1.msra.mxu0 0.0
        %6935 = vmatprep.subr.mxu0 0.0
        %6936 = vmatpush1.msra.mxu0 0.0
        %6937 = vmatprep.subr.mxu0 0.0
        %6938 = vmatpush1.msra.mxu0 0.0
        %6939 = vmatprep.subr.mxu0 0.0
        %6940 = vmatpush1.msra.mxu0 0.0
        %6941 = vmatprep.subr.mxu0 0.0
        %6942 = vmatpush1.msra.mxu0 0.0
        %6943 = vmatprep.subr.mxu0 0.0
        %6944 = vmatpush1.msra.mxu0 0.0
        %6945 = vmatprep.subr.mxu0 0.0
        %6946 = vmatpush1.msra.mxu0 0.0
        %6947 = vmatprep.subr.mxu0 0.0
        %6948 = vmatpush1.msra.mxu0 0.0
        %6949 = vmatprep.subr.mxu0 0.0
        %6950 = vmatpush1.msra.mxu0 0.0
        %6951 = vmatprep.subr.mxu0 0.0
        %6952 = vmatpush1.msra.mxu0 0.0
        %6953 = vmatprep.subr.mxu0 0.0
        %6954 = vmatpush1.msra.mxu0 0.0
        %6955 = vmatprep.subr.mxu0 0.0
        %6956 = vmatpush1.msra.mxu0 0.0
        %6957 = vmatprep.subr.mxu0 0.0
        %6958 = vmatpush1.msra.mxu0 0.0
        %6959 = vmatprep.subr.mxu0 0.0
        %6960 = vmatpush1.msra.mxu0 0.0
        %6961 = vmatprep.subr.mxu0 0.0
        %6962 = vmatpush1.msra.mxu0 0.0
        %6963 = vmatprep.subr.mxu0 0.0
        %6964 = vmatpush1.msra.mxu0 0.0
        %6965 = vmatprep.subr.mxu0 0.0
        %6966 = vmatpush1.msra.mxu0 0.0
        %6967 = vmatprep.subr.mxu0 0.0
        %6968 = vmatpush1.msra.mxu0 0.0
        %6969 = vmatprep.subr.mxu0 0.0
        %6970 = vmatpush1.msra.mxu0 0.0
        %6971 = vmatprep.subr.mxu0 0.0
        %6972 = vmatpush1.msra.mxu0 0.0
        %6973 = vmatprep.subr.mxu0 0.0
        %6974 = vmatpush1.msra.mxu0 0.0
        %6975 = vmatprep.subr.mxu0 0.0
        %6976 = vmatpush1.msra.mxu0 0.0
        %6977 = vmatprep.subr.mxu0 0.0
        %6978 = vmatpush1.msra.mxu0 0.0
        %6979 = vmatprep.mubr.f32.mxu0 0.0
        %v6980 = vand.u32 %v6759, 4294901760
        %v6981 = vsub.f32 %v6759, %v6980
        %6982 = vmatmul.mubr.f32.gmra.mrb[0].mxu0 %v6981
        %v6983 = vpop.f32.mrb[0].mxu0
        %v6984 = vadd.f32 %v6910, %v6983
        %v6985 = vpop.f32.mrb[0].mxu0
        %6986 = vdwg.mxu0
        %6987 = vmatprep.subr.mxu0 0.0
        %v6988 = vand.u32 %v6756, 4294901760
        %6989 = vmatpush1.msra.mxu0 %v6988
        %6990 = vmatprep.subr.mxu0 0.0
        %6991 = vmatpush1.msra.mxu0 0.0
        %6992 = vmatprep.subr.mxu0 0.0
        %6993 = vmatpush1.msra.mxu0 0.0
        %6994 = vmatprep.subr.mxu0 0.0
        %6995 = vmatpush1.msra.mxu0 0.0
        %6996 = vmatprep.subr.mxu0 0.0
        %6997 = vmatpush1.msra.mxu0 0.0
        %6998 = vmatprep.subr.mxu0 0.0
        %6999 = vmatpush1.msra.mxu0 0.0
        %7000 = vmatprep.subr.mxu0 0.0
        %7001 = vmatpush1.msra.mxu0 0.0
        %7002 = vmatprep.subr.mxu0 0.0
        %7003 = vmatpush1.msra.mxu0 0.0
        %7004 = vmatprep.subr.mxu0 0.0
        %7005 = vmatpush1.msra.mxu0 0.0
        %7006 = vmatprep.subr.mxu0 0.0
        %7007 = vmatpush1.msra.mxu0 0.0
        %7008 = vmatprep.subr.mxu0 0.0
        %7009 = vmatpush1.msra.mxu0 0.0
        %7010 = vmatprep.subr.mxu0 0.0
        %7011 = vmatpush1.msra.mxu0 0.0
        %7012 = vmatprep.subr.mxu0 0.0
        %7013 = vmatpush1.msra.mxu0 0.0
        %7014 = vmatprep.subr.mxu0 0.0
        %7015 = vmatpush1.msra.mxu0 0.0
        %7016 = vmatprep.subr.mxu0 0.0
        %7017 = vmatpush1.msra.mxu0 0.0
        %7018 = vmatprep.subr.mxu0 0.0
        %7019 = vmatpush1.msra.mxu0 0.0
        %7020 = vmatprep.subr.mxu0 0.0
        %7021 = vmatpush1.msra.mxu0 0.0
        %7022 = vmatprep.subr.mxu0 0.0
        %7023 = vmatpush1.msra.mxu0 0.0
        %7024 = vmatprep.subr.mxu0 0.0
        %7025 = vmatpush1.msra.mxu0 0.0
        %7026 = vmatprep.subr.mxu0 0.0
        %7027 = vmatpush1.msra.mxu0 0.0
        %7028 = vmatprep.subr.mxu0 0.0
        %7029 = vmatpush1.msra.mxu0 0.0
        %7030 = vmatprep.subr.mxu0 0.0
        %7031 = vmatpush1.msra.mxu0 0.0
        %7032 = vmatprep.subr.mxu0 0.0
        %7033 = vmatpush1.msra.mxu0 0.0
        %7034 = vmatprep.subr.mxu0 0.0
        %7035 = vmatpush1.msra.mxu0 0.0
        %7036 = vmatprep.subr.mxu0 0.0
        %7037 = vmatpush1.msra.mxu0 0.0
        %7038 = vmatprep.subr.mxu0 0.0
        %7039 = vmatpush1.msra.mxu0 0.0
        %7040 = vmatprep.subr.mxu0 0.0
        %7041 = vmatpush1.msra.mxu0 0.0
        %7042 = vmatprep.subr.mxu0 0.0
        %7043 = vmatpush1.msra.mxu0 0.0
        %7044 = vmatprep.subr.mxu0 0.0
        %7045 = vmatpush1.msra.mxu0 0.0
        %7046 = vmatprep.subr.mxu0 0.0
        %7047 = vmatpush1.msra.mxu0 0.0
        %7048 = vmatprep.subr.mxu0 0.0
        %7049 = vmatpush1.msra.mxu0 0.0
        %7050 = vmatprep.subr.mxu0 0.0
        %7051 = vmatpush1.msra.mxu0 0.0
        %7052 = vmatprep.mubr.f32.mxu0 0.0
        %v7053 = vand.u32 %v6759, 4294901760
        %v7054 = vsub.f32 %v6759, %v7053
        %v7055 = vand.u32 %v7054, 4294901760
        %7056 = vmatmul.mubr.f32.gmra.mrb[0].mxu0 %v7055
        %v7057 = vpop.f32.mrb[0].mxu0
        %v7058 = vadd.f32 %v6984, %v7057
        %v7059 = vpop.f32.mrb[0].mxu0
        %7060 = vdwg.mxu0
        %7061 = vmatprep.subr.mxu0 0.0
        %v7062 = vand.u32 %v6756, 4294901760
        %v7063 = vsub.f32 %v6756, %v7062
        %v7064 = vand.u32 %v7063, 4294901760
        %7065 = vmatpush1.msra.mxu0 %v7064
        %7066 = vmatprep.subr.mxu0 0.0
        %7067 = vmatpush1.msra.mxu0 0.0
        %7068 = vmatprep.subr.mxu0 0.0
        %7069 = vmatpush1.msra.mxu0 0.0
        %7070 = vmatprep.subr.mxu0 0.0
        %7071 = vmatpush1.msra.mxu0 0.0
        %7072 = vmatprep.subr.mxu0 0.0
        %7073 = vmatpush1.msra.mxu0 0.0
        %7074 = vmatprep.subr.mxu0 0.0
        %7075 = vmatpush1.msra.mxu0 0.0
        %7076 = vmatprep.subr.mxu0 0.0
        %7077 = vmatpush1.msra.mxu0 0.0
        %7078 = vmatprep.subr.mxu0 0.0
        %7079 = vmatpush1.msra.mxu0 0.0
        %7080 = vmatprep.subr.mxu0 0.0
        %7081 = vmatpush1.msra.mxu0 0.0
        %7082 = vmatprep.subr.mxu0 0.0
        %7083 = vmatpush1.msra.mxu0 0.0
        %7084 = vmatprep.subr.mxu0 0.0
        %7085 = vmatpush1.msra.mxu0 0.0
        %7086 = vmatprep.subr.mxu0 0.0
        %7087 = vmatpush1.msra.mxu0 0.0
        %7088 = vmatprep.subr.mxu0 0.0
        %7089 = vmatpush1.msra.mxu0 0.0
        %7090 = vmatprep.subr.mxu0 0.0
        %7091 = vmatpush1.msra.mxu0 0.0
        %7092 = vmatprep.subr.mxu0 0.0
        %7093 = vmatpush1.msra.mxu0 0.0
        %7094 = vmatprep.subr.mxu0 0.0
        %7095 = vmatpush1.msra.mxu0 0.0
        %7096 = vmatprep.subr.mxu0 0.0
        %7097 = vmatpush1.msra.mxu0 0.0
        %7098 = vmatprep.subr.mxu0 0.0
        %7099 = vmatpush1.msra.mxu0 0.0
        %7100 = vmatprep.subr.mxu0 0.0
        %7101 = vmatpush1.msra.mxu0 0.0
        %7102 = vmatprep.subr.mxu0 0.0
        %7103 = vmatpush1.msra.mxu0 0.0
        %7104 = vmatprep.subr.mxu0 0.0
        %7105 = vmatpush1.msra.mxu0 0.0
        %7106 = vmatprep.subr.mxu0 0.0
        %7107 = vmatpush1.msra.mxu0 0.0
        %7108 = vmatprep.subr.mxu0 0.0
        %7109 = vmatpush1.msra.mxu0 0.0
        %7110 = vmatprep.subr.mxu0 0.0
        %7111 = vmatpush1.msra.mxu0 0.0
        %7112 = vmatprep.subr.mxu0 0.0
        %7113 = vmatpush1.msra.mxu0 0.0
        %7114 = vmatprep.subr.mxu0 0.0
        %7115 = vmatpush1.msra.mxu0 0.0
        %7116 = vmatprep.subr.mxu0 0.0
        %7117 = vmatpush1.msra.mxu0 0.0
        %7118 = vmatprep.subr.mxu0 0.0
        %7119 = vmatpush1.msra.mxu0 0.0
        %7120 = vmatprep.subr.mxu0 0.0
        %7121 = vmatpush1.msra.mxu0 0.0
        %7122 = vmatprep.subr.mxu0 0.0
        %7123 = vmatpush1.msra.mxu0 0.0
        %7124 = vmatprep.subr.mxu0 0.0
        %7125 = vmatpush1.msra.mxu0 0.0
        %7126 = vmatprep.subr.mxu0 0.0
        %7127 = vmatpush1.msra.mxu0 0.0
        %7128 = vmatprep.mubr.f32.mxu0 0.0
        %v7129 = vand.u32 %v6759, 4294901760
        %7130 = vmatmul.mubr.f32.gmra.mrb[0].mxu0 %v7129
        %v7131 = vpop.f32.mrb[0].mxu0
        %v7132 = vadd.f32 %v7058, %v7131
        %v7133 = vpop.f32.mrb[0].mxu0
        %7134 = vdwg.mxu0
        %7135 = vmatprep.subr.mxu0 0.0
        %v7136 = vand.u32 %v6756, 4294901760
        %7137 = vmatpush1.msra.mxu0 %v7136
        %7138 = vmatprep.subr.mxu0 0.0
        %7139 = vmatpush1.msra.mxu0 0.0
        %7140 = vmatprep.subr.mxu0 0.0
        %7141 = vmatpush1.msra.mxu0 0.0
        %7142 = vmatprep.subr.mxu0 0.0
        %7143 = vmatpush1.msra.mxu0 0.0
        %7144 = vmatprep.subr.mxu0 0.0
        %7145 = vmatpush1.msra.mxu0 0.0
        %7146 = vmatprep.subr.mxu0 0.0
        %7147 = vmatpush1.msra.mxu0 0.0
        %7148 = vmatprep.subr.mxu0 0.0
        %7149 = vmatpush1.msra.mxu0 0.0
        %7150 = vmatprep.subr.mxu0 0.0
        %7151 = vmatpush1.msra.mxu0 0.0
        %7152 = vmatprep.subr.mxu0 0.0
        %7153 = vmatpush1.msra.mxu0 0.0
        %7154 = vmatprep.subr.mxu0 0.0
        %7155 = vmatpush1.msra.mxu0 0.0
        %7156 = vmatprep.subr.mxu0 0.0
        %7157 = vmatpush1.msra.mxu0 0.0
        %7158 = vmatprep.subr.mxu0 0.0
        %7159 = vmatpush1.msra.mxu0 0.0
        %7160 = vmatprep.subr.mxu0 0.0
        %7161 = vmatpush1.msra.mxu0 0.0
        %7162 = vmatprep.subr.mxu0 0.0
        %7163 = vmatpush1.msra.mxu0 0.0
        %7164 = vmatprep.subr.mxu0 0.0
        %7165 = vmatpush1.msra.mxu0 0.0
        %7166 = vmatprep.subr.mxu0 0.0
        %7167 = vmatpush1.msra.mxu0 0.0
        %7168 = vmatprep.subr.mxu0 0.0
        %7169 = vmatpush1.msra.mxu0 0.0
        %7170 = vmatprep.subr.mxu0 0.0
        %7171 = vmatpush1.msra.mxu0 0.0
        %7172 = vmatprep.subr.mxu0 0.0
        %7173 = vmatpush1.msra.mxu0 0.0
        %7174 = vmatprep.subr.mxu0 0.0
        %7175 = vmatpush1.msra.mxu0 0.0
        %7176 = vmatprep.subr.mxu0 0.0
        %7177 = vmatpush1.msra.mxu0 0.0
        %7178 = vmatprep.subr.mxu0 0.0
        %7179 = vmatpush1.msra.mxu0 0.0
        %7180 = vmatprep.subr.mxu0 0.0
        %7181 = vmatpush1.msra.mxu0 0.0
        %7182 = vmatprep.subr.mxu0 0.0
        %7183 = vmatpush1.msra.mxu0 0.0
        %7184 = vmatprep.subr.mxu0 0.0
        %7185 = vmatpush1.msra.mxu0 0.0
        %7186 = vmatprep.subr.mxu0 0.0
        %7187 = vmatpush1.msra.mxu0 0.0
        %7188 = vmatprep.subr.mxu0 0.0
        %7189 = vmatpush1.msra.mxu0 0.0
        %7190 = vmatprep.subr.mxu0 0.0
        %7191 = vmatpush1.msra.mxu0 0.0
        %7192 = vmatprep.subr.mxu0 0.0
        %7193 = vmatpush1.msra.mxu0 0.0
        %7194 = vmatprep.subr.mxu0 0.0
        %7195 = vmatpush1.msra.mxu0 0.0
        %7196 = vmatprep.subr.mxu0 0.0
        %7197 = vmatpush1.msra.mxu0 0.0
        %7198 = vmatprep.subr.mxu0 0.0
        %7199 = vmatpush1.msra.mxu0 0.0
        %7200 = vmatprep.mubr.f32.mxu0 0.0
        %v7201 = vand.u32 %v6759, 4294901760
        %7202 = vmatmul.mubr.f32.gmra.mrb[0].mxu0 %v7201
        %v7203 = vpop.f32.mrb[0].mxu0
        %v7204 = vadd.f32 %v7132, %v7203
        %v7205 = vpop.f32.mrb[0].mxu0
        %7206 = vdwg.mxu0
        %7207 = vrot.lane.b32.xlu0 %v771, 100
        %v7208 = vpop.permute.xlu0 %7207
        %7209 = vrot.lane.b32.xlu0 %v771, 68
        %v7210 = vpop.permute.xlu0 %7209
        %v7211 = vsel %vm777, %v7208, 0
        %v7213 = vsel %vm777, %v7210, 0
        %7215 = vmatprep.subr.mxu0 0.0
        %v7216 = vand.u32 %v7213, 4294901760
        %7217 = vmatpush1.xpose.msra.mxu0 %v7216
        %7218 = vmatprep.subr.mxu0 0.0
        %7219 = vmatpush1.xpose.msra.mxu0 0.0
        %7220 = vmatprep.subr.mxu0 0.0
        %7221 = vmatpush1.xpose.msra.mxu0 0.0
        %7222 = vmatprep.subr.mxu0 0.0
        %7223 = vmatpush1.xpose.msra.mxu0 0.0
        %7224 = vmatprep.subr.mxu0 0.0
        %7225 = vmatpush1.xpose.msra.mxu0 0.0
        %7226 = vmatprep.subr.mxu0 0.0
        %7227 = vmatpush1.xpose.msra.mxu0 0.0
        %7228 = vmatprep.subr.mxu0 0.0
        %7229 = vmatpush1.xpose.msra.mxu0 0.0
        %7230 = vmatprep.subr.mxu0 0.0
        %7231 = vmatpush1.xpose.msra.mxu0 0.0
        %7232 = vmatprep.subr.mxu0 0.0
        %7233 = vmatpush1.xpose.msra.mxu0 0.0
        %7234 = vmatprep.subr.mxu0 0.0
        %7235 = vmatpush1.xpose.msra.mxu0 0.0
        %7236 = vmatprep.subr.mxu0 0.0
        %7237 = vmatpush1.xpose.msra.mxu0 0.0
        %7238 = vmatprep.subr.mxu0 0.0
        %7239 = vmatpush1.xpose.msra.mxu0 0.0
        %7240 = vmatprep.subr.mxu0 0.0
        %7241 = vmatpush1.xpose.msra.mxu0 0.0
        %7242 = vmatprep.subr.mxu0 0.0
        %7243 = vmatpush1.xpose.msra.mxu0 0.0
        %7244 = vmatprep.subr.mxu0 0.0
        %7245 = vmatpush1.xpose.msra.mxu0 0.0
        %7246 = vmatprep.subr.mxu0 0.0
        %7247 = vmatpush1.xpose.msra.mxu0 0.0
        %7248 = vmatprep.subr.mxu0 0.0
        %7249 = vmatpush1.xpose.msra.mxu0 0.0
        %7250 = vmatprep.subr.mxu0 0.0
        %7251 = vmatpush1.xpose.msra.mxu0 0.0
        %7252 = vmatprep.subr.mxu0 0.0
        %7253 = vmatpush1.xpose.msra.mxu0 0.0
        %7254 = vmatprep.subr.mxu0 0.0
        %7255 = vmatpush1.xpose.msra.mxu0 0.0
        %7256 = vmatprep.subr.mxu0 0.0
        %7257 = vmatpush1.xpose.msra.mxu0 0.0
        %7258 = vmatprep.subr.mxu0 0.0
        %7259 = vmatpush1.xpose.msra.mxu0 0.0
        %7260 = vmatprep.subr.mxu0 0.0
        %7261 = vmatpush1.xpose.msra.mxu0 0.0
        %7262 = vmatprep.subr.mxu0 0.0
        %7263 = vmatpush1.xpose.msra.mxu0 0.0
        %7264 = vmatprep.subr.mxu0 0.0
        %7265 = vmatpush1.xpose.msra.mxu0 0.0
        %7266 = vmatprep.subr.mxu0 0.0
        %7267 = vmatpush1.xpose.msra.mxu0 0.0
        %7268 = vmatprep.subr.mxu0 0.0
        %7269 = vmatpush1.xpose.msra.mxu0 0.0
        %7270 = vmatprep.subr.mxu0 0.0
        %7271 = vmatpush1.xpose.msra.mxu0 0.0
        %7272 = vmatprep.subr.mxu0 0.0
        %7273 = vmatpush1.xpose.msra.mxu0 0.0
        %7274 = vmatprep.subr.mxu0 0.0
        %7275 = vmatpush1.xpose.msra.mxu0 0.0
        %7276 = vmatprep.subr.mxu0 0.0
        %7277 = vmatpush1.xpose.msra.mxu0 0.0
        %7278 = vmatprep.subr.mxu0 0.0
        %7279 = vmatpush1.xpose.msra.mxu0 0.0
        %7280 = vmatprep.mubr.f32.mxu0 0.0
        %v7281 = vand.u32 %v7211, 4294901760
        %v7282 = vsub.f32 %v7211, %v7281
        %v7283 = vand.u32 %v7282, 4294901760
        %v7284 = vsub.f32 %v7282, %v7283
        %v7285 = vand.u32 %v7284, 4294901760
        %7286 = vmatmul.mubr.f32.gmra.mrb[0].mxu0 %v7285
        %v7287 = vpop.f32.mrb[0].mxu0
        %v7288 = vadd.f32 0.0, %v7287
        %v7289 = vpop.f32.mrb[0].mxu0
        %7290 = vdwg.mxu0
        %7291 = vmatprep.subr.mxu0 0.0
        %v7292 = vand.u32 %v7213, 4294901760
        %v7293 = vsub.f32 %v7213, %v7292
        %v7294 = vand.u32 %v7293, 4294901760
        %v7295 = vsub.f32 %v7293, %v7294
        %v7296 = vand.u32 %v7295, 4294901760
        %7297 = vmatpush1.xpose.msra.mxu0 %v7296
        %7298 = vmatprep.subr.mxu0 0.0
        %7299 = vmatpush1.xpose.msra.mxu0 0.0
        %7300 = vmatprep.subr.mxu0 0.0
        %7301 = vmatpush1.xpose.msra.mxu0 0.0
        %7302 = vmatprep.subr.mxu0 0.0
        %7303 = vmatpush1.xpose.msra.mxu0 0.0
        %7304 = vmatprep.subr.mxu0 0.0
        %7305 = vmatpush1.xpose.msra.mxu0 0.0
        %7306 = vmatprep.subr.mxu0 0.0
        %7307 = vmatpush1.xpose.msra.mxu0 0.0
        %7308 = vmatprep.subr.mxu0 0.0
        %7309 = vmatpush1.xpose.msra.mxu0 0.0
        %7310 = vmatprep.subr.mxu0 0.0
        %7311 = vmatpush1.xpose.msra.mxu0 0.0
        %7312 = vmatprep.subr.mxu0 0.0
        %7313 = vmatpush1.xpose.msra.mxu0 0.0
        %7314 = vmatprep.subr.mxu0 0.0
        %7315 = vmatpush1.xpose.msra.mxu0 0.0
        %7316 = vmatprep.subr.mxu0 0.0
        %7317 = vmatpush1.xpose.msra.mxu0 0.0
        %7318 = vmatprep.subr.mxu0 0.0
        %7319 = vmatpush1.xpose.msra.mxu0 0.0
        %7320 = vmatprep.subr.mxu0 0.0
        %7321 = vmatpush1.xpose.msra.mxu0 0.0
        %7322 = vmatprep.subr.mxu0 0.0
        %7323 = vmatpush1.xpose.msra.mxu0 0.0
        %7324 = vmatprep.subr.mxu0 0.0
        %7325 = vmatpush1.xpose.msra.mxu0 0.0
        %7326 = vmatprep.subr.mxu0 0.0
        %7327 = vmatpush1.xpose.msra.mxu0 0.0
        %7328 = vmatprep.subr.mxu0 0.0
        %7329 = vmatpush1.xpose.msra.mxu0 0.0
        %7330 = vmatprep.subr.mxu0 0.0
        %7331 = vmatpush1.xpose.msra.mxu0 0.0
        %7332 = vmatprep.subr.mxu0 0.0
        %7333 = vmatpush1.xpose.msra.mxu0 0.0
        %7334 = vmatprep.subr.mxu0 0.0
        %7335 = vmatpush1.xpose.msra.mxu0 0.0
        %7336 = vmatprep.subr.mxu0 0.0
        %7337 = vmatpush1.xpose.msra.mxu0 0.0
        %7338 = vmatprep.subr.mxu0 0.0
        %7339 = vmatpush1.xpose.msra.mxu0 0.0
        %7340 = vmatprep.subr.mxu0 0.0
        %7341 = vmatpush1.xpose.msra.mxu0 0.0
        %7342 = vmatprep.subr.mxu0 0.0
        %7343 = vmatpush1.xpose.msra.mxu0 0.0
        %7344 = vmatprep.subr.mxu0 0.0
        %7345 = vmatpush1.xpose.msra.mxu0 0.0
        %7346 = vmatprep.subr.mxu0 0.0
        %7347 = vmatpush1.xpose.msra.mxu0 0.0
        %7348 = vmatprep.subr.mxu0 0.0
        %7349 = vmatpush1.xpose.msra.mxu0 0.0
        %7350 = vmatprep.subr.mxu0 0.0
        %7351 = vmatpush1.xpose.msra.mxu0 0.0
        %7352 = vmatprep.subr.mxu0 0.0
        %7353 = vmatpush1.xpose.msra.mxu0 0.0
        %7354 = vmatprep.subr.mxu0 0.0
        %7355 = vmatpush1.xpose.msra.mxu0 0.0
        %7356 = vmatprep.subr.mxu0 0.0
        %7357 = vmatpush1.xpose.msra.mxu0 0.0
        %7358 = vmatprep.subr.mxu0 0.0
        %7359 = vmatpush1.xpose.msra.mxu0 0.0
        %7360 = vmatprep.mubr.f32.mxu0 0.0
        %v7361 = vand.u32 %v7211, 4294901760
        %7362 = vmatmul.mubr.f32.gmra.mrb[0].mxu0 %v7361
        %v7363 = vpop.f32.mrb[0].mxu0
        %v7364 = vadd.f32 %v7288, %v7363
        %v7365 = vpop.f32.mrb[0].mxu0
        %7366 = vdwg.mxu0
        %7367 = vmatprep.subr.mxu0 0.0
        %v7368 = vand.u32 %v7213, 4294901760
        %v7369 = vsub.f32 %v7213, %v7368
        %7370 = vmatpush1.xpose.msra.mxu0 %v7369
        %7371 = vmatprep.subr.mxu0 0.0
        %7372 = vmatpush1.xpose.msra.mxu0 0.0
        %7373 = vmatprep.subr.mxu0 0.0
        %7374 = vmatpush1.xpose.msra.mxu0 0.0
        %7375 = vmatprep.subr.mxu0 0.0
        %7376 = vmatpush1.xpose.msra.mxu0 0.0
        %7377 = vmatprep.subr.mxu0 0.0
        %7378 = vmatpush1.xpose.msra.mxu0 0.0
        %7379 = vmatprep.subr.mxu0 0.0
        %7380 = vmatpush1.xpose.msra.mxu0 0.0
        %7381 = vmatprep.subr.mxu0 0.0
        %7382 = vmatpush1.xpose.msra.mxu0 0.0
        %7383 = vmatprep.subr.mxu0 0.0
        %7384 = vmatpush1.xpose.msra.mxu0 0.0
        %7385 = vmatprep.subr.mxu0 0.0
        %7386 = vmatpush1.xpose.msra.mxu0 0.0
        %7387 = vmatprep.subr.mxu0 0.0
        %7388 = vmatpush1.xpose.msra.mxu0 0.0
        %7389 = vmatprep.subr.mxu0 0.0
        %7390 = vmatpush1.xpose.msra.mxu0 0.0
        %7391 = vmatprep.subr.mxu0 0.0
        %7392 = vmatpush1.xpose.msra.mxu0 0.0
        %7393 = vmatprep.subr.mxu0 0.0
        %7394 = vmatpush1.xpose.msra.mxu0 0.0
        %7395 = vmatprep.subr.mxu0 0.0
        %7396 = vmatpush1.xpose.msra.mxu0 0.0
        %7397 = vmatprep.subr.mxu0 0.0
        %7398 = vmatpush1.xpose.msra.mxu0 0.0
        %7399 = vmatprep.subr.mxu0 0.0
        %7400 = vmatpush1.xpose.msra.mxu0 0.0
        %7401 = vmatprep.subr.mxu0 0.0
        %7402 = vmatpush1.xpose.msra.mxu0 0.0
        %7403 = vmatprep.subr.mxu0 0.0
        %7404 = vmatpush1.xpose.msra.mxu0 0.0
        %7405 = vmatprep.subr.mxu0 0.0
        %7406 = vmatpush1.xpose.msra.mxu0 0.0
        %7407 = vmatprep.subr.mxu0 0.0
        %7408 = vmatpush1.xpose.msra.mxu0 0.0
        %7409 = vmatprep.subr.mxu0 0.0
        %7410 = vmatpush1.xpose.msra.mxu0 0.0
        %7411 = vmatprep.subr.mxu0 0.0
        %7412 = vmatpush1.xpose.msra.mxu0 0.0
        %7413 = vmatprep.subr.mxu0 0.0
        %7414 = vmatpush1.xpose.msra.mxu0 0.0
        %7415 = vmatprep.subr.mxu0 0.0
        %7416 = vmatpush1.xpose.msra.mxu0 0.0
        %7417 = vmatprep.subr.mxu0 0.0
        %7418 = vmatpush1.xpose.msra.mxu0 0.0
        %7419 = vmatprep.subr.mxu0 0.0
        %7420 = vmatpush1.xpose.msra.mxu0 0.0
        %7421 = vmatprep.subr.mxu0 0.0
        %7422 = vmatpush1.xpose.msra.mxu0 0.0
        %7423 = vmatprep.subr.mxu0 0.0
        %7424 = vmatpush1.xpose.msra.mxu0 0.0
        %7425 = vmatprep.subr.mxu0 0.0
        %7426 = vmatpush1.xpose.msra.mxu0 0.0
        %7427 = vmatprep.subr.mxu0 0.0
        %7428 = vmatpush1.xpose.msra.mxu0 0.0
        %7429 = vmatprep.subr.mxu0 0.0
        %7430 = vmatpush1.xpose.msra.mxu0 0.0
        %7431 = vmatprep.subr.mxu0 0.0
        %7432 = vmatpush1.xpose.msra.mxu0 0.0
        %7433 = vmatprep.mubr.f32.mxu0 0.0
        %v7434 = vand.u32 %v7211, 4294901760
        %v7435 = vsub.f32 %v7211, %v7434
        %7436 = vmatmul.mubr.f32.gmra.mrb[0].mxu0 %v7435
        %v7437 = vpop.f32.mrb[0].mxu0
        %v7438 = vadd.f32 %v7364, %v7437
        %v7439 = vpop.f32.mrb[0].mxu0
        %7440 = vdwg.mxu0
        %7441 = vmatprep.subr.mxu0 0.0
        %v7442 = vand.u32 %v7213, 4294901760
        %7443 = vmatpush1.xpose.msra.mxu0 %v7442
        %7444 = vmatprep.subr.mxu0 0.0
        %7445 = vmatpush1.xpose.msra.mxu0 0.0
        %7446 = vmatprep.subr.mxu0 0.0
        %7447 = vmatpush1.xpose.msra.mxu0 0.0
        %7448 = vmatprep.subr.mxu0 0.0
        %7449 = vmatpush1.xpose.msra.mxu0 0.0
        %7450 = vmatprep.subr.mxu0 0.0
        %7451 = vmatpush1.xpose.msra.mxu0 0.0
        %7452 = vmatprep.subr.mxu0 0.0
        %7453 = vmatpush1.xpose.msra.mxu0 0.0
        %7454 = vmatprep.subr.mxu0 0.0
        %7455 = vmatpush1.xpose.msra.mxu0 0.0
        %7456 = vmatprep.subr.mxu0 0.0
        %7457 = vmatpush1.xpose.msra.mxu0 0.0
        %7458 = vmatprep.subr.mxu0 0.0
        %7459 = vmatpush1.xpose.msra.mxu0 0.0
        %7460 = vmatprep.subr.mxu0 0.0
        %7461 = vmatpush1.xpose.msra.mxu0 0.0
        %7462 = vmatprep.subr.mxu0 0.0
        %7463 = vmatpush1.xpose.msra.mxu0 0.0
        %7464 = vmatprep.subr.mxu0 0.0
        %7465 = vmatpush1.xpose.msra.mxu0 0.0
        %7466 = vmatprep.subr.mxu0 0.0
        %7467 = vmatpush1.xpose.msra.mxu0 0.0
        %7468 = vmatprep.subr.mxu0 0.0
        %7469 = vmatpush1.xpose.msra.mxu0 0.0
        %7470 = vmatprep.subr.mxu0 0.0
        %7471 = vmatpush1.xpose.msra.mxu0 0.0
        %7472 = vmatprep.subr.mxu0 0.0
        %7473 = vmatpush1.xpose.msra.mxu0 0.0
        %7474 = vmatprep.subr.mxu0 0.0
        %7475 = vmatpush1.xpose.msra.mxu0 0.0
        %7476 = vmatprep.subr.mxu0 0.0
        %7477 = vmatpush1.xpose.msra.mxu0 0.0
        %7478 = vmatprep.subr.mxu0 0.0
        %7479 = vmatpush1.xpose.msra.mxu0 0.0
        %7480 = vmatprep.subr.mxu0 0.0
        %7481 = vmatpush1.xpose.msra.mxu0 0.0
        %7482 = vmatprep.subr.mxu0 0.0
        %7483 = vmatpush1.xpose.msra.mxu0 0.0
        %7484 = vmatprep.subr.mxu0 0.0
        %7485 = vmatpush1.xpose.msra.mxu0 0.0
        %7486 = vmatprep.subr.mxu0 0.0
        %7487 = vmatpush1.xpose.msra.mxu0 0.0
        %7488 = vmatprep.subr.mxu0 0.0
        %7489 = vmatpush1.xpose.msra.mxu0 0.0
        %7490 = vmatprep.subr.mxu0 0.0
        %7491 = vmatpush1.xpose.msra.mxu0 0.0
        %7492 = vmatprep.subr.mxu0 0.0
        %7493 = vmatpush1.xpose.msra.mxu0 0.0
        %7494 = vmatprep.subr.mxu0 0.0
        %7495 = vmatpush1.xpose.msra.mxu0 0.0
        %7496 = vmatprep.subr.mxu0 0.0
        %7497 = vmatpush1.xpose.msra.mxu0 0.0
        %7498 = vmatprep.subr.mxu0 0.0
        %7499 = vmatpush1.xpose.msra.mxu0 0.0
        %7500 = vmatprep.subr.mxu0 0.0
        %7501 = vmatpush1.xpose.msra.mxu0 0.0
        %7502 = vmatprep.subr.mxu0 0.0
        %7503 = vmatpush1.xpose.msra.mxu0 0.0
        %7504 = vmatprep.subr.mxu0 0.0
        %7505 = vmatpush1.xpose.msra.mxu0 0.0
        %7506 = vmatprep.mubr.f32.mxu0 0.0
        %v7507 = vand.u32 %v7211, 4294901760
        %v7508 = vsub.f32 %v7211, %v7507
        %v7509 = vand.u32 %v7508, 4294901760
        %7510 = vmatmul.mubr.f32.gmra.mrb[0].mxu0 %v7509
        %v7511 = vpop.f32.mrb[0].mxu0
        %v7512 = vadd.f32 %v7438, %v7511
        %v7513 = vpop.f32.mrb[0].mxu0
        %7514 = vdwg.mxu0
        %7515 = vmatprep.subr.mxu0 0.0
        %v7516 = vand.u32 %v7213, 4294901760
        %v7517 = vsub.f32 %v7213, %v7516
        %v7518 = vand.u32 %v7517, 4294901760
        %7519 = vmatpush1.xpose.msra.mxu0 %v7518
        %7520 = vmatprep.subr.mxu0 0.0
        %7521 = vmatpush1.xpose.msra.mxu0 0.0
        %7522 = vmatprep.subr.mxu0 0.0
        %7523 = vmatpush1.xpose.msra.mxu0 0.0
        %7524 = vmatprep.subr.mxu0 0.0
        %7525 = vmatpush1.xpose.msra.mxu0 0.0
        %7526 = vmatprep.subr.mxu0 0.0
        %7527 = vmatpush1.xpose.msra.mxu0 0.0
        %7528 = vmatprep.subr.mxu0 0.0
        %7529 = vmatpush1.xpose.msra.mxu0 0.0
        %7530 = vmatprep.subr.mxu0 0.0
        %7531 = vmatpush1.xpose.msra.mxu0 0.0
        %7532 = vmatprep.subr.mxu0 0.0
        %7533 = vmatpush1.xpose.msra.mxu0 0.0
        %7534 = vmatprep.subr.mxu0 0.0
        %7535 = vmatpush1.xpose.msra.mxu0 0.0
        %7536 = vmatprep.subr.mxu0 0.0
        %7537 = vmatpush1.xpose.msra.mxu0 0.0
        %7538 = vmatprep.subr.mxu0 0.0
        %7539 = vmatpush1.xpose.msra.mxu0 0.0
        %7540 = vmatprep.subr.mxu0 0.0
        %7541 = vmatpush1.xpose.msra.mxu0 0.0
        %7542 = vmatprep.subr.mxu0 0.0
        %7543 = vmatpush1.xpose.msra.mxu0 0.0
        %7544 = vmatprep.subr.mxu0 0.0
        %7545 = vmatpush1.xpose.msra.mxu0 0.0
        %7546 = vmatprep.subr.mxu0 0.0
        %7547 = vmatpush1.xpose.msra.mxu0 0.0
        %7548 = vmatprep.subr.mxu0 0.0
        %7549 = vmatpush1.xpose.msra.mxu0 0.0
        %7550 = vmatprep.subr.mxu0 0.0
        %7551 = vmatpush1.xpose.msra.mxu0 0.0
        %7552 = vmatprep.subr.mxu0 0.0
        %7553 = vmatpush1.xpose.msra.mxu0 0.0
        %7554 = vmatprep.subr.mxu0 0.0
        %7555 = vmatpush1.xpose.msra.mxu0 0.0
        %7556 = vmatprep.subr.mxu0 0.0
        %7557 = vmatpush1.xpose.msra.mxu0 0.0
        %7558 = vmatprep.subr.mxu0 0.0
        %7559 = vmatpush1.xpose.msra.mxu0 0.0
        %7560 = vmatprep.subr.mxu0 0.0
        %7561 = vmatpush1.xpose.msra.mxu0 0.0
        %7562 = vmatprep.subr.mxu0 0.0
        %7563 = vmatpush1.xpose.msra.mxu0 0.0
        %7564 = vmatprep.subr.mxu0 0.0
        %7565 = vmatpush1.xpose.msra.mxu0 0.0
        %7566 = vmatprep.subr.mxu0 0.0
        %7567 = vmatpush1.xpose.msra.mxu0 0.0
        %7568 = vmatprep.subr.mxu0 0.0
        %7569 = vmatpush1.xpose.msra.mxu0 0.0
        %7570 = vmatprep.subr.mxu0 0.0
        %7571 = vmatpush1.xpose.msra.mxu0 0.0
        %7572 = vmatprep.subr.mxu0 0.0
        %7573 = vmatpush1.xpose.msra.mxu0 0.0
        %7574 = vmatprep.subr.mxu0 0.0
        %7575 = vmatpush1.xpose.msra.mxu0 0.0
        %7576 = vmatprep.subr.mxu0 0.0
        %7577 = vmatpush1.xpose.msra.mxu0 0.0
        %7578 = vmatprep.subr.mxu0 0.0
        %7579 = vmatpush1.xpose.msra.mxu0 0.0
        %7580 = vmatprep.subr.mxu0 0.0
        %7581 = vmatpush1.xpose.msra.mxu0 0.0
        %7582 = vmatprep.mubr.f32.mxu0 0.0
        %v7583 = vand.u32 %v7211, 4294901760
        %7584 = vmatmul.mubr.f32.gmra.mrb[0].mxu0 %v7583
        %v7585 = vpop.f32.mrb[0].mxu0
        %v7586 = vadd.f32 %v7512, %v7585
        %v7587 = vpop.f32.mrb[0].mxu0
        %7588 = vdwg.mxu0
        %7589 = vmatprep.subr.mxu0 0.0
        %v7590 = vand.u32 %v7213, 4294901760
        %7591 = vmatpush1.xpose.msra.mxu0 %v7590
        %7592 = vmatprep.subr.mxu0 0.0
        %7593 = vmatpush1.xpose.msra.mxu0 0.0
        %7594 = vmatprep.subr.mxu0 0.0
        %7595 = vmatpush1.xpose.msra.mxu0 0.0
        %7596 = vmatprep.subr.mxu0 0.0
        %7597 = vmatpush1.xpose.msra.mxu0 0.0
        %7598 = vmatprep.subr.mxu0 0.0
        %7599 = vmatpush1.xpose.msra.mxu0 0.0
        %7600 = vmatprep.subr.mxu0 0.0
        %7601 = vmatpush1.xpose.msra.mxu0 0.0
        %7602 = vmatprep.subr.mxu0 0.0
        %7603 = vmatpush1.xpose.msra.mxu0 0.0
        %7604 = vmatprep.subr.mxu0 0.0
        %7605 = vmatpush1.xpose.msra.mxu0 0.0
        %7606 = vmatprep.subr.mxu0 0.0
        %7607 = vmatpush1.xpose.msra.mxu0 0.0
        %7608 = vmatprep.subr.mxu0 0.0
        %7609 = vmatpush1.xpose.msra.mxu0 0.0
        %7610 = vmatprep.subr.mxu0 0.0
        %7611 = vmatpush1.xpose.msra.mxu0 0.0
        %7612 = vmatprep.subr.mxu0 0.0
        %7613 = vmatpush1.xpose.msra.mxu0 0.0
        %7614 = vmatprep.subr.mxu0 0.0
        %7615 = vmatpush1.xpose.msra.mxu0 0.0
        %7616 = vmatprep.subr.mxu0 0.0
        %7617 = vmatpush1.xpose.msra.mxu0 0.0
        %7618 = vmatprep.subr.mxu0 0.0
        %7619 = vmatpush1.xpose.msra.mxu0 0.0
        %7620 = vmatprep.subr.mxu0 0.0
        %7621 = vmatpush1.xpose.msra.mxu0 0.0
        %7622 = vmatprep.subr.mxu0 0.0
        %7623 = vmatpush1.xpose.msra.mxu0 0.0
        %7624 = vmatprep.subr.mxu0 0.0
        %7625 = vmatpush1.xpose.msra.mxu0 0.0
        %7626 = vmatprep.subr.mxu0 0.0
        %7627 = vmatpush1.xpose.msra.mxu0 0.0
        %7628 = vmatprep.subr.mxu0 0.0
        %7629 = vmatpush1.xpose.msra.mxu0 0.0
        %7630 = vmatprep.subr.mxu0 0.0
        %7631 = vmatpush1.xpose.msra.mxu0 0.0
        %7632 = vmatprep.subr.mxu0 0.0
        %7633 = vmatpush1.xpose.msra.mxu0 0.0
        %7634 = vmatprep.subr.mxu0 0.0
        %7635 = vmatpush1.xpose.msra.mxu0 0.0
        %7636 = vmatprep.subr.mxu0 0.0
        %7637 = vmatpush1.xpose.msra.mxu0 0.0
        %7638 = vmatprep.subr.mxu0 0.0
        %7639 = vmatpush1.xpose.msra.mxu0 0.0
        %7640 = vmatprep.subr.mxu0 0.0
        %7641 = vmatpush1.xpose.msra.mxu0 0.0
        %7642 = vmatprep.subr.mxu0 0.0
        %7643 = vmatpush1.xpose.msra.mxu0 0.0
        %7644 = vmatprep.subr.mxu0 0.0
        %7645 = vmatpush1.xpose.msra.mxu0 0.0
        %7646 = vmatprep.subr.mxu0 0.0
        %7647 = vmatpush1.xpose.msra.mxu0 0.0
        %7648 = vmatprep.subr.mxu0 0.0
        %7649 = vmatpush1.xpose.msra.mxu0 0.0
        %7650 = vmatprep.subr.mxu0 0.0
        %7651 = vmatpush1.xpose.msra.mxu0 0.0
        %7652 = vmatprep.subr.mxu0 0.0
        %7653 = vmatpush1.xpose.msra.mxu0 0.0
        %7654 = vmatprep.mubr.f32.mxu0 0.0
        %v7655 = vand.u32 %v7211, 4294901760
        %7656 = vmatmul.mubr.f32.gmra.mrb[0].mxu0 %v7655
        %v7657 = vpop.f32.mrb[0].mxu0
        %v7658 = vadd.f32 %v7586, %v7657
        %v7659 = vpop.f32.mrb[0].mxu0
        %7660 = vdwg.mxu0
        %v7661 = vsel %vm1228, %v7658, -inf
        %7662 = vmax.xlane.f32.xlu0 %v7661
        %v7663 = vpop.xlane.xlu0 %7662
        %v7664 = vsub.f32 %v7658, %v7663
        %v7665 = vmul.f32 %v7664, 1.442695
        %v7666 = vpow.pop %v7665
        %v7667 = vsel %vm1228, %v7666, 0.0
        %7668 = vadd.xlane.f32.xlu0 %v7667
        %v7669 = vpop.xlane.xlu0 %7668
        %v7670 = vrcp.pop %v7669
        %v7671 = vmul.f32 %v7666, %v7670
        %s7672 = scalar_lea.vmem %s279, 56 [#allocation9]
        %7673 = vst.msk [vmem:[%s7672] sm:$0xff] %vm1228, %v7671
        %7674 = vrot.lane.b32.xlu0 %v771, 36
        %v7675 = vpop.permute.xlu0 %7674
        %v7678 = vsel %vm1228, %v7671, 0
        %7680 = vmatprep.subr.mxu0 0.0
        %v7681 = vand.u32 %v7675, 4294901760
        %7682 = vmatpush1.msra.mxu0 %v7681
        %7683 = vmatprep.subr.mxu0 0.0
        %7684 = vmatpush1.msra.mxu0 0.0
        %7685 = vmatprep.subr.mxu0 0.0
        %7686 = vmatpush1.msra.mxu0 0.0
        %7687 = vmatprep.subr.mxu0 0.0
        %7688 = vmatpush1.msra.mxu0 0.0
        %7689 = vmatprep.subr.mxu0 0.0
        %7690 = vmatpush1.msra.mxu0 0.0
        %7691 = vmatprep.subr.mxu0 0.0
        %7692 = vmatpush1.msra.mxu0 0.0
        %7693 = vmatprep.subr.mxu0 0.0
        %7694 = vmatpush1.msra.mxu0 0.0
        %7695 = vmatprep.subr.mxu0 0.0
        %7696 = vmatpush1.msra.mxu0 0.0
        %7697 = vmatprep.subr.mxu0 0.0
        %7698 = vmatpush1.msra.mxu0 0.0
        %7699 = vmatprep.subr.mxu0 0.0
        %7700 = vmatpush1.msra.mxu0 0.0
        %7701 = vmatprep.subr.mxu0 0.0
        %7702 = vmatpush1.msra.mxu0 0.0
        %7703 = vmatprep.subr.mxu0 0.0
        %7704 = vmatpush1.msra.mxu0 0.0
        %7705 = vmatprep.subr.mxu0 0.0
        %7706 = vmatpush1.msra.mxu0 0.0
        %7707 = vmatprep.subr.mxu0 0.0
        %7708 = vmatpush1.msra.mxu0 0.0
        %7709 = vmatprep.subr.mxu0 0.0
        %7710 = vmatpush1.msra.mxu0 0.0
        %7711 = vmatprep.subr.mxu0 0.0
        %7712 = vmatpush1.msra.mxu0 0.0
        %7713 = vmatprep.subr.mxu0 0.0
        %7714 = vmatpush1.msra.mxu0 0.0
        %7715 = vmatprep.subr.mxu0 0.0
        %7716 = vmatpush1.msra.mxu0 0.0
        %7717 = vmatprep.subr.mxu0 0.0
        %7718 = vmatpush1.msra.mxu0 0.0
        %7719 = vmatprep.subr.mxu0 0.0
        %7720 = vmatpush1.msra.mxu0 0.0
        %7721 = vmatprep.subr.mxu0 0.0
        %7722 = vmatpush1.msra.mxu0 0.0
        %7723 = vmatprep.subr.mxu0 0.0
        %7724 = vmatpush1.msra.mxu0 0.0
        %7725 = vmatprep.subr.mxu0 0.0
        %7726 = vmatpush1.msra.mxu0 0.0
        %7727 = vmatprep.subr.mxu0 0.0
        %7728 = vmatpush1.msra.mxu0 0.0
        %7729 = vmatprep.subr.mxu0 0.0
        %7730 = vmatpush1.msra.mxu0 0.0
        %7731 = vmatprep.subr.mxu0 0.0
        %7732 = vmatpush1.msra.mxu0 0.0
        %7733 = vmatprep.subr.mxu0 0.0
        %7734 = vmatpush1.msra.mxu0 0.0
        %7735 = vmatprep.subr.mxu0 0.0
        %7736 = vmatpush1.msra.mxu0 0.0
        %7737 = vmatprep.subr.mxu0 0.0
        %7738 = vmatpush1.msra.mxu0 0.0
        %7739 = vmatprep.subr.mxu0 0.0
        %7740 = vmatpush1.msra.mxu0 0.0
        %7741 = vmatprep.subr.mxu0 0.0
        %7742 = vmatpush1.msra.mxu0 0.0
        %7743 = vmatprep.subr.mxu0 0.0
        %7744 = vmatpush1.msra.mxu0 0.0
        %7745 = vmatprep.mubr.f32.mxu0 0.0
        %v7746 = vand.u32 %v7678, 4294901760
        %v7747 = vsub.f32 %v7678, %v7746
        %v7748 = vand.u32 %v7747, 4294901760
        %v7749 = vsub.f32 %v7747, %v7748
        %v7750 = vand.u32 %v7749, 4294901760
        %7751 = vmatmul.mubr.f32.gmra.mrb[0].mxu0 %v7750
        %v7752 = vpop.f32.mrb[0].mxu0
        %v7753 = vadd.f32 0.0, %v7752
        %v7754 = vpop.f32.mrb[0].mxu0
        %7755 = vdwg.mxu0
        %7756 = vmatprep.subr.mxu0 0.0
        %v7757 = vand.u32 %v7675, 4294901760
        %v7758 = vsub.f32 %v7675, %v7757
        %v7759 = vand.u32 %v7758, 4294901760
        %v7760 = vsub.f32 %v7758, %v7759
        %v7761 = vand.u32 %v7760, 4294901760
        %7762 = vmatpush1.msra.mxu0 %v7761
        %7763 = vmatprep.subr.mxu0 0.0
        %7764 = vmatpush1.msra.mxu0 0.0
        %7765 = vmatprep.subr.mxu0 0.0
        %7766 = vmatpush1.msra.mxu0 0.0
        %7767 = vmatprep.subr.mxu0 0.0
        %7768 = vmatpush1.msra.mxu0 0.0
        %7769 = vmatprep.subr.mxu0 0.0
        %7770 = vmatpush1.msra.mxu0 0.0
        %7771 = vmatprep.subr.mxu0 0.0
        %7772 = vmatpush1.msra.mxu0 0.0
        %7773 = vmatprep.subr.mxu0 0.0
        %7774 = vmatpush1.msra.mxu0 0.0
        %7775 = vmatprep.subr.mxu0 0.0
        %7776 = vmatpush1.msra.mxu0 0.0
        %7777 = vmatprep.subr.mxu0 0.0
        %7778 = vmatpush1.msra.mxu0 0.0
        %7779 = vmatprep.subr.mxu0 0.0
        %7780 = vmatpush1.msra.mxu0 0.0
        %7781 = vmatprep.subr.mxu0 0.0
        %7782 = vmatpush1.msra.mxu0 0.0
        %7783 = vmatprep.subr.mxu0 0.0
        %7784 = vmatpush1.msra.mxu0 0.0
        %7785 = vmatprep.subr.mxu0 0.0
        %7786 = vmatpush1.msra.mxu0 0.0
        %7787 = vmatprep.subr.mxu0 0.0
        %7788 = vmatpush1.msra.mxu0 0.0
        %7789 = vmatprep.subr.mxu0 0.0
        %7790 = vmatpush1.msra.mxu0 0.0
        %7791 = vmatprep.subr.mxu0 0.0
        %7792 = vmatpush1.msra.mxu0 0.0
        %7793 = vmatprep.subr.mxu0 0.0
        %7794 = vmatpush1.msra.mxu0 0.0
        %7795 = vmatprep.subr.mxu0 0.0
        %7796 = vmatpush1.msra.mxu0 0.0
        %7797 = vmatprep.subr.mxu0 0.0
        %7798 = vmatpush1.msra.mxu0 0.0
        %7799 = vmatprep.subr.mxu0 0.0
        %7800 = vmatpush1.msra.mxu0 0.0
        %7801 = vmatprep.subr.mxu0 0.0
        %7802 = vmatpush1.msra.mxu0 0.0
        %7803 = vmatprep.subr.mxu0 0.0
        %7804 = vmatpush1.msra.mxu0 0.0
        %7805 = vmatprep.subr.mxu0 0.0
        %7806 = vmatpush1.msra.mxu0 0.0
        %7807 = vmatprep.subr.mxu0 0.0
        %7808 = vmatpush1.msra.mxu0 0.0
        %7809 = vmatprep.subr.mxu0 0.0
        %7810 = vmatpush1.msra.mxu0 0.0
        %7811 = vmatprep.subr.mxu0 0.0
        %7812 = vmatpush1.msra.mxu0 0.0
        %7813 = vmatprep.subr.mxu0 0.0
        %7814 = vmatpush1.msra.mxu0 0.0
        %7815 = vmatprep.subr.mxu0 0.0
        %7816 = vmatpush1.msra.mxu0 0.0
        %7817 = vmatprep.subr.mxu0 0.0
        %7818 = vmatpush1.msra.mxu0 0.0
        %7819 = vmatprep.subr.mxu0 0.0
        %7820 = vmatpush1.msra.mxu0 0.0
        %7821 = vmatprep.subr.mxu0 0.0
        %7822 = vmatpush1.msra.mxu0 0.0
        %7823 = vmatprep.subr.mxu0 0.0
        %7824 = vmatpush1.msra.mxu0 0.0
        %7825 = vmatprep.mubr.f32.mxu0 0.0
        %v7826 = vand.u32 %v7678, 4294901760
        %7827 = vmatmul.mubr.f32.gmra.mrb[0].mxu0 %v7826
        %v7828 = vpop.f32.mrb[0].mxu0
        %v7829 = vadd.f32 %v7753, %v7828
        %v7830 = vpop.f32.mrb[0].mxu0
        %7831 = vdwg.mxu0
        %7832 = vmatprep.subr.mxu0 0.0
        %v7833 = vand.u32 %v7675, 4294901760
        %v7834 = vsub.f32 %v7675, %v7833
        %7835 = vmatpush1.msra.mxu0 %v7834
        %7836 = vmatprep.subr.mxu0 0.0
        %7837 = vmatpush1.msra.mxu0 0.0
        %7838 = vmatprep.subr.mxu0 0.0
        %7839 = vmatpush1.msra.mxu0 0.0
        %7840 = vmatprep.subr.mxu0 0.0
        %7841 = vmatpush1.msra.mxu0 0.0
        %7842 = vmatprep.subr.mxu0 0.0
        %7843 = vmatpush1.msra.mxu0 0.0
        %7844 = vmatprep.subr.mxu0 0.0
        %7845 = vmatpush1.msra.mxu0 0.0
        %7846 = vmatprep.subr.mxu0 0.0
        %7847 = vmatpush1.msra.mxu0 0.0
        %7848 = vmatprep.subr.mxu0 0.0
        %7849 = vmatpush1.msra.mxu0 0.0
        %7850 = vmatprep.subr.mxu0 0.0
        %7851 = vmatpush1.msra.mxu0 0.0
        %7852 = vmatprep.subr.mxu0 0.0
        %7853 = vmatpush1.msra.mxu0 0.0
        %7854 = vmatprep.subr.mxu0 0.0
        %7855 = vmatpush1.msra.mxu0 0.0
        %7856 = vmatprep.subr.mxu0 0.0
        %7857 = vmatpush1.msra.mxu0 0.0
        %7858 = vmatprep.subr.mxu0 0.0
        %7859 = vmatpush1.msra.mxu0 0.0
        %7860 = vmatprep.subr.mxu0 0.0
        %7861 = vmatpush1.msra.mxu0 0.0
        %7862 = vmatprep.subr.mxu0 0.0
        %7863 = vmatpush1.msra.mxu0 0.0
        %7864 = vmatprep.subr.mxu0 0.0
        %7865 = vmatpush1.msra.mxu0 0.0
        %7866 = vmatprep.subr.mxu0 0.0
        %7867 = vmatpush1.msra.mxu0 0.0
        %7868 = vmatprep.subr.mxu0 0.0
        %7869 = vmatpush1.msra.mxu0 0.0
        %7870 = vmatprep.subr.mxu0 0.0
        %7871 = vmatpush1.msra.mxu0 0.0
        %7872 = vmatprep.subr.mxu0 0.0
        %7873 = vmatpush1.msra.mxu0 0.0
        %7874 = vmatprep.subr.mxu0 0.0
        %7875 = vmatpush1.msra.mxu0 0.0
        %7876 = vmatprep.subr.mxu0 0.0
        %7877 = vmatpush1.msra.mxu0 0.0
        %7878 = vmatprep.subr.mxu0 0.0
        %7879 = vmatpush1.msra.mxu0 0.0
        %7880 = vmatprep.subr.mxu0 0.0
        %7881 = vmatpush1.msra.mxu0 0.0
        %7882 = vmatprep.subr.mxu0 0.0
        %7883 = vmatpush1.msra.mxu0 0.0
        %7884 = vmatprep.subr.mxu0 0.0
        %7885 = vmatpush1.msra.mxu0 0.0
        %7886 = vmatprep.subr.mxu0 0.0
        %7887 = vmatpush1.msra.mxu0 0.0
        %7888 = vmatprep.subr.mxu0 0.0
        %7889 = vmatpush1.msra.mxu0 0.0
        %7890 = vmatprep.subr.mxu0 0.0
        %7891 = vmatpush1.msra.mxu0 0.0
        %7892 = vmatprep.subr.mxu0 0.0
        %7893 = vmatpush1.msra.mxu0 0.0
        %7894 = vmatprep.subr.mxu0 0.0
        %7895 = vmatpush1.msra.mxu0 0.0
        %7896 = vmatprep.subr.mxu0 0.0
        %7897 = vmatpush1.msra.mxu0 0.0
        %7898 = vmatprep.mubr.f32.mxu0 0.0
        %v7899 = vand.u32 %v7678, 4294901760
        %v7900 = vsub.f32 %v7678, %v7899
        %7901 = vmatmul.mubr.f32.gmra.mrb[0].mxu0 %v7900
        %v7902 = vpop.f32.mrb[0].mxu0
        %v7903 = vadd.f32 %v7829, %v7902
        %v7904 = vpop.f32.mrb[0].mxu0
        %7905 = vdwg.mxu0
        %7906 = vmatprep.subr.mxu0 0.0
        %v7907 = vand.u32 %v7675, 4294901760
        %7908 = vmatpush1.msra.mxu0 %v7907
        %7909 = vmatprep.subr.mxu0 0.0
        %7910 = vmatpush1.msra.mxu0 0.0
        %7911 = vmatprep.subr.mxu0 0.0
        %7912 = vmatpush1.msra.mxu0 0.0
        %7913 = vmatprep.subr.mxu0 0.0
        %7914 = vmatpush1.msra.mxu0 0.0
        %7915 = vmatprep.subr.mxu0 0.0
        %7916 = vmatpush1.msra.mxu0 0.0
        %7917 = vmatprep.subr.mxu0 0.0
        %7918 = vmatpush1.msra.mxu0 0.0
        %7919 = vmatprep.subr.mxu0 0.0
        %7920 = vmatpush1.msra.mxu0 0.0
        %7921 = vmatprep.subr.mxu0 0.0
        %7922 = vmatpush1.msra.mxu0 0.0
        %7923 = vmatprep.subr.mxu0 0.0
        %7924 = vmatpush1.msra.mxu0 0.0
        %7925 = vmatprep.subr.mxu0 0.0
        %7926 = vmatpush1.msra.mxu0 0.0
        %7927 = vmatprep.subr.mxu0 0.0
        %7928 = vmatpush1.msra.mxu0 0.0
        %7929 = vmatprep.subr.mxu0 0.0
        %7930 = vmatpush1.msra.mxu0 0.0
        %7931 = vmatprep.subr.mxu0 0.0
        %7932 = vmatpush1.msra.mxu0 0.0
        %7933 = vmatprep.subr.mxu0 0.0
        %7934 = vmatpush1.msra.mxu0 0.0
        %7935 = vmatprep.subr.mxu0 0.0
        %7936 = vmatpush1.msra.mxu0 0.0
        %7937 = vmatprep.subr.mxu0 0.0
        %7938 = vmatpush1.msra.mxu0 0.0
        %7939 = vmatprep.subr.mxu0 0.0
        %7940 = vmatpush1.msra.mxu0 0.0
        %7941 = vmatprep.subr.mxu0 0.0
        %7942 = vmatpush1.msra.mxu0 0.0
        %7943 = vmatprep.subr.mxu0 0.0
        %7944 = vmatpush1.msra.mxu0 0.0
        %7945 = vmatprep.subr.mxu0 0.0
        %7946 = vmatpush1.msra.mxu0 0.0
        %7947 = vmatprep.subr.mxu0 0.0
        %7948 = vmatpush1.msra.mxu0 0.0
        %7949 = vmatprep.subr.mxu0 0.0
        %7950 = vmatpush1.msra.mxu0 0.0
        %7951 = vmatprep.subr.mxu0 0.0
        %7952 = vmatpush1.msra.mxu0 0.0
        %7953 = vmatprep.subr.mxu0 0.0
        %7954 = vmatpush1.msra.mxu0 0.0
        %7955 = vmatprep.subr.mxu0 0.0
        %7956 = vmatpush1.msra.mxu0 0.0
        %7957 = vmatprep.subr.mxu0 0.0
        %7958 = vmatpush1.msra.mxu0 0.0
        %7959 = vmatprep.subr.mxu0 0.0
        %7960 = vmatpush1.msra.mxu0 0.0
        %7961 = vmatprep.subr.mxu0 0.0
        %7962 = vmatpush1.msra.mxu0 0.0
        %7963 = vmatprep.subr.mxu0 0.0
        %7964 = vmatpush1.msra.mxu0 0.0
        %7965 = vmatprep.subr.mxu0 0.0
        %7966 = vmatpush1.msra.mxu0 0.0
        %7967 = vmatprep.subr.mxu0 0.0
        %7968 = vmatpush1.msra.mxu0 0.0
        %7969 = vmatprep.subr.mxu0 0.0
        %7970 = vmatpush1.msra.mxu0 0.0
        %7971 = vmatprep.mubr.f32.mxu0 0.0
        %v7972 = vand.u32 %v7678, 4294901760
        %v7973 = vsub.f32 %v7678, %v7972
        %v7974 = vand.u32 %v7973, 4294901760
        %7975 = vmatmul.mubr.f32.gmra.mrb[0].mxu0 %v7974
        %v7976 = vpop.f32.mrb[0].mxu0
        %v7977 = vadd.f32 %v7903, %v7976
        %v7978 = vpop.f32.mrb[0].mxu0
        %7979 = vdwg.mxu0
        %7980 = vmatprep.subr.mxu0 0.0
        %v7981 = vand.u32 %v7675, 4294901760
        %v7982 = vsub.f32 %v7675, %v7981
        %v7983 = vand.u32 %v7982, 4294901760
        %7984 = vmatpush1.msra.mxu0 %v7983
        %7985 = vmatprep.subr.mxu0 0.0
        %7986 = vmatpush1.msra.mxu0 0.0
        %7987 = vmatprep.subr.mxu0 0.0
        %7988 = vmatpush1.msra.mxu0 0.0
        %7989 = vmatprep.subr.mxu0 0.0
        %7990 = vmatpush1.msra.mxu0 0.0
        %7991 = vmatprep.subr.mxu0 0.0
        %7992 = vmatpush1.msra.mxu0 0.0
        %7993 = vmatprep.subr.mxu0 0.0
        %7994 = vmatpush1.msra.mxu0 0.0
        %7995 = vmatprep.subr.mxu0 0.0
        %7996 = vmatpush1.msra.mxu0 0.0
        %7997 = vmatprep.subr.mxu0 0.0
        %7998 = vmatpush1.msra.mxu0 0.0
        %7999 = vmatprep.subr.mxu0 0.0
        %8000 = vmatpush1.msra.mxu0 0.0
        %8001 = vmatprep.subr.mxu0 0.0
        %8002 = vmatpush1.msra.mxu0 0.0
        %8003 = vmatprep.subr.mxu0 0.0
        %8004 = vmatpush1.msra.mxu0 0.0
        %8005 = vmatprep.subr.mxu0 0.0
        %8006 = vmatpush1.msra.mxu0 0.0
        %8007 = vmatprep.subr.mxu0 0.0
        %8008 = vmatpush1.msra.mxu0 0.0
        %8009 = vmatprep.subr.mxu0 0.0
        %8010 = vmatpush1.msra.mxu0 0.0
        %8011 = vmatprep.subr.mxu0 0.0
        %8012 = vmatpush1.msra.mxu0 0.0
        %8013 = vmatprep.subr.mxu0 0.0
        %8014 = vmatpush1.msra.mxu0 0.0
        %8015 = vmatprep.subr.mxu0 0.0
        %8016 = vmatpush1.msra.mxu0 0.0
        %8017 = vmatprep.subr.mxu0 0.0
        %8018 = vmatpush1.msra.mxu0 0.0
        %8019 = vmatprep.subr.mxu0 0.0
        %8020 = vmatpush1.msra.mxu0 0.0
        %8021 = vmatprep.subr.mxu0 0.0
        %8022 = vmatpush1.msra.mxu0 0.0
        %8023 = vmatprep.subr.mxu0 0.0
        %8024 = vmatpush1.msra.mxu0 0.0
        %8025 = vmatprep.subr.mxu0 0.0
        %8026 = vmatpush1.msra.mxu0 0.0
        %8027 = vmatprep.subr.mxu0 0.0
        %8028 = vmatpush1.msra.mxu0 0.0
        %8029 = vmatprep.subr.mxu0 0.0
        %8030 = vmatpush1.msra.mxu0 0.0
        %8031 = vmatprep.subr.mxu0 0.0
        %8032 = vmatpush1.msra.mxu0 0.0
        %8033 = vmatprep.subr.mxu0 0.0
        %8034 = vmatpush1.msra.mxu0 0.0
        %8035 = vmatprep.subr.mxu0 0.0
        %8036 = vmatpush1.msra.mxu0 0.0
        %8037 = vmatprep.subr.mxu0 0.0
        %8038 = vmatpush1.msra.mxu0 0.0
        %8039 = vmatprep.subr.mxu0 0.0
        %8040 = vmatpush1.msra.mxu0 0.0
        %8041 = vmatprep.subr.mxu0 0.0
        %8042 = vmatpush1.msra.mxu0 0.0
        %8043 = vmatprep.subr.mxu0 0.0
        %8044 = vmatpush1.msra.mxu0 0.0
        %8045 = vmatprep.subr.mxu0 0.0
        %8046 = vmatpush1.msra.mxu0 0.0
        %8047 = vmatprep.mubr.f32.mxu0 0.0
        %v8048 = vand.u32 %v7678, 4294901760
        %8049 = vmatmul.mubr.f32.gmra.mrb[0].mxu0 %v8048
        %v8050 = vpop.f32.mrb[0].mxu0
        %v8051 = vadd.f32 %v7977, %v8050
        %v8052 = vpop.f32.mrb[0].mxu0
        %8053 = vdwg.mxu0
        %8054 = vmatprep.subr.mxu0 0.0
        %v8055 = vand.u32 %v7675, 4294901760
        %8056 = vmatpush1.msra.mxu0 %v8055
        %8057 = vmatprep.subr.mxu0 0.0
        %8058 = vmatpush1.msra.mxu0 0.0
        %8059 = vmatprep.subr.mxu0 0.0
        %8060 = vmatpush1.msra.mxu0 0.0
        %8061 = vmatprep.subr.mxu0 0.0
        %8062 = vmatpush1.msra.mxu0 0.0
        %8063 = vmatprep.subr.mxu0 0.0
        %8064 = vmatpush1.msra.mxu0 0.0
        %8065 = vmatprep.subr.mxu0 0.0
        %8066 = vmatpush1.msra.mxu0 0.0
        %8067 = vmatprep.subr.mxu0 0.0
        %8068 = vmatpush1.msra.mxu0 0.0
        %8069 = vmatprep.subr.mxu0 0.0
        %8070 = vmatpush1.msra.mxu0 0.0
        %8071 = vmatprep.subr.mxu0 0.0
        %8072 = vmatpush1.msra.mxu0 0.0
        %8073 = vmatprep.subr.mxu0 0.0
        %8074 = vmatpush1.msra.mxu0 0.0
        %8075 = vmatprep.subr.mxu0 0.0
        %8076 = vmatpush1.msra.mxu0 0.0
        %8077 = vmatprep.subr.mxu0 0.0
        %8078 = vmatpush1.msra.mxu0 0.0
        %8079 = vmatprep.subr.mxu0 0.0
        %8080 = vmatpush1.msra.mxu0 0.0
        %8081 = vmatprep.subr.mxu0 0.0
        %8082 = vmatpush1.msra.mxu0 0.0
        %8083 = vmatprep.subr.mxu0 0.0
        %8084 = vmatpush1.msra.mxu0 0.0
        %8085 = vmatprep.subr.mxu0 0.0
        %8086 = vmatpush1.msra.mxu0 0.0
        %8087 = vmatprep.subr.mxu0 0.0
        %8088 = vmatpush1.msra.mxu0 0.0
        %8089 = vmatprep.subr.mxu0 0.0
        %8090 = vmatpush1.msra.mxu0 0.0
        %8091 = vmatprep.subr.mxu0 0.0
        %8092 = vmatpush1.msra.mxu0 0.0
        %8093 = vmatprep.subr.mxu0 0.0
        %8094 = vmatpush1.msra.mxu0 0.0
        %8095 = vmatprep.subr.mxu0 0.0
        %8096 = vmatpush1.msra.mxu0 0.0
        %8097 = vmatprep.subr.mxu0 0.0
        %8098 = vmatpush1.msra.mxu0 0.0
        %8099 = vmatprep.subr.mxu0 0.0
        %8100 = vmatpush1.msra.mxu0 0.0
        %8101 = vmatprep.subr.mxu0 0.0
        %8102 = vmatpush1.msra.mxu0 0.0
        %8103 = vmatprep.subr.mxu0 0.0
        %8104 = vmatpush1.msra.mxu0 0.0
        %8105 = vmatprep.subr.mxu0 0.0
        %8106 = vmatpush1.msra.mxu0 0.0
        %8107 = vmatprep.subr.mxu0 0.0
        %8108 = vmatpush1.msra.mxu0 0.0
        %8109 = vmatprep.subr.mxu0 0.0
        %8110 = vmatpush1.msra.mxu0 0.0
        %8111 = vmatprep.subr.mxu0 0.0
        %8112 = vmatpush1.msra.mxu0 0.0
        %8113 = vmatprep.subr.mxu0 0.0
        %8114 = vmatpush1.msra.mxu0 0.0
        %8115 = vmatprep.subr.mxu0 0.0
        %8116 = vmatpush1.msra.mxu0 0.0
        %8117 = vmatprep.subr.mxu0 0.0
        %8118 = vmatpush1.msra.mxu0 0.0
        %8119 = vmatprep.mubr.f32.mxu0 0.0
        %v8120 = vand.u32 %v7678, 4294901760
        %8121 = vmatmul.mubr.f32.gmra.mrb[0].mxu0 %v8120
        %v8122 = vpop.f32.mrb[0].mxu0
        %v8123 = vadd.f32 %v8051, %v8122
        %v8124 = vpop.f32.mrb[0].mxu0
        %8125 = vdwg.mxu0
        %8127 = vrot.lane.b32.xlu0 %v2609, 4
        %v8128 = vpop.permute.xlu0 %8127
        %8131 = vrot.lane.b32.xlu0 %v3528, 8
        %v8132 = vpop.permute.xlu0 %8131
        %8135 = vrot.lane.b32.xlu0 %v4447, 12
        %v8136 = vpop.permute.xlu0 %8135
        %8139 = vrot.lane.b32.xlu0 %v5366, 16
        %v8140 = vpop.permute.xlu0 %8139
        %8143 = vrot.lane.b32.xlu0 %v6285, 20
        %v8144 = vpop.permute.xlu0 %8143
        %8147 = vrot.lane.b32.xlu0 %v7204, 24
        %v8148 = vpop.permute.xlu0 %8147
        %8151 = vrot.lane.b32.xlu0 %v8123, 28
        %v8152 = vpop.permute.xlu0 %8151
        %v8154 = vsel %vm777, %v1690, %v8128
        %v8155 = vsel %vm1228, %v8154, %v8132
        %vm8156 = vcmask 97280
        %v8157 = vsel %vm8156, %v8155, %v8136
        %vm8158 = vcmask 130048
        %v8159 = vsel %vm8158, %v8157, %v8140
        %vm8160 = vcmask 162816
        %v8161 = vsel %vm8160, %v8159, %v8144
        %vm8162 = vcmask 195584
        %v8163 = vsel %vm8162, %v8161, %v8148
        %vm8164 = vcmask 228352
        %v8165 = vsel %vm8164, %v8163, %v8152
        %v8166 = vld [vmem:[#allocation7] sm:$0xff]
        %v8167 = vld [vmem:[#allocation7 + $0x8] sm:$0xff]
        %v8168 = vld [vmem:[#allocation7 + $0x10] sm:$0xff]
        %v8169 = vld [vmem:[#allocation7 + $0x18] sm:$0xff]
        %v8170 = vld [vmem:[%s3] sm:$0x1]
        %v8172 = vlaneseq
        %v8173 = vshrl.u32 %v8172, 7
        %v8174 = vsub.s32 0, %v8173
        %v8175 = vrot.slane %v8170, %v8174
        %v8178 = vsel %vm285, %v8165, 0
        %8180 = vmatprep.subr.mxu0 0.0
        %v8181 = vand.u32 %v8166, 4294901760
        %8182 = vmatpush1.msra.mxu0 %v8181
        %8183 = vmatprep.subr.mxu0 0.0
        %v8184 = vand.u32 %v8167, 4294901760
        %8185 = vmatpush1.msra.mxu0 %v8184
        %8186 = vmatprep.subr.mxu0 0.0
        %v8187 = vand.u32 %v8168, 4294901760
        %8188 = vmatpush1.msra.mxu0 %v8187
        %8189 = vmatprep.subr.mxu0 0.0
        %v8190 = vand.u32 %v8169, 4294901760
        %8191 = vmatpush1.msra.mxu0 %v8190
        %8192 = vmatprep.subr.mxu0 0.0
        %8193 = vmatpush1.msra.mxu0 0.0
        %8194 = vmatprep.subr.mxu0 0.0
        %8195 = vmatpush1.msra.mxu0 0.0
        %8196 = vmatprep.subr.mxu0 0.0
        %8197 = vmatpush1.msra.mxu0 0.0
        %8198 = vmatprep.subr.mxu0 0.0
        %8199 = vmatpush1.msra.mxu0 0.0
        %8200 = vmatprep.subr.mxu0 0.0
        %8201 = vmatpush1.msra.mxu0 0.0
        %8202 = vmatprep.subr.mxu0 0.0
        %8203 = vmatpush1.msra.mxu0 0.0
        %8204 = vmatprep.subr.mxu0 0.0
        %8205 = vmatpush1.msra.mxu0 0.0
        %8206 = vmatprep.subr.mxu0 0.0
        %8207 = vmatpush1.msra.mxu0 0.0
        %8208 = vmatprep.subr.mxu0 0.0
        %8209 = vmatpush1.msra.mxu0 0.0
        %8210 = vmatprep.subr.mxu0 0.0
        %8211 = vmatpush1.msra.mxu0 0.0
        %8212 = vmatprep.subr.mxu0 0.0
        %8213 = vmatpush1.msra.mxu0 0.0
        %8214 = vmatprep.subr.mxu0 0.0
        %8215 = vmatpush1.msra.mxu0 0.0
        %8216 = vmatprep.subr.mxu0 0.0
        %8217 = vmatpush1.msra.mxu0 0.0
        %8218 = vmatprep.subr.mxu0 0.0
        %8219 = vmatpush1.msra.mxu0 0.0
        %8220 = vmatprep.subr.mxu0 0.0
        %8221 = vmatpush1.msra.mxu0 0.0
        %8222 = vmatprep.subr.mxu0 0.0
        %8223 = vmatpush1.msra.mxu0 0.0
        %8224 = vmatprep.subr.mxu0 0.0
        %8225 = vmatpush1.msra.mxu0 0.0
        %8226 = vmatprep.subr.mxu0 0.0
        %8227 = vmatpush1.msra.mxu0 0.0
        %8228 = vmatprep.subr.mxu0 0.0
        %8229 = vmatpush1.msra.mxu0 0.0
        %8230 = vmatprep.subr.mxu0 0.0
        %8231 = vmatpush1.msra.mxu0 0.0
        %8232 = vmatprep.subr.mxu0 0.0
        %8233 = vmatpush1.msra.mxu0 0.0
        %8234 = vmatprep.subr.mxu0 0.0
        %8235 = vmatpush1.msra.mxu0 0.0
        %8236 = vmatprep.subr.mxu0 0.0
        %8237 = vmatpush1.msra.mxu0 0.0
        %8238 = vmatprep.subr.mxu0 0.0
        %8239 = vmatpush1.msra.mxu0 0.0
        %8240 = vmatprep.subr.mxu0 0.0
        %8241 = vmatpush1.msra.mxu0 0.0
        %8242 = vmatprep.subr.mxu0 0.0
        %8243 = vmatpush1.msra.mxu0 0.0
        %8244 = vmatprep.subr.mxu0 0.0
        %8245 = vmatpush1.msra.mxu0 0.0
        %8246 = vmatprep.subr.mxu0 0.0
        %8247 = vmatpush1.msra.mxu0 0.0
        %8248 = vmatprep.mubr.f32.mxu0 0.0
        %v8249 = vand.u32 %v8178, 4294901760
        %v8250 = vsub.f32 %v8178, %v8249
        %v8251 = vand.u32 %v8250, 4294901760
        %v8252 = vsub.f32 %v8250, %v8251
        %v8253 = vand.u32 %v8252, 4294901760
        %8254 = vmatmul.mubr.f32.gmra.mrb[0].mxu0 %v8253
        %v8255 = vpop.f32.mrb[0].mxu0
        %v8256 = vadd.f32 %v8175, %v8255
        %v8257 = vpop.f32.mrb[0].mxu0
        %8258 = vdwg.mxu0
        %8259 = vmatprep.subr.mxu0 0.0
        %v8260 = vand.u32 %v8166, 4294901760
        %v8261 = vsub.f32 %v8166, %v8260
        %v8262 = vand.u32 %v8261, 4294901760
        %v8263 = vsub.f32 %v8261, %v8262
        %v8264 = vand.u32 %v8263, 4294901760
        %8265 = vmatpush1.msra.mxu0 %v8264
        %8266 = vmatprep.subr.mxu0 0.0
        %v8267 = vand.u32 %v8167, 4294901760
        %v8268 = vsub.f32 %v8167, %v8267
        %v8269 = vand.u32 %v8268, 4294901760
        %v8270 = vsub.f32 %v8268, %v8269
        %v8271 = vand.u32 %v8270, 4294901760
        %8272 = vmatpush1.msra.mxu0 %v8271
        %8273 = vmatprep.subr.mxu0 0.0
        %v8274 = vand.u32 %v8168, 4294901760
        %v8275 = vsub.f32 %v8168, %v8274
        %v8276 = vand.u32 %v8275, 4294901760
        %v8277 = vsub.f32 %v8275, %v8276
        %v8278 = vand.u32 %v8277, 4294901760
        %8279 = vmatpush1.msra.mxu0 %v8278
        %8280 = vmatprep.subr.mxu0 0.0
        %v8281 = vand.u32 %v8169, 4294901760
        %v8282 = vsub.f32 %v8169, %v8281
        %v8283 = vand.u32 %v8282, 4294901760
        %v8284 = vsub.f32 %v8282, %v8283
        %v8285 = vand.u32 %v8284, 4294901760
        %8286 = vmatpush1.msra.mxu0 %v8285
        %8287 = vmatprep.subr.mxu0 0.0
        %8288 = vmatpush1.msra.mxu0 0.0
        %8289 = vmatprep.subr.mxu0 0.0
        %8290 = vmatpush1.msra.mxu0 0.0
        %8291 = vmatprep.subr.mxu0 0.0
        %8292 = vmatpush1.msra.mxu0 0.0
        %8293 = vmatprep.subr.mxu0 0.0
        %8294 = vmatpush1.msra.mxu0 0.0
        %8295 = vmatprep.subr.mxu0 0.0
        %8296 = vmatpush1.msra.mxu0 0.0
        %8297 = vmatprep.subr.mxu0 0.0
        %8298 = vmatpush1.msra.mxu0 0.0
        %8299 = vmatprep.subr.mxu0 0.0
        %8300 = vmatpush1.msra.mxu0 0.0
        %8301 = vmatprep.subr.mxu0 0.0
        %8302 = vmatpush1.msra.mxu0 0.0
        %8303 = vmatprep.subr.mxu0 0.0
        %8304 = vmatpush1.msra.mxu0 0.0
        %8305 = vmatprep.subr.mxu0 0.0
        %8306 = vmatpush1.msra.mxu0 0.0
        %8307 = vmatprep.subr.mxu0 0.0
        %8308 = vmatpush1.msra.mxu0 0.0
        %8309 = vmatprep.subr.mxu0 0.0
        %8310 = vmatpush1.msra.mxu0 0.0
        %8311 = vmatprep.subr.mxu0 0.0
        %8312 = vmatpush1.msra.mxu0 0.0
        %8313 = vmatprep.subr.mxu0 0.0
        %8314 = vmatpush1.msra.mxu0 0.0
        %8315 = vmatprep.subr.mxu0 0.0
        %8316 = vmatpush1.msra.mxu0 0.0
        %8317 = vmatprep.subr.mxu0 0.0
        %8318 = vmatpush1.msra.mxu0 0.0
        %8319 = vmatprep.subr.mxu0 0.0
        %8320 = vmatpush1.msra.mxu0 0.0
        %8321 = vmatprep.subr.mxu0 0.0
        %8322 = vmatpush1.msra.mxu0 0.0
        %8323 = vmatprep.subr.mxu0 0.0
        %8324 = vmatpush1.msra.mxu0 0.0
        %8325 = vmatprep.subr.mxu0 0.0
        %8326 = vmatpush1.msra.mxu0 0.0
        %8327 = vmatprep.subr.mxu0 0.0
        %8328 = vmatpush1.msra.mxu0 0.0
        %8329 = vmatprep.subr.mxu0 0.0
        %8330 = vmatpush1.msra.mxu0 0.0
        %8331 = vmatprep.subr.mxu0 0.0
        %8332 = vmatpush1.msra.mxu0 0.0
        %8333 = vmatprep.subr.mxu0 0.0
        %8334 = vmatpush1.msra.mxu0 0.0
        %8335 = vmatprep.subr.mxu0 0.0
        %8336 = vmatpush1.msra.mxu0 0.0
        %8337 = vmatprep.subr.mxu0 0.0
        %8338 = vmatpush1.msra.mxu0 0.0
        %8339 = vmatprep.subr.mxu0 0.0
        %8340 = vmatpush1.msra.mxu0 0.0
        %8341 = vmatprep.subr.mxu0 0.0
        %8342 = vmatpush1.msra.mxu0 0.0
        %8343 = vmatprep.mubr.f32.mxu0 0.0
        %v8344 = vand.u32 %v8178, 4294901760
        %8345 = vmatmul.mubr.f32.gmra.mrb[0].mxu0 %v8344
        %v8346 = vpop.f32.mrb[0].mxu0
        %v8347 = vadd.f32 %v8256, %v8346
        %v8348 = vpop.f32.mrb[0].mxu0
        %8349 = vdwg.mxu0
        %8350 = vmatprep.subr.mxu0 0.0
        %v8351 = vand.u32 %v8166, 4294901760
        %v8352 = vsub.f32 %v8166, %v8351
        %8353 = vmatpush1.msra.mxu0 %v8352
        %8354 = vmatprep.subr.mxu0 0.0
        %v8355 = vand.u32 %v8167, 4294901760
        %v8356 = vsub.f32 %v8167, %v8355
        %8357 = vmatpush1.msra.mxu0 %v8356
        %8358 = vmatprep.subr.mxu0 0.0
        %v8359 = vand.u32 %v8168, 4294901760
        %v8360 = vsub.f32 %v8168, %v8359
        %8361 = vmatpush1.msra.mxu0 %v8360
        %8362 = vmatprep.subr.mxu0 0.0
        %v8363 = vand.u32 %v8169, 4294901760
        %v8364 = vsub.f32 %v8169, %v8363
        %8365 = vmatpush1.msra.mxu0 %v8364
        %8366 = vmatprep.subr.mxu0 0.0
        %8367 = vmatpush1.msra.mxu0 0.0
        %8368 = vmatprep.subr.mxu0 0.0
        %8369 = vmatpush1.msra.mxu0 0.0
        %8370 = vmatprep.subr.mxu0 0.0
        %8371 = vmatpush1.msra.mxu0 0.0
        %8372 = vmatprep.subr.mxu0 0.0
        %8373 = vmatpush1.msra.mxu0 0.0
        %8374 = vmatprep.subr.mxu0 0.0
        %8375 = vmatpush1.msra.mxu0 0.0
        %8376 = vmatprep.subr.mxu0 0.0
        %8377 = vmatpush1.msra.mxu0 0.0
        %8378 = vmatprep.subr.mxu0 0.0
        %8379 = vmatpush1.msra.mxu0 0.0
        %8380 = vmatprep.subr.mxu0 0.0
        %8381 = vmatpush1.msra.mxu0 0.0
        %8382 = vmatprep.subr.mxu0 0.0
        %8383 = vmatpush1.msra.mxu0 0.0
        %8384 = vmatprep.subr.mxu0 0.0
        %8385 = vmatpush1.msra.mxu0 0.0
        %8386 = vmatprep.subr.mxu0 0.0
        %8387 = vmatpush1.msra.mxu0 0.0
        %8388 = vmatprep.subr.mxu0 0.0
        %8389 = vmatpush1.msra.mxu0 0.0
        %8390 = vmatprep.subr.mxu0 0.0
        %8391 = vmatpush1.msra.mxu0 0.0
        %8392 = vmatprep.subr.mxu0 0.0
        %8393 = vmatpush1.msra.mxu0 0.0
        %8394 = vmatprep.subr.mxu0 0.0
        %8395 = vmatpush1.msra.mxu0 0.0
        %8396 = vmatprep.subr.mxu0 0.0
        %8397 = vmatpush1.msra.mxu0 0.0
        %8398 = vmatprep.subr.mxu0 0.0
        %8399 = vmatpush1.msra.mxu0 0.0
        %8400 = vmatprep.subr.mxu0 0.0
        %8401 = vmatpush1.msra.mxu0 0.0
        %8402 = vmatprep.subr.mxu0 0.0
        %8403 = vmatpush1.msra.mxu0 0.0
        %8404 = vmatprep.subr.mxu0 0.0
        %8405 = vmatpush1.msra.mxu0 0.0
        %8406 = vmatprep.subr.mxu0 0.0
        %8407 = vmatpush1.msra.mxu0 0.0
        %8408 = vmatprep.subr.mxu0 0.0
        %8409 = vmatpush1.msra.mxu0 0.0
        %8410 = vmatprep.subr.mxu0 0.0
        %8411 = vmatpush1.msra.mxu0 0.0
        %8412 = vmatprep.subr.mxu0 0.0
        %8413 = vmatpush1.msra.mxu0 0.0
        %8414 = vmatprep.subr.mxu0 0.0
        %8415 = vmatpush1.msra.mxu0 0.0
        %8416 = vmatprep.subr.mxu0 0.0
        %8417 = vmatpush1.msra.mxu0 0.0
        %8418 = vmatprep.subr.mxu0 0.0
        %8419 = vmatpush1.msra.mxu0 0.0
        %8420 = vmatprep.subr.mxu0 0.0
        %8421 = vmatpush1.msra.mxu0 0.0
        %8422 = vmatprep.mubr.f32.mxu0 0.0
        %v8423 = vand.u32 %v8178, 4294901760
        %v8424 = vsub.f32 %v8178, %v8423
        %8425 = vmatmul.mubr.f32.gmra.mrb[0].mxu0 %v8424
        %v8426 = vpop.f32.mrb[0].mxu0
        %v8427 = vadd.f32 %v8347, %v8426
        %v8428 = vpop.f32.mrb[0].mxu0
        %8429 = vdwg.mxu0
        %8430 = vmatprep.subr.mxu0 0.0
        %v8431 = vand.u32 %v8166, 4294901760
        %8432 = vmatpush1.msra.mxu0 %v8431
        %8433 = vmatprep.subr.mxu0 0.0
        %v8434 = vand.u32 %v8167, 4294901760
        %8435 = vmatpush1.msra.mxu0 %v8434
        %8436 = vmatprep.subr.mxu0 0.0
        %v8437 = vand.u32 %v8168, 4294901760
        %8438 = vmatpush1.msra.mxu0 %v8437
        %8439 = vmatprep.subr.mxu0 0.0
        %v8440 = vand.u32 %v8169, 4294901760
        %8441 = vmatpush1.msra.mxu0 %v8440
        %8442 = vmatprep.subr.mxu0 0.0
        %8443 = vmatpush1.msra.mxu0 0.0
        %8444 = vmatprep.subr.mxu0 0.0
        %8445 = vmatpush1.msra.mxu0 0.0
        %8446 = vmatprep.subr.mxu0 0.0
        %8447 = vmatpush1.msra.mxu0 0.0
        %8448 = vmatprep.subr.mxu0 0.0
        %8449 = vmatpush1.msra.mxu0 0.0
        %8450 = vmatprep.subr.mxu0 0.0
        %8451 = vmatpush1.msra.mxu0 0.0
        %8452 = vmatprep.subr.mxu0 0.0
        %8453 = vmatpush1.msra.mxu0 0.0
        %8454 = vmatprep.subr.mxu0 0.0
        %8455 = vmatpush1.msra.mxu0 0.0
        %8456 = vmatprep.subr.mxu0 0.0
        %8457 = vmatpush1.msra.mxu0 0.0
        %8458 = vmatprep.subr.mxu0 0.0
        %8459 = vmatpush1.msra.mxu0 0.0
        %8460 = vmatprep.subr.mxu0 0.0
        %8461 = vmatpush1.msra.mxu0 0.0
        %8462 = vmatprep.subr.mxu0 0.0
        %8463 = vmatpush1.msra.mxu0 0.0
        %8464 = vmatprep.subr.mxu0 0.0
        %8465 = vmatpush1.msra.mxu0 0.0
        %8466 = vmatprep.subr.mxu0 0.0
        %8467 = vmatpush1.msra.mxu0 0.0
        %8468 = vmatprep.subr.mxu0 0.0
        %8469 = vmatpush1.msra.mxu0 0.0
        %8470 = vmatprep.subr.mxu0 0.0
        %8471 = vmatpush1.msra.mxu0 0.0
        %8472 = vmatprep.subr.mxu0 0.0
        %8473 = vmatpush1.msra.mxu0 0.0
        %8474 = vmatprep.subr.mxu0 0.0
        %8475 = vmatpush1.msra.mxu0 0.0
        %8476 = vmatprep.subr.mxu0 0.0
        %8477 = vmatpush1.msra.mxu0 0.0
        %8478 = vmatprep.subr.mxu0 0.0
        %8479 = vmatpush1.msra.mxu0 0.0
        %8480 = vmatprep.subr.mxu0 0.0
        %8481 = vmatpush1.msra.mxu0 0.0
        %8482 = vmatprep.subr.mxu0 0.0
        %8483 = vmatpush1.msra.mxu0 0.0
        %8484 = vmatprep.subr.mxu0 0.0
        %8485 = vmatpush1.msra.mxu0 0.0
        %8486 = vmatprep.subr.mxu0 0.0
        %8487 = vmatpush1.msra.mxu0 0.0
        %8488 = vmatprep.subr.mxu0 0.0
        %8489 = vmatpush1.msra.mxu0 0.0
        %8490 = vmatprep.subr.mxu0 0.0
        %8491 = vmatpush1.msra.mxu0 0.0
        %8492 = vmatprep.subr.mxu0 0.0
        %8493 = vmatpush1.msra.mxu0 0.0
        %8494 = vmatprep.subr.mxu0 0.0
        %8495 = vmatpush1.msra.mxu0 0.0
        %8496 = vmatprep.subr.mxu0 0.0
        %8497 = vmatpush1.msra.mxu0 0.0
        %8498 = vmatprep.mubr.f32.mxu0 0.0
        %v8499 = vand.u32 %v8178, 4294901760
        %v8500 = vsub.f32 %v8178, %v8499
        %v8501 = vand.u32 %v8500, 4294901760
        %8502 = vmatmul.mubr.f32.gmra.mrb[0].mxu0 %v8501
        %v8503 = vpop.f32.mrb[0].mxu0
        %v8504 = vadd.f32 %v8427, %v8503
        %v8505 = vpop.f32.mrb[0].mxu0
        %8506 = vdwg.mxu0
        %8507 = vmatprep.subr.mxu0 0.0
        %v8508 = vand.u32 %v8166, 4294901760
        %v8509 = vsub.f32 %v8166, %v8508
        %v8510 = vand.u32 %v8509, 4294901760
        %8511 = vmatpush1.msra.mxu0 %v8510
        %8512 = vmatprep.subr.mxu0 0.0
        %v8513 = vand.u32 %v8167, 4294901760
        %v8514 = vsub.f32 %v8167, %v8513
        %v8515 = vand.u32 %v8514, 4294901760
        %8516 = vmatpush1.msra.mxu0 %v8515
        %8517 = vmatprep.subr.mxu0 0.0
        %v8518 = vand.u32 %v8168, 4294901760
        %v8519 = vsub.f32 %v8168, %v8518
        %v8520 = vand.u32 %v8519, 4294901760
        %8521 = vmatpush1.msra.mxu0 %v8520
        %8522 = vmatprep.subr.mxu0 0.0
        %v8523 = vand.u32 %v8169, 4294901760
        %v8524 = vsub.f32 %v8169, %v8523
        %v8525 = vand.u32 %v8524, 4294901760
        %8526 = vmatpush1.msra.mxu0 %v8525
        %8527 = vmatprep.subr.mxu0 0.0
        %8528 = vmatpush1.msra.mxu0 0.0
        %8529 = vmatprep.subr.mxu0 0.0
        %8530 = vmatpush1.msra.mxu0 0.0
        %8531 = vmatprep.subr.mxu0 0.0
        %8532 = vmatpush1.msra.mxu0 0.0
        %8533 = vmatprep.subr.mxu0 0.0
        %8534 = vmatpush1.msra.mxu0 0.0
        %8535 = vmatprep.subr.mxu0 0.0
        %8536 = vmatpush1.msra.mxu0 0.0
        %8537 = vmatprep.subr.mxu0 0.0
        %8538 = vmatpush1.msra.mxu0 0.0
        %8539 = vmatprep.subr.mxu0 0.0
        %8540 = vmatpush1.msra.mxu0 0.0
        %8541 = vmatprep.subr.mxu0 0.0
        %8542 = vmatpush1.msra.mxu0 0.0
        %8543 = vmatprep.subr.mxu0 0.0
        %8544 = vmatpush1.msra.mxu0 0.0
        %8545 = vmatprep.subr.mxu0 0.0
        %8546 = vmatpush1.msra.mxu0 0.0
        %8547 = vmatprep.subr.mxu0 0.0
        %8548 = vmatpush1.msra.mxu0 0.0
        %8549 = vmatprep.subr.mxu0 0.0
        %8550 = vmatpush1.msra.mxu0 0.0
        %8551 = vmatprep.subr.mxu0 0.0
        %8552 = vmatpush1.msra.mxu0 0.0
        %8553 = vmatprep.subr.mxu0 0.0
        %8554 = vmatpush1.msra.mxu0 0.0
        %8555 = vmatprep.subr.mxu0 0.0
        %8556 = vmatpush1.msra.mxu0 0.0
        %8557 = vmatprep.subr.mxu0 0.0
        %8558 = vmatpush1.msra.mxu0 0.0
        %8559 = vmatprep.subr.mxu0 0.0
        %8560 = vmatpush1.msra.mxu0 0.0
        %8561 = vmatprep.subr.mxu0 0.0
        %8562 = vmatpush1.msra.mxu0 0.0
        %8563 = vmatprep.subr.mxu0 0.0
        %8564 = vmatpush1.msra.mxu0 0.0
        %8565 = vmatprep.subr.mxu0 0.0
        %8566 = vmatpush1.msra.mxu0 0.0
        %8567 = vmatprep.subr.mxu0 0.0
        %8568 = vmatpush1.msra.mxu0 0.0
        %8569 = vmatprep.subr.mxu0 0.0
        %8570 = vmatpush1.msra.mxu0 0.0
        %8571 = vmatprep.subr.mxu0 0.0
        %8572 = vmatpush1.msra.mxu0 0.0
        %8573 = vmatprep.subr.mxu0 0.0
        %8574 = vmatpush1.msra.mxu0 0.0
        %8575 = vmatprep.subr.mxu0 0.0
        %8576 = vmatpush1.msra.mxu0 0.0
        %8577 = vmatprep.subr.mxu0 0.0
        %8578 = vmatpush1.msra.mxu0 0.0
        %8579 = vmatprep.subr.mxu0 0.0
        %8580 = vmatpush1.msra.mxu0 0.0
        %8581 = vmatprep.subr.mxu0 0.0
        %8582 = vmatpush1.msra.mxu0 0.0
        %8583 = vmatprep.mubr.f32.mxu0 0.0
        %v8584 = vand.u32 %v8178, 4294901760
        %8585 = vmatmul.mubr.f32.gmra.mrb[0].mxu0 %v8584
        %v8586 = vpop.f32.mrb[0].mxu0
        %v8587 = vadd.f32 %v8504, %v8586
        %v8588 = vpop.f32.mrb[0].mxu0
        %8589 = vdwg.mxu0
        %8590 = vmatprep.subr.mxu0 0.0
        %v8591 = vand.u32 %v8166, 4294901760
        %8592 = vmatpush1.msra.mxu0 %v8591
        %8593 = vmatprep.subr.mxu0 0.0
        %v8594 = vand.u32 %v8167, 4294901760
        %8595 = vmatpush1.msra.mxu0 %v8594
        %8596 = vmatprep.subr.mxu0 0.0
        %v8597 = vand.u32 %v8168, 4294901760
        %8598 = vmatpush1.msra.mxu0 %v8597
        %8599 = vmatprep.subr.mxu0 0.0
        %v8600 = vand.u32 %v8169, 4294901760
        %8601 = vmatpush1.msra.mxu0 %v8600
        %8602 = vmatprep.subr.mxu0 0.0
        %8603 = vmatpush1.msra.mxu0 0.0
        %8604 = vmatprep.subr.mxu0 0.0
        %8605 = vmatpush1.msra.mxu0 0.0
        %8606 = vmatprep.subr.mxu0 0.0
        %8607 = vmatpush1.msra.mxu0 0.0
        %8608 = vmatprep.subr.mxu0 0.0
        %8609 = vmatpush1.msra.mxu0 0.0
        %8610 = vmatprep.subr.mxu0 0.0
        %8611 = vmatpush1.msra.mxu0 0.0
        %8612 = vmatprep.subr.mxu0 0.0
        %8613 = vmatpush1.msra.mxu0 0.0
        %8614 = vmatprep.subr.mxu0 0.0
        %8615 = vmatpush1.msra.mxu0 0.0
        %8616 = vmatprep.subr.mxu0 0.0
        %8617 = vmatpush1.msra.mxu0 0.0
        %8618 = vmatprep.subr.mxu0 0.0
        %8619 = vmatpush1.msra.mxu0 0.0
        %8620 = vmatprep.subr.mxu0 0.0
        %8621 = vmatpush1.msra.mxu0 0.0
        %8622 = vmatprep.subr.mxu0 0.0
        %8623 = vmatpush1.msra.mxu0 0.0
        %8624 = vmatprep.subr.mxu0 0.0
        %8625 = vmatpush1.msra.mxu0 0.0
        %8626 = vmatprep.subr.mxu0 0.0
        %8627 = vmatpush1.msra.mxu0 0.0
        %8628 = vmatprep.subr.mxu0 0.0
        %8629 = vmatpush1.msra.mxu0 0.0
        %8630 = vmatprep.subr.mxu0 0.0
        %8631 = vmatpush1.msra.mxu0 0.0
        %8632 = vmatprep.subr.mxu0 0.0
        %8633 = vmatpush1.msra.mxu0 0.0
        %8634 = vmatprep.subr.mxu0 0.0
        %8635 = vmatpush1.msra.mxu0 0.0
        %8636 = vmatprep.subr.mxu0 0.0
        %8637 = vmatpush1.msra.mxu0 0.0
        %8638 = vmatprep.subr.mxu0 0.0
        %8639 = vmatpush1.msra.mxu0 0.0
        %8640 = vmatprep.subr.mxu0 0.0
        %8641 = vmatpush1.msra.mxu0 0.0
        %8642 = vmatprep.subr.mxu0 0.0
        %8643 = vmatpush1.msra.mxu0 0.0
        %8644 = vmatprep.subr.mxu0 0.0
        %8645 = vmatpush1.msra.mxu0 0.0
        %8646 = vmatprep.subr.mxu0 0.0
        %8647 = vmatpush1.msra.mxu0 0.0
        %8648 = vmatprep.subr.mxu0 0.0
        %8649 = vmatpush1.msra.mxu0 0.0
        %8650 = vmatprep.subr.mxu0 0.0
        %8651 = vmatpush1.msra.mxu0 0.0
        %8652 = vmatprep.subr.mxu0 0.0
        %8653 = vmatpush1.msra.mxu0 0.0
        %8654 = vmatprep.subr.mxu0 0.0
        %8655 = vmatpush1.msra.mxu0 0.0
        %8656 = vmatprep.subr.mxu0 0.0
        %8657 = vmatpush1.msra.mxu0 0.0
        %8658 = vmatprep.mubr.f32.mxu0 0.0
        %v8659 = vand.u32 %v8178, 4294901760
        %8660 = vmatmul.mubr.f32.gmra.mrb[0].mxu0 %v8659
        %v8661 = vpop.f32.mrb[0].mxu0
        %v8662 = vadd.f32 %v8587, %v8661
        %v8663 = vpop.f32.mrb[0].mxu0
        %8664 = vdwg.mxu0
        %8665 = vst.msk [vmem:[%s272] sm:$0xff] %vm285, %v8662
        %s8666 = sand.u32 %s124, 1
        %s8667 = scalar_lea.sflag [#allocation4], %s8666
        %s8668 = sand.u32 %s124, 1
        %s8669 = smul.addr %s8668, 8
        %s8670 = scalar_lea.vmem [#allocation8], %s8669
        %s8671 = sand.u32 %s150, 1
        %s8672 = scalar_lea.sflag [#allocation10], %s8671
        %s8673 = sand.u32 %s150, 1
        %s8674 = smul.addr %s8673, 64
        %s8675 = scalar_lea.vmem [#allocation9], %s8674
        // Predicated region
        $region49: #{tpu_custom_call.1} parent=35 // pred_check
          %p8676 = pneg %p134
        $region50: #{tpu_custom_call.1} parent=35 // pred_check_branch
          %8678 = sbr.rel (%p8676) target = $region52
        $region51: #{tpu_custom_call.1} parent=35 // pred_region
          %s8680 = ssub.s32 128, 128
          %8681 = vsyncadd %s8667, %s8680
          %s8682 = smul.addr %s27, 128
          %s8683 = scalar_lea.hbm %s4, %s8682
          %s8685 = sshll.u32 %s8670, 4
          %s8686 = int_to_ptr.vmem [resolvable:$true] %s8685
          %8688 = dma.vmem_to_hbm [thread:$0]  %s8686, 128, %s8683, %s8667
        $region52: #{tpu_custom_call.1} parent=35 // pred_fallthru
          _
        // Predicated region
        $region53: #{tpu_custom_call.1} parent=35 // pred_check
          %p8689 = pneg %p160
        $region54: #{tpu_custom_call.1} parent=35 // pred_check_branch
          %8691 = sbr.rel (%p8689) target = $region56
        $region55: #{tpu_custom_call.1} parent=35 // pred_region
          %s8693 = ssub.s32 1024, 1024
          %8694 = vsyncadd %s8672, %s8693
          %s8695 = smul.addr %s27, 8
          %s8696 = smul.addr %s8695, 128
          %s8697 = scalar_lea.hbm %s5, %s8696
          %s8698 = sshll.u32 %s8675, 4
          %s8699 = int_to_ptr.vmem [resolvable:$true] %s8698
          %8704 = dma.vmem_to_hbm [thread:$0]  %s8699, 1024, %s8697, %s8672, 128, 128, 8
        $region56: #{tpu_custom_call.1} parent=35 // pred_fallthru
          _
      $region36: #{tpu_custom_call.1} parent=5 // pred_fallthru
        _
      %p8705 = scmp.le.s32.totalorder 2, %s22
      // Predicated region
      $region57: #{tpu_custom_call.1} parent=5 // pred_check
        %p8706 = pneg %p8705
      $region58: #{tpu_custom_call.1} parent=5 // pred_check_branch
        %8708 = sbr.rel (%p8706) target = $region60
      $region59: #{tpu_custom_call.1} parent=5 // pred_region
        %s8709 = ssub.s32 %s22, 2
        // Predicated region
        $region61: #{tpu_custom_call.1} parent=59 // pred_check
          %p8710 = pneg %p140
        $region62: #{tpu_custom_call.1} parent=59 // pred_check_branch
          %8712 = sbr.rel (%p8710) target = $region64
        $region63: #{tpu_custom_call.1} parent=59 // pred_region
          %s8713 = sand.u32 %s125, 1
          %s8714 = scalar_lea.sflag [#allocation4], %s8713
          %s8715 = sand.u32 %s125, 1
          %s8716 = smul.addr %s8715, 8
          %s8717 = scalar_lea.vmem [#allocation8], %s8716
          %8718 = dma.done %s8714, 128
        $region64: #{tpu_custom_call.1} parent=59 // pred_fallthru
          _
        // Predicated region
        $region65: #{tpu_custom_call.1} parent=59 // pred_check
          %p8719 = pneg %p166
        $region66: #{tpu_custom_call.1} parent=59 // pred_check_branch
          %8721 = sbr.rel (%p8719) target = $region68
        $region67: #{tpu_custom_call.1} parent=59 // pred_region
          %s8722 = sand.u32 %s151, 1
          %s8723 = scalar_lea.sflag [#allocation10], %s8722
          %s8724 = sand.u32 %s151, 1
          %s8725 = smul.addr %s8724, 64
          %s8726 = scalar_lea.vmem [#allocation9], %s8725
          %8727 = dma.done %s8723, 1024
        $region68: #{tpu_custom_call.1} parent=59 // pred_fallthru
          _
      $region60: #{tpu_custom_call.1} parent=5 // pred_fallthru
        _
    $region6: #{tpu_custom_call.1} parent=1 // loop_footer
      %s26 = sadd.s32 1, %s22
    $region7: #{tpu_custom_call.1} parent=1 // loop_footer_branch
      %21 = sbr.rel target = $region3
    $region8: #{tpu_custom_call.1} parent=1 // loop_exit
      _
    %8728 = vsyncpa [#allocation3], 1
    %s8729 = scalar_lea.sflag [#allocation3], 1
    %8730 = vsyncpa %s8729, 1
    %8731 = vsyncpa [#allocation6], 1
    %8732 = vsyncpa [#allocation4], 1
    %s8733 = scalar_lea.sflag [#allocation4], 1
    %8734 = vsyncpa %s8733, 1
    %8735 = vsyncpa [#allocation10], 1
    %s8736 = scalar_lea.sflag [#allocation10], 1
    %8737 = vsyncpa %s8736, 1

</llo_original>
